<compile_context>
chip_gen: v7x
topology: tpu7x:2x2x1
jax: 0.10.0
libtpu: 0.0.40
codegen_flags: <defaults>
</compile_context>

<pallas_src>
import math
import functools
import types

import numpy as np
import jax
import jax.numpy as jnp
from jax.experimental import pallas as pl
from jax.experimental.pallas import tpu as pltpu


# ------------------------------ in-kernel math -------------------------------

def _layernorm(x, g, b, eps):
    mu = jnp.mean(x, axis=-1, keepdims=True)
    var = jnp.mean(jnp.square(x - mu), axis=-1, keepdims=True)
    return (x - mu) * jax.lax.rsqrt(var + eps) * g + b


def _gelu_erf(x):
    # Exact GELU 0.5*x*(1+erf(x/sqrt(2))); erf via Abramowitz-Stegun 7.1.26
    # polynomial (max abs err ~1.5e-7).  Uses only exp / div / elementwise ops
    # so it lowers cleanly under Mosaic (exp goes to the EUP slot).
    z = x * (1.0 / math.sqrt(2.0))
    a = jnp.abs(z)
    t = 1.0 / (1.0 + 0.3275911 * a)
    poly = t * (0.254829592 + t * (-0.284496736 + t * (1.421413741
             + t * (-1.453152027 + t * 1.061405429))))
    erf_abs = 1.0 - poly * jnp.exp(-a * a)
    erf_z = jnp.where(z < 0.0, -erf_abs, erf_abs)
    return 0.5 * x * (1.0 + erf_z)


# ------------------------------ fused kernel ---------------------------------

def _informer_fused_kernel(x_ref, tw_ref, pos_ref, cnt_ref,
                           wqkv_ref, bqkv_ref, wo_ref, bo_ref,
                           n1g_ref, n1b_ref, w1_ref, b1_ref,
                           w2_ref, b2_ref, n2g_ref, n2b_ref,
                           fng_ref, fnb_ref, w3_ref, b3_ref,
                           o_ref, *, L, H, Dh, E, u_top, scale, eps):
    f32 = jnp.float32
    d = H * Dh

    # ---- loop-invariant (L, L) helpers (tiny VPU work, once per grid step) ----
    row_i = jax.lax.broadcasted_iota(jnp.int32, (L, L), 0)
    col_j = jax.lax.broadcasted_iota(jnp.int32, (L, L), 1)
    eye = jnp.where(row_i == col_j, 1.0, 0.0)
    cnt = cnt_ref[...]                                # sampled-key multiplicities
    smask = jnp.where(cnt > 0.0, 0.0, -1e30)          # additive mask for sampled max

    # ---- DataEmbedding: circular k=3 token conv (3 matmuls + row perms) + pos ---
    x = x_ref[0]                                      # (L, C)
    e_prev = jnp.dot(x, tw_ref[0], preferred_element_type=f32)
    e_cent = jnp.dot(x, tw_ref[1], preferred_element_type=f32)
    e_next = jnp.dot(x, tw_ref[2], preferred_element_type=f32)
    # out[t] = e_prev[t-1] + e_cent[t] + e_next[t+1]  (circular wrap)
    p_prev = jnp.where((col_j == row_i - 1) |
                       ((row_i == 0) & (col_j == L - 1)), 1.0, 0.0)
    p_next = jnp.where((col_j == row_i + 1) |
                       ((row_i == L - 1) & (col_j == 0)), 1.0, 0.0)
    h = (jnp.dot(p_prev, e_prev, preferred_element_type=f32) + e_cent
         + jnp.dot(p_next, e_next, preferred_element_type=f32) + pos_ref[...])
    # embedding dropout: identity (eval mode)

    # ------------------------------ encoder layers ------------------------------
    for li in range(E):
        # fused Q/K/V projection (single matmul); heads are value lane-slices
        qkv = jnp.dot(h, wqkv_ref[li], preferred_element_type=f32) + bqkv_ref[li]
        wo_l = wo_ref[li]                             # (d, d)
        out = jnp.zeros((L, d), f32)
        for hh in range(H):
            c0 = hh * Dh
            q = qkv[:, c0:c0 + Dh]                    # (L, Dh)
            k = qkv[:, d + c0:d + c0 + Dh]
            v = qkv[:, 2 * d + c0:2 * d + c0 + Dh]

            # raw (unscaled) scores, queries x keys
            s_raw = jax.lax.dot_general(q, k, (((1,), (1,)), ((), ())),
                                        preferred_element_type=f32)   # (L, L)

            # ProbSparse measure over the sampled keys:
            #   M[j] = max_s(Q_j.K_sample) - sum_s(Q_j.K_sample)/L_K
            m_max = jnp.max(s_raw + smask, axis=-1, keepdims=True)
            m_sum = jnp.sum(s_raw * cnt, axis=-1, keepdims=True) * (1.0 / L)
            m_col = m_max - m_sum                                     # (L, 1)
            # column -> row orientation via masked cross-sublane reduce (XLU)
            m_row = jnp.sum(eye * m_col, axis=-2, keepdims=True)      # (1, L)
            # stable descending rank == top-u index set (ties -> lower index)
            before = (m_row > m_col) | ((m_row == m_col) & (col_j < row_i))
            rank = jnp.sum(jnp.where(before, 1.0, 0.0), axis=-1, keepdims=True)
            selected = rank < float(u_top)                            # (L, 1)

            # softmax attention; unselected query rows get mean(V), identical to
            # attending only the top-u queries scattered into the V-mean context
            s_sc = s_raw * scale
            mx = jnp.max(s_sc, axis=-1, keepdims=True)
            ex = jnp.exp(s_sc - mx)
            p = ex / jnp.sum(ex, axis=-1, keepdims=True)
            attn = jnp.dot(p, v, preferred_element_type=f32)          # (L, Dh)
            vmean = jnp.sum(v, axis=-2, keepdims=True) * (1.0 / L)    # (1, Dh)
            ctx = jnp.where(selected, attn, vmean)

            # fold the per-head slice of the output projection into the sum
            out = out + jnp.dot(ctx, wo_l[c0:c0 + Dh, :],
                                preferred_element_type=f32)
        out = out + bo_ref[li]

        # residual + LayerNorm1, then FFN (conv1 -> GELU -> conv2) + res + LN2
        z = _layernorm(h + out, n1g_ref[li], n1b_ref[li], eps)
        h1 = jnp.dot(z, w1_ref[li], preferred_element_type=f32) + b1_ref[li]
        h2 = jnp.dot(_gelu_erf(h1), w2_ref[li],
                     preferred_element_type=f32) + b2_ref[li]
        h = _layernorm(z + h2, n2g_ref[li], n2b_ref[li], eps)

    # ---- encoder final LayerNorm, head GELU, flatten-free projection ----
    h = _layernorm(h, fng_ref[...], fnb_ref[...], eps)
    act = _gelu_erf(h)                                # (L, d)
    # logits = act.reshape(1, L*d) @ W  ==  sum_t act[t] @ W[t]
    # (per-row matmuls avoid a sublane->lane relayout reshape)
    logits = b3_ref[...]                              # (1, n_pad), lane-dense
    for t in range(L):
        logits = logits + jnp.dot(act[t:t + 1, :], w3_ref[t],
                                  preferred_element_type=f32)
    o_ref[0] = logits


# ------------------------------ model wrapper --------------------------------

def _full_spec(shape):
    idx = (0,) * len(shape)
    return pl.BlockSpec(shape, lambda b: idx)


def model_forward(params, x_enc, x_mark_enc=None, x_dec=None, x_mark_dec=None,
                  *, cfg):
    """Equivalent of Model.forward -> Model.classification(x_enc).
    x_mark_enc / x_dec / x_mark_dec are unused by the reference classification
    path (the spec's `output = output` line)."""
    B, L, C = x_enc.shape
    d, f, E, H = cfg.d_model, cfg.d_ff, cfg.e_layers, cfg.n_heads
    Dh = d // H
    n_pad = params['proj_w3'].shape[-1]
    u_top = min(cfg.factor * int(np.ceil(np.log(L))), L)
    scale = 1.0 / math.sqrt(Dh)

    kern = functools.partial(_informer_fused_kernel, L=L, H=H, Dh=Dh, E=E,
                             u_top=u_top, scale=scale, eps=1e-5)

    logits_pad = pl.pallas_call(
        kern,
        out_shape=jax.ShapeDtypeStruct((B, 1, n_pad), jnp.float32),
        grid=(B,),
        in_specs=[
            pl.BlockSpec((1, L, C), lambda b: (b, 0, 0)),   # per-batch activation
            _full_spec((3, C, d)),                          # token conv weights
            _full_spec((L, d)),                             # positional embedding
            _full_spec((L, L)),                             # key-sample counts
            _full_spec((E, d, 3 * d)), _full_spec((E, 1, 3 * d)),
            _full_spec((E, d, d)), _full_spec((E, 1, d)),
            _full_spec((E, 1, d)), _full_spec((E, 1, d)),   # LN1 gamma/beta
            _full_spec((E, d, f)), _full_spec((E, 1, f)),
            _full_spec((E, f, d)), _full_spec((E, 1, d)),
            _full_spec((E, 1, d)), _full_spec((E, 1, d)),   # LN2 gamma/beta
            _full_spec((1, d)), _full_spec((1, d)),         # encoder final LN
            _full_spec((L, d, n_pad)), _full_spec((1, n_pad)),  # head (padded)
        ],
        out_specs=pl.BlockSpec((1, 1, n_pad), lambda b: (b, 0, 0)),
        compiler_params=pltpu.CompilerParams(
            dimension_semantics=("parallel",)),             # v7x: shard batch over TCs
    )(x_enc, params['token_w3'], params['pos_emb'], params['sample_cnt'],
      params['wqkv'], params['bqkv'], params['wo'], params['bo'],
      params['n1_g'], params['n1_b'], params['w1'], params['b1'],
      params['w2'], params['b2'], params['n2_g'], params['n2_b'],
      params['enc_norm_g'], params['enc_norm_b'],
      params['proj_w3'], params['proj_b_pad'])

    return logits_pad[:, 0, :cfg.num_class]


# ------------------------------ parameter setup ------------------------------

def positional_embedding(d_model, max_len):
    pe = np.zeros((max_len, d_model), dtype=np.float32)
    position = np.arange(0, max_len, dtype=np.float32)[:, None]
    div_term = np.exp(np.arange(0, d_model, 2, dtype=np.float32)
                      * -(math.log(10000.0) / d_model))
    pe[:, 0::2] = np.sin(position * div_term)
    pe[:, 1::2] = np.cos(position * div_term)
    return jnp.asarray(pe)


def build_sample_counts(L_Q, L_K, U_part, seed=42):
    # TODO(synk): the reference ProbAttention resamples keys (torch.randint)
    # every forward / every layer; here one deterministic sample table is baked
    # into a per-query key-count matrix and reused.
    idx = np.asarray(jax.random.randint(jax.random.PRNGKey(seed),
                                        (L_Q, U_part), 0, L_K))
    cnt = np.zeros((L_Q, L_K), np.float32)
    for j in range(L_Q):
        for s in range(U_part):
            cnt[j, idx[j, s]] += 1.0
    return jnp.asarray(cnt)


def init_params(key, cfg):
    d, f, L, C, E = cfg.d_model, cfg.d_ff, cfg.seq_len, cfg.enc_in, cfg.e_layers
    n_pad = int(np.ceil(max(cfg.num_class, 1) / 128.0)) * 128  # lane-dense head
    keys = jax.random.split(key, 16)
    ki = iter(keys)

    def nrm(shape, scale=0.02):
        return scale * jax.random.normal(next(ki), shape, dtype=jnp.float32)

    U_part = min(cfg.factor * int(np.ceil(np.log(L))), L)
    proj_w = nrm((L, d, cfg.num_class))     # row-major match of reshape(B, L*d)
    proj_b = nrm((1, cfg.num_class))

    params = {
        # TokenEmbedding: Conv1d(enc_in, d_model, k=3, circular, bias=False);
        # stored as (3, enc_in, d_model) = [W_prev, W_center, W_next]
        # (torch weight (d,C,3) maps via permute(2,1,0)).
        'token_w3': nrm((3, C, d)),
        'pos_emb': positional_embedding(d, L),
        'sample_cnt': build_sample_counts(L, L, U_part),
        # stacked per-layer encoder weights (e_layers leading axis)
        'wqkv': nrm((E, d, 3 * d)), 'bqkv': nrm((E, 1, 3 * d)),
        'wo': nrm((E, d, d)), 'bo': nrm((E, 1, d)),
        'w1': nrm((E, d, f)), 'b1': nrm((E, 1, f)),     # Conv1d(d_model, d_ff, 1)
        'w2': nrm((E, f, d)), 'b2': nrm((E, 1, d)),     # Conv1d(d_ff, d_model, 1)
        'n1_g': jnp.ones((E, 1, d), jnp.float32),
        'n1_b': jnp.zeros((E, 1, d), jnp.float32),
        'n2_g': jnp.ones((E, 1, d), jnp.float32),
        'n2_b': jnp.zeros((E, 1, d), jnp.float32),
        'enc_norm_g': jnp.ones((1, d), jnp.float32),
        'enc_norm_b': jnp.zeros((1, d), jnp.float32),
        # classification head padded to 128 output lanes (sliced in wrapper)
        'proj_w3': jnp.zeros((L, d, n_pad), jnp.float32)
                     .at[:, :, :cfg.num_class].set(proj_w),
        'proj_b_pad': jnp.zeros((1, n_pad), jnp.float32)
                        .at[:, :cfg.num_class].set(proj_b),
    }
    return params


# ------------------------------------ main ------------------------------------

if __name__ == "__main__":
    cfg = types.SimpleNamespace(
        enc_in=4, d_model=32, n_heads=4, d_ff=64, e_layers=2,
        seq_len=8, num_class=5, factor=1, dropout=0.1, activation='gelu',
    )

    key = jax.random.PRNGKey(0)
    kp, kx = jax.random.split(key)
    params = init_params(kp, cfg)

    B = 2
    x_enc = jax.random.normal(kx, (B, cfg.seq_len, cfg.enc_in), dtype=jnp.float32)

    fwd = jax.jit(functools.partial(model_forward, cfg=cfg))
    logits = fwd(params, x_enc)
    logits = jax.block_until_ready(logits)

    assert logits.shape == (B, cfg.num_class)
    assert bool(jnp.all(jnp.isfinite(logits)))
    print("KERNEL_OK")
</pallas_src>

<mosaic_0001>
module attributes {stable_mosaic.version = 11 : i64} {
  func.func @_informer_fused_kernel(%arg0: i32, %arg1: memref<1x8x4xf32, #tpu.memory_space<vmem>>, %arg2: memref<3x4x32xf32, #tpu.memory_space<vmem>>, %arg3: memref<8x32xf32, #tpu.memory_space<vmem>>, %arg4: memref<8x8xf32, #tpu.memory_space<vmem>>, %arg5: memref<2x32x96xf32, #tpu.memory_space<vmem>>, %arg6: memref<2x1x96xf32, #tpu.memory_space<vmem>>, %arg7: memref<2x32x32xf32, #tpu.memory_space<vmem>>, %arg8: memref<2x1x32xf32, #tpu.memory_space<vmem>>, %arg9: memref<2x1x32xf32, #tpu.memory_space<vmem>>, %arg10: memref<2x1x32xf32, #tpu.memory_space<vmem>>, %arg11: memref<2x32x64xf32, #tpu.memory_space<vmem>>, %arg12: memref<2x1x64xf32, #tpu.memory_space<vmem>>, %arg13: memref<2x64x32xf32, #tpu.memory_space<vmem>>, %arg14: memref<2x1x32xf32, #tpu.memory_space<vmem>>, %arg15: memref<2x1x32xf32, #tpu.memory_space<vmem>>, %arg16: memref<2x1x32xf32, #tpu.memory_space<vmem>>, %arg17: memref<1x32xf32, #tpu.memory_space<vmem>>, %arg18: memref<1x32xf32, #tpu.memory_space<vmem>>, %arg19: memref<8x32x128xf32, #tpu.memory_space<vmem>>, %arg20: memref<1x128xf32, #tpu.memory_space<vmem>>, %arg21: memref<1x1x128xf32, #tpu.memory_space<vmem>>) attributes {dimension_semantics = [#tpu.dimension_semantics<parallel>], iteration_bounds = array<i64: 2>, scalar_prefetch = 0 : i64, scratch_operands = 0 : i64, tpu.core_type = #tpu.core_type<tc>, window_params = [{transform_indices = @transform_0, window_bounds = array<i64: 1, 8, 4>}, {pipeline_mode = #tpu.pipeline_mode<synchronous>, transform_indices = @transform_1, window_bounds = array<i64: 3, 4, 32>}, {pipeline_mode = #tpu.pipeline_mode<synchronous>, transform_indices = @transform_2, window_bounds = array<i64: 8, 32>}, {pipeline_mode = #tpu.pipeline_mode<synchronous>, transform_indices = @transform_3, window_bounds = array<i64: 8, 8>}, {pipeline_mode = #tpu.pipeline_mode<synchronous>, transform_indices = @transform_4, window_bounds = array<i64: 2, 32, 96>}, {pipeline_mode = #tpu.pipeline_mode<synchronous>, transform_indices = @transform_5, window_bounds = array<i64: 2, 1, 96>}, {pipeline_mode = #tpu.pipeline_mode<synchronous>, transform_indices = @transform_6, window_bounds = array<i64: 2, 32, 32>}, {pipeline_mode = #tpu.pipeline_mode<synchronous>, transform_indices = @transform_7, window_bounds = array<i64: 2, 1, 32>}, {pipeline_mode = #tpu.pipeline_mode<synchronous>, transform_indices = @transform_8, window_bounds = array<i64: 2, 1, 32>}, {pipeline_mode = #tpu.pipeline_mode<synchronous>, transform_indices = @transform_9, window_bounds = array<i64: 2, 1, 32>}, {pipeline_mode = #tpu.pipeline_mode<synchronous>, transform_indices = @transform_10, window_bounds = array<i64: 2, 32, 64>}, {pipeline_mode = #tpu.pipeline_mode<synchronous>, transform_indices = @transform_11, window_bounds = array<i64: 2, 1, 64>}, {pipeline_mode = #tpu.pipeline_mode<synchronous>, transform_indices = @transform_12, window_bounds = array<i64: 2, 64, 32>}, {pipeline_mode = #tpu.pipeline_mode<synchronous>, transform_indices = @transform_13, window_bounds = array<i64: 2, 1, 32>}, {pipeline_mode = #tpu.pipeline_mode<synchronous>, transform_indices = @transform_14, window_bounds = array<i64: 2, 1, 32>}, {pipeline_mode = #tpu.pipeline_mode<synchronous>, transform_indices = @transform_15, window_bounds = array<i64: 2, 1, 32>}, {pipeline_mode = #tpu.pipeline_mode<synchronous>, transform_indices = @transform_16, window_bounds = array<i64: 1, 32>}, {pipeline_mode = #tpu.pipeline_mode<synchronous>, transform_indices = @transform_17, window_bounds = array<i64: 1, 32>}, {pipeline_mode = #tpu.pipeline_mode<synchronous>, transform_indices = @transform_18, window_bounds = array<i64: 8, 32, 128>}, {pipeline_mode = #tpu.pipeline_mode<synchronous>, transform_indices = @transform_19, window_bounds = array<i64: 1, 128>}, {transform_indices = @transform_20, window_bounds = array<i64: 1, 1, 128>}]} {
    %0 = tpu.iota {dimensions = array<i32: 0>} : vector<8x8xi32>
    %1 = tpu.iota {dimensions = array<i32: 1>} : vector<8x8xi32>
    %2 = arith.cmpi eq, %0, %1 : vector<8x8xi32>
    %cst = arith.constant 1.000000e+00 : f32
    %cst_0 = arith.constant 0.000000e+00 : f32
    %3 = vector.broadcast %cst : f32 to vector<8x8xf32>
    %4 = vector.broadcast %cst_0 : f32 to vector<8x8xf32>
    %5 = arith.select %2, %3, %4 : vector<8x8xi1>, vector<8x8xf32>
    %c0 = arith.constant 0 : index
    %c0_1 = arith.constant 0 : index
    %6 = vector.load %arg4[%c0, %c0_1] : memref<8x8xf32, #tpu.memory_space<vmem>>, vector<8x8xf32>
    %cst_2 = arith.constant 0.000000e+00 : f32
    %7 = vector.broadcast %cst_2 : f32 to vector<8x8xf32>
    %8 = arith.cmpf ogt, %6, %7 : vector<8x8xf32>
    %cst_3 = arith.constant 0.000000e+00 : f32
    %cst_4 = arith.constant -1.000000e+30 : f32
    %9 = vector.broadcast %cst_3 : f32 to vector<8x8xf32>
    %10 = vector.broadcast %cst_4 : f32 to vector<8x8xf32>
    %11 = arith.select %8, %9, %10 : vector<8x8xi1>, vector<8x8xf32>
    %c0_5 = arith.constant 0 : index
    %c0_6 = arith.constant 0 : index
    %c0_7 = arith.constant 0 : index
    %12 = vector.load %arg1[%c0_5, %c0_6, %c0_7] : memref<1x8x4xf32, #tpu.memory_space<vmem>>, vector<1x8x4xf32>
    %13 = vector.shape_cast %12 : vector<1x8x4xf32> to vector<8x4xf32>
    %c0_8 = arith.constant 0 : index
    %c0_9 = arith.constant 0 : index
    %c0_10 = arith.constant 0 : index
    %14 = vector.load %arg2[%c0_8, %c0_9, %c0_10] : memref<3x4x32xf32, #tpu.memory_space<vmem>>, vector<1x4x32xf32>
    %15 = vector.shape_cast %14 : vector<1x4x32xf32> to vector<4x32xf32>
    %cst_11 = arith.constant dense<0.000000e+00> : vector<8x32xf32>
    %16 = tpu.matmul %13, %15, %cst_11 {dimension_numbers = #tpu.dot_dimension_numbers<[1], [0], [0], [1], [0, 0, 1, 1], [], []>} : vector<8x4xf32>, vector<4x32xf32>, vector<8x32xf32> -> vector<8x32xf32>
    %c1 = arith.constant 1 : index
    %c0_12 = arith.constant 0 : index
    %c0_13 = arith.constant 0 : index
    %17 = vector.load %arg2[%c1, %c0_12, %c0_13] : memref<3x4x32xf32, #tpu.memory_space<vmem>>, vector<1x4x32xf32>
    %18 = vector.shape_cast %17 : vector<1x4x32xf32> to vector<4x32xf32>
    %cst_14 = arith.constant dense<0.000000e+00> : vector<8x32xf32>
    %19 = tpu.matmul %13, %18, %cst_14 {dimension_numbers = #tpu.dot_dimension_numbers<[1], [0], [0], [1], [0, 0, 1, 1], [], []>} : vector<8x4xf32>, vector<4x32xf32>, vector<8x32xf32> -> vector<8x32xf32>
    %c2 = arith.constant 2 : index
    %c0_15 = arith.constant 0 : index
    %c0_16 = arith.constant 0 : index
    %20 = vector.load %arg2[%c2, %c0_15, %c0_16] : memref<3x4x32xf32, #tpu.memory_space<vmem>>, vector<1x4x32xf32>
    %21 = vector.shape_cast %20 : vector<1x4x32xf32> to vector<4x32xf32>
    %cst_17 = arith.constant dense<0.000000e+00> : vector<8x32xf32>
    %22 = tpu.matmul %13, %21, %cst_17 {dimension_numbers = #tpu.dot_dimension_numbers<[1], [0], [0], [1], [0, 0, 1, 1], [], []>} : vector<8x4xf32>, vector<4x32xf32>, vector<8x32xf32> -> vector<8x32xf32>
    %c1_i32 = arith.constant 1 : i32
    %23 = vector.broadcast %c1_i32 : i32 to vector<8x8xi32>
    %24 = arith.subi %0, %23 : vector<8x8xi32>
    %25 = arith.cmpi eq, %1, %24 : vector<8x8xi32>
    %c0_i32 = arith.constant 0 : i32
    %26 = vector.broadcast %c0_i32 : i32 to vector<8x8xi32>
    %27 = arith.cmpi eq, %0, %26 : vector<8x8xi32>
    %c7_i32 = arith.constant 7 : i32
    %28 = vector.broadcast %c7_i32 : i32 to vector<8x8xi32>
    %29 = arith.cmpi eq, %1, %28 : vector<8x8xi32>
    %30 = arith.andi %27, %29 : vector<8x8xi1>
    %31 = arith.ori %25, %30 : vector<8x8xi1>
    %cst_18 = arith.constant 1.000000e+00 : f32
    %cst_19 = arith.constant 0.000000e+00 : f32
    %32 = vector.broadcast %cst_18 : f32 to vector<8x8xf32>
    %33 = vector.broadcast %cst_19 : f32 to vector<8x8xf32>
    %34 = arith.select %31, %32, %33 : vector<8x8xi1>, vector<8x8xf32>
    %c1_i32_20 = arith.constant 1 : i32
    %35 = vector.broadcast %c1_i32_20 : i32 to vector<8x8xi32>
    %36 = arith.addi %0, %35 : vector<8x8xi32>
    %37 = arith.cmpi eq, %1, %36 : vector<8x8xi32>
    %c7_i32_21 = arith.constant 7 : i32
    %38 = vector.broadcast %c7_i32_21 : i32 to vector<8x8xi32>
    %39 = arith.cmpi eq, %0, %38 : vector<8x8xi32>
    %c0_i32_22 = arith.constant 0 : i32
    %40 = vector.broadcast %c0_i32_22 : i32 to vector<8x8xi32>
    %41 = arith.cmpi eq, %1, %40 : vector<8x8xi32>
    %42 = arith.andi %39, %41 : vector<8x8xi1>
    %43 = arith.ori %37, %42 : vector<8x8xi1>
    %cst_23 = arith.constant 1.000000e+00 : f32
    %cst_24 = arith.constant 0.000000e+00 : f32
    %44 = vector.broadcast %cst_23 : f32 to vector<8x8xf32>
    %45 = vector.broadcast %cst_24 : f32 to vector<8x8xf32>
    %46 = arith.select %43, %44, %45 : vector<8x8xi1>, vector<8x8xf32>
    %cst_25 = arith.constant dense<0.000000e+00> : vector<8x32xf32>
    %47 = tpu.matmul %34, %16, %cst_25 {dimension_numbers = #tpu.dot_dimension_numbers<[1], [0], [0], [1], [0, 0, 1, 1], [], []>} : vector<8x8xf32>, vector<8x32xf32>, vector<8x32xf32> -> vector<8x32xf32>
    %48 = arith.addf %47, %19 : vector<8x32xf32>
    %cst_26 = arith.constant dense<0.000000e+00> : vector<8x32xf32>
    %49 = tpu.matmul %46, %22, %cst_26 {dimension_numbers = #tpu.dot_dimension_numbers<[1], [0], [0], [1], [0, 0, 1, 1], [], []>} : vector<8x8xf32>, vector<8x32xf32>, vector<8x32xf32> -> vector<8x32xf32>
    %50 = arith.addf %48, %49 : vector<8x32xf32>
    %c0_27 = arith.constant 0 : index
    %c0_28 = arith.constant 0 : index
    %51 = vector.load %arg3[%c0_27, %c0_28] : memref<8x32xf32, #tpu.memory_space<vmem>>, vector<8x32xf32>
    %52 = arith.addf %50, %51 : vector<8x32xf32>
    %c0_29 = arith.constant 0 : index
    %c0_30 = arith.constant 0 : index
    %c0_31 = arith.constant 0 : index
    %53 = vector.load %arg5[%c0_29, %c0_30, %c0_31] : memref<2x32x96xf32, #tpu.memory_space<vmem>>, vector<1x32x96xf32>
    %54 = vector.shape_cast %53 : vector<1x32x96xf32> to vector<32x96xf32>
    %cst_32 = arith.constant dense<0.000000e+00> : vector<8x96xf32>
    %55 = tpu.matmul %52, %54, %cst_32 {dimension_numbers = #tpu.dot_dimension_numbers<[1], [0], [0], [1], [0, 0, 1, 1], [], []>} : vector<8x32xf32>, vector<32x96xf32>, vector<8x96xf32> -> vector<8x96xf32>
    %c0_33 = arith.constant 0 : index
    %c0_34 = arith.constant 0 : index
    %c0_35 = arith.constant 0 : index
    %56 = vector.load %arg6[%c0_33, %c0_34, %c0_35] : memref<2x1x96xf32, #tpu.memory_space<vmem>>, vector<1x1x96xf32>
    %57 = vector.shape_cast %56 : vector<1x1x96xf32> to vector<1x96xf32>
    %58 = vector.broadcast %57 : vector<1x96xf32> to vector<8x96xf32>
    %59 = arith.addf %55, %58 : vector<8x96xf32>
    %c0_36 = arith.constant 0 : index
    %c0_37 = arith.constant 0 : index
    %c0_38 = arith.constant 0 : index
    %60 = vector.load %arg7[%c0_36, %c0_37, %c0_38] : memref<2x32x32xf32, #tpu.memory_space<vmem>>, vector<1x32x32xf32>
    %61 = vector.shape_cast %60 : vector<1x32x32xf32> to vector<32x32xf32>
    %cst_39 = arith.constant 0.000000e+00 : f32
    %62 = vector.broadcast %cst_39 : f32 to vector<8x32xf32>
    %63 = vector.extract_strided_slice %59 {offsets = [0, 0], sizes = [8, 8], strides = [1, 1]} : vector<8x96xf32> to vector<8x8xf32>
    %64 = vector.extract_strided_slice %59 {offsets = [0, 32], sizes = [8, 8], strides = [1, 1]} : vector<8x96xf32> to vector<8x8xf32>
    %65 = vector.extract_strided_slice %59 {offsets = [0, 64], sizes = [8, 8], strides = [1, 1]} : vector<8x96xf32> to vector<8x8xf32>
    %cst_40 = arith.constant dense<0.000000e+00> : vector<8x8xf32>
    %66 = tpu.matmul %63, %64, %cst_40 {dimension_numbers = #tpu.dot_dimension_numbers<[1], [1], [0], [0], [0, 0, 1, 0], [], []>} : vector<8x8xf32>, vector<8x8xf32>, vector<8x8xf32> -> vector<8x8xf32>
    %67 = arith.addf %66, %11 : vector<8x8xf32>
    %cst_41 = arith.constant dense<0xFF800000> : vector<8xf32>
    %68 = vector.multi_reduction <maximumf>, %67, %cst_41 [1] : vector<8x8xf32> to vector<8xf32>
    %69 = vector.shape_cast %68 : vector<8xf32> to vector<8x1xf32>
    %70 = arith.mulf %66, %6 : vector<8x8xf32>
    %cst_42 = arith.constant dense<0.000000e+00> : vector<8xf32>
    %71 = vector.multi_reduction <add>, %70, %cst_42 [1] : vector<8x8xf32> to vector<8xf32>
    %72 = vector.shape_cast %71 : vector<8xf32> to vector<8x1xf32>
    %cst_43 = arith.constant 1.250000e-01 : f32
    %73 = vector.broadcast %cst_43 : f32 to vector<8x1xf32>
    %74 = arith.mulf %72, %73 : vector<8x1xf32>
    %75 = arith.subf %69, %74 : vector<8x1xf32>
    %76 = vector.broadcast %75 : vector<8x1xf32> to vector<8x8xf32>
    %77 = arith.mulf %5, %76 : vector<8x8xf32>
    %cst_44 = arith.constant dense<0.000000e+00> : vector<8xf32>
    %78 = vector.multi_reduction <add>, %77, %cst_44 [0] : vector<8x8xf32> to vector<8xf32>
    %79 = vector.shape_cast %78 : vector<8xf32> to vector<1x8xf32>
    %80 = vector.broadcast %79 : vector<1x8xf32> to vector<8x8xf32>
    %81 = vector.broadcast %75 : vector<8x1xf32> to vector<8x8xf32>
    %82 = arith.cmpf ogt, %80, %81 : vector<8x8xf32>
    %83 = vector.broadcast %79 : vector<1x8xf32> to vector<8x8xf32>
    %84 = vector.broadcast %75 : vector<8x1xf32> to vector<8x8xf32>
    %85 = arith.cmpf oeq, %83, %84 : vector<8x8xf32>
    %86 = arith.cmpi slt, %1, %0 : vector<8x8xi32>
    %87 = arith.andi %85, %86 : vector<8x8xi1>
    %88 = arith.ori %82, %87 : vector<8x8xi1>
    %cst_45 = arith.constant 1.000000e+00 : f32
    %cst_46 = arith.constant 0.000000e+00 : f32
    %89 = vector.broadcast %cst_45 : f32 to vector<8x8xf32>
    %90 = vector.broadcast %cst_46 : f32 to vector<8x8xf32>
    %91 = arith.select %88, %89, %90 : vector<8x8xi1>, vector<8x8xf32>
    %cst_47 = arith.constant dense<0.000000e+00> : vector<8xf32>
    %92 = vector.multi_reduction <add>, %91, %cst_47 [1] : vector<8x8xf32> to vector<8xf32>
    %93 = vector.shape_cast %92 : vector<8xf32> to vector<8x1xf32>
    %cst_48 = arith.constant 3.000000e+00 : f32
    %94 = vector.broadcast %cst_48 : f32 to vector<8x1xf32>
    %95 = arith.cmpf olt, %93, %94 : vector<8x1xf32>
    %cst_49 = arith.constant 0.353553385 : f32
    %96 = vector.broadcast %cst_49 : f32 to vector<8x8xf32>
    %97 = arith.mulf %66, %96 : vector<8x8xf32>
    %cst_50 = arith.constant dense<0xFF800000> : vector<8xf32>
    %98 = vector.multi_reduction <maximumf>, %97, %cst_50 [1] : vector<8x8xf32> to vector<8xf32>
    %99 = vector.shape_cast %98 : vector<8xf32> to vector<8x1xf32>
    %100 = vector.broadcast %99 : vector<8x1xf32> to vector<8x8xf32>
    %101 = arith.subf %97, %100 : vector<8x8xf32>
    %102 = math.exp %101 : vector<8x8xf32>
    %cst_51 = arith.constant dense<0.000000e+00> : vector<8xf32>
    %103 = vector.multi_reduction <add>, %102, %cst_51 [1] : vector<8x8xf32> to vector<8xf32>
    %104 = vector.shape_cast %103 : vector<8xf32> to vector<8x1xf32>
    %105 = vector.broadcast %104 : vector<8x1xf32> to vector<8x8xf32>
    %106 = arith.divf %102, %105 : vector<8x8xf32>
    %cst_52 = arith.constant dense<0.000000e+00> : vector<8x8xf32>
    %107 = tpu.matmul %106, %65, %cst_52 {dimension_numbers = #tpu.dot_dimension_numbers<[1], [0], [0], [1], [0, 0, 1, 1], [], []>} : vector<8x8xf32>, vector<8x8xf32>, vector<8x8xf32> -> vector<8x8xf32>
    %cst_53 = arith.constant dense<0.000000e+00> : vector<8xf32>
    %108 = vector.multi_reduction <add>, %65, %cst_53 [0] : vector<8x8xf32> to vector<8xf32>
    %109 = vector.shape_cast %108 : vector<8xf32> to vector<1x8xf32>
    %cst_54 = arith.constant 1.250000e-01 : f32
    %110 = vector.broadcast %cst_54 : f32 to vector<1x8xf32>
    %111 = arith.mulf %109, %110 : vector<1x8xf32>
    %112 = vector.shape_cast %95 : vector<8x1xi1> to vector<8x1xi1>
    %113 = vector.broadcast %112 : vector<8x1xi1> to vector<8x8xi1>
    %114 = vector.shape_cast %111 : vector<1x8xf32> to vector<1x8xf32>
    %115 = vector.broadcast %114 : vector<1x8xf32> to vector<8x8xf32>
    %116 = arith.select %113, %107, %115 : vector<8x8xi1>, vector<8x8xf32>
    %117 = vector.extract_strided_slice %61 {offsets = [0, 0], sizes = [8, 32], strides = [1, 1]} : vector<32x32xf32> to vector<8x32xf32>
    %cst_55 = arith.constant dense<0.000000e+00> : vector<8x32xf32>
    %118 = tpu.matmul %116, %117, %cst_55 {dimension_numbers = #tpu.dot_dimension_numbers<[1], [0], [0], [1], [0, 0, 1, 1], [], []>} : vector<8x8xf32>, vector<8x32xf32>, vector<8x32xf32> -> vector<8x32xf32>
    %119 = arith.addf %62, %118 : vector<8x32xf32>
    %120 = vector.extract_strided_slice %59 {offsets = [0, 8], sizes = [8, 8], strides = [1, 1]} : vector<8x96xf32> to vector<8x8xf32>
    %121 = vector.extract_strided_slice %59 {offsets = [0, 40], sizes = [8, 8], strides = [1, 1]} : vector<8x96xf32> to vector<8x8xf32>
    %122 = vector.extract_strided_slice %59 {offsets = [0, 72], sizes = [8, 8], strides = [1, 1]} : vector<8x96xf32> to vector<8x8xf32>
    %cst_56 = arith.constant dense<0.000000e+00> : vector<8x8xf32>
    %123 = tpu.matmul %120, %121, %cst_56 {dimension_numbers = #tpu.dot_dimension_numbers<[1], [1], [0], [0], [0, 0, 1, 0], [], []>} : vector<8x8xf32>, vector<8x8xf32>, vector<8x8xf32> -> vector<8x8xf32>
    %124 = arith.addf %123, %11 : vector<8x8xf32>
    %cst_57 = arith.constant dense<0xFF800000> : vector<8xf32>
    %125 = vector.multi_reduction <maximumf>, %124, %cst_57 [1] : vector<8x8xf32> to vector<8xf32>
    %126 = vector.shape_cast %125 : vector<8xf32> to vector<8x1xf32>
    %127 = arith.mulf %123, %6 : vector<8x8xf32>
    %cst_58 = arith.constant dense<0.000000e+00> : vector<8xf32>
    %128 = vector.multi_reduction <add>, %127, %cst_58 [1] : vector<8x8xf32> to vector<8xf32>
    %129 = vector.shape_cast %128 : vector<8xf32> to vector<8x1xf32>
    %cst_59 = arith.constant 1.250000e-01 : f32
    %130 = vector.broadcast %cst_59 : f32 to vector<8x1xf32>
    %131 = arith.mulf %129, %130 : vector<8x1xf32>
    %132 = arith.subf %126, %131 : vector<8x1xf32>
    %133 = vector.broadcast %132 : vector<8x1xf32> to vector<8x8xf32>
    %134 = arith.mulf %5, %133 : vector<8x8xf32>
    %cst_60 = arith.constant dense<0.000000e+00> : vector<8xf32>
    %135 = vector.multi_reduction <add>, %134, %cst_60 [0] : vector<8x8xf32> to vector<8xf32>
    %136 = vector.shape_cast %135 : vector<8xf32> to vector<1x8xf32>
    %137 = vector.broadcast %136 : vector<1x8xf32> to vector<8x8xf32>
    %138 = vector.broadcast %132 : vector<8x1xf32> to vector<8x8xf32>
    %139 = arith.cmpf ogt, %137, %138 : vector<8x8xf32>
    %140 = vector.broadcast %136 : vector<1x8xf32> to vector<8x8xf32>
    %141 = vector.broadcast %132 : vector<8x1xf32> to vector<8x8xf32>
    %142 = arith.cmpf oeq, %140, %141 : vector<8x8xf32>
    %143 = arith.cmpi slt, %1, %0 : vector<8x8xi32>
    %144 = arith.andi %142, %143 : vector<8x8xi1>
    %145 = arith.ori %139, %144 : vector<8x8xi1>
    %cst_61 = arith.constant 1.000000e+00 : f32
    %cst_62 = arith.constant 0.000000e+00 : f32
    %146 = vector.broadcast %cst_61 : f32 to vector<8x8xf32>
    %147 = vector.broadcast %cst_62 : f32 to vector<8x8xf32>
    %148 = arith.select %145, %146, %147 : vector<8x8xi1>, vector<8x8xf32>
    %cst_63 = arith.constant dense<0.000000e+00> : vector<8xf32>
    %149 = vector.multi_reduction <add>, %148, %cst_63 [1] : vector<8x8xf32> to vector<8xf32>
    %150 = vector.shape_cast %149 : vector<8xf32> to vector<8x1xf32>
    %cst_64 = arith.constant 3.000000e+00 : f32
    %151 = vector.broadcast %cst_64 : f32 to vector<8x1xf32>
    %152 = arith.cmpf olt, %150, %151 : vector<8x1xf32>
    %cst_65 = arith.constant 0.353553385 : f32
    %153 = vector.broadcast %cst_65 : f32 to vector<8x8xf32>
    %154 = arith.mulf %123, %153 : vector<8x8xf32>
    %cst_66 = arith.constant dense<0xFF800000> : vector<8xf32>
    %155 = vector.multi_reduction <maximumf>, %154, %cst_66 [1] : vector<8x8xf32> to vector<8xf32>
    %156 = vector.shape_cast %155 : vector<8xf32> to vector<8x1xf32>
    %157 = vector.broadcast %156 : vector<8x1xf32> to vector<8x8xf32>
    %158 = arith.subf %154, %157 : vector<8x8xf32>
    %159 = math.exp %158 : vector<8x8xf32>
    %cst_67 = arith.constant dense<0.000000e+00> : vector<8xf32>
    %160 = vector.multi_reduction <add>, %159, %cst_67 [1] : vector<8x8xf32> to vector<8xf32>
    %161 = vector.shape_cast %160 : vector<8xf32> to vector<8x1xf32>
    %162 = vector.broadcast %161 : vector<8x1xf32> to vector<8x8xf32>
    %163 = arith.divf %159, %162 : vector<8x8xf32>
    %cst_68 = arith.constant dense<0.000000e+00> : vector<8x8xf32>
    %164 = tpu.matmul %163, %122, %cst_68 {dimension_numbers = #tpu.dot_dimension_numbers<[1], [0], [0], [1], [0, 0, 1, 1], [], []>} : vector<8x8xf32>, vector<8x8xf32>, vector<8x8xf32> -> vector<8x8xf32>
    %cst_69 = arith.constant dense<0.000000e+00> : vector<8xf32>
    %165 = vector.multi_reduction <add>, %122, %cst_69 [0] : vector<8x8xf32> to vector<8xf32>
    %166 = vector.shape_cast %165 : vector<8xf32> to vector<1x8xf32>
    %cst_70 = arith.constant 1.250000e-01 : f32
    %167 = vector.broadcast %cst_70 : f32 to vector<1x8xf32>
    %168 = arith.mulf %166, %167 : vector<1x8xf32>
    %169 = vector.shape_cast %152 : vector<8x1xi1> to vector<8x1xi1>
    %170 = vector.broadcast %169 : vector<8x1xi1> to vector<8x8xi1>
    %171 = vector.shape_cast %168 : vector<1x8xf32> to vector<1x8xf32>
    %172 = vector.broadcast %171 : vector<1x8xf32> to vector<8x8xf32>
    %173 = arith.select %170, %164, %172 : vector<8x8xi1>, vector<8x8xf32>
    %174 = vector.extract_strided_slice %61 {offsets = [8, 0], sizes = [8, 32], strides = [1, 1]} : vector<32x32xf32> to vector<8x32xf32>
    %cst_71 = arith.constant dense<0.000000e+00> : vector<8x32xf32>
    %175 = tpu.matmul %173, %174, %cst_71 {dimension_numbers = #tpu.dot_dimension_numbers<[1], [0], [0], [1], [0, 0, 1, 1], [], []>} : vector<8x8xf32>, vector<8x32xf32>, vector<8x32xf32> -> vector<8x32xf32>
    %176 = arith.addf %119, %175 : vector<8x32xf32>
    %177 = vector.extract_strided_slice %59 {offsets = [0, 16], sizes = [8, 8], strides = [1, 1]} : vector<8x96xf32> to vector<8x8xf32>
    %178 = vector.extract_strided_slice %59 {offsets = [0, 48], sizes = [8, 8], strides = [1, 1]} : vector<8x96xf32> to vector<8x8xf32>
    %179 = vector.extract_strided_slice %59 {offsets = [0, 80], sizes = [8, 8], strides = [1, 1]} : vector<8x96xf32> to vector<8x8xf32>
    %cst_72 = arith.constant dense<0.000000e+00> : vector<8x8xf32>
    %180 = tpu.matmul %177, %178, %cst_72 {dimension_numbers = #tpu.dot_dimension_numbers<[1], [1], [0], [0], [0, 0, 1, 0], [], []>} : vector<8x8xf32>, vector<8x8xf32>, vector<8x8xf32> -> vector<8x8xf32>
    %181 = arith.addf %180, %11 : vector<8x8xf32>
    %cst_73 = arith.constant dense<0xFF800000> : vector<8xf32>
    %182 = vector.multi_reduction <maximumf>, %181, %cst_73 [1] : vector<8x8xf32> to vector<8xf32>
    %183 = vector.shape_cast %182 : vector<8xf32> to vector<8x1xf32>
    %184 = arith.mulf %180, %6 : vector<8x8xf32>
    %cst_74 = arith.constant dense<0.000000e+00> : vector<8xf32>
    %185 = vector.multi_reduction <add>, %184, %cst_74 [1] : vector<8x8xf32> to vector<8xf32>
    %186 = vector.shape_cast %185 : vector<8xf32> to vector<8x1xf32>
    %cst_75 = arith.constant 1.250000e-01 : f32
    %187 = vector.broadcast %cst_75 : f32 to vector<8x1xf32>
    %188 = arith.mulf %186, %187 : vector<8x1xf32>
    %189 = arith.subf %183, %188 : vector<8x1xf32>
    %190 = vector.broadcast %189 : vector<8x1xf32> to vector<8x8xf32>
    %191 = arith.mulf %5, %190 : vector<8x8xf32>
    %cst_76 = arith.constant dense<0.000000e+00> : vector<8xf32>
    %192 = vector.multi_reduction <add>, %191, %cst_76 [0] : vector<8x8xf32> to vector<8xf32>
    %193 = vector.shape_cast %192 : vector<8xf32> to vector<1x8xf32>
    %194 = vector.broadcast %193 : vector<1x8xf32> to vector<8x8xf32>
    %195 = vector.broadcast %189 : vector<8x1xf32> to vector<8x8xf32>
    %196 = arith.cmpf ogt, %194, %195 : vector<8x8xf32>
    %197 = vector.broadcast %193 : vector<1x8xf32> to vector<8x8xf32>
    %198 = vector.broadcast %189 : vector<8x1xf32> to vector<8x8xf32>
    %199 = arith.cmpf oeq, %197, %198 : vector<8x8xf32>
    %200 = arith.cmpi slt, %1, %0 : vector<8x8xi32>
    %201 = arith.andi %199, %200 : vector<8x8xi1>
    %202 = arith.ori %196, %201 : vector<8x8xi1>
    %cst_77 = arith.constant 1.000000e+00 : f32
    %cst_78 = arith.constant 0.000000e+00 : f32
    %203 = vector.broadcast %cst_77 : f32 to vector<8x8xf32>
    %204 = vector.broadcast %cst_78 : f32 to vector<8x8xf32>
    %205 = arith.select %202, %203, %204 : vector<8x8xi1>, vector<8x8xf32>
    %cst_79 = arith.constant dense<0.000000e+00> : vector<8xf32>
    %206 = vector.multi_reduction <add>, %205, %cst_79 [1] : vector<8x8xf32> to vector<8xf32>
    %207 = vector.shape_cast %206 : vector<8xf32> to vector<8x1xf32>
    %cst_80 = arith.constant 3.000000e+00 : f32
    %208 = vector.broadcast %cst_80 : f32 to vector<8x1xf32>
    %209 = arith.cmpf olt, %207, %208 : vector<8x1xf32>
    %cst_81 = arith.constant 0.353553385 : f32
    %210 = vector.broadcast %cst_81 : f32 to vector<8x8xf32>
    %211 = arith.mulf %180, %210 : vector<8x8xf32>
    %cst_82 = arith.constant dense<0xFF800000> : vector<8xf32>
    %212 = vector.multi_reduction <maximumf>, %211, %cst_82 [1] : vector<8x8xf32> to vector<8xf32>
    %213 = vector.shape_cast %212 : vector<8xf32> to vector<8x1xf32>
    %214 = vector.broadcast %213 : vector<8x1xf32> to vector<8x8xf32>
    %215 = arith.subf %211, %214 : vector<8x8xf32>
    %216 = math.exp %215 : vector<8x8xf32>
    %cst_83 = arith.constant dense<0.000000e+00> : vector<8xf32>
    %217 = vector.multi_reduction <add>, %216, %cst_83 [1] : vector<8x8xf32> to vector<8xf32>
    %218 = vector.shape_cast %217 : vector<8xf32> to vector<8x1xf32>
    %219 = vector.broadcast %218 : vector<8x1xf32> to vector<8x8xf32>
    %220 = arith.divf %216, %219 : vector<8x8xf32>
    %cst_84 = arith.constant dense<0.000000e+00> : vector<8x8xf32>
    %221 = tpu.matmul %220, %179, %cst_84 {dimension_numbers = #tpu.dot_dimension_numbers<[1], [0], [0], [1], [0, 0, 1, 1], [], []>} : vector<8x8xf32>, vector<8x8xf32>, vector<8x8xf32> -> vector<8x8xf32>
    %cst_85 = arith.constant dense<0.000000e+00> : vector<8xf32>
    %222 = vector.multi_reduction <add>, %179, %cst_85 [0] : vector<8x8xf32> to vector<8xf32>
    %223 = vector.shape_cast %222 : vector<8xf32> to vector<1x8xf32>
    %cst_86 = arith.constant 1.250000e-01 : f32
    %224 = vector.broadcast %cst_86 : f32 to vector<1x8xf32>
    %225 = arith.mulf %223, %224 : vector<1x8xf32>
    %226 = vector.shape_cast %209 : vector<8x1xi1> to vector<8x1xi1>
    %227 = vector.broadcast %226 : vector<8x1xi1> to vector<8x8xi1>
    %228 = vector.shape_cast %225 : vector<1x8xf32> to vector<1x8xf32>
    %229 = vector.broadcast %228 : vector<1x8xf32> to vector<8x8xf32>
    %230 = arith.select %227, %221, %229 : vector<8x8xi1>, vector<8x8xf32>
    %231 = vector.extract_strided_slice %61 {offsets = [16, 0], sizes = [8, 32], strides = [1, 1]} : vector<32x32xf32> to vector<8x32xf32>
    %cst_87 = arith.constant dense<0.000000e+00> : vector<8x32xf32>
    %232 = tpu.matmul %230, %231, %cst_87 {dimension_numbers = #tpu.dot_dimension_numbers<[1], [0], [0], [1], [0, 0, 1, 1], [], []>} : vector<8x8xf32>, vector<8x32xf32>, vector<8x32xf32> -> vector<8x32xf32>
    %233 = arith.addf %176, %232 : vector<8x32xf32>
    %234 = vector.extract_strided_slice %59 {offsets = [0, 24], sizes = [8, 8], strides = [1, 1]} : vector<8x96xf32> to vector<8x8xf32>
    %235 = vector.extract_strided_slice %59 {offsets = [0, 56], sizes = [8, 8], strides = [1, 1]} : vector<8x96xf32> to vector<8x8xf32>
    %236 = vector.extract_strided_slice %59 {offsets = [0, 88], sizes = [8, 8], strides = [1, 1]} : vector<8x96xf32> to vector<8x8xf32>
    %cst_88 = arith.constant dense<0.000000e+00> : vector<8x8xf32>
    %237 = tpu.matmul %234, %235, %cst_88 {dimension_numbers = #tpu.dot_dimension_numbers<[1], [1], [0], [0], [0, 0, 1, 0], [], []>} : vector<8x8xf32>, vector<8x8xf32>, vector<8x8xf32> -> vector<8x8xf32>
    %238 = arith.addf %237, %11 : vector<8x8xf32>
    %cst_89 = arith.constant dense<0xFF800000> : vector<8xf32>
    %239 = vector.multi_reduction <maximumf>, %238, %cst_89 [1] : vector<8x8xf32> to vector<8xf32>
    %240 = vector.shape_cast %239 : vector<8xf32> to vector<8x1xf32>
    %241 = arith.mulf %237, %6 : vector<8x8xf32>
    %cst_90 = arith.constant dense<0.000000e+00> : vector<8xf32>
    %242 = vector.multi_reduction <add>, %241, %cst_90 [1] : vector<8x8xf32> to vector<8xf32>
    %243 = vector.shape_cast %242 : vector<8xf32> to vector<8x1xf32>
    %cst_91 = arith.constant 1.250000e-01 : f32
    %244 = vector.broadcast %cst_91 : f32 to vector<8x1xf32>
    %245 = arith.mulf %243, %244 : vector<8x1xf32>
    %246 = arith.subf %240, %245 : vector<8x1xf32>
    %247 = vector.broadcast %246 : vector<8x1xf32> to vector<8x8xf32>
    %248 = arith.mulf %5, %247 : vector<8x8xf32>
    %cst_92 = arith.constant dense<0.000000e+00> : vector<8xf32>
    %249 = vector.multi_reduction <add>, %248, %cst_92 [0] : vector<8x8xf32> to vector<8xf32>
    %250 = vector.shape_cast %249 : vector<8xf32> to vector<1x8xf32>
    %251 = vector.broadcast %250 : vector<1x8xf32> to vector<8x8xf32>
    %252 = vector.broadcast %246 : vector<8x1xf32> to vector<8x8xf32>
    %253 = arith.cmpf ogt, %251, %252 : vector<8x8xf32>
    %254 = vector.broadcast %250 : vector<1x8xf32> to vector<8x8xf32>
    %255 = vector.broadcast %246 : vector<8x1xf32> to vector<8x8xf32>
    %256 = arith.cmpf oeq, %254, %255 : vector<8x8xf32>
    %257 = arith.cmpi slt, %1, %0 : vector<8x8xi32>
    %258 = arith.andi %256, %257 : vector<8x8xi1>
    %259 = arith.ori %253, %258 : vector<8x8xi1>
    %cst_93 = arith.constant 1.000000e+00 : f32
    %cst_94 = arith.constant 0.000000e+00 : f32
    %260 = vector.broadcast %cst_93 : f32 to vector<8x8xf32>
    %261 = vector.broadcast %cst_94 : f32 to vector<8x8xf32>
    %262 = arith.select %259, %260, %261 : vector<8x8xi1>, vector<8x8xf32>
    %cst_95 = arith.constant dense<0.000000e+00> : vector<8xf32>
    %263 = vector.multi_reduction <add>, %262, %cst_95 [1] : vector<8x8xf32> to vector<8xf32>
    %264 = vector.shape_cast %263 : vector<8xf32> to vector<8x1xf32>
    %cst_96 = arith.constant 3.000000e+00 : f32
    %265 = vector.broadcast %cst_96 : f32 to vector<8x1xf32>
    %266 = arith.cmpf olt, %264, %265 : vector<8x1xf32>
    %cst_97 = arith.constant 0.353553385 : f32
    %267 = vector.broadcast %cst_97 : f32 to vector<8x8xf32>
    %268 = arith.mulf %237, %267 : vector<8x8xf32>
    %cst_98 = arith.constant dense<0xFF800000> : vector<8xf32>
    %269 = vector.multi_reduction <maximumf>, %268, %cst_98 [1] : vector<8x8xf32> to vector<8xf32>
    %270 = vector.shape_cast %269 : vector<8xf32> to vector<8x1xf32>
    %271 = vector.broadcast %270 : vector<8x1xf32> to vector<8x8xf32>
    %272 = arith.subf %268, %271 : vector<8x8xf32>
    %273 = math.exp %272 : vector<8x8xf32>
    %cst_99 = arith.constant dense<0.000000e+00> : vector<8xf32>
    %274 = vector.multi_reduction <add>, %273, %cst_99 [1] : vector<8x8xf32> to vector<8xf32>
    %275 = vector.shape_cast %274 : vector<8xf32> to vector<8x1xf32>
    %276 = vector.broadcast %275 : vector<8x1xf32> to vector<8x8xf32>
    %277 = arith.divf %273, %276 : vector<8x8xf32>
    %cst_100 = arith.constant dense<0.000000e+00> : vector<8x8xf32>
    %278 = tpu.matmul %277, %236, %cst_100 {dimension_numbers = #tpu.dot_dimension_numbers<[1], [0], [0], [1], [0, 0, 1, 1], [], []>} : vector<8x8xf32>, vector<8x8xf32>, vector<8x8xf32> -> vector<8x8xf32>
    %cst_101 = arith.constant dense<0.000000e+00> : vector<8xf32>
    %279 = vector.multi_reduction <add>, %236, %cst_101 [0] : vector<8x8xf32> to vector<8xf32>
    %280 = vector.shape_cast %279 : vector<8xf32> to vector<1x8xf32>
    %cst_102 = arith.constant 1.250000e-01 : f32
    %281 = vector.broadcast %cst_102 : f32 to vector<1x8xf32>
    %282 = arith.mulf %280, %281 : vector<1x8xf32>
    %283 = vector.shape_cast %266 : vector<8x1xi1> to vector<8x1xi1>
    %284 = vector.broadcast %283 : vector<8x1xi1> to vector<8x8xi1>
    %285 = vector.shape_cast %282 : vector<1x8xf32> to vector<1x8xf32>
    %286 = vector.broadcast %285 : vector<1x8xf32> to vector<8x8xf32>
    %287 = arith.select %284, %278, %286 : vector<8x8xi1>, vector<8x8xf32>
    %288 = vector.extract_strided_slice %61 {offsets = [24, 0], sizes = [8, 32], strides = [1, 1]} : vector<32x32xf32> to vector<8x32xf32>
    %cst_103 = arith.constant dense<0.000000e+00> : vector<8x32xf32>
    %289 = tpu.matmul %287, %288, %cst_103 {dimension_numbers = #tpu.dot_dimension_numbers<[1], [0], [0], [1], [0, 0, 1, 1], [], []>} : vector<8x8xf32>, vector<8x32xf32>, vector<8x32xf32> -> vector<8x32xf32>
    %290 = arith.addf %233, %289 : vector<8x32xf32>
    %c0_104 = arith.constant 0 : index
    %c0_105 = arith.constant 0 : index
    %c0_106 = arith.constant 0 : index
    %291 = vector.load %arg8[%c0_104, %c0_105, %c0_106] : memref<2x1x32xf32, #tpu.memory_space<vmem>>, vector<1x1x32xf32>
    %292 = vector.shape_cast %291 : vector<1x1x32xf32> to vector<1x32xf32>
    %293 = vector.broadcast %292 : vector<1x32xf32> to vector<8x32xf32>
    %294 = arith.addf %290, %293 : vector<8x32xf32>
    %295 = arith.addf %52, %294 : vector<8x32xf32>
    %c0_107 = arith.constant 0 : index
    %c0_108 = arith.constant 0 : index
    %c0_109 = arith.constant 0 : index
    %296 = vector.load %arg9[%c0_107, %c0_108, %c0_109] : memref<2x1x32xf32, #tpu.memory_space<vmem>>, vector<1x1x32xf32>
    %297 = vector.shape_cast %296 : vector<1x1x32xf32> to vector<1x32xf32>
    %c0_110 = arith.constant 0 : index
    %c0_111 = arith.constant 0 : index
    %c0_112 = arith.constant 0 : index
    %298 = vector.load %arg10[%c0_110, %c0_111, %c0_112] : memref<2x1x32xf32, #tpu.memory_space<vmem>>, vector<1x1x32xf32>
    %299 = vector.shape_cast %298 : vector<1x1x32xf32> to vector<1x32xf32>
    %cst_113 = arith.constant dense<0.000000e+00> : vector<8xf32>
    %300 = vector.multi_reduction <add>, %295, %cst_113 [1] : vector<8x32xf32> to vector<8xf32>
    %301 = vector.shape_cast %300 : vector<8xf32> to vector<8x1xf32>
    %cst_114 = arith.constant 3.200000e+01 : f32
    %302 = vector.broadcast %cst_114 : f32 to vector<8x1xf32>
    %303 = arith.divf %301, %302 : vector<8x1xf32>
    %304 = vector.broadcast %303 : vector<8x1xf32> to vector<8x32xf32>
    %305 = arith.subf %295, %304 : vector<8x32xf32>
    %306 = arith.mulf %305, %305 : vector<8x32xf32>
    %cst_115 = arith.constant dense<0.000000e+00> : vector<8xf32>
    %307 = vector.multi_reduction <add>, %306, %cst_115 [1] : vector<8x32xf32> to vector<8xf32>
    %308 = vector.shape_cast %307 : vector<8xf32> to vector<8x1xf32>
    %cst_116 = arith.constant 3.200000e+01 : f32
    %309 = vector.broadcast %cst_116 : f32 to vector<8x1xf32>
    %310 = arith.divf %308, %309 : vector<8x1xf32>
    %311 = vector.broadcast %303 : vector<8x1xf32> to vector<8x32xf32>
    %312 = arith.subf %295, %311 : vector<8x32xf32>
    %cst_117 = arith.constant 9.99999974E-6 : f32
    %313 = vector.broadcast %cst_117 : f32 to vector<8x1xf32>
    %314 = arith.addf %310, %313 : vector<8x1xf32>
    %315 = math.rsqrt %314 : vector<8x1xf32>
    %316 = vector.broadcast %315 : vector<8x1xf32> to vector<8x32xf32>
    %317 = arith.mulf %312, %316 : vector<8x32xf32>
    %318 = vector.broadcast %297 : vector<1x32xf32> to vector<8x32xf32>
    %319 = arith.mulf %317, %318 : vector<8x32xf32>
    %320 = vector.broadcast %299 : vector<1x32xf32> to vector<8x32xf32>
    %321 = arith.addf %319, %320 : vector<8x32xf32>
    %c0_118 = arith.constant 0 : index
    %c0_119 = arith.constant 0 : index
    %c0_120 = arith.constant 0 : index
    %322 = vector.load %arg11[%c0_118, %c0_119, %c0_120] : memref<2x32x64xf32, #tpu.memory_space<vmem>>, vector<1x32x64xf32>
    %323 = vector.shape_cast %322 : vector<1x32x64xf32> to vector<32x64xf32>
    %cst_121 = arith.constant dense<0.000000e+00> : vector<8x64xf32>
    %324 = tpu.matmul %321, %323, %cst_121 {dimension_numbers = #tpu.dot_dimension_numbers<[1], [0], [0], [1], [0, 0, 1, 1], [], []>} : vector<8x32xf32>, vector<32x64xf32>, vector<8x64xf32> -> vector<8x64xf32>
    %c0_122 = arith.constant 0 : index
    %c0_123 = arith.constant 0 : index
    %c0_124 = arith.constant 0 : index
    %325 = vector.load %arg12[%c0_122, %c0_123, %c0_124] : memref<2x1x64xf32, #tpu.memory_space<vmem>>, vector<1x1x64xf32>
    %326 = vector.shape_cast %325 : vector<1x1x64xf32> to vector<1x64xf32>
    %327 = vector.broadcast %326 : vector<1x64xf32> to vector<8x64xf32>
    %328 = arith.addf %324, %327 : vector<8x64xf32>
    %cst_125 = arith.constant 0.707106769 : f32
    %329 = vector.broadcast %cst_125 : f32 to vector<8x64xf32>
    %330 = arith.mulf %328, %329 : vector<8x64xf32>
    %331 = math.absf %330 : vector<8x64xf32>
    %cst_126 = arith.constant 0.327591091 : f32
    %332 = vector.broadcast %cst_126 : f32 to vector<8x64xf32>
    %333 = arith.mulf %332, %331 : vector<8x64xf32>
    %cst_127 = arith.constant 1.000000e+00 : f32
    %334 = vector.broadcast %cst_127 : f32 to vector<8x64xf32>
    %335 = arith.addf %334, %333 : vector<8x64xf32>
    %cst_128 = arith.constant 1.000000e+00 : f32
    %336 = vector.broadcast %cst_128 : f32 to vector<8x64xf32>
    %337 = arith.divf %336, %335 : vector<8x64xf32>
    %cst_129 = arith.constant 1.06140542 : f32
    %338 = vector.broadcast %cst_129 : f32 to vector<8x64xf32>
    %339 = arith.mulf %337, %338 : vector<8x64xf32>
    %cst_130 = arith.constant -1.45315206 : f32
    %340 = vector.broadcast %cst_130 : f32 to vector<8x64xf32>
    %341 = arith.addf %340, %339 : vector<8x64xf32>
    %342 = arith.mulf %337, %341 : vector<8x64xf32>
    %cst_131 = arith.constant 1.42141378 : f32
    %343 = vector.broadcast %cst_131 : f32 to vector<8x64xf32>
    %344 = arith.addf %343, %342 : vector<8x64xf32>
    %345 = arith.mulf %337, %344 : vector<8x64xf32>
    %cst_132 = arith.constant -0.284496725 : f32
    %346 = vector.broadcast %cst_132 : f32 to vector<8x64xf32>
    %347 = arith.addf %346, %345 : vector<8x64xf32>
    %348 = arith.mulf %337, %347 : vector<8x64xf32>
    %cst_133 = arith.constant 0.254829586 : f32
    %349 = vector.broadcast %cst_133 : f32 to vector<8x64xf32>
    %350 = arith.addf %349, %348 : vector<8x64xf32>
    %351 = arith.mulf %337, %350 : vector<8x64xf32>
    %cst_134 = arith.constant 0.000000e+00 : f32
    %352 = vector.broadcast %cst_134 : f32 to vector<8x64xf32>
    %353 = arith.subf %352, %331 : vector<8x64xf32>
    %354 = arith.mulf %353, %331 : vector<8x64xf32>
    %355 = math.exp %354 : vector<8x64xf32>
    %356 = arith.mulf %351, %355 : vector<8x64xf32>
    %cst_135 = arith.constant 1.000000e+00 : f32
    %357 = vector.broadcast %cst_135 : f32 to vector<8x64xf32>
    %358 = arith.subf %357, %356 : vector<8x64xf32>
    %cst_136 = arith.constant 0.000000e+00 : f32
    %359 = vector.broadcast %cst_136 : f32 to vector<8x64xf32>
    %360 = arith.cmpf olt, %330, %359 : vector<8x64xf32>
    %cst_137 = arith.constant 0.000000e+00 : f32
    %361 = vector.broadcast %cst_137 : f32 to vector<8x64xf32>
    %362 = arith.subf %361, %358 : vector<8x64xf32>
    %363 = arith.select %360, %362, %358 : vector<8x64xi1>, vector<8x64xf32>
    %cst_138 = arith.constant 5.000000e-01 : f32
    %364 = vector.broadcast %cst_138 : f32 to vector<8x64xf32>
    %365 = arith.mulf %364, %328 : vector<8x64xf32>
    %cst_139 = arith.constant 1.000000e+00 : f32
    %366 = vector.broadcast %cst_139 : f32 to vector<8x64xf32>
    %367 = arith.addf %366, %363 : vector<8x64xf32>
    %368 = arith.mulf %365, %367 : vector<8x64xf32>
    %c0_140 = arith.constant 0 : index
    %c0_141 = arith.constant 0 : index
    %c0_142 = arith.constant 0 : index
    %369 = vector.load %arg13[%c0_140, %c0_141, %c0_142] : memref<2x64x32xf32, #tpu.memory_space<vmem>>, vector<1x64x32xf32>
    %370 = vector.shape_cast %369 : vector<1x64x32xf32> to vector<64x32xf32>
    %cst_143 = arith.constant dense<0.000000e+00> : vector<8x32xf32>
    %371 = tpu.matmul %368, %370, %cst_143 {dimension_numbers = #tpu.dot_dimension_numbers<[1], [0], [0], [1], [0, 0, 1, 1], [], []>} : vector<8x64xf32>, vector<64x32xf32>, vector<8x32xf32> -> vector<8x32xf32>
    %c0_144 = arith.constant 0 : index
    %c0_145 = arith.constant 0 : index
    %c0_146 = arith.constant 0 : index
    %372 = vector.load %arg14[%c0_144, %c0_145, %c0_146] : memref<2x1x32xf32, #tpu.memory_space<vmem>>, vector<1x1x32xf32>
    %373 = vector.shape_cast %372 : vector<1x1x32xf32> to vector<1x32xf32>
    %374 = vector.broadcast %373 : vector<1x32xf32> to vector<8x32xf32>
    %375 = arith.addf %371, %374 : vector<8x32xf32>
    %376 = arith.addf %321, %375 : vector<8x32xf32>
    %c0_147 = arith.constant 0 : index
    %c0_148 = arith.constant 0 : index
    %c0_149 = arith.constant 0 : index
    %377 = vector.load %arg15[%c0_147, %c0_148, %c0_149] : memref<2x1x32xf32, #tpu.memory_space<vmem>>, vector<1x1x32xf32>
    %378 = vector.shape_cast %377 : vector<1x1x32xf32> to vector<1x32xf32>
    %c0_150 = arith.constant 0 : index
    %c0_151 = arith.constant 0 : index
    %c0_152 = arith.constant 0 : index
    %379 = vector.load %arg16[%c0_150, %c0_151, %c0_152] : memref<2x1x32xf32, #tpu.memory_space<vmem>>, vector<1x1x32xf32>
    %380 = vector.shape_cast %379 : vector<1x1x32xf32> to vector<1x32xf32>
    %cst_153 = arith.constant dense<0.000000e+00> : vector<8xf32>
    %381 = vector.multi_reduction <add>, %376, %cst_153 [1] : vector<8x32xf32> to vector<8xf32>
    %382 = vector.shape_cast %381 : vector<8xf32> to vector<8x1xf32>
    %cst_154 = arith.constant 3.200000e+01 : f32
    %383 = vector.broadcast %cst_154 : f32 to vector<8x1xf32>
    %384 = arith.divf %382, %383 : vector<8x1xf32>
    %385 = vector.broadcast %384 : vector<8x1xf32> to vector<8x32xf32>
    %386 = arith.subf %376, %385 : vector<8x32xf32>
    %387 = arith.mulf %386, %386 : vector<8x32xf32>
    %cst_155 = arith.constant dense<0.000000e+00> : vector<8xf32>
    %388 = vector.multi_reduction <add>, %387, %cst_155 [1] : vector<8x32xf32> to vector<8xf32>
    %389 = vector.shape_cast %388 : vector<8xf32> to vector<8x1xf32>
    %cst_156 = arith.constant 3.200000e+01 : f32
    %390 = vector.broadcast %cst_156 : f32 to vector<8x1xf32>
    %391 = arith.divf %389, %390 : vector<8x1xf32>
    %392 = vector.broadcast %384 : vector<8x1xf32> to vector<8x32xf32>
    %393 = arith.subf %376, %392 : vector<8x32xf32>
    %cst_157 = arith.constant 9.99999974E-6 : f32
    %394 = vector.broadcast %cst_157 : f32 to vector<8x1xf32>
    %395 = arith.addf %391, %394 : vector<8x1xf32>
    %396 = math.rsqrt %395 : vector<8x1xf32>
    %397 = vector.broadcast %396 : vector<8x1xf32> to vector<8x32xf32>
    %398 = arith.mulf %393, %397 : vector<8x32xf32>
    %399 = vector.broadcast %378 : vector<1x32xf32> to vector<8x32xf32>
    %400 = arith.mulf %398, %399 : vector<8x32xf32>
    %401 = vector.broadcast %380 : vector<1x32xf32> to vector<8x32xf32>
    %402 = arith.addf %400, %401 : vector<8x32xf32>
    %c1_158 = arith.constant 1 : index
    %c0_159 = arith.constant 0 : index
    %c0_160 = arith.constant 0 : index
    %403 = vector.load %arg5[%c1_158, %c0_159, %c0_160] : memref<2x32x96xf32, #tpu.memory_space<vmem>>, vector<1x32x96xf32>
    %404 = vector.shape_cast %403 : vector<1x32x96xf32> to vector<32x96xf32>
    %cst_161 = arith.constant dense<0.000000e+00> : vector<8x96xf32>
    %405 = tpu.matmul %402, %404, %cst_161 {dimension_numbers = #tpu.dot_dimension_numbers<[1], [0], [0], [1], [0, 0, 1, 1], [], []>} : vector<8x32xf32>, vector<32x96xf32>, vector<8x96xf32> -> vector<8x96xf32>
    %c1_162 = arith.constant 1 : index
    %c0_163 = arith.constant 0 : index
    %c0_164 = arith.constant 0 : index
    %406 = vector.load %arg6[%c1_162, %c0_163, %c0_164] : memref<2x1x96xf32, #tpu.memory_space<vmem>>, vector<1x1x96xf32>
    %407 = vector.shape_cast %406 : vector<1x1x96xf32> to vector<1x96xf32>
    %408 = vector.broadcast %407 : vector<1x96xf32> to vector<8x96xf32>
    %409 = arith.addf %405, %408 : vector<8x96xf32>
    %c1_165 = arith.constant 1 : index
    %c0_166 = arith.constant 0 : index
    %c0_167 = arith.constant 0 : index
    %410 = vector.load %arg7[%c1_165, %c0_166, %c0_167] : memref<2x32x32xf32, #tpu.memory_space<vmem>>, vector<1x32x32xf32>
    %411 = vector.shape_cast %410 : vector<1x32x32xf32> to vector<32x32xf32>
    %cst_168 = arith.constant 0.000000e+00 : f32
    %412 = vector.broadcast %cst_168 : f32 to vector<8x32xf32>
    %413 = vector.extract_strided_slice %409 {offsets = [0, 0], sizes = [8, 8], strides = [1, 1]} : vector<8x96xf32> to vector<8x8xf32>
    %414 = vector.extract_strided_slice %409 {offsets = [0, 32], sizes = [8, 8], strides = [1, 1]} : vector<8x96xf32> to vector<8x8xf32>
    %415 = vector.extract_strided_slice %409 {offsets = [0, 64], sizes = [8, 8], strides = [1, 1]} : vector<8x96xf32> to vector<8x8xf32>
    %cst_169 = arith.constant dense<0.000000e+00> : vector<8x8xf32>
    %416 = tpu.matmul %413, %414, %cst_169 {dimension_numbers = #tpu.dot_dimension_numbers<[1], [1], [0], [0], [0, 0, 1, 0], [], []>} : vector<8x8xf32>, vector<8x8xf32>, vector<8x8xf32> -> vector<8x8xf32>
    %417 = arith.addf %416, %11 : vector<8x8xf32>
    %cst_170 = arith.constant dense<0xFF800000> : vector<8xf32>
    %418 = vector.multi_reduction <maximumf>, %417, %cst_170 [1] : vector<8x8xf32> to vector<8xf32>
    %419 = vector.shape_cast %418 : vector<8xf32> to vector<8x1xf32>
    %420 = arith.mulf %416, %6 : vector<8x8xf32>
    %cst_171 = arith.constant dense<0.000000e+00> : vector<8xf32>
    %421 = vector.multi_reduction <add>, %420, %cst_171 [1] : vector<8x8xf32> to vector<8xf32>
    %422 = vector.shape_cast %421 : vector<8xf32> to vector<8x1xf32>
    %cst_172 = arith.constant 1.250000e-01 : f32
    %423 = vector.broadcast %cst_172 : f32 to vector<8x1xf32>
    %424 = arith.mulf %422, %423 : vector<8x1xf32>
    %425 = arith.subf %419, %424 : vector<8x1xf32>
    %426 = vector.broadcast %425 : vector<8x1xf32> to vector<8x8xf32>
    %427 = arith.mulf %5, %426 : vector<8x8xf32>
    %cst_173 = arith.constant dense<0.000000e+00> : vector<8xf32>
    %428 = vector.multi_reduction <add>, %427, %cst_173 [0] : vector<8x8xf32> to vector<8xf32>
    %429 = vector.shape_cast %428 : vector<8xf32> to vector<1x8xf32>
    %430 = vector.broadcast %429 : vector<1x8xf32> to vector<8x8xf32>
    %431 = vector.broadcast %425 : vector<8x1xf32> to vector<8x8xf32>
    %432 = arith.cmpf ogt, %430, %431 : vector<8x8xf32>
    %433 = vector.broadcast %429 : vector<1x8xf32> to vector<8x8xf32>
    %434 = vector.broadcast %425 : vector<8x1xf32> to vector<8x8xf32>
    %435 = arith.cmpf oeq, %433, %434 : vector<8x8xf32>
    %436 = arith.cmpi slt, %1, %0 : vector<8x8xi32>
    %437 = arith.andi %435, %436 : vector<8x8xi1>
    %438 = arith.ori %432, %437 : vector<8x8xi1>
    %cst_174 = arith.constant 1.000000e+00 : f32
    %cst_175 = arith.constant 0.000000e+00 : f32
    %439 = vector.broadcast %cst_174 : f32 to vector<8x8xf32>
    %440 = vector.broadcast %cst_175 : f32 to vector<8x8xf32>
    %441 = arith.select %438, %439, %440 : vector<8x8xi1>, vector<8x8xf32>
    %cst_176 = arith.constant dense<0.000000e+00> : vector<8xf32>
    %442 = vector.multi_reduction <add>, %441, %cst_176 [1] : vector<8x8xf32> to vector<8xf32>
    %443 = vector.shape_cast %442 : vector<8xf32> to vector<8x1xf32>
    %cst_177 = arith.constant 3.000000e+00 : f32
    %444 = vector.broadcast %cst_177 : f32 to vector<8x1xf32>
    %445 = arith.cmpf olt, %443, %444 : vector<8x1xf32>
    %cst_178 = arith.constant 0.353553385 : f32
    %446 = vector.broadcast %cst_178 : f32 to vector<8x8xf32>
    %447 = arith.mulf %416, %446 : vector<8x8xf32>
    %cst_179 = arith.constant dense<0xFF800000> : vector<8xf32>
    %448 = vector.multi_reduction <maximumf>, %447, %cst_179 [1] : vector<8x8xf32> to vector<8xf32>
    %449 = vector.shape_cast %448 : vector<8xf32> to vector<8x1xf32>
    %450 = vector.broadcast %449 : vector<8x1xf32> to vector<8x8xf32>
    %451 = arith.subf %447, %450 : vector<8x8xf32>
    %452 = math.exp %451 : vector<8x8xf32>
    %cst_180 = arith.constant dense<0.000000e+00> : vector<8xf32>
    %453 = vector.multi_reduction <add>, %452, %cst_180 [1] : vector<8x8xf32> to vector<8xf32>
    %454 = vector.shape_cast %453 : vector<8xf32> to vector<8x1xf32>
    %455 = vector.broadcast %454 : vector<8x1xf32> to vector<8x8xf32>
    %456 = arith.divf %452, %455 : vector<8x8xf32>
    %cst_181 = arith.constant dense<0.000000e+00> : vector<8x8xf32>
    %457 = tpu.matmul %456, %415, %cst_181 {dimension_numbers = #tpu.dot_dimension_numbers<[1], [0], [0], [1], [0, 0, 1, 1], [], []>} : vector<8x8xf32>, vector<8x8xf32>, vector<8x8xf32> -> vector<8x8xf32>
    %cst_182 = arith.constant dense<0.000000e+00> : vector<8xf32>
    %458 = vector.multi_reduction <add>, %415, %cst_182 [0] : vector<8x8xf32> to vector<8xf32>
    %459 = vector.shape_cast %458 : vector<8xf32> to vector<1x8xf32>
    %cst_183 = arith.constant 1.250000e-01 : f32
    %460 = vector.broadcast %cst_183 : f32 to vector<1x8xf32>
    %461 = arith.mulf %459, %460 : vector<1x8xf32>
    %462 = vector.shape_cast %445 : vector<8x1xi1> to vector<8x1xi1>
    %463 = vector.broadcast %462 : vector<8x1xi1> to vector<8x8xi1>
    %464 = vector.shape_cast %461 : vector<1x8xf32> to vector<1x8xf32>
    %465 = vector.broadcast %464 : vector<1x8xf32> to vector<8x8xf32>
    %466 = arith.select %463, %457, %465 : vector<8x8xi1>, vector<8x8xf32>
    %467 = vector.extract_strided_slice %411 {offsets = [0, 0], sizes = [8, 32], strides = [1, 1]} : vector<32x32xf32> to vector<8x32xf32>
    %cst_184 = arith.constant dense<0.000000e+00> : vector<8x32xf32>
    %468 = tpu.matmul %466, %467, %cst_184 {dimension_numbers = #tpu.dot_dimension_numbers<[1], [0], [0], [1], [0, 0, 1, 1], [], []>} : vector<8x8xf32>, vector<8x32xf32>, vector<8x32xf32> -> vector<8x32xf32>
    %469 = arith.addf %412, %468 : vector<8x32xf32>
    %470 = vector.extract_strided_slice %409 {offsets = [0, 8], sizes = [8, 8], strides = [1, 1]} : vector<8x96xf32> to vector<8x8xf32>
    %471 = vector.extract_strided_slice %409 {offsets = [0, 40], sizes = [8, 8], strides = [1, 1]} : vector<8x96xf32> to vector<8x8xf32>
    %472 = vector.extract_strided_slice %409 {offsets = [0, 72], sizes = [8, 8], strides = [1, 1]} : vector<8x96xf32> to vector<8x8xf32>
    %cst_185 = arith.constant dense<0.000000e+00> : vector<8x8xf32>
    %473 = tpu.matmul %470, %471, %cst_185 {dimension_numbers = #tpu.dot_dimension_numbers<[1], [1], [0], [0], [0, 0, 1, 0], [], []>} : vector<8x8xf32>, vector<8x8xf32>, vector<8x8xf32> -> vector<8x8xf32>
    %474 = arith.addf %473, %11 : vector<8x8xf32>
    %cst_186 = arith.constant dense<0xFF800000> : vector<8xf32>
    %475 = vector.multi_reduction <maximumf>, %474, %cst_186 [1] : vector<8x8xf32> to vector<8xf32>
    %476 = vector.shape_cast %475 : vector<8xf32> to vector<8x1xf32>
    %477 = arith.mulf %473, %6 : vector<8x8xf32>
    %cst_187 = arith.constant dense<0.000000e+00> : vector<8xf32>
    %478 = vector.multi_reduction <add>, %477, %cst_187 [1] : vector<8x8xf32> to vector<8xf32>
    %479 = vector.shape_cast %478 : vector<8xf32> to vector<8x1xf32>
    %cst_188 = arith.constant 1.250000e-01 : f32
    %480 = vector.broadcast %cst_188 : f32 to vector<8x1xf32>
    %481 = arith.mulf %479, %480 : vector<8x1xf32>
    %482 = arith.subf %476, %481 : vector<8x1xf32>
    %483 = vector.broadcast %482 : vector<8x1xf32> to vector<8x8xf32>
    %484 = arith.mulf %5, %483 : vector<8x8xf32>
    %cst_189 = arith.constant dense<0.000000e+00> : vector<8xf32>
    %485 = vector.multi_reduction <add>, %484, %cst_189 [0] : vector<8x8xf32> to vector<8xf32>
    %486 = vector.shape_cast %485 : vector<8xf32> to vector<1x8xf32>
    %487 = vector.broadcast %486 : vector<1x8xf32> to vector<8x8xf32>
    %488 = vector.broadcast %482 : vector<8x1xf32> to vector<8x8xf32>
    %489 = arith.cmpf ogt, %487, %488 : vector<8x8xf32>
    %490 = vector.broadcast %486 : vector<1x8xf32> to vector<8x8xf32>
    %491 = vector.broadcast %482 : vector<8x1xf32> to vector<8x8xf32>
    %492 = arith.cmpf oeq, %490, %491 : vector<8x8xf32>
    %493 = arith.cmpi slt, %1, %0 : vector<8x8xi32>
    %494 = arith.andi %492, %493 : vector<8x8xi1>
    %495 = arith.ori %489, %494 : vector<8x8xi1>
    %cst_190 = arith.constant 1.000000e+00 : f32
    %cst_191 = arith.constant 0.000000e+00 : f32
    %496 = vector.broadcast %cst_190 : f32 to vector<8x8xf32>
    %497 = vector.broadcast %cst_191 : f32 to vector<8x8xf32>
    %498 = arith.select %495, %496, %497 : vector<8x8xi1>, vector<8x8xf32>
    %cst_192 = arith.constant dense<0.000000e+00> : vector<8xf32>
    %499 = vector.multi_reduction <add>, %498, %cst_192 [1] : vector<8x8xf32> to vector<8xf32>
    %500 = vector.shape_cast %499 : vector<8xf32> to vector<8x1xf32>
    %cst_193 = arith.constant 3.000000e+00 : f32
    %501 = vector.broadcast %cst_193 : f32 to vector<8x1xf32>
    %502 = arith.cmpf olt, %500, %501 : vector<8x1xf32>
    %cst_194 = arith.constant 0.353553385 : f32
    %503 = vector.broadcast %cst_194 : f32 to vector<8x8xf32>
    %504 = arith.mulf %473, %503 : vector<8x8xf32>
    %cst_195 = arith.constant dense<0xFF800000> : vector<8xf32>
    %505 = vector.multi_reduction <maximumf>, %504, %cst_195 [1] : vector<8x8xf32> to vector<8xf32>
    %506 = vector.shape_cast %505 : vector<8xf32> to vector<8x1xf32>
    %507 = vector.broadcast %506 : vector<8x1xf32> to vector<8x8xf32>
    %508 = arith.subf %504, %507 : vector<8x8xf32>
    %509 = math.exp %508 : vector<8x8xf32>
    %cst_196 = arith.constant dense<0.000000e+00> : vector<8xf32>
    %510 = vector.multi_reduction <add>, %509, %cst_196 [1] : vector<8x8xf32> to vector<8xf32>
    %511 = vector.shape_cast %510 : vector<8xf32> to vector<8x1xf32>
    %512 = vector.broadcast %511 : vector<8x1xf32> to vector<8x8xf32>
    %513 = arith.divf %509, %512 : vector<8x8xf32>
    %cst_197 = arith.constant dense<0.000000e+00> : vector<8x8xf32>
    %514 = tpu.matmul %513, %472, %cst_197 {dimension_numbers = #tpu.dot_dimension_numbers<[1], [0], [0], [1], [0, 0, 1, 1], [], []>} : vector<8x8xf32>, vector<8x8xf32>, vector<8x8xf32> -> vector<8x8xf32>
    %cst_198 = arith.constant dense<0.000000e+00> : vector<8xf32>
    %515 = vector.multi_reduction <add>, %472, %cst_198 [0] : vector<8x8xf32> to vector<8xf32>
    %516 = vector.shape_cast %515 : vector<8xf32> to vector<1x8xf32>
    %cst_199 = arith.constant 1.250000e-01 : f32
    %517 = vector.broadcast %cst_199 : f32 to vector<1x8xf32>
    %518 = arith.mulf %516, %517 : vector<1x8xf32>
    %519 = vector.shape_cast %502 : vector<8x1xi1> to vector<8x1xi1>
    %520 = vector.broadcast %519 : vector<8x1xi1> to vector<8x8xi1>
    %521 = vector.shape_cast %518 : vector<1x8xf32> to vector<1x8xf32>
    %522 = vector.broadcast %521 : vector<1x8xf32> to vector<8x8xf32>
    %523 = arith.select %520, %514, %522 : vector<8x8xi1>, vector<8x8xf32>
    %524 = vector.extract_strided_slice %411 {offsets = [8, 0], sizes = [8, 32], strides = [1, 1]} : vector<32x32xf32> to vector<8x32xf32>
    %cst_200 = arith.constant dense<0.000000e+00> : vector<8x32xf32>
    %525 = tpu.matmul %523, %524, %cst_200 {dimension_numbers = #tpu.dot_dimension_numbers<[1], [0], [0], [1], [0, 0, 1, 1], [], []>} : vector<8x8xf32>, vector<8x32xf32>, vector<8x32xf32> -> vector<8x32xf32>
    %526 = arith.addf %469, %525 : vector<8x32xf32>
    %527 = vector.extract_strided_slice %409 {offsets = [0, 16], sizes = [8, 8], strides = [1, 1]} : vector<8x96xf32> to vector<8x8xf32>
    %528 = vector.extract_strided_slice %409 {offsets = [0, 48], sizes = [8, 8], strides = [1, 1]} : vector<8x96xf32> to vector<8x8xf32>
    %529 = vector.extract_strided_slice %409 {offsets = [0, 80], sizes = [8, 8], strides = [1, 1]} : vector<8x96xf32> to vector<8x8xf32>
    %cst_201 = arith.constant dense<0.000000e+00> : vector<8x8xf32>
    %530 = tpu.matmul %527, %528, %cst_201 {dimension_numbers = #tpu.dot_dimension_numbers<[1], [1], [0], [0], [0, 0, 1, 0], [], []>} : vector<8x8xf32>, vector<8x8xf32>, vector<8x8xf32> -> vector<8x8xf32>
    %531 = arith.addf %530, %11 : vector<8x8xf32>
    %cst_202 = arith.constant dense<0xFF800000> : vector<8xf32>
    %532 = vector.multi_reduction <maximumf>, %531, %cst_202 [1] : vector<8x8xf32> to vector<8xf32>
    %533 = vector.shape_cast %532 : vector<8xf32> to vector<8x1xf32>
    %534 = arith.mulf %530, %6 : vector<8x8xf32>
    %cst_203 = arith.constant dense<0.000000e+00> : vector<8xf32>
    %535 = vector.multi_reduction <add>, %534, %cst_203 [1] : vector<8x8xf32> to vector<8xf32>
    %536 = vector.shape_cast %535 : vector<8xf32> to vector<8x1xf32>
    %cst_204 = arith.constant 1.250000e-01 : f32
    %537 = vector.broadcast %cst_204 : f32 to vector<8x1xf32>
    %538 = arith.mulf %536, %537 : vector<8x1xf32>
    %539 = arith.subf %533, %538 : vector<8x1xf32>
    %540 = vector.broadcast %539 : vector<8x1xf32> to vector<8x8xf32>
    %541 = arith.mulf %5, %540 : vector<8x8xf32>
    %cst_205 = arith.constant dense<0.000000e+00> : vector<8xf32>
    %542 = vector.multi_reduction <add>, %541, %cst_205 [0] : vector<8x8xf32> to vector<8xf32>
    %543 = vector.shape_cast %542 : vector<8xf32> to vector<1x8xf32>
    %544 = vector.broadcast %543 : vector<1x8xf32> to vector<8x8xf32>
    %545 = vector.broadcast %539 : vector<8x1xf32> to vector<8x8xf32>
    %546 = arith.cmpf ogt, %544, %545 : vector<8x8xf32>
    %547 = vector.broadcast %543 : vector<1x8xf32> to vector<8x8xf32>
    %548 = vector.broadcast %539 : vector<8x1xf32> to vector<8x8xf32>
    %549 = arith.cmpf oeq, %547, %548 : vector<8x8xf32>
    %550 = arith.cmpi slt, %1, %0 : vector<8x8xi32>
    %551 = arith.andi %549, %550 : vector<8x8xi1>
    %552 = arith.ori %546, %551 : vector<8x8xi1>
    %cst_206 = arith.constant 1.000000e+00 : f32
    %cst_207 = arith.constant 0.000000e+00 : f32
    %553 = vector.broadcast %cst_206 : f32 to vector<8x8xf32>
    %554 = vector.broadcast %cst_207 : f32 to vector<8x8xf32>
    %555 = arith.select %552, %553, %554 : vector<8x8xi1>, vector<8x8xf32>
    %cst_208 = arith.constant dense<0.000000e+00> : vector<8xf32>
    %556 = vector.multi_reduction <add>, %555, %cst_208 [1] : vector<8x8xf32> to vector<8xf32>
    %557 = vector.shape_cast %556 : vector<8xf32> to vector<8x1xf32>
    %cst_209 = arith.constant 3.000000e+00 : f32
    %558 = vector.broadcast %cst_209 : f32 to vector<8x1xf32>
    %559 = arith.cmpf olt, %557, %558 : vector<8x1xf32>
    %cst_210 = arith.constant 0.353553385 : f32
    %560 = vector.broadcast %cst_210 : f32 to vector<8x8xf32>
    %561 = arith.mulf %530, %560 : vector<8x8xf32>
    %cst_211 = arith.constant dense<0xFF800000> : vector<8xf32>
    %562 = vector.multi_reduction <maximumf>, %561, %cst_211 [1] : vector<8x8xf32> to vector<8xf32>
    %563 = vector.shape_cast %562 : vector<8xf32> to vector<8x1xf32>
    %564 = vector.broadcast %563 : vector<8x1xf32> to vector<8x8xf32>
    %565 = arith.subf %561, %564 : vector<8x8xf32>
    %566 = math.exp %565 : vector<8x8xf32>
    %cst_212 = arith.constant dense<0.000000e+00> : vector<8xf32>
    %567 = vector.multi_reduction <add>, %566, %cst_212 [1] : vector<8x8xf32> to vector<8xf32>
    %568 = vector.shape_cast %567 : vector<8xf32> to vector<8x1xf32>
    %569 = vector.broadcast %568 : vector<8x1xf32> to vector<8x8xf32>
    %570 = arith.divf %566, %569 : vector<8x8xf32>
    %cst_213 = arith.constant dense<0.000000e+00> : vector<8x8xf32>
    %571 = tpu.matmul %570, %529, %cst_213 {dimension_numbers = #tpu.dot_dimension_numbers<[1], [0], [0], [1], [0, 0, 1, 1], [], []>} : vector<8x8xf32>, vector<8x8xf32>, vector<8x8xf32> -> vector<8x8xf32>
    %cst_214 = arith.constant dense<0.000000e+00> : vector<8xf32>
    %572 = vector.multi_reduction <add>, %529, %cst_214 [0] : vector<8x8xf32> to vector<8xf32>
    %573 = vector.shape_cast %572 : vector<8xf32> to vector<1x8xf32>
    %cst_215 = arith.constant 1.250000e-01 : f32
    %574 = vector.broadcast %cst_215 : f32 to vector<1x8xf32>
    %575 = arith.mulf %573, %574 : vector<1x8xf32>
    %576 = vector.shape_cast %559 : vector<8x1xi1> to vector<8x1xi1>
    %577 = vector.broadcast %576 : vector<8x1xi1> to vector<8x8xi1>
    %578 = vector.shape_cast %575 : vector<1x8xf32> to vector<1x8xf32>
    %579 = vector.broadcast %578 : vector<1x8xf32> to vector<8x8xf32>
    %580 = arith.select %577, %571, %579 : vector<8x8xi1>, vector<8x8xf32>
    %581 = vector.extract_strided_slice %411 {offsets = [16, 0], sizes = [8, 32], strides = [1, 1]} : vector<32x32xf32> to vector<8x32xf32>
    %cst_216 = arith.constant dense<0.000000e+00> : vector<8x32xf32>
    %582 = tpu.matmul %580, %581, %cst_216 {dimension_numbers = #tpu.dot_dimension_numbers<[1], [0], [0], [1], [0, 0, 1, 1], [], []>} : vector<8x8xf32>, vector<8x32xf32>, vector<8x32xf32> -> vector<8x32xf32>
    %583 = arith.addf %526, %582 : vector<8x32xf32>
    %584 = vector.extract_strided_slice %409 {offsets = [0, 24], sizes = [8, 8], strides = [1, 1]} : vector<8x96xf32> to vector<8x8xf32>
    %585 = vector.extract_strided_slice %409 {offsets = [0, 56], sizes = [8, 8], strides = [1, 1]} : vector<8x96xf32> to vector<8x8xf32>
    %586 = vector.extract_strided_slice %409 {offsets = [0, 88], sizes = [8, 8], strides = [1, 1]} : vector<8x96xf32> to vector<8x8xf32>
    %cst_217 = arith.constant dense<0.000000e+00> : vector<8x8xf32>
    %587 = tpu.matmul %584, %585, %cst_217 {dimension_numbers = #tpu.dot_dimension_numbers<[1], [1], [0], [0], [0, 0, 1, 0], [], []>} : vector<8x8xf32>, vector<8x8xf32>, vector<8x8xf32> -> vector<8x8xf32>
    %588 = arith.addf %587, %11 : vector<8x8xf32>
    %cst_218 = arith.constant dense<0xFF800000> : vector<8xf32>
    %589 = vector.multi_reduction <maximumf>, %588, %cst_218 [1] : vector<8x8xf32> to vector<8xf32>
    %590 = vector.shape_cast %589 : vector<8xf32> to vector<8x1xf32>
    %591 = arith.mulf %587, %6 : vector<8x8xf32>
    %cst_219 = arith.constant dense<0.000000e+00> : vector<8xf32>
    %592 = vector.multi_reduction <add>, %591, %cst_219 [1] : vector<8x8xf32> to vector<8xf32>
    %593 = vector.shape_cast %592 : vector<8xf32> to vector<8x1xf32>
    %cst_220 = arith.constant 1.250000e-01 : f32
    %594 = vector.broadcast %cst_220 : f32 to vector<8x1xf32>
    %595 = arith.mulf %593, %594 : vector<8x1xf32>
    %596 = arith.subf %590, %595 : vector<8x1xf32>
    %597 = vector.broadcast %596 : vector<8x1xf32> to vector<8x8xf32>
    %598 = arith.mulf %5, %597 : vector<8x8xf32>
    %cst_221 = arith.constant dense<0.000000e+00> : vector<8xf32>
    %599 = vector.multi_reduction <add>, %598, %cst_221 [0] : vector<8x8xf32> to vector<8xf32>
    %600 = vector.shape_cast %599 : vector<8xf32> to vector<1x8xf32>
    %601 = vector.broadcast %600 : vector<1x8xf32> to vector<8x8xf32>
    %602 = vector.broadcast %596 : vector<8x1xf32> to vector<8x8xf32>
    %603 = arith.cmpf ogt, %601, %602 : vector<8x8xf32>
    %604 = vector.broadcast %600 : vector<1x8xf32> to vector<8x8xf32>
    %605 = vector.broadcast %596 : vector<8x1xf32> to vector<8x8xf32>
    %606 = arith.cmpf oeq, %604, %605 : vector<8x8xf32>
    %607 = arith.cmpi slt, %1, %0 : vector<8x8xi32>
    %608 = arith.andi %606, %607 : vector<8x8xi1>
    %609 = arith.ori %603, %608 : vector<8x8xi1>
    %cst_222 = arith.constant 1.000000e+00 : f32
    %cst_223 = arith.constant 0.000000e+00 : f32
    %610 = vector.broadcast %cst_222 : f32 to vector<8x8xf32>
    %611 = vector.broadcast %cst_223 : f32 to vector<8x8xf32>
    %612 = arith.select %609, %610, %611 : vector<8x8xi1>, vector<8x8xf32>
    %cst_224 = arith.constant dense<0.000000e+00> : vector<8xf32>
    %613 = vector.multi_reduction <add>, %612, %cst_224 [1] : vector<8x8xf32> to vector<8xf32>
    %614 = vector.shape_cast %613 : vector<8xf32> to vector<8x1xf32>
    %cst_225 = arith.constant 3.000000e+00 : f32
    %615 = vector.broadcast %cst_225 : f32 to vector<8x1xf32>
    %616 = arith.cmpf olt, %614, %615 : vector<8x1xf32>
    %cst_226 = arith.constant 0.353553385 : f32
    %617 = vector.broadcast %cst_226 : f32 to vector<8x8xf32>
    %618 = arith.mulf %587, %617 : vector<8x8xf32>
    %cst_227 = arith.constant dense<0xFF800000> : vector<8xf32>
    %619 = vector.multi_reduction <maximumf>, %618, %cst_227 [1] : vector<8x8xf32> to vector<8xf32>
    %620 = vector.shape_cast %619 : vector<8xf32> to vector<8x1xf32>
    %621 = vector.broadcast %620 : vector<8x1xf32> to vector<8x8xf32>
    %622 = arith.subf %618, %621 : vector<8x8xf32>
    %623 = math.exp %622 : vector<8x8xf32>
    %cst_228 = arith.constant dense<0.000000e+00> : vector<8xf32>
    %624 = vector.multi_reduction <add>, %623, %cst_228 [1] : vector<8x8xf32> to vector<8xf32>
    %625 = vector.shape_cast %624 : vector<8xf32> to vector<8x1xf32>
    %626 = vector.broadcast %625 : vector<8x1xf32> to vector<8x8xf32>
    %627 = arith.divf %623, %626 : vector<8x8xf32>
    %cst_229 = arith.constant dense<0.000000e+00> : vector<8x8xf32>
    %628 = tpu.matmul %627, %586, %cst_229 {dimension_numbers = #tpu.dot_dimension_numbers<[1], [0], [0], [1], [0, 0, 1, 1], [], []>} : vector<8x8xf32>, vector<8x8xf32>, vector<8x8xf32> -> vector<8x8xf32>
    %cst_230 = arith.constant dense<0.000000e+00> : vector<8xf32>
    %629 = vector.multi_reduction <add>, %586, %cst_230 [0] : vector<8x8xf32> to vector<8xf32>
    %630 = vector.shape_cast %629 : vector<8xf32> to vector<1x8xf32>
    %cst_231 = arith.constant 1.250000e-01 : f32
    %631 = vector.broadcast %cst_231 : f32 to vector<1x8xf32>
    %632 = arith.mulf %630, %631 : vector<1x8xf32>
    %633 = vector.shape_cast %616 : vector<8x1xi1> to vector<8x1xi1>
    %634 = vector.broadcast %633 : vector<8x1xi1> to vector<8x8xi1>
    %635 = vector.shape_cast %632 : vector<1x8xf32> to vector<1x8xf32>
    %636 = vector.broadcast %635 : vector<1x8xf32> to vector<8x8xf32>
    %637 = arith.select %634, %628, %636 : vector<8x8xi1>, vector<8x8xf32>
    %638 = vector.extract_strided_slice %411 {offsets = [24, 0], sizes = [8, 32], strides = [1, 1]} : vector<32x32xf32> to vector<8x32xf32>
    %cst_232 = arith.constant dense<0.000000e+00> : vector<8x32xf32>
    %639 = tpu.matmul %637, %638, %cst_232 {dimension_numbers = #tpu.dot_dimension_numbers<[1], [0], [0], [1], [0, 0, 1, 1], [], []>} : vector<8x8xf32>, vector<8x32xf32>, vector<8x32xf32> -> vector<8x32xf32>
    %640 = arith.addf %583, %639 : vector<8x32xf32>
    %c1_233 = arith.constant 1 : index
    %c0_234 = arith.constant 0 : index
    %c0_235 = arith.constant 0 : index
    %641 = vector.load %arg8[%c1_233, %c0_234, %c0_235] : memref<2x1x32xf32, #tpu.memory_space<vmem>>, vector<1x1x32xf32>
    %642 = vector.shape_cast %641 : vector<1x1x32xf32> to vector<1x32xf32>
    %643 = vector.broadcast %642 : vector<1x32xf32> to vector<8x32xf32>
    %644 = arith.addf %640, %643 : vector<8x32xf32>
    %645 = arith.addf %402, %644 : vector<8x32xf32>
    %c1_236 = arith.constant 1 : index
    %c0_237 = arith.constant 0 : index
    %c0_238 = arith.constant 0 : index
    %646 = vector.load %arg9[%c1_236, %c0_237, %c0_238] : memref<2x1x32xf32, #tpu.memory_space<vmem>>, vector<1x1x32xf32>
    %647 = vector.shape_cast %646 : vector<1x1x32xf32> to vector<1x32xf32>
    %c1_239 = arith.constant 1 : index
    %c0_240 = arith.constant 0 : index
    %c0_241 = arith.constant 0 : index
    %648 = vector.load %arg10[%c1_239, %c0_240, %c0_241] : memref<2x1x32xf32, #tpu.memory_space<vmem>>, vector<1x1x32xf32>
    %649 = vector.shape_cast %648 : vector<1x1x32xf32> to vector<1x32xf32>
    %cst_242 = arith.constant dense<0.000000e+00> : vector<8xf32>
    %650 = vector.multi_reduction <add>, %645, %cst_242 [1] : vector<8x32xf32> to vector<8xf32>
    %651 = vector.shape_cast %650 : vector<8xf32> to vector<8x1xf32>
    %cst_243 = arith.constant 3.200000e+01 : f32
    %652 = vector.broadcast %cst_243 : f32 to vector<8x1xf32>
    %653 = arith.divf %651, %652 : vector<8x1xf32>
    %654 = vector.broadcast %653 : vector<8x1xf32> to vector<8x32xf32>
    %655 = arith.subf %645, %654 : vector<8x32xf32>
    %656 = arith.mulf %655, %655 : vector<8x32xf32>
    %cst_244 = arith.constant dense<0.000000e+00> : vector<8xf32>
    %657 = vector.multi_reduction <add>, %656, %cst_244 [1] : vector<8x32xf32> to vector<8xf32>
    %658 = vector.shape_cast %657 : vector<8xf32> to vector<8x1xf32>
    %cst_245 = arith.constant 3.200000e+01 : f32
    %659 = vector.broadcast %cst_245 : f32 to vector<8x1xf32>
    %660 = arith.divf %658, %659 : vector<8x1xf32>
    %661 = vector.broadcast %653 : vector<8x1xf32> to vector<8x32xf32>
    %662 = arith.subf %645, %661 : vector<8x32xf32>
    %cst_246 = arith.constant 9.99999974E-6 : f32
    %663 = vector.broadcast %cst_246 : f32 to vector<8x1xf32>
    %664 = arith.addf %660, %663 : vector<8x1xf32>
    %665 = math.rsqrt %664 : vector<8x1xf32>
    %666 = vector.broadcast %665 : vector<8x1xf32> to vector<8x32xf32>
    %667 = arith.mulf %662, %666 : vector<8x32xf32>
    %668 = vector.broadcast %647 : vector<1x32xf32> to vector<8x32xf32>
    %669 = arith.mulf %667, %668 : vector<8x32xf32>
    %670 = vector.broadcast %649 : vector<1x32xf32> to vector<8x32xf32>
    %671 = arith.addf %669, %670 : vector<8x32xf32>
    %c1_247 = arith.constant 1 : index
    %c0_248 = arith.constant 0 : index
    %c0_249 = arith.constant 0 : index
    %672 = vector.load %arg11[%c1_247, %c0_248, %c0_249] : memref<2x32x64xf32, #tpu.memory_space<vmem>>, vector<1x32x64xf32>
    %673 = vector.shape_cast %672 : vector<1x32x64xf32> to vector<32x64xf32>
    %cst_250 = arith.constant dense<0.000000e+00> : vector<8x64xf32>
    %674 = tpu.matmul %671, %673, %cst_250 {dimension_numbers = #tpu.dot_dimension_numbers<[1], [0], [0], [1], [0, 0, 1, 1], [], []>} : vector<8x32xf32>, vector<32x64xf32>, vector<8x64xf32> -> vector<8x64xf32>
    %c1_251 = arith.constant 1 : index
    %c0_252 = arith.constant 0 : index
    %c0_253 = arith.constant 0 : index
    %675 = vector.load %arg12[%c1_251, %c0_252, %c0_253] : memref<2x1x64xf32, #tpu.memory_space<vmem>>, vector<1x1x64xf32>
    %676 = vector.shape_cast %675 : vector<1x1x64xf32> to vector<1x64xf32>
    %677 = vector.broadcast %676 : vector<1x64xf32> to vector<8x64xf32>
    %678 = arith.addf %674, %677 : vector<8x64xf32>
    %cst_254 = arith.constant 0.707106769 : f32
    %679 = vector.broadcast %cst_254 : f32 to vector<8x64xf32>
    %680 = arith.mulf %678, %679 : vector<8x64xf32>
    %681 = math.absf %680 : vector<8x64xf32>
    %cst_255 = arith.constant 0.327591091 : f32
    %682 = vector.broadcast %cst_255 : f32 to vector<8x64xf32>
    %683 = arith.mulf %682, %681 : vector<8x64xf32>
    %cst_256 = arith.constant 1.000000e+00 : f32
    %684 = vector.broadcast %cst_256 : f32 to vector<8x64xf32>
    %685 = arith.addf %684, %683 : vector<8x64xf32>
    %cst_257 = arith.constant 1.000000e+00 : f32
    %686 = vector.broadcast %cst_257 : f32 to vector<8x64xf32>
    %687 = arith.divf %686, %685 : vector<8x64xf32>
    %cst_258 = arith.constant 1.06140542 : f32
    %688 = vector.broadcast %cst_258 : f32 to vector<8x64xf32>
    %689 = arith.mulf %687, %688 : vector<8x64xf32>
    %cst_259 = arith.constant -1.45315206 : f32
    %690 = vector.broadcast %cst_259 : f32 to vector<8x64xf32>
    %691 = arith.addf %690, %689 : vector<8x64xf32>
    %692 = arith.mulf %687, %691 : vector<8x64xf32>
    %cst_260 = arith.constant 1.42141378 : f32
    %693 = vector.broadcast %cst_260 : f32 to vector<8x64xf32>
    %694 = arith.addf %693, %692 : vector<8x64xf32>
    %695 = arith.mulf %687, %694 : vector<8x64xf32>
    %cst_261 = arith.constant -0.284496725 : f32
    %696 = vector.broadcast %cst_261 : f32 to vector<8x64xf32>
    %697 = arith.addf %696, %695 : vector<8x64xf32>
    %698 = arith.mulf %687, %697 : vector<8x64xf32>
    %cst_262 = arith.constant 0.254829586 : f32
    %699 = vector.broadcast %cst_262 : f32 to vector<8x64xf32>
    %700 = arith.addf %699, %698 : vector<8x64xf32>
    %701 = arith.mulf %687, %700 : vector<8x64xf32>
    %cst_263 = arith.constant 0.000000e+00 : f32
    %702 = vector.broadcast %cst_263 : f32 to vector<8x64xf32>
    %703 = arith.subf %702, %681 : vector<8x64xf32>
    %704 = arith.mulf %703, %681 : vector<8x64xf32>
    %705 = math.exp %704 : vector<8x64xf32>
    %706 = arith.mulf %701, %705 : vector<8x64xf32>
    %cst_264 = arith.constant 1.000000e+00 : f32
    %707 = vector.broadcast %cst_264 : f32 to vector<8x64xf32>
    %708 = arith.subf %707, %706 : vector<8x64xf32>
    %cst_265 = arith.constant 0.000000e+00 : f32
    %709 = vector.broadcast %cst_265 : f32 to vector<8x64xf32>
    %710 = arith.cmpf olt, %680, %709 : vector<8x64xf32>
    %cst_266 = arith.constant 0.000000e+00 : f32
    %711 = vector.broadcast %cst_266 : f32 to vector<8x64xf32>
    %712 = arith.subf %711, %708 : vector<8x64xf32>
    %713 = arith.select %710, %712, %708 : vector<8x64xi1>, vector<8x64xf32>
    %cst_267 = arith.constant 5.000000e-01 : f32
    %714 = vector.broadcast %cst_267 : f32 to vector<8x64xf32>
    %715 = arith.mulf %714, %678 : vector<8x64xf32>
    %cst_268 = arith.constant 1.000000e+00 : f32
    %716 = vector.broadcast %cst_268 : f32 to vector<8x64xf32>
    %717 = arith.addf %716, %713 : vector<8x64xf32>
    %718 = arith.mulf %715, %717 : vector<8x64xf32>
    %c1_269 = arith.constant 1 : index
    %c0_270 = arith.constant 0 : index
    %c0_271 = arith.constant 0 : index
    %719 = vector.load %arg13[%c1_269, %c0_270, %c0_271] : memref<2x64x32xf32, #tpu.memory_space<vmem>>, vector<1x64x32xf32>
    %720 = vector.shape_cast %719 : vector<1x64x32xf32> to vector<64x32xf32>
    %cst_272 = arith.constant dense<0.000000e+00> : vector<8x32xf32>
    %721 = tpu.matmul %718, %720, %cst_272 {dimension_numbers = #tpu.dot_dimension_numbers<[1], [0], [0], [1], [0, 0, 1, 1], [], []>} : vector<8x64xf32>, vector<64x32xf32>, vector<8x32xf32> -> vector<8x32xf32>
    %c1_273 = arith.constant 1 : index
    %c0_274 = arith.constant 0 : index
    %c0_275 = arith.constant 0 : index
    %722 = vector.load %arg14[%c1_273, %c0_274, %c0_275] : memref<2x1x32xf32, #tpu.memory_space<vmem>>, vector<1x1x32xf32>
    %723 = vector.shape_cast %722 : vector<1x1x32xf32> to vector<1x32xf32>
    %724 = vector.broadcast %723 : vector<1x32xf32> to vector<8x32xf32>
    %725 = arith.addf %721, %724 : vector<8x32xf32>
    %726 = arith.addf %671, %725 : vector<8x32xf32>
    %c1_276 = arith.constant 1 : index
    %c0_277 = arith.constant 0 : index
    %c0_278 = arith.constant 0 : index
    %727 = vector.load %arg15[%c1_276, %c0_277, %c0_278] : memref<2x1x32xf32, #tpu.memory_space<vmem>>, vector<1x1x32xf32>
    %728 = vector.shape_cast %727 : vector<1x1x32xf32> to vector<1x32xf32>
    %c1_279 = arith.constant 1 : index
    %c0_280 = arith.constant 0 : index
    %c0_281 = arith.constant 0 : index
    %729 = vector.load %arg16[%c1_279, %c0_280, %c0_281] : memref<2x1x32xf32, #tpu.memory_space<vmem>>, vector<1x1x32xf32>
    %730 = vector.shape_cast %729 : vector<1x1x32xf32> to vector<1x32xf32>
    %cst_282 = arith.constant dense<0.000000e+00> : vector<8xf32>
    %731 = vector.multi_reduction <add>, %726, %cst_282 [1] : vector<8x32xf32> to vector<8xf32>
    %732 = vector.shape_cast %731 : vector<8xf32> to vector<8x1xf32>
    %cst_283 = arith.constant 3.200000e+01 : f32
    %733 = vector.broadcast %cst_283 : f32 to vector<8x1xf32>
    %734 = arith.divf %732, %733 : vector<8x1xf32>
    %735 = vector.broadcast %734 : vector<8x1xf32> to vector<8x32xf32>
    %736 = arith.subf %726, %735 : vector<8x32xf32>
    %737 = arith.mulf %736, %736 : vector<8x32xf32>
    %cst_284 = arith.constant dense<0.000000e+00> : vector<8xf32>
    %738 = vector.multi_reduction <add>, %737, %cst_284 [1] : vector<8x32xf32> to vector<8xf32>
    %739 = vector.shape_cast %738 : vector<8xf32> to vector<8x1xf32>
    %cst_285 = arith.constant 3.200000e+01 : f32
    %740 = vector.broadcast %cst_285 : f32 to vector<8x1xf32>
    %741 = arith.divf %739, %740 : vector<8x1xf32>
    %742 = vector.broadcast %734 : vector<8x1xf32> to vector<8x32xf32>
    %743 = arith.subf %726, %742 : vector<8x32xf32>
    %cst_286 = arith.constant 9.99999974E-6 : f32
    %744 = vector.broadcast %cst_286 : f32 to vector<8x1xf32>
    %745 = arith.addf %741, %744 : vector<8x1xf32>
    %746 = math.rsqrt %745 : vector<8x1xf32>
    %747 = vector.broadcast %746 : vector<8x1xf32> to vector<8x32xf32>
    %748 = arith.mulf %743, %747 : vector<8x32xf32>
    %749 = vector.broadcast %728 : vector<1x32xf32> to vector<8x32xf32>
    %750 = arith.mulf %748, %749 : vector<8x32xf32>
    %751 = vector.broadcast %730 : vector<1x32xf32> to vector<8x32xf32>
    %752 = arith.addf %750, %751 : vector<8x32xf32>
    %c0_287 = arith.constant 0 : index
    %c0_288 = arith.constant 0 : index
    %753 = vector.load %arg17[%c0_287, %c0_288] : memref<1x32xf32, #tpu.memory_space<vmem>>, vector<1x32xf32>
    %c0_289 = arith.constant 0 : index
    %c0_290 = arith.constant 0 : index
    %754 = vector.load %arg18[%c0_289, %c0_290] : memref<1x32xf32, #tpu.memory_space<vmem>>, vector<1x32xf32>
    %cst_291 = arith.constant dense<0.000000e+00> : vector<8xf32>
    %755 = vector.multi_reduction <add>, %752, %cst_291 [1] : vector<8x32xf32> to vector<8xf32>
    %756 = vector.shape_cast %755 : vector<8xf32> to vector<8x1xf32>
    %cst_292 = arith.constant 3.200000e+01 : f32
    %757 = vector.broadcast %cst_292 : f32 to vector<8x1xf32>
    %758 = arith.divf %756, %757 : vector<8x1xf32>
    %759 = vector.broadcast %758 : vector<8x1xf32> to vector<8x32xf32>
    %760 = arith.subf %752, %759 : vector<8x32xf32>
    %761 = arith.mulf %760, %760 : vector<8x32xf32>
    %cst_293 = arith.constant dense<0.000000e+00> : vector<8xf32>
    %762 = vector.multi_reduction <add>, %761, %cst_293 [1] : vector<8x32xf32> to vector<8xf32>
    %763 = vector.shape_cast %762 : vector<8xf32> to vector<8x1xf32>
    %cst_294 = arith.constant 3.200000e+01 : f32
    %764 = vector.broadcast %cst_294 : f32 to vector<8x1xf32>
    %765 = arith.divf %763, %764 : vector<8x1xf32>
    %766 = vector.broadcast %758 : vector<8x1xf32> to vector<8x32xf32>
    %767 = arith.subf %752, %766 : vector<8x32xf32>
    %cst_295 = arith.constant 9.99999974E-6 : f32
    %768 = vector.broadcast %cst_295 : f32 to vector<8x1xf32>
    %769 = arith.addf %765, %768 : vector<8x1xf32>
    %770 = math.rsqrt %769 : vector<8x1xf32>
    %771 = vector.broadcast %770 : vector<8x1xf32> to vector<8x32xf32>
    %772 = arith.mulf %767, %771 : vector<8x32xf32>
    %773 = vector.broadcast %753 : vector<1x32xf32> to vector<8x32xf32>
    %774 = arith.mulf %772, %773 : vector<8x32xf32>
    %775 = vector.broadcast %754 : vector<1x32xf32> to vector<8x32xf32>
    %776 = arith.addf %774, %775 : vector<8x32xf32>
    %cst_296 = arith.constant 0.707106769 : f32
    %777 = vector.broadcast %cst_296 : f32 to vector<8x32xf32>
    %778 = arith.mulf %776, %777 : vector<8x32xf32>
    %779 = math.absf %778 : vector<8x32xf32>
    %cst_297 = arith.constant 0.327591091 : f32
    %780 = vector.broadcast %cst_297 : f32 to vector<8x32xf32>
    %781 = arith.mulf %780, %779 : vector<8x32xf32>
    %cst_298 = arith.constant 1.000000e+00 : f32
    %782 = vector.broadcast %cst_298 : f32 to vector<8x32xf32>
    %783 = arith.addf %782, %781 : vector<8x32xf32>
    %cst_299 = arith.constant 1.000000e+00 : f32
    %784 = vector.broadcast %cst_299 : f32 to vector<8x32xf32>
    %785 = arith.divf %784, %783 : vector<8x32xf32>
    %cst_300 = arith.constant 1.06140542 : f32
    %786 = vector.broadcast %cst_300 : f32 to vector<8x32xf32>
    %787 = arith.mulf %785, %786 : vector<8x32xf32>
    %cst_301 = arith.constant -1.45315206 : f32
    %788 = vector.broadcast %cst_301 : f32 to vector<8x32xf32>
    %789 = arith.addf %788, %787 : vector<8x32xf32>
    %790 = arith.mulf %785, %789 : vector<8x32xf32>
    %cst_302 = arith.constant 1.42141378 : f32
    %791 = vector.broadcast %cst_302 : f32 to vector<8x32xf32>
    %792 = arith.addf %791, %790 : vector<8x32xf32>
    %793 = arith.mulf %785, %792 : vector<8x32xf32>
    %cst_303 = arith.constant -0.284496725 : f32
    %794 = vector.broadcast %cst_303 : f32 to vector<8x32xf32>
    %795 = arith.addf %794, %793 : vector<8x32xf32>
    %796 = arith.mulf %785, %795 : vector<8x32xf32>
    %cst_304 = arith.constant 0.254829586 : f32
    %797 = vector.broadcast %cst_304 : f32 to vector<8x32xf32>
    %798 = arith.addf %797, %796 : vector<8x32xf32>
    %799 = arith.mulf %785, %798 : vector<8x32xf32>
    %cst_305 = arith.constant 0.000000e+00 : f32
    %800 = vector.broadcast %cst_305 : f32 to vector<8x32xf32>
    %801 = arith.subf %800, %779 : vector<8x32xf32>
    %802 = arith.mulf %801, %779 : vector<8x32xf32>
    %803 = math.exp %802 : vector<8x32xf32>
    %804 = arith.mulf %799, %803 : vector<8x32xf32>
    %cst_306 = arith.constant 1.000000e+00 : f32
    %805 = vector.broadcast %cst_306 : f32 to vector<8x32xf32>
    %806 = arith.subf %805, %804 : vector<8x32xf32>
    %cst_307 = arith.constant 0.000000e+00 : f32
    %807 = vector.broadcast %cst_307 : f32 to vector<8x32xf32>
    %808 = arith.cmpf olt, %778, %807 : vector<8x32xf32>
    %cst_308 = arith.constant 0.000000e+00 : f32
    %809 = vector.broadcast %cst_308 : f32 to vector<8x32xf32>
    %810 = arith.subf %809, %806 : vector<8x32xf32>
    %811 = arith.select %808, %810, %806 : vector<8x32xi1>, vector<8x32xf32>
    %cst_309 = arith.constant 5.000000e-01 : f32
    %812 = vector.broadcast %cst_309 : f32 to vector<8x32xf32>
    %813 = arith.mulf %812, %776 : vector<8x32xf32>
    %cst_310 = arith.constant 1.000000e+00 : f32
    %814 = vector.broadcast %cst_310 : f32 to vector<8x32xf32>
    %815 = arith.addf %814, %811 : vector<8x32xf32>
    %816 = arith.mulf %813, %815 : vector<8x32xf32>
    %c0_311 = arith.constant 0 : index
    %c0_312 = arith.constant 0 : index
    %817 = vector.load %arg20[%c0_311, %c0_312] : memref<1x128xf32, #tpu.memory_space<vmem>>, vector<1x128xf32>
    %818 = vector.extract_strided_slice %816 {offsets = [0, 0], sizes = [1, 32], strides = [1, 1]} : vector<8x32xf32> to vector<1x32xf32>
    %c0_313 = arith.constant 0 : index
    %c0_314 = arith.constant 0 : index
    %c0_315 = arith.constant 0 : index
    %819 = vector.load %arg19[%c0_313, %c0_314, %c0_315] : memref<8x32x128xf32, #tpu.memory_space<vmem>>, vector<1x32x128xf32>
    %820 = vector.shape_cast %819 : vector<1x32x128xf32> to vector<32x128xf32>
    %cst_316 = arith.constant dense<0.000000e+00> : vector<1x128xf32>
    %821 = tpu.matmul %818, %820, %cst_316 {dimension_numbers = #tpu.dot_dimension_numbers<[1], [0], [0], [1], [0, 0, 1, 1], [], []>} : vector<1x32xf32>, vector<32x128xf32>, vector<1x128xf32> -> vector<1x128xf32>
    %822 = arith.addf %817, %821 : vector<1x128xf32>
    %823 = vector.extract_strided_slice %816 {offsets = [1, 0], sizes = [1, 32], strides = [1, 1]} : vector<8x32xf32> to vector<1x32xf32>
    %c1_317 = arith.constant 1 : index
    %c0_318 = arith.constant 0 : index
    %c0_319 = arith.constant 0 : index
    %824 = vector.load %arg19[%c1_317, %c0_318, %c0_319] : memref<8x32x128xf32, #tpu.memory_space<vmem>>, vector<1x32x128xf32>
    %825 = vector.shape_cast %824 : vector<1x32x128xf32> to vector<32x128xf32>
    %cst_320 = arith.constant dense<0.000000e+00> : vector<1x128xf32>
    %826 = tpu.matmul %823, %825, %cst_320 {dimension_numbers = #tpu.dot_dimension_numbers<[1], [0], [0], [1], [0, 0, 1, 1], [], []>} : vector<1x32xf32>, vector<32x128xf32>, vector<1x128xf32> -> vector<1x128xf32>
    %827 = arith.addf %822, %826 : vector<1x128xf32>
    %828 = vector.extract_strided_slice %816 {offsets = [2, 0], sizes = [1, 32], strides = [1, 1]} : vector<8x32xf32> to vector<1x32xf32>
    %c2_321 = arith.constant 2 : index
    %c0_322 = arith.constant 0 : index
    %c0_323 = arith.constant 0 : index
    %829 = vector.load %arg19[%c2_321, %c0_322, %c0_323] : memref<8x32x128xf32, #tpu.memory_space<vmem>>, vector<1x32x128xf32>
    %830 = vector.shape_cast %829 : vector<1x32x128xf32> to vector<32x128xf32>
    %cst_324 = arith.constant dense<0.000000e+00> : vector<1x128xf32>
    %831 = tpu.matmul %828, %830, %cst_324 {dimension_numbers = #tpu.dot_dimension_numbers<[1], [0], [0], [1], [0, 0, 1, 1], [], []>} : vector<1x32xf32>, vector<32x128xf32>, vector<1x128xf32> -> vector<1x128xf32>
    %832 = arith.addf %827, %831 : vector<1x128xf32>
    %833 = vector.extract_strided_slice %816 {offsets = [3, 0], sizes = [1, 32], strides = [1, 1]} : vector<8x32xf32> to vector<1x32xf32>
    %c3 = arith.constant 3 : index
    %c0_325 = arith.constant 0 : index
    %c0_326 = arith.constant 0 : index
    %834 = vector.load %arg19[%c3, %c0_325, %c0_326] : memref<8x32x128xf32, #tpu.memory_space<vmem>>, vector<1x32x128xf32>
    %835 = vector.shape_cast %834 : vector<1x32x128xf32> to vector<32x128xf32>
    %cst_327 = arith.constant dense<0.000000e+00> : vector<1x128xf32>
    %836 = tpu.matmul %833, %835, %cst_327 {dimension_numbers = #tpu.dot_dimension_numbers<[1], [0], [0], [1], [0, 0, 1, 1], [], []>} : vector<1x32xf32>, vector<32x128xf32>, vector<1x128xf32> -> vector<1x128xf32>
    %837 = arith.addf %832, %836 : vector<1x128xf32>
    %838 = vector.extract_strided_slice %816 {offsets = [4, 0], sizes = [1, 32], strides = [1, 1]} : vector<8x32xf32> to vector<1x32xf32>
    %c4 = arith.constant 4 : index
    %c0_328 = arith.constant 0 : index
    %c0_329 = arith.constant 0 : index
    %839 = vector.load %arg19[%c4, %c0_328, %c0_329] : memref<8x32x128xf32, #tpu.memory_space<vmem>>, vector<1x32x128xf32>
    %840 = vector.shape_cast %839 : vector<1x32x128xf32> to vector<32x128xf32>
    %cst_330 = arith.constant dense<0.000000e+00> : vector<1x128xf32>
    %841 = tpu.matmul %838, %840, %cst_330 {dimension_numbers = #tpu.dot_dimension_numbers<[1], [0], [0], [1], [0, 0, 1, 1], [], []>} : vector<1x32xf32>, vector<32x128xf32>, vector<1x128xf32> -> vector<1x128xf32>
    %842 = arith.addf %837, %841 : vector<1x128xf32>
    %843 = vector.extract_strided_slice %816 {offsets = [5, 0], sizes = [1, 32], strides = [1, 1]} : vector<8x32xf32> to vector<1x32xf32>
    %c5 = arith.constant 5 : index
    %c0_331 = arith.constant 0 : index
    %c0_332 = arith.constant 0 : index
    %844 = vector.load %arg19[%c5, %c0_331, %c0_332] : memref<8x32x128xf32, #tpu.memory_space<vmem>>, vector<1x32x128xf32>
    %845 = vector.shape_cast %844 : vector<1x32x128xf32> to vector<32x128xf32>
    %cst_333 = arith.constant dense<0.000000e+00> : vector<1x128xf32>
    %846 = tpu.matmul %843, %845, %cst_333 {dimension_numbers = #tpu.dot_dimension_numbers<[1], [0], [0], [1], [0, 0, 1, 1], [], []>} : vector<1x32xf32>, vector<32x128xf32>, vector<1x128xf32> -> vector<1x128xf32>
    %847 = arith.addf %842, %846 : vector<1x128xf32>
    %848 = vector.extract_strided_slice %816 {offsets = [6, 0], sizes = [1, 32], strides = [1, 1]} : vector<8x32xf32> to vector<1x32xf32>
    %c6 = arith.constant 6 : index
    %c0_334 = arith.constant 0 : index
    %c0_335 = arith.constant 0 : index
    %849 = vector.load %arg19[%c6, %c0_334, %c0_335] : memref<8x32x128xf32, #tpu.memory_space<vmem>>, vector<1x32x128xf32>
    %850 = vector.shape_cast %849 : vector<1x32x128xf32> to vector<32x128xf32>
    %cst_336 = arith.constant dense<0.000000e+00> : vector<1x128xf32>
    %851 = tpu.matmul %848, %850, %cst_336 {dimension_numbers = #tpu.dot_dimension_numbers<[1], [0], [0], [1], [0, 0, 1, 1], [], []>} : vector<1x32xf32>, vector<32x128xf32>, vector<1x128xf32> -> vector<1x128xf32>
    %852 = arith.addf %847, %851 : vector<1x128xf32>
    %853 = vector.extract_strided_slice %816 {offsets = [7, 0], sizes = [1, 32], strides = [1, 1]} : vector<8x32xf32> to vector<1x32xf32>
    %c7 = arith.constant 7 : index
    %c0_337 = arith.constant 0 : index
    %c0_338 = arith.constant 0 : index
    %854 = vector.load %arg19[%c7, %c0_337, %c0_338] : memref<8x32x128xf32, #tpu.memory_space<vmem>>, vector<1x32x128xf32>
    %855 = vector.shape_cast %854 : vector<1x32x128xf32> to vector<32x128xf32>
    %cst_339 = arith.constant dense<0.000000e+00> : vector<1x128xf32>
    %856 = tpu.matmul %853, %855, %cst_339 {dimension_numbers = #tpu.dot_dimension_numbers<[1], [0], [0], [1], [0, 0, 1, 1], [], []>} : vector<1x32xf32>, vector<32x128xf32>, vector<1x128xf32> -> vector<1x128xf32>
    %857 = arith.addf %852, %856 : vector<1x128xf32>
    %c0_340 = arith.constant 0 : index
    %c0_341 = arith.constant 0 : index
    %c0_342 = arith.constant 0 : index
    %858 = vector.load %arg21[%c0_340, %c0_341, %c0_342] : memref<1x1x128xf32, #tpu.memory_space<vmem>>, vector<1x1x128xf32>
    %859 = vector.shape_cast %858 : vector<1x1x128xf32> to vector<1x128xf32>
    %860 = vector.shape_cast %857 : vector<1x128xf32> to vector<1x1x128xf32>
    tpu.vector_store %arg21[%c0_340, %c0_341, %c0_342], %860 {strides = array<i32>} : memref<1x1x128xf32, #tpu.memory_space<vmem>>, vector<1x1x128xf32>,
    return
  }
  func.func @transform_0(%arg0: i32) -> (i32, i32, i32) {
    %c0_i32 = arith.constant 0 : i32
    %c0_i32_0 = arith.constant 0 : i32
    %c0_i32_1 = arith.constant 0 : i32
    return %arg0, %c0_i32, %c0_i32_0 : i32, i32, i32
  }
  func.func @transform_1(%arg0: i32) -> (i32, i32, i32) {
    %c0_i32 = arith.constant 0 : i32
    %c0_i32_0 = arith.constant 0 : i32
    %c0_i32_1 = arith.constant 0 : i32
    %c0_i32_2 = arith.constant 0 : i32
    return %c0_i32, %c0_i32_0, %c0_i32_1 : i32, i32, i32
  }
  func.func @transform_2(%arg0: i32) -> (i32, i32) {
    %c0_i32 = arith.constant 0 : i32
    %c0_i32_0 = arith.constant 0 : i32
    %c0_i32_1 = arith.constant 0 : i32
    return %c0_i32, %c0_i32_0 : i32, i32
  }
  func.func @transform_3(%arg0: i32) -> (i32, i32) {
    %c0_i32 = arith.constant 0 : i32
    %c0_i32_0 = arith.constant 0 : i32
    %c0_i32_1 = arith.constant 0 : i32
    return %c0_i32, %c0_i32_0 : i32, i32
  }
  func.func @transform_4(%arg0: i32) -> (i32, i32, i32) {
    %c0_i32 = arith.constant 0 : i32
    %c0_i32_0 = arith.constant 0 : i32
    %c0_i32_1 = arith.constant 0 : i32
    %c0_i32_2 = arith.constant 0 : i32
    return %c0_i32, %c0_i32_0, %c0_i32_1 : i32, i32, i32
  }
  func.func @transform_5(%arg0: i32) -> (i32, i32, i32) {
    %c0_i32 = arith.constant 0 : i32
    %c0_i32_0 = arith.constant 0 : i32
    %c0_i32_1 = arith.constant 0 : i32
    %c0_i32_2 = arith.constant 0 : i32
    return %c0_i32, %c0_i32_0, %c0_i32_1 : i32, i32, i32
  }
  func.func @transform_6(%arg0: i32) -> (i32, i32, i32) {
    %c0_i32 = arith.constant 0 : i32
    %c0_i32_0 = arith.constant 0 : i32
    %c0_i32_1 = arith.constant 0 : i32
    %c0_i32_2 = arith.constant 0 : i32
    return %c0_i32, %c0_i32_0, %c0_i32_1 : i32, i32, i32
  }
  func.func @transform_7(%arg0: i32) -> (i32, i32, i32) {
    %c0_i32 = arith.constant 0 : i32
    %c0_i32_0 = arith.constant 0 : i32
    %c0_i32_1 = arith.constant 0 : i32
    %c0_i32_2 = arith.constant 0 : i32
    return %c0_i32, %c0_i32_0, %c0_i32_1 : i32, i32, i32
  }
  func.func @transform_8(%arg0: i32) -> (i32, i32, i32) {
    %c0_i32 = arith.constant 0 : i32
    %c0_i32_0 = arith.constant 0 : i32
    %c0_i32_1 = arith.constant 0 : i32
    %c0_i32_2 = arith.constant 0 : i32
    return %c0_i32, %c0_i32_0, %c0_i32_1 : i32, i32, i32
  }
  func.func @transform_9(%arg0: i32) -> (i32, i32, i32) {
    %c0_i32 = arith.constant 0 : i32
    %c0_i32_0 = arith.constant 0 : i32
    %c0_i32_1 = arith.constant 0 : i32
    %c0_i32_2 = arith.constant 0 : i32
    return %c0_i32, %c0_i32_0, %c0_i32_1 : i32, i32, i32
  }
  func.func @transform_10(%arg0: i32) -> (i32, i32, i32) {
    %c0_i32 = arith.constant 0 : i32
    %c0_i32_0 = arith.constant 0 : i32
    %c0_i32_1 = arith.constant 0 : i32
    %c0_i32_2 = arith.constant 0 : i32
    return %c0_i32, %c0_i32_0, %c0_i32_1 : i32, i32, i32
  }
  func.func @transform_11(%arg0: i32) -> (i32, i32, i32) {
    %c0_i32 = arith.constant 0 : i32
    %c0_i32_0 = arith.constant 0 : i32
    %c0_i32_1 = arith.constant 0 : i32
    %c0_i32_2 = arith.constant 0 : i32
    return %c0_i32, %c0_i32_0, %c0_i32_1 : i32, i32, i32
  }
  func.func @transform_12(%arg0: i32) -> (i32, i32, i32) {
    %c0_i32 = arith.constant 0 : i32
    %c0_i32_0 = arith.constant 0 : i32
    %c0_i32_1 = arith.constant 0 : i32
    %c0_i32_2 = arith.constant 0 : i32
    return %c0_i32, %c0_i32_0, %c0_i32_1 : i32, i32, i32
  }
  func.func @transform_13(%arg0: i32) -> (i32, i32, i32) {
    %c0_i32 = arith.constant 0 : i32
    %c0_i32_0 = arith.constant 0 : i32
    %c0_i32_1 = arith.constant 0 : i32
    %c0_i32_2 = arith.constant 0 : i32
    return %c0_i32, %c0_i32_0, %c0_i32_1 : i32, i32, i32
  }
  func.func @transform_14(%arg0: i32) -> (i32, i32, i32) {
    %c0_i32 = arith.constant 0 : i32
    %c0_i32_0 = arith.constant 0 : i32
    %c0_i32_1 = arith.constant 0 : i32
    %c0_i32_2 = arith.constant 0 : i32
    return %c0_i32, %c0_i32_0, %c0_i32_1 : i32, i32, i32
  }
  func.func @transform_15(%arg0: i32) -> (i32, i32, i32) {
    %c0_i32 = arith.constant 0 : i32
    %c0_i32_0 = arith.constant 0 : i32
    %c0_i32_1 = arith.constant 0 : i32
    %c0_i32_2 = arith.constant 0 : i32
    return %c0_i32, %c0_i32_0, %c0_i32_1 : i32, i32, i32
  }
  func.func @transform_16(%arg0: i32) -> (i32, i32) {
    %c0_i32 = arith.constant 0 : i32
    %c0_i32_0 = arith.constant 0 : i32
    %c0_i32_1 = arith.constant 0 : i32
    return %c0_i32, %c0_i32_0 : i32, i32
  }
  func.func @transform_17(%arg0: i32) -> (i32, i32) {
    %c0_i32 = arith.constant 0 : i32
    %c0_i32_0 = arith.constant 0 : i32
    %c0_i32_1 = arith.constant 0 : i32
    return %c0_i32, %c0_i32_0 : i32, i32
  }
  func.func @transform_18(%arg0: i32) -> (i32, i32, i32) {
    %c0_i32 = arith.constant 0 : i32
    %c0_i32_0 = arith.constant 0 : i32
    %c0_i32_1 = arith.constant 0 : i32
    %c0_i32_2 = arith.constant 0 : i32
    return %c0_i32, %c0_i32_0, %c0_i32_1 : i32, i32, i32
  }
  func.func @transform_19(%arg0: i32) -> (i32, i32) {
    %c0_i32 = arith.constant 0 : i32
    %c0_i32_0 = arith.constant 0 : i32
    %c0_i32_1 = arith.constant 0 : i32
    return %c0_i32, %c0_i32_0 : i32, i32
  }
  func.func @transform_20(%arg0: i32) -> (i32, i32, i32) {
    %c0_i32 = arith.constant 0 : i32
    %c0_i32_0 = arith.constant 0 : i32
    %c0_i32_1 = arith.constant 0 : i32
    return %arg0, %c0_i32, %c0_i32_0 : i32, i32, i32
  }
}

</mosaic_0001>

<llo_original>
// kernel: model_forward.1
$region0: #{model_forward.1}
  #allocation0 [shape = 'u32[]', space=smem, size = 0x4, offset = 0x4, fixed_abs, tag = 'smem constant byte address 0x4 - core index']
  #allocation1 [shape = 'u32[144,128]{1,0:T(1,128)}', space=vmem, size = 0x12000, scoped, tag = 'internal scratch']
  %s0 = inlined_call_operand.vmem [shape: f32[2,8,4], index: 0, kind: input, shape index: {}]
  %s1 = inlined_call_operand.vmem [shape: f32[3,4,32], index: 1, kind: input, shape index: {}]
  %s2 = inlined_call_operand.hbm [shape: f32[8,32], index: 2, kind: input, shape index: {}]
  %s3 = inlined_call_operand.hbm [shape: f32[8,8], index: 3, kind: input, shape index: {}]
  %s4 = inlined_call_operand.hbm [shape: f32[2,32,96], index: 4, kind: input, shape index: {}]
  %s5 = inlined_call_operand.hbm [shape: f32[2,1,96], index: 5, kind: input, shape index: {}]
  %s6 = inlined_call_operand.hbm [shape: f32[2,32,32], index: 6, kind: input, shape index: {}]
  %s7 = inlined_call_operand.hbm [shape: f32[2,1,32], index: 7, kind: input, shape index: {}]
  %s8 = inlined_call_operand.hbm [shape: f32[2,1,32], index: 8, kind: input, shape index: {}]
  %s9 = inlined_call_operand.hbm [shape: f32[2,1,32], index: 9, kind: input, shape index: {}]
  %s10 = inlined_call_operand.hbm [shape: f32[2,32,64], index: 10, kind: input, shape index: {}]
  %s11 = inlined_call_operand.hbm [shape: f32[2,1,64], index: 11, kind: input, shape index: {}]
  %s12 = inlined_call_operand.vmem [shape: f32[2,64,32], index: 12, kind: input, shape index: {}]
  %s13 = inlined_call_operand.hbm [shape: f32[2,1,32], index: 13, kind: input, shape index: {}]
  %s14 = inlined_call_operand.hbm [shape: f32[2,1,32], index: 14, kind: input, shape index: {}]
  %s15 = inlined_call_operand.hbm [shape: f32[2,1,32], index: 15, kind: input, shape index: {}]
  %s16 = inlined_call_operand.hbm [shape: f32[1,32], index: 16, kind: input, shape index: {}]
  %s17 = inlined_call_operand.hbm [shape: f32[1,32], index: 17, kind: input, shape index: {}]
  %s18 = inlined_call_operand.vmem [shape: f32[8,32,128], index: 18, kind: input, shape index: {}]
  %s19 = inlined_call_operand.hbm [shape: f32[1,128], index: 19, kind: input, shape index: {}]
  %s20 = inlined_call_operand.hbm [shape: f32[2,1,128], index: 20, kind: output, shape index: {}]
  %s21 = sld [smem:[#allocation0]]
  $region177: #{model_forward.1} parent=0
    _
  %s23 = ssub.s32 1, %s21
  %s24 = scalar_select 0, %s23, %s21
  $region1: #{model_forward.1} parent=0
    #allocation2 [shape = 'u8[4096]{0}', space=vmem, size = 0x1000, scoped, tag = 'input window, operand 2, single buffered']
    #allocation3 [shape = 's32[2]{0}', space=sflag, size = 0x8, scoped, tag = 'scoped memory for model_forward.1']
    #allocation4 [shape = 's32[2]{0}', space=sflag, size = 0x8, scoped, tag = 'scoped memory for model_forward.1']
    #allocation5 [shape = 'u8[4096]{0}', space=vmem, size = 0x1000, scoped, tag = 'input window, operand 3, single buffered']
    #allocation6 [shape = 's32[1]{0}', space=sflag, size = 0x4, scoped, tag = 'scoped memory for model_forward.1']
    #allocation7 [shape = 'u8[32768]{0}', space=vmem, size = 0x8000, scoped, tag = 'input window, operand 4, single buffered']
    #allocation8 [shape = 'u8[1024]{0}', space=vmem, size = 0x400, scoped, tag = 'input window, operand 5, single buffered']
    #allocation9 [shape = 's32[1]{0}', space=sflag, size = 0x4, scoped, tag = 'scoped memory for model_forward.1']
    #allocation10 [shape = 'u8[32768]{0}', space=vmem, size = 0x8000, scoped, tag = 'input window, operand 6, single buffered']
    #allocation11 [shape = 'u8[1024]{0}', space=vmem, size = 0x400, scoped, tag = 'input window, operand 7, single buffered']
    #allocation12 [shape = 's32[1]{0}', space=sflag, size = 0x4, scoped, tag = 'scoped memory for model_forward.1']
    #allocation13 [shape = 'u8[1024]{0}', space=vmem, size = 0x400, scoped, tag = 'input window, operand 8, single buffered']
    #allocation14 [shape = 'u8[1024]{0}', space=vmem, size = 0x400, scoped, tag = 'input window, operand 9, single buffered']
    #allocation15 [shape = 's32[1]{0}', space=sflag, size = 0x4, scoped, tag = 'scoped memory for model_forward.1']
    #allocation16 [shape = 'u8[32768]{0}', space=vmem, size = 0x8000, scoped, tag = 'input window, operand 10, single buffered']
    #allocation17 [shape = 'u8[1024]{0}', space=vmem, size = 0x400, scoped, tag = 'input window, operand 11, single buffered']
    #allocation18 [shape = 's32[1]{0}', space=sflag, size = 0x4, scoped, tag = 'scoped memory for model_forward.1']
    #allocation19 [shape = 'u8[1024]{0}', space=vmem, size = 0x400, scoped, tag = 'input window, operand 13, single buffered']
    #allocation20 [shape = 'u8[1024]{0}', space=vmem, size = 0x400, scoped, tag = 'input window, operand 14, single buffered']
    #allocation21 [shape = 's32[1]{0}', space=sflag, size = 0x4, scoped, tag = 'scoped memory for model_forward.1']
    #allocation22 [shape = 'u8[1024]{0}', space=vmem, size = 0x400, scoped, tag = 'input window, operand 15, single buffered']
    #allocation23 [shape = 'u8[512]{0}', space=vmem, size = 0x400, scoped, tag = 'input window, operand 16, single buffered']
    #allocation24 [shape = 's32[1]{0}', space=sflag, size = 0x4, scoped, tag = 'scoped memory for model_forward.1']
    #allocation25 [shape = 'u8[512]{0}', space=vmem, size = 0x400, scoped, tag = 'input window, operand 17, single buffered']
    #allocation26 [shape = 'u8[512]{0}', space=vmem, size = 0x400, scoped, tag = 'input window, operand 19, single buffered']
    #allocation27 [shape = 's32[1]{0}', space=sflag, size = 0x4, scoped, tag = 'scoped memory for model_forward.1']
    #allocation28 [shape = 'u8[1024]{0}', space=vmem, size = 0x400, scoped, tag = 'output window, operand 0']
    %25 = vsyncpa [#allocation3], 0
    %26 = vsyncpa [#allocation6], 0
    %27 = vsyncpa [#allocation9], 0
    %28 = vsyncpa [#allocation12], 0
    %29 = vsyncpa [#allocation15], 0
    %30 = vsyncpa [#allocation18], 0
    %31 = vsyncpa [#allocation21], 0
    %32 = vsyncpa [#allocation24], 0
    %33 = vsyncpa [#allocation27], 0
    %34 = vsyncpa [#allocation4], 0
    %s35 = scalar_lea.sflag [#allocation4], 1
    %36 = vsyncpa %s35, 0
    loop: start=0, step=1, limit=4
    $region2: #{model_forward.1} parent=1 // loop_pre_header
      _
    $region3: #{model_forward.1} parent=1 // loop_header
      %s38 = sphi 0, %s42
      %p39 = scmp.ge.s32.totalorder %s38, 4
      %s48 = sphi 0, %s50
      %s51 = sphi 0, %s48
      %s52 = sphi 0, %s51
      %s68 = sphi 0, %s52
      %s72 = sphi 0, %s72
      %s74 = sphi 0, %s72
      %s75 = sphi 0, %s74
      %s89 = sphi 0, %s75
      %s93 = sphi 0, %s93
      %s95 = sphi 0, %s93
      %s96 = sphi 0, %s95
      %s110 = sphi 0, %s96
      %s114 = sphi 0, %s114
      %s116 = sphi 0, %s114
      %s117 = sphi 0, %s116
      %s131 = sphi 0, %s117
      %s135 = sphi 0, %s135
      %s137 = sphi 0, %s135
      %s138 = sphi 0, %s137
      %s152 = sphi 0, %s138
      %s156 = sphi 0, %s156
      %s158 = sphi 0, %s156
      %s159 = sphi 0, %s158
      %s173 = sphi 0, %s159
      %s177 = sphi 0, %s177
      %s179 = sphi 0, %s177
      %s180 = sphi 0, %s179
      %s194 = sphi 0, %s180
      %s198 = sphi 0, %s198
      %s200 = sphi 0, %s198
      %s201 = sphi 0, %s200
      %s215 = sphi 0, %s201
      %s219 = sphi 0, %s219
      %s221 = sphi 0, %s219
      %s222 = sphi 0, %s221
      %s236 = sphi 0, %s222
      %s240 = sphi 0, %s240
      %s242 = sphi 0, %s240
      %s243 = sphi 0, %s242
      %s257 = sphi 0, %s243
      %s261 = sphi 0, %s261
      %s263 = sphi 0, %s261
      %s264 = sphi 0, %s263
      %s278 = sphi 0, %s264
      %s282 = sphi 0, %s282
      %s284 = sphi 0, %s282
      %s285 = sphi 0, %s284
      %s299 = sphi 0, %s285
      %s303 = sphi 0, %s303
      %s305 = sphi 0, %s303
      %s306 = sphi 0, %s305
      %s320 = sphi 0, %s306
      %s324 = sphi 0, %s324
      %s326 = sphi 0, %s324
      %s327 = sphi 0, %s326
      %s341 = sphi 0, %s327
      %s345 = sphi 0, %s345
      %s347 = sphi 0, %s345
      %s348 = sphi 0, %s347
      %s362 = sphi 0, %s348
      %s366 = sphi 0, %s366
      %s368 = sphi 0, %s366
      %s369 = sphi 0, %s368
      %s383 = sphi 0, %s369
      %s387 = sphi 0, %s387
      %s389 = sphi 0, %s387
      %s390 = sphi 0, %s389
      %s404 = sphi 0, %s390
      %s408 = sphi 0, %s408
      %s410 = sphi 0, %s408
      %s411 = sphi 0, %s410
      %s425 = sphi 0, %s411
      %s429 = sphi 0, %s429
      %s431 = sphi 0, %s429
      %s432 = sphi 0, %s431
      %s446 = sphi 0, %s432
      %s450 = sphi 0, %s450
      %s452 = sphi 0, %s450
      %s453 = sphi 0, %s452
      %s467 = sphi 0, %s453
      %s473 = sphi 0, %s475
      %s476 = sphi 0, %s473
      %s477 = sphi 0, %s476
      %s493 = sphi 0, %s477
    $region4: #{model_forward.1} parent=1 // loop_header_branch
      %41 = sbr.rel (%p39) target = $region8
    $region5: #{model_forward.1} parent=1 // loop_body
      %s43 = ssub.s32 %s38, 1
      %s44 = ssub.s32 %s38, 2
      %s45 = sadd.s32 %s38, 1
      %s46 = ssub.s32 %s38, %s45
      %p47 = scmp.eq.s32.totalorder %s46, 0
      %s49 = sadd.s32 %s48, 1
      %s50 = scalar_select %p47, %s48, %s49
      %p53 = pneg %p47
      %p54 = scmp.eq.s32.totalorder %s38, 1
      %p55 = por %p53, %p54
      %p56 = scmp.ne.s32.totalorder %s48, %s51
      %p57 = scmp.eq.s32.totalorder %s38, 0
      %p58 = por %p56, %p57
      %p59 = scmp.ne.s32.totalorder %s48, %s51
      %p60 = scmp.eq.s32.totalorder %s43, 1
      %p61 = por %p59, %p60
      %p62 = scmp.ne.s32.totalorder %s51, %s52
      %p63 = scmp.eq.s32.totalorder %s43, 0
      %p64 = por %p62, %p63
      %p65 = scmp.ne.s32.totalorder %s51, %s52
      %p66 = scmp.eq.s32.totalorder %s44, 1
      %p67 = por %p65, %p66
      %p69 = scmp.ne.s32.totalorder %s52, %s68
      %p70 = scmp.eq.s32.totalorder %s44, 0
      %p71 = por %p69, %p70
      %s73 = sadd.s32 %s72, 1
      %p76 = scmp.eq.s32.totalorder %s38, 1
      %p77 = scmp.ne.s32.totalorder %s72, %s74
      %p78 = scmp.eq.s32.totalorder %s38, 0
      %p79 = por %p77, %p78
      %p80 = scmp.ne.s32.totalorder %s72, %s74
      %p81 = scmp.eq.s32.totalorder %s43, 1
      %p82 = por %p80, %p81
      %p83 = scmp.ne.s32.totalorder %s74, %s75
      %p84 = scmp.eq.s32.totalorder %s43, 0
      %p85 = por %p83, %p84
      %p86 = scmp.ne.s32.totalorder %s74, %s75
      %p87 = scmp.eq.s32.totalorder %s44, 1
      %p88 = por %p86, %p87
      %p90 = scmp.ne.s32.totalorder %s75, %s89
      %p91 = scmp.eq.s32.totalorder %s44, 0
      %p92 = por %p90, %p91
      %s94 = sadd.s32 %s93, 1
      %p97 = scmp.eq.s32.totalorder %s38, 1
      %p98 = scmp.ne.s32.totalorder %s93, %s95
      %p99 = scmp.eq.s32.totalorder %s38, 0
      %p100 = por %p98, %p99
      %p101 = scmp.ne.s32.totalorder %s93, %s95
      %p102 = scmp.eq.s32.totalorder %s43, 1
      %p103 = por %p101, %p102
      %p104 = scmp.ne.s32.totalorder %s95, %s96
      %p105 = scmp.eq.s32.totalorder %s43, 0
      %p106 = por %p104, %p105
      %p107 = scmp.ne.s32.totalorder %s95, %s96
      %p108 = scmp.eq.s32.totalorder %s44, 1
      %p109 = por %p107, %p108
      %p111 = scmp.ne.s32.totalorder %s96, %s110
      %p112 = scmp.eq.s32.totalorder %s44, 0
      %p113 = por %p111, %p112
      %s115 = sadd.s32 %s114, 1
      %p118 = scmp.eq.s32.totalorder %s38, 1
      %p119 = scmp.ne.s32.totalorder %s114, %s116
      %p120 = scmp.eq.s32.totalorder %s38, 0
      %p121 = por %p119, %p120
      %p122 = scmp.ne.s32.totalorder %s114, %s116
      %p123 = scmp.eq.s32.totalorder %s43, 1
      %p124 = por %p122, %p123
      %p125 = scmp.ne.s32.totalorder %s116, %s117
      %p126 = scmp.eq.s32.totalorder %s43, 0
      %p127 = por %p125, %p126
      %p128 = scmp.ne.s32.totalorder %s116, %s117
      %p129 = scmp.eq.s32.totalorder %s44, 1
      %p130 = por %p128, %p129
      %p132 = scmp.ne.s32.totalorder %s117, %s131
      %p133 = scmp.eq.s32.totalorder %s44, 0
      %p134 = por %p132, %p133
      %s136 = sadd.s32 %s135, 1
      %p139 = scmp.eq.s32.totalorder %s38, 1
      %p140 = scmp.ne.s32.totalorder %s135, %s137
      %p141 = scmp.eq.s32.totalorder %s38, 0
      %p142 = por %p140, %p141
      %p143 = scmp.ne.s32.totalorder %s135, %s137
      %p144 = scmp.eq.s32.totalorder %s43, 1
      %p145 = por %p143, %p144
      %p146 = scmp.ne.s32.totalorder %s137, %s138
      %p147 = scmp.eq.s32.totalorder %s43, 0
      %p148 = por %p146, %p147
      %p149 = scmp.ne.s32.totalorder %s137, %s138
      %p150 = scmp.eq.s32.totalorder %s44, 1
      %p151 = por %p149, %p150
      %p153 = scmp.ne.s32.totalorder %s138, %s152
      %p154 = scmp.eq.s32.totalorder %s44, 0
      %p155 = por %p153, %p154
      %s157 = sadd.s32 %s156, 1
      %p160 = scmp.eq.s32.totalorder %s38, 1
      %p161 = scmp.ne.s32.totalorder %s156, %s158
      %p162 = scmp.eq.s32.totalorder %s38, 0
      %p163 = por %p161, %p162
      %p164 = scmp.ne.s32.totalorder %s156, %s158
      %p165 = scmp.eq.s32.totalorder %s43, 1
      %p166 = por %p164, %p165
      %p167 = scmp.ne.s32.totalorder %s158, %s159
      %p168 = scmp.eq.s32.totalorder %s43, 0
      %p169 = por %p167, %p168
      %p170 = scmp.ne.s32.totalorder %s158, %s159
      %p171 = scmp.eq.s32.totalorder %s44, 1
      %p172 = por %p170, %p171
      %p174 = scmp.ne.s32.totalorder %s159, %s173
      %p175 = scmp.eq.s32.totalorder %s44, 0
      %p176 = por %p174, %p175
      %s178 = sadd.s32 %s177, 1
      %p181 = scmp.eq.s32.totalorder %s38, 1
      %p182 = scmp.ne.s32.totalorder %s177, %s179
      %p183 = scmp.eq.s32.totalorder %s38, 0
      %p184 = por %p182, %p183
      %p185 = scmp.ne.s32.totalorder %s177, %s179
      %p186 = scmp.eq.s32.totalorder %s43, 1
      %p187 = por %p185, %p186
      %p188 = scmp.ne.s32.totalorder %s179, %s180
      %p189 = scmp.eq.s32.totalorder %s43, 0
      %p190 = por %p188, %p189
      %p191 = scmp.ne.s32.totalorder %s179, %s180
      %p192 = scmp.eq.s32.totalorder %s44, 1
      %p193 = por %p191, %p192
      %p195 = scmp.ne.s32.totalorder %s180, %s194
      %p196 = scmp.eq.s32.totalorder %s44, 0
      %p197 = por %p195, %p196
      %s199 = sadd.s32 %s198, 1
      %p202 = scmp.eq.s32.totalorder %s38, 1
      %p203 = scmp.ne.s32.totalorder %s198, %s200
      %p204 = scmp.eq.s32.totalorder %s38, 0
      %p205 = por %p203, %p204
      %p206 = scmp.ne.s32.totalorder %s198, %s200
      %p207 = scmp.eq.s32.totalorder %s43, 1
      %p208 = por %p206, %p207
      %p209 = scmp.ne.s32.totalorder %s200, %s201
      %p210 = scmp.eq.s32.totalorder %s43, 0
      %p211 = por %p209, %p210
      %p212 = scmp.ne.s32.totalorder %s200, %s201
      %p213 = scmp.eq.s32.totalorder %s44, 1
      %p214 = por %p212, %p213
      %p216 = scmp.ne.s32.totalorder %s201, %s215
      %p217 = scmp.eq.s32.totalorder %s44, 0
      %p218 = por %p216, %p217
      %s220 = sadd.s32 %s219, 1
      %p223 = scmp.eq.s32.totalorder %s38, 1
      %p224 = scmp.ne.s32.totalorder %s219, %s221
      %p225 = scmp.eq.s32.totalorder %s38, 0
      %p226 = por %p224, %p225
      %p227 = scmp.ne.s32.totalorder %s219, %s221
      %p228 = scmp.eq.s32.totalorder %s43, 1
      %p229 = por %p227, %p228
      %p230 = scmp.ne.s32.totalorder %s221, %s222
      %p231 = scmp.eq.s32.totalorder %s43, 0
      %p232 = por %p230, %p231
      %p233 = scmp.ne.s32.totalorder %s221, %s222
      %p234 = scmp.eq.s32.totalorder %s44, 1
      %p235 = por %p233, %p234
      %p237 = scmp.ne.s32.totalorder %s222, %s236
      %p238 = scmp.eq.s32.totalorder %s44, 0
      %p239 = por %p237, %p238
      %s241 = sadd.s32 %s240, 1
      %p244 = scmp.eq.s32.totalorder %s38, 1
      %p245 = scmp.ne.s32.totalorder %s240, %s242
      %p246 = scmp.eq.s32.totalorder %s38, 0
      %p247 = por %p245, %p246
      %p248 = scmp.ne.s32.totalorder %s240, %s242
      %p249 = scmp.eq.s32.totalorder %s43, 1
      %p250 = por %p248, %p249
      %p251 = scmp.ne.s32.totalorder %s242, %s243
      %p252 = scmp.eq.s32.totalorder %s43, 0
      %p253 = por %p251, %p252
      %p254 = scmp.ne.s32.totalorder %s242, %s243
      %p255 = scmp.eq.s32.totalorder %s44, 1
      %p256 = por %p254, %p255
      %p258 = scmp.ne.s32.totalorder %s243, %s257
      %p259 = scmp.eq.s32.totalorder %s44, 0
      %p260 = por %p258, %p259
      %s262 = sadd.s32 %s261, 1
      %p265 = scmp.eq.s32.totalorder %s38, 1
      %p266 = scmp.ne.s32.totalorder %s261, %s263
      %p267 = scmp.eq.s32.totalorder %s38, 0
      %p268 = por %p266, %p267
      %p269 = scmp.ne.s32.totalorder %s261, %s263
      %p270 = scmp.eq.s32.totalorder %s43, 1
      %p271 = por %p269, %p270
      %p272 = scmp.ne.s32.totalorder %s263, %s264
      %p273 = scmp.eq.s32.totalorder %s43, 0
      %p274 = por %p272, %p273
      %p275 = scmp.ne.s32.totalorder %s263, %s264
      %p276 = scmp.eq.s32.totalorder %s44, 1
      %p277 = por %p275, %p276
      %p279 = scmp.ne.s32.totalorder %s264, %s278
      %p280 = scmp.eq.s32.totalorder %s44, 0
      %p281 = por %p279, %p280
      %s283 = sadd.s32 %s282, 1
      %p286 = scmp.eq.s32.totalorder %s38, 1
      %p287 = scmp.ne.s32.totalorder %s282, %s284
      %p288 = scmp.eq.s32.totalorder %s38, 0
      %p289 = por %p287, %p288
      %p290 = scmp.ne.s32.totalorder %s282, %s284
      %p291 = scmp.eq.s32.totalorder %s43, 1
      %p292 = por %p290, %p291
      %p293 = scmp.ne.s32.totalorder %s284, %s285
      %p294 = scmp.eq.s32.totalorder %s43, 0
      %p295 = por %p293, %p294
      %p296 = scmp.ne.s32.totalorder %s284, %s285
      %p297 = scmp.eq.s32.totalorder %s44, 1
      %p298 = por %p296, %p297
      %p300 = scmp.ne.s32.totalorder %s285, %s299
      %p301 = scmp.eq.s32.totalorder %s44, 0
      %p302 = por %p300, %p301
      %s304 = sadd.s32 %s303, 1
      %p307 = scmp.eq.s32.totalorder %s38, 1
      %p308 = scmp.ne.s32.totalorder %s303, %s305
      %p309 = scmp.eq.s32.totalorder %s38, 0
      %p310 = por %p308, %p309
      %p311 = scmp.ne.s32.totalorder %s303, %s305
      %p312 = scmp.eq.s32.totalorder %s43, 1
      %p313 = por %p311, %p312
      %p314 = scmp.ne.s32.totalorder %s305, %s306
      %p315 = scmp.eq.s32.totalorder %s43, 0
      %p316 = por %p314, %p315
      %p317 = scmp.ne.s32.totalorder %s305, %s306
      %p318 = scmp.eq.s32.totalorder %s44, 1
      %p319 = por %p317, %p318
      %p321 = scmp.ne.s32.totalorder %s306, %s320
      %p322 = scmp.eq.s32.totalorder %s44, 0
      %p323 = por %p321, %p322
      %s325 = sadd.s32 %s324, 1
      %p328 = scmp.eq.s32.totalorder %s38, 1
      %p329 = scmp.ne.s32.totalorder %s324, %s326
      %p330 = scmp.eq.s32.totalorder %s38, 0
      %p331 = por %p329, %p330
      %p332 = scmp.ne.s32.totalorder %s324, %s326
      %p333 = scmp.eq.s32.totalorder %s43, 1
      %p334 = por %p332, %p333
      %p335 = scmp.ne.s32.totalorder %s326, %s327
      %p336 = scmp.eq.s32.totalorder %s43, 0
      %p337 = por %p335, %p336
      %p338 = scmp.ne.s32.totalorder %s326, %s327
      %p339 = scmp.eq.s32.totalorder %s44, 1
      %p340 = por %p338, %p339
      %p342 = scmp.ne.s32.totalorder %s327, %s341
      %p343 = scmp.eq.s32.totalorder %s44, 0
      %p344 = por %p342, %p343
      %s346 = sadd.s32 %s345, 1
      %p349 = scmp.eq.s32.totalorder %s38, 1
      %p350 = scmp.ne.s32.totalorder %s345, %s347
      %p351 = scmp.eq.s32.totalorder %s38, 0
      %p352 = por %p350, %p351
      %p353 = scmp.ne.s32.totalorder %s345, %s347
      %p354 = scmp.eq.s32.totalorder %s43, 1
      %p355 = por %p353, %p354
      %p356 = scmp.ne.s32.totalorder %s347, %s348
      %p357 = scmp.eq.s32.totalorder %s43, 0
      %p358 = por %p356, %p357
      %p359 = scmp.ne.s32.totalorder %s347, %s348
      %p360 = scmp.eq.s32.totalorder %s44, 1
      %p361 = por %p359, %p360
      %p363 = scmp.ne.s32.totalorder %s348, %s362
      %p364 = scmp.eq.s32.totalorder %s44, 0
      %p365 = por %p363, %p364
      %s367 = sadd.s32 %s366, 1
      %p370 = scmp.eq.s32.totalorder %s38, 1
      %p371 = scmp.ne.s32.totalorder %s366, %s368
      %p372 = scmp.eq.s32.totalorder %s38, 0
      %p373 = por %p371, %p372
      %p374 = scmp.ne.s32.totalorder %s366, %s368
      %p375 = scmp.eq.s32.totalorder %s43, 1
      %p376 = por %p374, %p375
      %p377 = scmp.ne.s32.totalorder %s368, %s369
      %p378 = scmp.eq.s32.totalorder %s43, 0
      %p379 = por %p377, %p378
      %p380 = scmp.ne.s32.totalorder %s368, %s369
      %p381 = scmp.eq.s32.totalorder %s44, 1
      %p382 = por %p380, %p381
      %p384 = scmp.ne.s32.totalorder %s369, %s383
      %p385 = scmp.eq.s32.totalorder %s44, 0
      %p386 = por %p384, %p385
      %s388 = sadd.s32 %s387, 1
      %p391 = scmp.eq.s32.totalorder %s38, 1
      %p392 = scmp.ne.s32.totalorder %s387, %s389
      %p393 = scmp.eq.s32.totalorder %s38, 0
      %p394 = por %p392, %p393
      %p395 = scmp.ne.s32.totalorder %s387, %s389
      %p396 = scmp.eq.s32.totalorder %s43, 1
      %p397 = por %p395, %p396
      %p398 = scmp.ne.s32.totalorder %s389, %s390
      %p399 = scmp.eq.s32.totalorder %s43, 0
      %p400 = por %p398, %p399
      %p401 = scmp.ne.s32.totalorder %s389, %s390
      %p402 = scmp.eq.s32.totalorder %s44, 1
      %p403 = por %p401, %p402
      %p405 = scmp.ne.s32.totalorder %s390, %s404
      %p406 = scmp.eq.s32.totalorder %s44, 0
      %p407 = por %p405, %p406
      %s409 = sadd.s32 %s408, 1
      %p412 = scmp.eq.s32.totalorder %s38, 1
      %p413 = scmp.ne.s32.totalorder %s408, %s410
      %p414 = scmp.eq.s32.totalorder %s38, 0
      %p415 = por %p413, %p414
      %p416 = scmp.ne.s32.totalorder %s408, %s410
      %p417 = scmp.eq.s32.totalorder %s43, 1
      %p418 = por %p416, %p417
      %p419 = scmp.ne.s32.totalorder %s410, %s411
      %p420 = scmp.eq.s32.totalorder %s43, 0
      %p421 = por %p419, %p420
      %p422 = scmp.ne.s32.totalorder %s410, %s411
      %p423 = scmp.eq.s32.totalorder %s44, 1
      %p424 = por %p422, %p423
      %p426 = scmp.ne.s32.totalorder %s411, %s425
      %p427 = scmp.eq.s32.totalorder %s44, 0
      %p428 = por %p426, %p427
      %s430 = sadd.s32 %s429, 1
      %p433 = scmp.eq.s32.totalorder %s38, 1
      %p434 = scmp.ne.s32.totalorder %s429, %s431
      %p435 = scmp.eq.s32.totalorder %s38, 0
      %p436 = por %p434, %p435
      %p437 = scmp.ne.s32.totalorder %s429, %s431
      %p438 = scmp.eq.s32.totalorder %s43, 1
      %p439 = por %p437, %p438
      %p440 = scmp.ne.s32.totalorder %s431, %s432
      %p441 = scmp.eq.s32.totalorder %s43, 0
      %p442 = por %p440, %p441
      %p443 = scmp.ne.s32.totalorder %s431, %s432
      %p444 = scmp.eq.s32.totalorder %s44, 1
      %p445 = por %p443, %p444
      %p447 = scmp.ne.s32.totalorder %s432, %s446
      %p448 = scmp.eq.s32.totalorder %s44, 0
      %p449 = por %p447, %p448
      %s451 = sadd.s32 %s450, 1
      %p454 = scmp.eq.s32.totalorder %s38, 1
      %p455 = scmp.ne.s32.totalorder %s450, %s452
      %p456 = scmp.eq.s32.totalorder %s38, 0
      %p457 = por %p455, %p456
      %p458 = scmp.ne.s32.totalorder %s450, %s452
      %p459 = scmp.eq.s32.totalorder %s43, 1
      %p460 = por %p458, %p459
      %p461 = scmp.ne.s32.totalorder %s452, %s453
      %p462 = scmp.eq.s32.totalorder %s43, 0
      %p463 = por %p461, %p462
      %p464 = scmp.ne.s32.totalorder %s452, %s453
      %p465 = scmp.eq.s32.totalorder %s44, 1
      %p466 = por %p464, %p465
      %p468 = scmp.ne.s32.totalorder %s453, %s467
      %p469 = scmp.eq.s32.totalorder %s44, 0
      %p470 = por %p468, %p469
      %s471 = ssub.s32 %s38, %s45
      %p472 = scmp.eq.s32.totalorder %s471, 0
      %s474 = sadd.s32 %s473, 1
      %s475 = scalar_select %p472, %s473, %s474
      %p478 = pneg %p472
      %p479 = scmp.eq.s32.totalorder %s38, 1
      %p480 = por %p478, %p479
      %p481 = scmp.ne.s32.totalorder %s473, %s476
      %p482 = scmp.eq.s32.totalorder %s38, 0
      %p483 = por %p481, %p482
      %p484 = scmp.ne.s32.totalorder %s473, %s476
      %p485 = scmp.eq.s32.totalorder %s43, 1
      %p486 = por %p484, %p485
      %p487 = scmp.ne.s32.totalorder %s476, %s477
      %p488 = scmp.eq.s32.totalorder %s43, 0
      %p489 = por %p487, %p488
      %p490 = scmp.ne.s32.totalorder %s476, %s477
      %p491 = scmp.eq.s32.totalorder %s44, 1
      %p492 = por %p490, %p491
      %p494 = scmp.ne.s32.totalorder %s477, %s493
      %p495 = scmp.eq.s32.totalorder %s44, 0
      %p496 = por %p494, %p495
      %p497 = scmp.le.s32.totalorder 1, %s38
      %p498 = scmp.lt.s32.totalorder %s38, 3
      %p499 = pnand %p497, %p498
      %p500 = pneg %p499
      // Predicated region
      $region9: #{model_forward.1} parent=5 // pred_check
        _
      $region10: #{model_forward.1} parent=5 // pred_check_branch
        %502 = sbr.rel (%p499) target = $region12
      $region11: #{model_forward.1} parent=5 // pred_region
        %s503 = ssub.s32 %s38, 1
        // Predicated region
        $region13: #{model_forward.1} parent=11 // pred_check
          %p504 = pneg %p85
        $region14: #{model_forward.1} parent=11 // pred_check_branch
          %506 = sbr.rel (%p504) target = $region16
        $region15: #{model_forward.1} parent=11 // pred_region
          _
        $region16: #{model_forward.1} parent=11 // pred_fallthru
          _
        // Predicated region
        $region17: #{model_forward.1} parent=11 // pred_check
          %p507 = pneg %p106
        $region18: #{model_forward.1} parent=11 // pred_check_branch
          %509 = sbr.rel (%p507) target = $region20
        $region19: #{model_forward.1} parent=11 // pred_region
          %s511 = ssub.s32 128, 128
          %512 = vsyncadd [#allocation3], %s511
          %s514 = sshll.u32 [#allocation2], 4
          %s515 = int_to_ptr.vmem [resolvable:$true] %s514
          %517 = dma.hbm_to_vmem [thread:$0]  %s2, 128, %s515, [#allocation3]
        $region20: #{model_forward.1} parent=11 // pred_fallthru
          _
        // Predicated region
        $region21: #{model_forward.1} parent=11 // pred_check
          %p518 = pneg %p127
        $region22: #{model_forward.1} parent=11 // pred_check_branch
          %520 = sbr.rel (%p518) target = $region24
        $region23: #{model_forward.1} parent=11 // pred_region
          %s522 = ssub.s32 128, 128
          %523 = vsyncadd [#allocation6], %s522
          %s525 = sshll.u32 [#allocation5], 4
          %s526 = int_to_ptr.vmem [resolvable:$true] %s525
          %528 = dma.hbm_to_vmem [thread:$0]  %s3, 128, %s526, [#allocation6]
        $region24: #{model_forward.1} parent=11 // pred_fallthru
          _
        // Predicated region
        $region25: #{model_forward.1} parent=11 // pred_check
          %p529 = pneg %p148
        $region26: #{model_forward.1} parent=11 // pred_check_branch
          %531 = sbr.rel (%p529) target = $region28
        $region27: #{model_forward.1} parent=11 // pred_region
          %s533 = ssub.s32 1024, 1024
          %534 = vsyncadd [#allocation6], %s533
          %s535 = sshll.u32 [#allocation7], 4
          %s536 = int_to_ptr.vmem [resolvable:$true] %s535
          %541 = dma.hbm_to_vmem [thread:$0]  %s4, 1024, %s536, [#allocation6], 128, 128, 8
        $region28: #{model_forward.1} parent=11 // pred_fallthru
          _
        // Predicated region
        $region29: #{model_forward.1} parent=11 // pred_check
          %p542 = pneg %p169
        $region30: #{model_forward.1} parent=11 // pred_check_branch
          %544 = sbr.rel (%p542) target = $region32
        $region31: #{model_forward.1} parent=11 // pred_region
          %s546 = ssub.s32 32, 32
          %547 = vsyncadd [#allocation9], %s546
          %s548 = sshll.u32 [#allocation8], 4
          %s549 = int_to_ptr.vmem [resolvable:$true] %s548
          %554 = dma.hbm_to_vmem [thread:$0]  %s5, 32, %s549, [#allocation9], 16, 16, 1
        $region32: #{model_forward.1} parent=11 // pred_fallthru
          _
        // Predicated region
        $region33: #{model_forward.1} parent=11 // pred_check
          %p555 = pneg %p190
        $region34: #{model_forward.1} parent=11 // pred_check_branch
          %557 = sbr.rel (%p555) target = $region36
        $region35: #{model_forward.1} parent=11 // pred_region
          %s559 = ssub.s32 1024, 1024
          %560 = vsyncadd [#allocation9], %s559
          %s561 = sshll.u32 [#allocation10], 4
          %s562 = int_to_ptr.vmem [resolvable:$true] %s561
          %567 = dma.hbm_to_vmem [thread:$0]  %s6, 1024, %s562, [#allocation9], 128, 128, 8
        $region36: #{model_forward.1} parent=11 // pred_fallthru
          _
        // Predicated region
        $region37: #{model_forward.1} parent=11 // pred_check
          %p568 = pneg %p211
        $region38: #{model_forward.1} parent=11 // pred_check_branch
          %570 = sbr.rel (%p568) target = $region40
        $region39: #{model_forward.1} parent=11 // pred_region
          %s572 = ssub.s32 32, 32
          %573 = vsyncadd [#allocation12], %s572
          %s574 = sshll.u32 [#allocation11], 4
          %s575 = int_to_ptr.vmem [resolvable:$true] %s574
          %580 = dma.hbm_to_vmem [thread:$0]  %s7, 32, %s575, [#allocation12], 16, 16, 1
        $region40: #{model_forward.1} parent=11 // pred_fallthru
          _
        // Predicated region
        $region41: #{model_forward.1} parent=11 // pred_check
          %p581 = pneg %p232
        $region42: #{model_forward.1} parent=11 // pred_check_branch
          %583 = sbr.rel (%p581) target = $region44
        $region43: #{model_forward.1} parent=11 // pred_region
          %s585 = ssub.s32 32, 32
          %586 = vsyncadd [#allocation12], %s585
          %s587 = sshll.u32 [#allocation13], 4
          %s588 = int_to_ptr.vmem [resolvable:$true] %s587
          %593 = dma.hbm_to_vmem [thread:$0]  %s8, 32, %s588, [#allocation12], 16, 16, 1
        $region44: #{model_forward.1} parent=11 // pred_fallthru
          _
        // Predicated region
        $region45: #{model_forward.1} parent=11 // pred_check
          %p594 = pneg %p253
        $region46: #{model_forward.1} parent=11 // pred_check_branch
          %596 = sbr.rel (%p594) target = $region48
        $region47: #{model_forward.1} parent=11 // pred_region
          %s598 = ssub.s32 32, 32
          %599 = vsyncadd [#allocation15], %s598
          %s600 = sshll.u32 [#allocation14], 4
          %s601 = int_to_ptr.vmem [resolvable:$true] %s600
          %606 = dma.hbm_to_vmem [thread:$0]  %s9, 32, %s601, [#allocation15], 16, 16, 1
        $region48: #{model_forward.1} parent=11 // pred_fallthru
          _
        // Predicated region
        $region49: #{model_forward.1} parent=11 // pred_check
          %p607 = pneg %p274
        $region50: #{model_forward.1} parent=11 // pred_check_branch
          %609 = sbr.rel (%p607) target = $region52
        $region51: #{model_forward.1} parent=11 // pred_region
          %s611 = ssub.s32 1024, 1024
          %612 = vsyncadd [#allocation15], %s611
          %s613 = sshll.u32 [#allocation16], 4
          %s614 = int_to_ptr.vmem [resolvable:$true] %s613
          %619 = dma.hbm_to_vmem [thread:$0]  %s10, 1024, %s614, [#allocation15], 128, 128, 8
        $region52: #{model_forward.1} parent=11 // pred_fallthru
          _
        // Predicated region
        $region53: #{model_forward.1} parent=11 // pred_check
          %p620 = pneg %p295
        $region54: #{model_forward.1} parent=11 // pred_check_branch
          %622 = sbr.rel (%p620) target = $region56
        $region55: #{model_forward.1} parent=11 // pred_region
          %s624 = ssub.s32 32, 32
          %625 = vsyncadd [#allocation18], %s624
          %s626 = sshll.u32 [#allocation17], 4
          %s627 = int_to_ptr.vmem [resolvable:$true] %s626
          %632 = dma.hbm_to_vmem [thread:$0]  %s11, 32, %s627, [#allocation18], 16, 16, 1
        $region56: #{model_forward.1} parent=11 // pred_fallthru
          _
        // Predicated region
        $region57: #{model_forward.1} parent=11 // pred_check
          %p633 = pneg %p316
        $region58: #{model_forward.1} parent=11 // pred_check_branch
          %635 = sbr.rel (%p633) target = $region60
        $region59: #{model_forward.1} parent=11 // pred_region
          _
        $region60: #{model_forward.1} parent=11 // pred_fallthru
          _
        // Predicated region
        $region61: #{model_forward.1} parent=11 // pred_check
          %p636 = pneg %p337
        $region62: #{model_forward.1} parent=11 // pred_check_branch
          %638 = sbr.rel (%p636) target = $region64
        $region63: #{model_forward.1} parent=11 // pred_region
          %s640 = ssub.s32 32, 32
          %641 = vsyncadd [#allocation18], %s640
          %s642 = sshll.u32 [#allocation19], 4
          %s643 = int_to_ptr.vmem [resolvable:$true] %s642
          %648 = dma.hbm_to_vmem [thread:$0]  %s13, 32, %s643, [#allocation18], 16, 16, 1
        $region64: #{model_forward.1} parent=11 // pred_fallthru
          _
        // Predicated region
        $region65: #{model_forward.1} parent=11 // pred_check
          %p649 = pneg %p358
        $region66: #{model_forward.1} parent=11 // pred_check_branch
          %651 = sbr.rel (%p649) target = $region68
        $region67: #{model_forward.1} parent=11 // pred_region
          %s653 = ssub.s32 32, 32
          %654 = vsyncadd [#allocation21], %s653
          %s655 = sshll.u32 [#allocation20], 4
          %s656 = int_to_ptr.vmem [resolvable:$true] %s655
          %661 = dma.hbm_to_vmem [thread:$0]  %s14, 32, %s656, [#allocation21], 16, 16, 1
        $region68: #{model_forward.1} parent=11 // pred_fallthru
          _
        // Predicated region
        $region69: #{model_forward.1} parent=11 // pred_check
          %p662 = pneg %p379
        $region70: #{model_forward.1} parent=11 // pred_check_branch
          %664 = sbr.rel (%p662) target = $region72
        $region71: #{model_forward.1} parent=11 // pred_region
          %s666 = ssub.s32 32, 32
          %667 = vsyncadd [#allocation21], %s666
          %s668 = sshll.u32 [#allocation22], 4
          %s669 = int_to_ptr.vmem [resolvable:$true] %s668
          %674 = dma.hbm_to_vmem [thread:$0]  %s15, 32, %s669, [#allocation21], 16, 16, 1
        $region72: #{model_forward.1} parent=11 // pred_fallthru
          _
        // Predicated region
        $region73: #{model_forward.1} parent=11 // pred_check
          %p675 = pneg %p400
        $region74: #{model_forward.1} parent=11 // pred_check_branch
          %677 = sbr.rel (%p675) target = $region76
        $region75: #{model_forward.1} parent=11 // pred_region
          %s679 = ssub.s32 16, 16
          %680 = vsyncadd [#allocation24], %s679
          %s682 = sshll.u32 [#allocation23], 4
          %s683 = int_to_ptr.vmem [resolvable:$true] %s682
          %685 = dma.hbm_to_vmem [thread:$0]  %s16, 16, %s683, [#allocation24]
        $region76: #{model_forward.1} parent=11 // pred_fallthru
          _
        // Predicated region
        $region77: #{model_forward.1} parent=11 // pred_check
          %p686 = pneg %p421
        $region78: #{model_forward.1} parent=11 // pred_check_branch
          %688 = sbr.rel (%p686) target = $region80
        $region79: #{model_forward.1} parent=11 // pred_region
          %s690 = ssub.s32 16, 16
          %691 = vsyncadd [#allocation24], %s690
          %s693 = sshll.u32 [#allocation25], 4
          %s694 = int_to_ptr.vmem [resolvable:$true] %s693
          %696 = dma.hbm_to_vmem [thread:$0]  %s17, 16, %s694, [#allocation24]
        $region80: #{model_forward.1} parent=11 // pred_fallthru
          _
        // Predicated region
        $region81: #{model_forward.1} parent=11 // pred_check
          %p697 = pneg %p442
        $region82: #{model_forward.1} parent=11 // pred_check_branch
          %699 = sbr.rel (%p697) target = $region84
        $region83: #{model_forward.1} parent=11 // pred_region
          _
        $region84: #{model_forward.1} parent=11 // pred_fallthru
          _
        // Predicated region
        $region85: #{model_forward.1} parent=11 // pred_check
          %p700 = pneg %p463
        $region86: #{model_forward.1} parent=11 // pred_check_branch
          %702 = sbr.rel (%p700) target = $region88
        $region87: #{model_forward.1} parent=11 // pred_region
          %s704 = ssub.s32 16, 16
          %705 = vsyncadd [#allocation27], %s704
          %s707 = sshll.u32 [#allocation26], 4
          %s708 = int_to_ptr.vmem [resolvable:$true] %s707
          %710 = dma.hbm_to_vmem [thread:$0]  %s19, 16, %s708, [#allocation27]
        $region88: #{model_forward.1} parent=11 // pred_fallthru
          _
      $region12: #{model_forward.1} parent=5 // pred_fallthru
        _
      %p711 = scmp.lt.s32.totalorder %s38, 2
      // Predicated region
      $region89: #{model_forward.1} parent=5 // pred_check
        %p712 = pneg %p711
      $region90: #{model_forward.1} parent=5 // pred_check_branch
        %714 = sbr.rel (%p712) target = $region92
      $region91: #{model_forward.1} parent=5 // pred_region
        // Predicated region
        $region93: #{model_forward.1} parent=91 // pred_check
          %p715 = pneg %p58
        $region94: #{model_forward.1} parent=91 // pred_check_branch
          %717 = sbr.rel (%p715) target = $region96
        $region95: #{model_forward.1} parent=91 // pred_region
          %p718 = scmp.lt.s32.totalorder %s38, 1
          %s719 = scalar_select %p718, %s38, 1
          %s720 = smul.addr %s719, 8
          %s721 = scalar_lea.vmem %s0, %s720
        $region96: #{model_forward.1} parent=91 // pred_fallthru
          _
      $region92: #{model_forward.1} parent=5 // pred_fallthru
        _
      %p722 = scmp.le.s32.totalorder 1, %s38
      %p723 = scmp.lt.s32.totalorder %s38, 3
      %p724 = pnand %p722, %p723
      %p725 = pneg %p724
      // Predicated region
      $region97: #{model_forward.1} parent=5 // pred_check
        _
      $region98: #{model_forward.1} parent=5 // pred_check_branch
        %727 = sbr.rel (%p724) target = $region100
      $region99: #{model_forward.1} parent=5 // pred_region
        %s728 = ssub.s32 %s38, 1
        // Predicated region
        $region101: #{model_forward.1} parent=99 // pred_check
          %p729 = pneg %p106
        $region102: #{model_forward.1} parent=99 // pred_check_branch
          %731 = sbr.rel (%p729) target = $region104
        $region103: #{model_forward.1} parent=99 // pred_region
          %732 = dma.done [#allocation3], 128
        $region104: #{model_forward.1} parent=99 // pred_fallthru
          _
        // Predicated region
        $region105: #{model_forward.1} parent=99 // pred_check
          %p733 = pneg %p127
        $region106: #{model_forward.1} parent=99 // pred_check_branch
          %735 = sbr.rel (%p733) target = $region108
        $region107: #{model_forward.1} parent=99 // pred_region
          %736 = dma.done [#allocation6], 128
        $region108: #{model_forward.1} parent=99 // pred_fallthru
          _
        // Predicated region
        $region109: #{model_forward.1} parent=99 // pred_check
          %p737 = pneg %p148
        $region110: #{model_forward.1} parent=99 // pred_check_branch
          %739 = sbr.rel (%p737) target = $region112
        $region111: #{model_forward.1} parent=99 // pred_region
          %740 = dma.done [#allocation6], 1024
        $region112: #{model_forward.1} parent=99 // pred_fallthru
          _
        // Predicated region
        $region113: #{model_forward.1} parent=99 // pred_check
          %p741 = pneg %p169
        $region114: #{model_forward.1} parent=99 // pred_check_branch
          %743 = sbr.rel (%p741) target = $region116
        $region115: #{model_forward.1} parent=99 // pred_region
          %744 = dma.done [#allocation9], 32
        $region116: #{model_forward.1} parent=99 // pred_fallthru
          _
        // Predicated region
        $region117: #{model_forward.1} parent=99 // pred_check
          %p745 = pneg %p190
        $region118: #{model_forward.1} parent=99 // pred_check_branch
          %747 = sbr.rel (%p745) target = $region120
        $region119: #{model_forward.1} parent=99 // pred_region
          %748 = dma.done [#allocation9], 1024
        $region120: #{model_forward.1} parent=99 // pred_fallthru
          _
        // Predicated region
        $region121: #{model_forward.1} parent=99 // pred_check
          %p749 = pneg %p211
        $region122: #{model_forward.1} parent=99 // pred_check_branch
          %751 = sbr.rel (%p749) target = $region124
        $region123: #{model_forward.1} parent=99 // pred_region
          %752 = dma.done [#allocation12], 32
        $region124: #{model_forward.1} parent=99 // pred_fallthru
          _
        // Predicated region
        $region125: #{model_forward.1} parent=99 // pred_check
          %p753 = pneg %p232
        $region126: #{model_forward.1} parent=99 // pred_check_branch
          %755 = sbr.rel (%p753) target = $region128
        $region127: #{model_forward.1} parent=99 // pred_region
          %756 = dma.done [#allocation12], 32
        $region128: #{model_forward.1} parent=99 // pred_fallthru
          _
        // Predicated region
        $region129: #{model_forward.1} parent=99 // pred_check
          %p757 = pneg %p253
        $region130: #{model_forward.1} parent=99 // pred_check_branch
          %759 = sbr.rel (%p757) target = $region132
        $region131: #{model_forward.1} parent=99 // pred_region
          %760 = dma.done [#allocation15], 32
        $region132: #{model_forward.1} parent=99 // pred_fallthru
          _
        // Predicated region
        $region133: #{model_forward.1} parent=99 // pred_check
          %p761 = pneg %p274
        $region134: #{model_forward.1} parent=99 // pred_check_branch
          %763 = sbr.rel (%p761) target = $region136
        $region135: #{model_forward.1} parent=99 // pred_region
          %764 = dma.done [#allocation15], 1024
        $region136: #{model_forward.1} parent=99 // pred_fallthru
          _
        // Predicated region
        $region137: #{model_forward.1} parent=99 // pred_check
          %p765 = pneg %p295
        $region138: #{model_forward.1} parent=99 // pred_check_branch
          %767 = sbr.rel (%p765) target = $region140
        $region139: #{model_forward.1} parent=99 // pred_region
          %768 = dma.done [#allocation18], 32
        $region140: #{model_forward.1} parent=99 // pred_fallthru
          _
        // Predicated region
        $region141: #{model_forward.1} parent=99 // pred_check
          %p769 = pneg %p337
        $region142: #{model_forward.1} parent=99 // pred_check_branch
          %771 = sbr.rel (%p769) target = $region144
        $region143: #{model_forward.1} parent=99 // pred_region
          %772 = dma.done [#allocation18], 32
        $region144: #{model_forward.1} parent=99 // pred_fallthru
          _
        // Predicated region
        $region145: #{model_forward.1} parent=99 // pred_check
          %p773 = pneg %p358
        $region146: #{model_forward.1} parent=99 // pred_check_branch
          %775 = sbr.rel (%p773) target = $region148
        $region147: #{model_forward.1} parent=99 // pred_region
          %776 = dma.done [#allocation21], 32
        $region148: #{model_forward.1} parent=99 // pred_fallthru
          _
        // Predicated region
        $region149: #{model_forward.1} parent=99 // pred_check
          %p777 = pneg %p379
        $region150: #{model_forward.1} parent=99 // pred_check_branch
          %779 = sbr.rel (%p777) target = $region152
        $region151: #{model_forward.1} parent=99 // pred_region
          %780 = dma.done [#allocation21], 32
        $region152: #{model_forward.1} parent=99 // pred_fallthru
          _
        // Predicated region
        $region153: #{model_forward.1} parent=99 // pred_check
          %p781 = pneg %p400
        $region154: #{model_forward.1} parent=99 // pred_check_branch
          %783 = sbr.rel (%p781) target = $region156
        $region155: #{model_forward.1} parent=99 // pred_region
          %784 = dma.done [#allocation24], 16
        $region156: #{model_forward.1} parent=99 // pred_fallthru
          _
        // Predicated region
        $region157: #{model_forward.1} parent=99 // pred_check
          %p785 = pneg %p421
        $region158: #{model_forward.1} parent=99 // pred_check_branch
          %787 = sbr.rel (%p785) target = $region160
        $region159: #{model_forward.1} parent=99 // pred_region
          %788 = dma.done [#allocation24], 16
        $region160: #{model_forward.1} parent=99 // pred_fallthru
          _
        // Predicated region
        $region161: #{model_forward.1} parent=99 // pred_check
          %p789 = pneg %p463
        $region162: #{model_forward.1} parent=99 // pred_check_branch
          %791 = sbr.rel (%p789) target = $region164
        $region163: #{model_forward.1} parent=99 // pred_region
          %792 = dma.done [#allocation27], 16
        $region164: #{model_forward.1} parent=99 // pred_fallthru
          _
        %p793 = scmp.lt.s32.totalorder %s43, 1
        %s794 = scalar_select %p793, %s43, 1
        %s795 = smul.addr %s794, 8
        %s796 = scalar_lea.vmem %s0, %s795
        %p797 = pneg %p64
        %p798 = pneg %p61
        %p799 = pneg %p85
        %p800 = pneg %p82
        %p801 = pneg %p106
        %p802 = pneg %p103
        %p803 = pneg %p127
        %p804 = pneg %p124
        %p805 = pneg %p148
        %p806 = pneg %p145
        %p807 = pneg %p169
        %p808 = pneg %p166
        %p809 = pneg %p190
        %p810 = pneg %p187
        %p811 = pneg %p211
        %p812 = pneg %p208
        %p813 = pneg %p232
        %p814 = pneg %p229
        %p815 = pneg %p253
        %p816 = pneg %p250
        %p817 = pneg %p274
        %p818 = pneg %p271
        %p819 = pneg %p295
        %p820 = pneg %p292
        %p821 = pneg %p316
        %p822 = pneg %p313
        %p823 = pneg %p337
        %p824 = pneg %p334
        %p825 = pneg %p358
        %p826 = pneg %p355
        %p827 = pneg %p379
        %p828 = pneg %p376
        %p829 = pneg %p400
        %p830 = pneg %p397
        %p831 = pneg %p421
        %p832 = pneg %p418
        %p833 = pneg %p442
        %p834 = pneg %p439
        %p835 = pneg %p463
        %p836 = pneg %p460
        %p837 = pneg %p489
        %p838 = pneg %p486
        %s839 = sand.u32 %s476, 1
        %s840 = scalar_lea.sflag [#allocation4], %s839
        %s841 = sand.u32 %s476, 1
        %s842 = scalar_lea.vmem [#allocation28], %s841
        %p843 = scmp.lt.s32.totalorder %s43, 1
        %s844 = scalar_select %p843, %s43, 1
        %s845 = smul.addr %s844, 8
        %s846 = scalar_lea.vmem %s0, %s845
        %v847 = vlaneseq
        %v848 = vshrl.u32 %v847, 7
        %v849 = vlaneseq
        %v850 = vand.u32 %v849, 127
        %vm851 = vcmp.eq.s32.totalorder %v848, %v850
        %v852 = vsel %vm851, 1.0, 0.0
        %v853 = vld [vmem:[#allocation5] sm:$0xff]
        %vm854 = vcmp.gt.f32.partialorder %v853, 0.0
        %v855 = vsel %vm854, 0.0, -1e+30
        %v856 = vld [vmem:[%s846] sm:$0xff]
        %v857 = vld [vmem:[%s1] sm:$0xf]
        %vm858 = vcmask 31744
        %v860 = vsel %vm858, %v856, 0
        %vm862 = vcmask 1043456
        %v864 = vsel %vm862, %v857, 0
        %866 = vmatprep.subr.mxu0 0.0
        %867 = vmatpush1.msra.mxu0 %v864
        %868 = vmatprep.subr.mxu0 0.0
        %869 = vmatpush1.msra.mxu0 0.0
        %870 = vmatprep.subr.mxu0 0.0
        %871 = vmatpush1.msra.mxu0 0.0
        %872 = vmatprep.subr.mxu0 0.0
        %873 = vmatpush1.msra.mxu0 0.0
        %874 = vmatprep.subr.mxu0 0.0
        %875 = vmatpush1.msra.mxu0 0.0
        %876 = vmatprep.subr.mxu0 0.0
        %877 = vmatpush1.msra.mxu0 0.0
        %878 = vmatprep.subr.mxu0 0.0
        %879 = vmatpush1.msra.mxu0 0.0
        %880 = vmatprep.subr.mxu0 0.0
        %881 = vmatpush1.msra.mxu0 0.0
        %882 = vmatprep.subr.mxu0 0.0
        %883 = vmatpush1.msra.mxu0 0.0
        %884 = vmatprep.subr.mxu0 0.0
        %885 = vmatpush1.msra.mxu0 0.0
        %886 = vmatprep.subr.mxu0 0.0
        %887 = vmatpush1.msra.mxu0 0.0
        %888 = vmatprep.subr.mxu0 0.0
        %889 = vmatpush1.msra.mxu0 0.0
        %890 = vmatprep.subr.mxu0 0.0
        %891 = vmatpush1.msra.mxu0 0.0
        %892 = vmatprep.subr.mxu0 0.0
        %893 = vmatpush1.msra.mxu0 0.0
        %894 = vmatprep.subr.mxu0 0.0
        %895 = vmatpush1.msra.mxu0 0.0
        %896 = vmatprep.subr.mxu0 0.0
        %897 = vmatpush1.msra.mxu0 0.0
        %898 = vmatprep.subr.mxu0 0.0
        %899 = vmatpush1.msra.mxu0 0.0
        %900 = vmatprep.subr.mxu0 0.0
        %901 = vmatpush1.msra.mxu0 0.0
        %902 = vmatprep.subr.mxu0 0.0
        %903 = vmatpush1.msra.mxu0 0.0
        %904 = vmatprep.subr.mxu0 0.0
        %905 = vmatpush1.msra.mxu0 0.0
        %906 = vmatprep.subr.mxu0 0.0
        %907 = vmatpush1.msra.mxu0 0.0
        %908 = vmatprep.subr.mxu0 0.0
        %909 = vmatpush1.msra.mxu0 0.0
        %910 = vmatprep.subr.mxu0 0.0
        %911 = vmatpush1.msra.mxu0 0.0
        %912 = vmatprep.subr.mxu0 0.0
        %913 = vmatpush1.msra.mxu0 0.0
        %914 = vmatprep.subr.mxu0 0.0
        %915 = vmatpush1.msra.mxu0 0.0
        %916 = vmatprep.subr.mxu0 0.0
        %917 = vmatpush1.msra.mxu0 0.0
        %918 = vmatprep.subr.mxu0 0.0
        %919 = vmatpush1.msra.mxu0 0.0
        %920 = vmatprep.subr.mxu0 0.0
        %921 = vmatpush1.msra.mxu0 0.0
        %922 = vmatprep.subr.mxu0 0.0
        %923 = vmatpush1.msra.mxu0 0.0
        %924 = vmatprep.subr.mxu0 0.0
        %925 = vmatpush1.msra.mxu0 0.0
        %926 = vmatprep.subr.mxu0 0.0
        %927 = vmatpush1.msra.mxu0 0.0
        %928 = vmatprep.subr.mxu0 0.0
        %929 = vmatpush1.msra.mxu0 0.0
        %930 = vmatprep.mubr.f32.mxu0 0.0
        %931 = vmatmul.mubr.f32.gmra.mrb[0].mxu0 %v860
        %v932 = vpop.f32.mrb[0].mxu0
        %v933 = vadd.f32 0.0, %v932
        %v934 = vpop.f32.mrb[0].mxu0
        %935 = vdwg.mxu0
        %s936 = scalar_lea.vmem %s1, 4
        %v937 = vld [vmem:[%s936] sm:$0xf]
        %v939 = vsel %vm862, %v937, 0
        %941 = vmatprep.subr.mxu0 0.0
        %942 = vmatpush1.msra.mxu0 %v939
        %943 = vmatprep.subr.mxu0 0.0
        %944 = vmatpush1.msra.mxu0 0.0
        %945 = vmatprep.subr.mxu0 0.0
        %946 = vmatpush1.msra.mxu0 0.0
        %947 = vmatprep.subr.mxu0 0.0
        %948 = vmatpush1.msra.mxu0 0.0
        %949 = vmatprep.subr.mxu0 0.0
        %950 = vmatpush1.msra.mxu0 0.0
        %951 = vmatprep.subr.mxu0 0.0
        %952 = vmatpush1.msra.mxu0 0.0
        %953 = vmatprep.subr.mxu0 0.0
        %954 = vmatpush1.msra.mxu0 0.0
        %955 = vmatprep.subr.mxu0 0.0
        %956 = vmatpush1.msra.mxu0 0.0
        %957 = vmatprep.subr.mxu0 0.0
        %958 = vmatpush1.msra.mxu0 0.0
        %959 = vmatprep.subr.mxu0 0.0
        %960 = vmatpush1.msra.mxu0 0.0
        %961 = vmatprep.subr.mxu0 0.0
        %962 = vmatpush1.msra.mxu0 0.0
        %963 = vmatprep.subr.mxu0 0.0
        %964 = vmatpush1.msra.mxu0 0.0
        %965 = vmatprep.subr.mxu0 0.0
        %966 = vmatpush1.msra.mxu0 0.0
        %967 = vmatprep.subr.mxu0 0.0
        %968 = vmatpush1.msra.mxu0 0.0
        %969 = vmatprep.subr.mxu0 0.0
        %970 = vmatpush1.msra.mxu0 0.0
        %971 = vmatprep.subr.mxu0 0.0
        %972 = vmatpush1.msra.mxu0 0.0
        %973 = vmatprep.subr.mxu0 0.0
        %974 = vmatpush1.msra.mxu0 0.0
        %975 = vmatprep.subr.mxu0 0.0
        %976 = vmatpush1.msra.mxu0 0.0
        %977 = vmatprep.subr.mxu0 0.0
        %978 = vmatpush1.msra.mxu0 0.0
        %979 = vmatprep.subr.mxu0 0.0
        %980 = vmatpush1.msra.mxu0 0.0
        %981 = vmatprep.subr.mxu0 0.0
        %982 = vmatpush1.msra.mxu0 0.0
        %983 = vmatprep.subr.mxu0 0.0
        %984 = vmatpush1.msra.mxu0 0.0
        %985 = vmatprep.subr.mxu0 0.0
        %986 = vmatpush1.msra.mxu0 0.0
        %987 = vmatprep.subr.mxu0 0.0
        %988 = vmatpush1.msra.mxu0 0.0
        %989 = vmatprep.subr.mxu0 0.0
        %990 = vmatpush1.msra.mxu0 0.0
        %991 = vmatprep.subr.mxu0 0.0
        %992 = vmatpush1.msra.mxu0 0.0
        %993 = vmatprep.subr.mxu0 0.0
        %994 = vmatpush1.msra.mxu0 0.0
        %995 = vmatprep.subr.mxu0 0.0
        %996 = vmatpush1.msra.mxu0 0.0
        %997 = vmatprep.subr.mxu0 0.0
        %998 = vmatpush1.msra.mxu0 0.0
        %999 = vmatprep.subr.mxu0 0.0
        %1000 = vmatpush1.msra.mxu0 0.0
        %1001 = vmatprep.subr.mxu0 0.0
        %1002 = vmatpush1.msra.mxu0 0.0
        %1003 = vmatprep.subr.mxu0 0.0
        %1004 = vmatpush1.msra.mxu0 0.0
        %1005 = vmatprep.mubr.f32.mxu0 0.0
        %1006 = vmatmul.mubr.f32.gmra.mrb[0].mxu0 %v860
        %v1007 = vpop.f32.mrb[0].mxu0
        %v1008 = vadd.f32 0.0, %v1007
        %v1009 = vpop.f32.mrb[0].mxu0
        %1010 = vdwg.mxu0
        %s1011 = scalar_lea.vmem %s1, 8
        %v1012 = vld [vmem:[%s1011] sm:$0xf]
        %v1014 = vsel %vm862, %v1012, 0
        %1016 = vmatprep.subr.mxu0 0.0
        %1017 = vmatpush1.msra.mxu0 %v1014
        %1018 = vmatprep.subr.mxu0 0.0
        %1019 = vmatpush1.msra.mxu0 0.0
        %1020 = vmatprep.subr.mxu0 0.0
        %1021 = vmatpush1.msra.mxu0 0.0
        %1022 = vmatprep.subr.mxu0 0.0
        %1023 = vmatpush1.msra.mxu0 0.0
        %1024 = vmatprep.subr.mxu0 0.0
        %1025 = vmatpush1.msra.mxu0 0.0
        %1026 = vmatprep.subr.mxu0 0.0
        %1027 = vmatpush1.msra.mxu0 0.0
        %1028 = vmatprep.subr.mxu0 0.0
        %1029 = vmatpush1.msra.mxu0 0.0
        %1030 = vmatprep.subr.mxu0 0.0
        %1031 = vmatpush1.msra.mxu0 0.0
        %1032 = vmatprep.subr.mxu0 0.0
        %1033 = vmatpush1.msra.mxu0 0.0
        %1034 = vmatprep.subr.mxu0 0.0
        %1035 = vmatpush1.msra.mxu0 0.0
        %1036 = vmatprep.subr.mxu0 0.0
        %1037 = vmatpush1.msra.mxu0 0.0
        %1038 = vmatprep.subr.mxu0 0.0
        %1039 = vmatpush1.msra.mxu0 0.0
        %1040 = vmatprep.subr.mxu0 0.0
        %1041 = vmatpush1.msra.mxu0 0.0
        %1042 = vmatprep.subr.mxu0 0.0
        %1043 = vmatpush1.msra.mxu0 0.0
        %1044 = vmatprep.subr.mxu0 0.0
        %1045 = vmatpush1.msra.mxu0 0.0
        %1046 = vmatprep.subr.mxu0 0.0
        %1047 = vmatpush1.msra.mxu0 0.0
        %1048 = vmatprep.subr.mxu0 0.0
        %1049 = vmatpush1.msra.mxu0 0.0
        %1050 = vmatprep.subr.mxu0 0.0
        %1051 = vmatpush1.msra.mxu0 0.0
        %1052 = vmatprep.subr.mxu0 0.0
        %1053 = vmatpush1.msra.mxu0 0.0
        %1054 = vmatprep.subr.mxu0 0.0
        %1055 = vmatpush1.msra.mxu0 0.0
        %1056 = vmatprep.subr.mxu0 0.0
        %1057 = vmatpush1.msra.mxu0 0.0
        %1058 = vmatprep.subr.mxu0 0.0
        %1059 = vmatpush1.msra.mxu0 0.0
        %1060 = vmatprep.subr.mxu0 0.0
        %1061 = vmatpush1.msra.mxu0 0.0
        %1062 = vmatprep.subr.mxu0 0.0
        %1063 = vmatpush1.msra.mxu0 0.0
        %1064 = vmatprep.subr.mxu0 0.0
        %1065 = vmatpush1.msra.mxu0 0.0
        %1066 = vmatprep.subr.mxu0 0.0
        %1067 = vmatpush1.msra.mxu0 0.0
        %1068 = vmatprep.subr.mxu0 0.0
        %1069 = vmatpush1.msra.mxu0 0.0
        %1070 = vmatprep.subr.mxu0 0.0
        %1071 = vmatpush1.msra.mxu0 0.0
        %1072 = vmatprep.subr.mxu0 0.0
        %1073 = vmatpush1.msra.mxu0 0.0
        %1074 = vmatprep.subr.mxu0 0.0
        %1075 = vmatpush1.msra.mxu0 0.0
        %1076 = vmatprep.subr.mxu0 0.0
        %1077 = vmatpush1.msra.mxu0 0.0
        %1078 = vmatprep.subr.mxu0 0.0
        %1079 = vmatpush1.msra.mxu0 0.0
        %1080 = vmatprep.mubr.f32.mxu0 0.0
        %1081 = vmatmul.mubr.f32.gmra.mrb[0].mxu0 %v860
        %v1082 = vpop.f32.mrb[0].mxu0
        %v1083 = vadd.f32 0.0, %v1082
        %v1084 = vpop.f32.mrb[0].mxu0
        %1085 = vdwg.mxu0
        %v1086 = vsub.s32 %v848, 1
        %vm1087 = vcmp.eq.s32.totalorder %v850, %v1086
        %vm1088 = vcmp.eq.s32.totalorder %v848, 0
        %vm1089 = vcmp.eq.s32.totalorder %v850, 7
        %vm1090 = vmand %vm1088, %vm1089
        %vm1091 = vmor %vm1087, %vm1090
        %v1092 = vsel %vm1091, 1.0, 0.0
        %v1093 = vadd.s32 %v848, 1
        %vm1094 = vcmp.eq.s32.totalorder %v850, %v1093
        %vm1095 = vcmp.eq.s32.totalorder %v848, 7
        %vm1096 = vcmp.eq.s32.totalorder %v850, 0
        %vm1097 = vmand %vm1095, %vm1096
        %vm1098 = vmor %vm1094, %vm1097
        %v1099 = vsel %vm1098, 1.0, 0.0
        %vm1100 = vcmask 64512
        %v1102 = vsel %vm1100, %v1092, 0
        %1104 = vmatprep.subr.mxu0 0.0
        %1105 = vmatpush1.msra.mxu0 %v933
        %1106 = vmatprep.subr.mxu0 0.0
        %1107 = vmatpush1.msra.mxu0 0.0
        %1108 = vmatprep.subr.mxu0 0.0
        %1109 = vmatpush1.msra.mxu0 0.0
        %1110 = vmatprep.subr.mxu0 0.0
        %1111 = vmatpush1.msra.mxu0 0.0
        %1112 = vmatprep.subr.mxu0 0.0
        %1113 = vmatpush1.msra.mxu0 0.0
        %1114 = vmatprep.subr.mxu0 0.0
        %1115 = vmatpush1.msra.mxu0 0.0
        %1116 = vmatprep.subr.mxu0 0.0
        %1117 = vmatpush1.msra.mxu0 0.0
        %1118 = vmatprep.subr.mxu0 0.0
        %1119 = vmatpush1.msra.mxu0 0.0
        %1120 = vmatprep.subr.mxu0 0.0
        %1121 = vmatpush1.msra.mxu0 0.0
        %1122 = vmatprep.subr.mxu0 0.0
        %1123 = vmatpush1.msra.mxu0 0.0
        %1124 = vmatprep.subr.mxu0 0.0
        %1125 = vmatpush1.msra.mxu0 0.0
        %1126 = vmatprep.subr.mxu0 0.0
        %1127 = vmatpush1.msra.mxu0 0.0
        %1128 = vmatprep.subr.mxu0 0.0
        %1129 = vmatpush1.msra.mxu0 0.0
        %1130 = vmatprep.subr.mxu0 0.0
        %1131 = vmatpush1.msra.mxu0 0.0
        %1132 = vmatprep.subr.mxu0 0.0
        %1133 = vmatpush1.msra.mxu0 0.0
        %1134 = vmatprep.subr.mxu0 0.0
        %1135 = vmatpush1.msra.mxu0 0.0
        %1136 = vmatprep.subr.mxu0 0.0
        %1137 = vmatpush1.msra.mxu0 0.0
        %1138 = vmatprep.subr.mxu0 0.0
        %1139 = vmatpush1.msra.mxu0 0.0
        %1140 = vmatprep.subr.mxu0 0.0
        %1141 = vmatpush1.msra.mxu0 0.0
        %1142 = vmatprep.subr.mxu0 0.0
        %1143 = vmatpush1.msra.mxu0 0.0
        %1144 = vmatprep.subr.mxu0 0.0
        %1145 = vmatpush1.msra.mxu0 0.0
        %1146 = vmatprep.subr.mxu0 0.0
        %1147 = vmatpush1.msra.mxu0 0.0
        %1148 = vmatprep.subr.mxu0 0.0
        %1149 = vmatpush1.msra.mxu0 0.0
        %1150 = vmatprep.subr.mxu0 0.0
        %1151 = vmatpush1.msra.mxu0 0.0
        %1152 = vmatprep.subr.mxu0 0.0
        %1153 = vmatpush1.msra.mxu0 0.0
        %1154 = vmatprep.subr.mxu0 0.0
        %1155 = vmatpush1.msra.mxu0 0.0
        %1156 = vmatprep.subr.mxu0 0.0
        %1157 = vmatpush1.msra.mxu0 0.0
        %1158 = vmatprep.subr.mxu0 0.0
        %1159 = vmatpush1.msra.mxu0 0.0
        %1160 = vmatprep.subr.mxu0 0.0
        %1161 = vmatpush1.msra.mxu0 0.0
        %1162 = vmatprep.subr.mxu0 0.0
        %1163 = vmatpush1.msra.mxu0 0.0
        %1164 = vmatprep.subr.mxu0 0.0
        %1165 = vmatpush1.msra.mxu0 0.0
        %1166 = vmatprep.subr.mxu0 0.0
        %1167 = vmatpush1.msra.mxu0 0.0
        %1168 = vmatprep.mubr.f32.mxu0 0.0
        %1169 = vmatmul.mubr.f32.gmra.mrb[0].mxu0 %v1102
        %v1170 = vpop.f32.mrb[0].mxu0
        %v1171 = vadd.f32 %v1008, %v1170
        %v1172 = vpop.f32.mrb[0].mxu0
        %1173 = vdwg.mxu0
        %v1175 = vsel %vm1100, %v1099, 0
        %1177 = vmatprep.subr.mxu0 0.0
        %1178 = vmatpush1.msra.mxu0 %v1083
        %1179 = vmatprep.subr.mxu0 0.0
        %1180 = vmatpush1.msra.mxu0 0.0
        %1181 = vmatprep.subr.mxu0 0.0
        %1182 = vmatpush1.msra.mxu0 0.0
        %1183 = vmatprep.subr.mxu0 0.0
        %1184 = vmatpush1.msra.mxu0 0.0
        %1185 = vmatprep.subr.mxu0 0.0
        %1186 = vmatpush1.msra.mxu0 0.0
        %1187 = vmatprep.subr.mxu0 0.0
        %1188 = vmatpush1.msra.mxu0 0.0
        %1189 = vmatprep.subr.mxu0 0.0
        %1190 = vmatpush1.msra.mxu0 0.0
        %1191 = vmatprep.subr.mxu0 0.0
        %1192 = vmatpush1.msra.mxu0 0.0
        %1193 = vmatprep.subr.mxu0 0.0
        %1194 = vmatpush1.msra.mxu0 0.0
        %1195 = vmatprep.subr.mxu0 0.0
        %1196 = vmatpush1.msra.mxu0 0.0
        %1197 = vmatprep.subr.mxu0 0.0
        %1198 = vmatpush1.msra.mxu0 0.0
        %1199 = vmatprep.subr.mxu0 0.0
        %1200 = vmatpush1.msra.mxu0 0.0
        %1201 = vmatprep.subr.mxu0 0.0
        %1202 = vmatpush1.msra.mxu0 0.0
        %1203 = vmatprep.subr.mxu0 0.0
        %1204 = vmatpush1.msra.mxu0 0.0
        %1205 = vmatprep.subr.mxu0 0.0
        %1206 = vmatpush1.msra.mxu0 0.0
        %1207 = vmatprep.subr.mxu0 0.0
        %1208 = vmatpush1.msra.mxu0 0.0
        %1209 = vmatprep.subr.mxu0 0.0
        %1210 = vmatpush1.msra.mxu0 0.0
        %1211 = vmatprep.subr.mxu0 0.0
        %1212 = vmatpush1.msra.mxu0 0.0
        %1213 = vmatprep.subr.mxu0 0.0
        %1214 = vmatpush1.msra.mxu0 0.0
        %1215 = vmatprep.subr.mxu0 0.0
        %1216 = vmatpush1.msra.mxu0 0.0
        %1217 = vmatprep.subr.mxu0 0.0
        %1218 = vmatpush1.msra.mxu0 0.0
        %1219 = vmatprep.subr.mxu0 0.0
        %1220 = vmatpush1.msra.mxu0 0.0
        %1221 = vmatprep.subr.mxu0 0.0
        %1222 = vmatpush1.msra.mxu0 0.0
        %1223 = vmatprep.subr.mxu0 0.0
        %1224 = vmatpush1.msra.mxu0 0.0
        %1225 = vmatprep.subr.mxu0 0.0
        %1226 = vmatpush1.msra.mxu0 0.0
        %1227 = vmatprep.subr.mxu0 0.0
        %1228 = vmatpush1.msra.mxu0 0.0
        %1229 = vmatprep.subr.mxu0 0.0
        %1230 = vmatpush1.msra.mxu0 0.0
        %1231 = vmatprep.subr.mxu0 0.0
        %1232 = vmatpush1.msra.mxu0 0.0
        %1233 = vmatprep.subr.mxu0 0.0
        %1234 = vmatpush1.msra.mxu0 0.0
        %1235 = vmatprep.subr.mxu0 0.0
        %1236 = vmatpush1.msra.mxu0 0.0
        %1237 = vmatprep.subr.mxu0 0.0
        %1238 = vmatpush1.msra.mxu0 0.0
        %1239 = vmatprep.subr.mxu0 0.0
        %1240 = vmatpush1.msra.mxu0 0.0
        %1241 = vmatprep.mubr.f32.mxu0 0.0
        %1242 = vmatmul.mubr.f32.gmra.mrb[0].mxu0 %v1175
        %v1243 = vpop.f32.mrb[0].mxu0
        %v1244 = vadd.f32 0.0, %v1243
        %v1245 = vpop.f32.mrb[0].mxu0
        %1246 = vdwg.mxu0
        %v1247 = vadd.f32 %v1171, %v1244
        %v1248 = vld [vmem:[#allocation2] sm:$0xff]
        %v1249 = vadd.f32 %v1247, %v1248
        %v1250 = vld [vmem:[#allocation7] sm:$0xff]
        %v1251 = vld [vmem:[#allocation7 + $0x8] sm:$0xff]
        %v1252 = vld [vmem:[#allocation7 + $0x10] sm:$0xff]
        %v1253 = vld [vmem:[#allocation7 + $0x18] sm:$0xff]
        %v1254 = vld [vmem:[#allocation8] sm:$0x1]
        %v1256 = vlaneseq
        %v1257 = vshrl.u32 %v1256, 7
        %v1258 = vsub.s32 0, %v1257
        %v1259 = vrot.slane %v1254, %v1258
        %vm1261 = vcmask 261120
        %v1263 = vsel %vm1261, %v1249, 0
        %1265 = vmatprep.subr.mxu0 0.0
        %1266 = vmatpush1.msra.mxu0 %v1250
        %1267 = vmatprep.subr.mxu0 0.0
        %1268 = vmatpush1.msra.mxu0 %v1251
        %1269 = vmatprep.subr.mxu0 0.0
        %1270 = vmatpush1.msra.mxu0 %v1252
        %1271 = vmatprep.subr.mxu0 0.0
        %1272 = vmatpush1.msra.mxu0 %v1253
        %1273 = vmatprep.subr.mxu0 0.0
        %1274 = vmatpush1.msra.mxu0 0.0
        %1275 = vmatprep.subr.mxu0 0.0
        %1276 = vmatpush1.msra.mxu0 0.0
        %1277 = vmatprep.subr.mxu0 0.0
        %1278 = vmatpush1.msra.mxu0 0.0
        %1279 = vmatprep.subr.mxu0 0.0
        %1280 = vmatpush1.msra.mxu0 0.0
        %1281 = vmatprep.subr.mxu0 0.0
        %1282 = vmatpush1.msra.mxu0 0.0
        %1283 = vmatprep.subr.mxu0 0.0
        %1284 = vmatpush1.msra.mxu0 0.0
        %1285 = vmatprep.subr.mxu0 0.0
        %1286 = vmatpush1.msra.mxu0 0.0
        %1287 = vmatprep.subr.mxu0 0.0
        %1288 = vmatpush1.msra.mxu0 0.0
        %1289 = vmatprep.subr.mxu0 0.0
        %1290 = vmatpush1.msra.mxu0 0.0
        %1291 = vmatprep.subr.mxu0 0.0
        %1292 = vmatpush1.msra.mxu0 0.0
        %1293 = vmatprep.subr.mxu0 0.0
        %1294 = vmatpush1.msra.mxu0 0.0
        %1295 = vmatprep.subr.mxu0 0.0
        %1296 = vmatpush1.msra.mxu0 0.0
        %1297 = vmatprep.subr.mxu0 0.0
        %1298 = vmatpush1.msra.mxu0 0.0
        %1299 = vmatprep.subr.mxu0 0.0
        %1300 = vmatpush1.msra.mxu0 0.0
        %1301 = vmatprep.subr.mxu0 0.0
        %1302 = vmatpush1.msra.mxu0 0.0
        %1303 = vmatprep.subr.mxu0 0.0
        %1304 = vmatpush1.msra.mxu0 0.0
        %1305 = vmatprep.subr.mxu0 0.0
        %1306 = vmatpush1.msra.mxu0 0.0
        %1307 = vmatprep.subr.mxu0 0.0
        %1308 = vmatpush1.msra.mxu0 0.0
        %1309 = vmatprep.subr.mxu0 0.0
        %1310 = vmatpush1.msra.mxu0 0.0
        %1311 = vmatprep.subr.mxu0 0.0
        %1312 = vmatpush1.msra.mxu0 0.0
        %1313 = vmatprep.subr.mxu0 0.0
        %1314 = vmatpush1.msra.mxu0 0.0
        %1315 = vmatprep.subr.mxu0 0.0
        %1316 = vmatpush1.msra.mxu0 0.0
        %1317 = vmatprep.subr.mxu0 0.0
        %1318 = vmatpush1.msra.mxu0 0.0
        %1319 = vmatprep.subr.mxu0 0.0
        %1320 = vmatpush1.msra.mxu0 0.0
        %1321 = vmatprep.subr.mxu0 0.0
        %1322 = vmatpush1.msra.mxu0 0.0
        %1323 = vmatprep.subr.mxu0 0.0
        %1324 = vmatpush1.msra.mxu0 0.0
        %1325 = vmatprep.subr.mxu0 0.0
        %1326 = vmatpush1.msra.mxu0 0.0
        %1327 = vmatprep.subr.mxu0 0.0
        %1328 = vmatpush1.msra.mxu0 0.0
        %1329 = vmatprep.mubr.f32.mxu0 0.0
        %1330 = vmatmul.mubr.f32.gmra.mrb[0].mxu0 %v1263
        %v1331 = vpop.f32.mrb[0].mxu0
        %v1332 = vadd.f32 %v1259, %v1331
        %v1333 = vpop.f32.mrb[0].mxu0
        %1334 = vdwg.mxu0
        %v1335 = vld [vmem:[#allocation10] sm:$0xff]
        %v1336 = vld [vmem:[#allocation10 + $0x8] sm:$0xff]
        %v1337 = vld [vmem:[#allocation10 + $0x10] sm:$0xff]
        %v1338 = vld [vmem:[#allocation10 + $0x18] sm:$0xff]
        %1340 = vrot.lane.b32.xlu0 %v1332, 96
        %v1341 = vpop.permute.xlu0 %1340
        %v1342 = vsel %vm1100, %v1332, 0
        %v1344 = vsel %vm1100, %v1341, 0
        %1346 = vmatprep.subr.mxu0 0.0
        %1347 = vmatpush1.xpose.msra.mxu0 %v1344
        %1348 = vmatprep.subr.mxu0 0.0
        %1349 = vmatpush1.xpose.msra.mxu0 0.0
        %1350 = vmatprep.subr.mxu0 0.0
        %1351 = vmatpush1.xpose.msra.mxu0 0.0
        %1352 = vmatprep.subr.mxu0 0.0
        %1353 = vmatpush1.xpose.msra.mxu0 0.0
        %1354 = vmatprep.subr.mxu0 0.0
        %1355 = vmatpush1.xpose.msra.mxu0 0.0
        %1356 = vmatprep.subr.mxu0 0.0
        %1357 = vmatpush1.xpose.msra.mxu0 0.0
        %1358 = vmatprep.subr.mxu0 0.0
        %1359 = vmatpush1.xpose.msra.mxu0 0.0
        %1360 = vmatprep.subr.mxu0 0.0
        %1361 = vmatpush1.xpose.msra.mxu0 0.0
        %1362 = vmatprep.subr.mxu0 0.0
        %1363 = vmatpush1.xpose.msra.mxu0 0.0
        %1364 = vmatprep.subr.mxu0 0.0
        %1365 = vmatpush1.xpose.msra.mxu0 0.0
        %1366 = vmatprep.subr.mxu0 0.0
        %1367 = vmatpush1.xpose.msra.mxu0 0.0
        %1368 = vmatprep.subr.mxu0 0.0
        %1369 = vmatpush1.xpose.msra.mxu0 0.0
        %1370 = vmatprep.subr.mxu0 0.0
        %1371 = vmatpush1.xpose.msra.mxu0 0.0
        %1372 = vmatprep.subr.mxu0 0.0
        %1373 = vmatpush1.xpose.msra.mxu0 0.0
        %1374 = vmatprep.subr.mxu0 0.0
        %1375 = vmatpush1.xpose.msra.mxu0 0.0
        %1376 = vmatprep.subr.mxu0 0.0
        %1377 = vmatpush1.xpose.msra.mxu0 0.0
        %1378 = vmatprep.subr.mxu0 0.0
        %1379 = vmatpush1.xpose.msra.mxu0 0.0
        %1380 = vmatprep.subr.mxu0 0.0
        %1381 = vmatpush1.xpose.msra.mxu0 0.0
        %1382 = vmatprep.subr.mxu0 0.0
        %1383 = vmatpush1.xpose.msra.mxu0 0.0
        %1384 = vmatprep.subr.mxu0 0.0
        %1385 = vmatpush1.xpose.msra.mxu0 0.0
        %1386 = vmatprep.subr.mxu0 0.0
        %1387 = vmatpush1.xpose.msra.mxu0 0.0
        %1388 = vmatprep.subr.mxu0 0.0
        %1389 = vmatpush1.xpose.msra.mxu0 0.0
        %1390 = vmatprep.subr.mxu0 0.0
        %1391 = vmatpush1.xpose.msra.mxu0 0.0
        %1392 = vmatprep.subr.mxu0 0.0
        %1393 = vmatpush1.xpose.msra.mxu0 0.0
        %1394 = vmatprep.subr.mxu0 0.0
        %1395 = vmatpush1.xpose.msra.mxu0 0.0
        %1396 = vmatprep.subr.mxu0 0.0
        %1397 = vmatpush1.xpose.msra.mxu0 0.0
        %1398 = vmatprep.subr.mxu0 0.0
        %1399 = vmatpush1.xpose.msra.mxu0 0.0
        %1400 = vmatprep.subr.mxu0 0.0
        %1401 = vmatpush1.xpose.msra.mxu0 0.0
        %1402 = vmatprep.subr.mxu0 0.0
        %1403 = vmatpush1.xpose.msra.mxu0 0.0
        %1404 = vmatprep.subr.mxu0 0.0
        %1405 = vmatpush1.xpose.msra.mxu0 0.0
        %1406 = vmatprep.subr.mxu0 0.0
        %1407 = vmatpush1.xpose.msra.mxu0 0.0
        %1408 = vmatprep.subr.mxu0 0.0
        %1409 = vmatpush1.xpose.msra.mxu0 0.0
        %1410 = vmatprep.mubr.f32.mxu0 0.0
        %1411 = vmatmul.mubr.f32.gmra.mrb[0].mxu0 %v1342
        %v1412 = vpop.f32.mrb[0].mxu0
        %v1413 = vadd.f32 0.0, %v1412
        %v1414 = vpop.f32.mrb[0].mxu0
        %1415 = vdwg.mxu0
        %v1416 = vadd.f32 %v1413, %v855
        %v1417 = vsel %vm1100, %v1416, -inf
        %1418 = vmax.xlane.f32.xlu0 %v1417
        %v1419 = vpop.xlane.xlu0 %1418
        %v1420 = vmul.f32 %v1413, %v853
        %v1421 = vsel %vm1100, %v1420, 0.0
        %1422 = vadd.xlane.f32.xlu0 %v1421
        %v1423 = vpop.xlane.xlu0 %1422
        %v1424 = vmul.f32 %v1423, 0.125
        %v1425 = vsub.f32 %v1419, %v1424
        %v1426 = vmul.f32 %v852, %v1425
        %v1427 = vsel %vm1100, %v1426, 0.0
        %v1428 = vrot.slane %v1427, 4
        %v1429 = vadd.f32 %v1427, %v1428
        %v1430 = vrot.slane %v1429, 2
        %v1431 = vadd.f32 %v1429, %v1430
        %v1432 = vrot.slane %v1431, 1
        %v1433 = vadd.f32 %v1431, %v1432
        %vm1434 = vcmp.gt.f32.partialorder %v1433, %v1425
        %vm1435 = vcmp.eq.f32.partialorder %v1433, %v1425
        %vm1436 = vcmp.lt.s32.totalorder %v850, %v848
        %vm1437 = vmand %vm1435, %vm1436
        %vm1438 = vmor %vm1434, %vm1437
        %v1439 = vsel %vm1438, 1.0, 0.0
        %v1440 = vsel %vm1100, %v1439, 0.0
        %1441 = vadd.xlane.f32.xlu0 %v1440
        %v1442 = vpop.xlane.xlu0 %1441
        %vm1443 = vcmp.lt.f32.partialorder %v1442, 3.0
        %v1444 = vmul.f32 %v1413, 0.35355338
        %v1445 = vsel %vm1100, %v1444, -inf
        %1446 = vmax.xlane.f32.xlu0 %v1445
        %v1447 = vpop.xlane.xlu0 %1446
        %v1448 = vsub.f32 %v1444, %v1447
        %v1449 = vmul.f32 %v1448, 1.442695
        %v1450 = vpow.pop %v1449
        %v1451 = vsel %vm1100, %v1450, 0.0
        %1452 = vadd.xlane.f32.xlu0 %v1451
        %v1453 = vpop.xlane.xlu0 %1452
        %v1454 = vrcp.pop %v1453
        %v1455 = vmul.f32 %v1450, %v1454
        %1456 = vrot.lane.b32.xlu0 %v1332, 64
        %v1457 = vpop.permute.xlu0 %1456
        %v1460 = vsel %vm1100, %v1455, 0
        %1462 = vmatprep.subr.mxu0 0.0
        %1463 = vmatpush1.msra.mxu0 %v1457
        %1464 = vmatprep.subr.mxu0 0.0
        %1465 = vmatpush1.msra.mxu0 0.0
        %1466 = vmatprep.subr.mxu0 0.0
        %1467 = vmatpush1.msra.mxu0 0.0
        %1468 = vmatprep.subr.mxu0 0.0
        %1469 = vmatpush1.msra.mxu0 0.0
        %1470 = vmatprep.subr.mxu0 0.0
        %1471 = vmatpush1.msra.mxu0 0.0
        %1472 = vmatprep.subr.mxu0 0.0
        %1473 = vmatpush1.msra.mxu0 0.0
        %1474 = vmatprep.subr.mxu0 0.0
        %1475 = vmatpush1.msra.mxu0 0.0
        %1476 = vmatprep.subr.mxu0 0.0
        %1477 = vmatpush1.msra.mxu0 0.0
        %1478 = vmatprep.subr.mxu0 0.0
        %1479 = vmatpush1.msra.mxu0 0.0
        %1480 = vmatprep.subr.mxu0 0.0
        %1481 = vmatpush1.msra.mxu0 0.0
        %1482 = vmatprep.subr.mxu0 0.0
        %1483 = vmatpush1.msra.mxu0 0.0
        %1484 = vmatprep.subr.mxu0 0.0
        %1485 = vmatpush1.msra.mxu0 0.0
        %1486 = vmatprep.subr.mxu0 0.0
        %1487 = vmatpush1.msra.mxu0 0.0
        %1488 = vmatprep.subr.mxu0 0.0
        %1489 = vmatpush1.msra.mxu0 0.0
        %1490 = vmatprep.subr.mxu0 0.0
        %1491 = vmatpush1.msra.mxu0 0.0
        %1492 = vmatprep.subr.mxu0 0.0
        %1493 = vmatpush1.msra.mxu0 0.0
        %1494 = vmatprep.subr.mxu0 0.0
        %1495 = vmatpush1.msra.mxu0 0.0
        %1496 = vmatprep.subr.mxu0 0.0
        %1497 = vmatpush1.msra.mxu0 0.0
        %1498 = vmatprep.subr.mxu0 0.0
        %1499 = vmatpush1.msra.mxu0 0.0
        %1500 = vmatprep.subr.mxu0 0.0
        %1501 = vmatpush1.msra.mxu0 0.0
        %1502 = vmatprep.subr.mxu0 0.0
        %1503 = vmatpush1.msra.mxu0 0.0
        %1504 = vmatprep.subr.mxu0 0.0
        %1505 = vmatpush1.msra.mxu0 0.0
        %1506 = vmatprep.subr.mxu0 0.0
        %1507 = vmatpush1.msra.mxu0 0.0
        %1508 = vmatprep.subr.mxu0 0.0
        %1509 = vmatpush1.msra.mxu0 0.0
        %1510 = vmatprep.subr.mxu0 0.0
        %1511 = vmatpush1.msra.mxu0 0.0
        %1512 = vmatprep.subr.mxu0 0.0
        %1513 = vmatpush1.msra.mxu0 0.0
        %1514 = vmatprep.subr.mxu0 0.0
        %1515 = vmatpush1.msra.mxu0 0.0
        %1516 = vmatprep.subr.mxu0 0.0
        %1517 = vmatpush1.msra.mxu0 0.0
        %1518 = vmatprep.subr.mxu0 0.0
        %1519 = vmatpush1.msra.mxu0 0.0
        %1520 = vmatprep.subr.mxu0 0.0
        %1521 = vmatpush1.msra.mxu0 0.0
        %1522 = vmatprep.subr.mxu0 0.0
        %1523 = vmatpush1.msra.mxu0 0.0
        %1524 = vmatprep.subr.mxu0 0.0
        %1525 = vmatpush1.msra.mxu0 0.0
        %1526 = vmatprep.mubr.f32.mxu0 0.0
        %1527 = vmatmul.mubr.f32.gmra.mrb[0].mxu0 %v1460
        %v1528 = vpop.f32.mrb[0].mxu0
        %v1529 = vadd.f32 0.0, %v1528
        %v1530 = vpop.f32.mrb[0].mxu0
        %1531 = vdwg.mxu0
        %vm1532 = vcmask 589312
        %v1533 = vsel %vm1532, %v1332, 0.0
        %v1534 = vrot.slane %v1533, 4
        %v1535 = vadd.f32 %v1533, %v1534
        %v1536 = vrot.slane %v1535, 2
        %v1537 = vadd.f32 %v1535, %v1536
        %v1538 = vrot.slane %v1537, 1
        %v1539 = vadd.f32 %v1537, %v1538
        %v1540 = vmul.f32 %v1539, 0.125
        %v1541 = vsel %vm1443, 1, 0
        %vm1542 = vcmp.eq.s32.totalorder %v1541, 1
        %1544 = vrot.lane.b32.xlu0 %v1540, 64
        %v1545 = vpop.permute.xlu0 %1544
        %v1547 = vsel %vm1542, %v1529, %v1545
        %1548 = vrot.lane.b32.xlu0 %v1332, 120
        %v1549 = vpop.permute.xlu0 %1548
        %1550 = vrot.lane.b32.xlu0 %v1332, 88
        %v1551 = vpop.permute.xlu0 %1550
        %v1552 = vsel %vm1100, %v1549, 0
        %v1554 = vsel %vm1100, %v1551, 0
        %1556 = vmatprep.subr.mxu0 0.0
        %1557 = vmatpush1.xpose.msra.mxu0 %v1554
        %1558 = vmatprep.subr.mxu0 0.0
        %1559 = vmatpush1.xpose.msra.mxu0 0.0
        %1560 = vmatprep.subr.mxu0 0.0
        %1561 = vmatpush1.xpose.msra.mxu0 0.0
        %1562 = vmatprep.subr.mxu0 0.0
        %1563 = vmatpush1.xpose.msra.mxu0 0.0
        %1564 = vmatprep.subr.mxu0 0.0
        %1565 = vmatpush1.xpose.msra.mxu0 0.0
        %1566 = vmatprep.subr.mxu0 0.0
        %1567 = vmatpush1.xpose.msra.mxu0 0.0
        %1568 = vmatprep.subr.mxu0 0.0
        %1569 = vmatpush1.xpose.msra.mxu0 0.0
        %1570 = vmatprep.subr.mxu0 0.0
        %1571 = vmatpush1.xpose.msra.mxu0 0.0
        %1572 = vmatprep.subr.mxu0 0.0
        %1573 = vmatpush1.xpose.msra.mxu0 0.0
        %1574 = vmatprep.subr.mxu0 0.0
        %1575 = vmatpush1.xpose.msra.mxu0 0.0
        %1576 = vmatprep.subr.mxu0 0.0
        %1577 = vmatpush1.xpose.msra.mxu0 0.0
        %1578 = vmatprep.subr.mxu0 0.0
        %1579 = vmatpush1.xpose.msra.mxu0 0.0
        %1580 = vmatprep.subr.mxu0 0.0
        %1581 = vmatpush1.xpose.msra.mxu0 0.0
        %1582 = vmatprep.subr.mxu0 0.0
        %1583 = vmatpush1.xpose.msra.mxu0 0.0
        %1584 = vmatprep.subr.mxu0 0.0
        %1585 = vmatpush1.xpose.msra.mxu0 0.0
        %1586 = vmatprep.subr.mxu0 0.0
        %1587 = vmatpush1.xpose.msra.mxu0 0.0
        %1588 = vmatprep.subr.mxu0 0.0
        %1589 = vmatpush1.xpose.msra.mxu0 0.0
        %1590 = vmatprep.subr.mxu0 0.0
        %1591 = vmatpush1.xpose.msra.mxu0 0.0
        %1592 = vmatprep.subr.mxu0 0.0
        %1593 = vmatpush1.xpose.msra.mxu0 0.0
        %1594 = vmatprep.subr.mxu0 0.0
        %1595 = vmatpush1.xpose.msra.mxu0 0.0
        %1596 = vmatprep.subr.mxu0 0.0
        %1597 = vmatpush1.xpose.msra.mxu0 0.0
        %1598 = vmatprep.subr.mxu0 0.0
        %1599 = vmatpush1.xpose.msra.mxu0 0.0
        %1600 = vmatprep.subr.mxu0 0.0
        %1601 = vmatpush1.xpose.msra.mxu0 0.0
        %1602 = vmatprep.subr.mxu0 0.0
        %1603 = vmatpush1.xpose.msra.mxu0 0.0
        %1604 = vmatprep.subr.mxu0 0.0
        %1605 = vmatpush1.xpose.msra.mxu0 0.0
        %1606 = vmatprep.subr.mxu0 0.0
        %1607 = vmatpush1.xpose.msra.mxu0 0.0
        %1608 = vmatprep.subr.mxu0 0.0
        %1609 = vmatpush1.xpose.msra.mxu0 0.0
        %1610 = vmatprep.subr.mxu0 0.0
        %1611 = vmatpush1.xpose.msra.mxu0 0.0
        %1612 = vmatprep.subr.mxu0 0.0
        %1613 = vmatpush1.xpose.msra.mxu0 0.0
        %1614 = vmatprep.subr.mxu0 0.0
        %1615 = vmatpush1.xpose.msra.mxu0 0.0
        %1616 = vmatprep.subr.mxu0 0.0
        %1617 = vmatpush1.xpose.msra.mxu0 0.0
        %1618 = vmatprep.subr.mxu0 0.0
        %1619 = vmatpush1.xpose.msra.mxu0 0.0
        %1620 = vmatprep.mubr.f32.mxu0 0.0
        %1621 = vmatmul.mubr.f32.gmra.mrb[0].mxu0 %v1552
        %v1622 = vpop.f32.mrb[0].mxu0
        %v1623 = vadd.f32 0.0, %v1622
        %v1624 = vpop.f32.mrb[0].mxu0
        %1625 = vdwg.mxu0
        %v1626 = vadd.f32 %v1623, %v855
        %v1627 = vsel %vm1100, %v1626, -inf
        %1628 = vmax.xlane.f32.xlu0 %v1627
        %v1629 = vpop.xlane.xlu0 %1628
        %v1630 = vmul.f32 %v1623, %v853
        %v1631 = vsel %vm1100, %v1630, 0.0
        %1632 = vadd.xlane.f32.xlu0 %v1631
        %v1633 = vpop.xlane.xlu0 %1632
        %v1634 = vmul.f32 %v1633, 0.125
        %v1635 = vsub.f32 %v1629, %v1634
        %v1636 = vmul.f32 %v852, %v1635
        %v1637 = vsel %vm1100, %v1636, 0.0
        %v1638 = vrot.slane %v1637, 4
        %v1639 = vadd.f32 %v1637, %v1638
        %v1640 = vrot.slane %v1639, 2
        %v1641 = vadd.f32 %v1639, %v1640
        %v1642 = vrot.slane %v1641, 1
        %v1643 = vadd.f32 %v1641, %v1642
        %vm1644 = vcmp.gt.f32.partialorder %v1643, %v1635
        %vm1645 = vcmp.eq.f32.partialorder %v1643, %v1635
        %vm1646 = vmand %vm1645, %vm1436
        %vm1647 = vmor %vm1644, %vm1646
        %v1648 = vsel %vm1647, 1.0, 0.0
        %v1649 = vsel %vm1100, %v1648, 0.0
        %1650 = vadd.xlane.f32.xlu0 %v1649
        %v1651 = vpop.xlane.xlu0 %1650
        %vm1652 = vcmp.lt.f32.partialorder %v1651, 3.0
        %v1653 = vmul.f32 %v1623, 0.35355338
        %v1654 = vsel %vm1100, %v1653, -inf
        %1655 = vmax.xlane.f32.xlu0 %v1654
        %v1656 = vpop.xlane.xlu0 %1655
        %v1657 = vsub.f32 %v1653, %v1656
        %v1658 = vmul.f32 %v1657, 1.442695
        %v1659 = vpow.pop %v1658
        %v1660 = vsel %vm1100, %v1659, 0.0
        %1661 = vadd.xlane.f32.xlu0 %v1660
        %v1662 = vpop.xlane.xlu0 %1661
        %v1663 = vrcp.pop %v1662
        %v1664 = vmul.f32 %v1659, %v1663
        %1665 = vrot.lane.b32.xlu0 %v1332, 56
        %v1666 = vpop.permute.xlu0 %1665
        %v1669 = vsel %vm1100, %v1664, 0
        %1671 = vmatprep.subr.mxu0 0.0
        %1672 = vmatpush1.msra.mxu0 %v1666
        %1673 = vmatprep.subr.mxu0 0.0
        %1674 = vmatpush1.msra.mxu0 0.0
        %1675 = vmatprep.subr.mxu0 0.0
        %1676 = vmatpush1.msra.mxu0 0.0
        %1677 = vmatprep.subr.mxu0 0.0
        %1678 = vmatpush1.msra.mxu0 0.0
        %1679 = vmatprep.subr.mxu0 0.0
        %1680 = vmatpush1.msra.mxu0 0.0
        %1681 = vmatprep.subr.mxu0 0.0
        %1682 = vmatpush1.msra.mxu0 0.0
        %1683 = vmatprep.subr.mxu0 0.0
        %1684 = vmatpush1.msra.mxu0 0.0
        %1685 = vmatprep.subr.mxu0 0.0
        %1686 = vmatpush1.msra.mxu0 0.0
        %1687 = vmatprep.subr.mxu0 0.0
        %1688 = vmatpush1.msra.mxu0 0.0
        %1689 = vmatprep.subr.mxu0 0.0
        %1690 = vmatpush1.msra.mxu0 0.0
        %1691 = vmatprep.subr.mxu0 0.0
        %1692 = vmatpush1.msra.mxu0 0.0
        %1693 = vmatprep.subr.mxu0 0.0
        %1694 = vmatpush1.msra.mxu0 0.0
        %1695 = vmatprep.subr.mxu0 0.0
        %1696 = vmatpush1.msra.mxu0 0.0
        %1697 = vmatprep.subr.mxu0 0.0
        %1698 = vmatpush1.msra.mxu0 0.0
        %1699 = vmatprep.subr.mxu0 0.0
        %1700 = vmatpush1.msra.mxu0 0.0
        %1701 = vmatprep.subr.mxu0 0.0
        %1702 = vmatpush1.msra.mxu0 0.0
        %1703 = vmatprep.subr.mxu0 0.0
        %1704 = vmatpush1.msra.mxu0 0.0
        %1705 = vmatprep.subr.mxu0 0.0
        %1706 = vmatpush1.msra.mxu0 0.0
        %1707 = vmatprep.subr.mxu0 0.0
        %1708 = vmatpush1.msra.mxu0 0.0
        %1709 = vmatprep.subr.mxu0 0.0
        %1710 = vmatpush1.msra.mxu0 0.0
        %1711 = vmatprep.subr.mxu0 0.0
        %1712 = vmatpush1.msra.mxu0 0.0
        %1713 = vmatprep.subr.mxu0 0.0
        %1714 = vmatpush1.msra.mxu0 0.0
        %1715 = vmatprep.subr.mxu0 0.0
        %1716 = vmatpush1.msra.mxu0 0.0
        %1717 = vmatprep.subr.mxu0 0.0
        %1718 = vmatpush1.msra.mxu0 0.0
        %1719 = vmatprep.subr.mxu0 0.0
        %1720 = vmatpush1.msra.mxu0 0.0
        %1721 = vmatprep.subr.mxu0 0.0
        %1722 = vmatpush1.msra.mxu0 0.0
        %1723 = vmatprep.subr.mxu0 0.0
        %1724 = vmatpush1.msra.mxu0 0.0
        %1725 = vmatprep.subr.mxu0 0.0
        %1726 = vmatpush1.msra.mxu0 0.0
        %1727 = vmatprep.subr.mxu0 0.0
        %1728 = vmatpush1.msra.mxu0 0.0
        %1729 = vmatprep.subr.mxu0 0.0
        %1730 = vmatpush1.msra.mxu0 0.0
        %1731 = vmatprep.subr.mxu0 0.0
        %1732 = vmatpush1.msra.mxu0 0.0
        %1733 = vmatprep.subr.mxu0 0.0
        %1734 = vmatpush1.msra.mxu0 0.0
        %1735 = vmatprep.mubr.f32.mxu0 0.0
        %1736 = vmatmul.mubr.f32.gmra.mrb[0].mxu0 %v1669
        %v1737 = vpop.f32.mrb[0].mxu0
        %v1738 = vadd.f32 0.0, %v1737
        %v1739 = vpop.f32.mrb[0].mxu0
        %1740 = vdwg.mxu0
        %vm1741 = vcmask 654912
        %v1742 = vsel %vm1741, %v1332, 0.0
        %v1743 = vrot.slane %v1742, 4
        %v1744 = vadd.f32 %v1742, %v1743
        %v1745 = vrot.slane %v1744, 2
        %v1746 = vadd.f32 %v1744, %v1745
        %v1747 = vrot.slane %v1746, 1
        %v1748 = vadd.f32 %v1746, %v1747
        %v1749 = vmul.f32 %v1748, 0.125
        %v1750 = vsel %vm1652, 1, 0
        %vm1751 = vcmp.eq.s32.totalorder %v1750, 1
        %1753 = vrot.lane.b32.xlu0 %v1749, 56
        %v1754 = vpop.permute.xlu0 %1753
        %v1756 = vsel %vm1751, %v1738, %v1754
        %v1758 = vsel %vm1100, %v1756, 0
        %1760 = vmatprep.subr.mxu0 0.0
        %1761 = vmatpush1.msra.mxu0 %v1336
        %1762 = vmatprep.subr.mxu0 0.0
        %1763 = vmatpush1.msra.mxu0 0.0
        %1764 = vmatprep.subr.mxu0 0.0
        %1765 = vmatpush1.msra.mxu0 0.0
        %1766 = vmatprep.subr.mxu0 0.0
        %1767 = vmatpush1.msra.mxu0 0.0
        %1768 = vmatprep.subr.mxu0 0.0
        %1769 = vmatpush1.msra.mxu0 0.0
        %1770 = vmatprep.subr.mxu0 0.0
        %1771 = vmatpush1.msra.mxu0 0.0
        %1772 = vmatprep.subr.mxu0 0.0
        %1773 = vmatpush1.msra.mxu0 0.0
        %1774 = vmatprep.subr.mxu0 0.0
        %1775 = vmatpush1.msra.mxu0 0.0
        %1776 = vmatprep.subr.mxu0 0.0
        %1777 = vmatpush1.msra.mxu0 0.0
        %1778 = vmatprep.subr.mxu0 0.0
        %1779 = vmatpush1.msra.mxu0 0.0
        %1780 = vmatprep.subr.mxu0 0.0
        %1781 = vmatpush1.msra.mxu0 0.0
        %1782 = vmatprep.subr.mxu0 0.0
        %1783 = vmatpush1.msra.mxu0 0.0
        %1784 = vmatprep.subr.mxu0 0.0
        %1785 = vmatpush1.msra.mxu0 0.0
        %1786 = vmatprep.subr.mxu0 0.0
        %1787 = vmatpush1.msra.mxu0 0.0
        %1788 = vmatprep.subr.mxu0 0.0
        %1789 = vmatpush1.msra.mxu0 0.0
        %1790 = vmatprep.subr.mxu0 0.0
        %1791 = vmatpush1.msra.mxu0 0.0
        %1792 = vmatprep.subr.mxu0 0.0
        %1793 = vmatpush1.msra.mxu0 0.0
        %1794 = vmatprep.subr.mxu0 0.0
        %1795 = vmatpush1.msra.mxu0 0.0
        %1796 = vmatprep.subr.mxu0 0.0
        %1797 = vmatpush1.msra.mxu0 0.0
        %1798 = vmatprep.subr.mxu0 0.0
        %1799 = vmatpush1.msra.mxu0 0.0
        %1800 = vmatprep.subr.mxu0 0.0
        %1801 = vmatpush1.msra.mxu0 0.0
        %1802 = vmatprep.subr.mxu0 0.0
        %1803 = vmatpush1.msra.mxu0 0.0
        %1804 = vmatprep.subr.mxu0 0.0
        %1805 = vmatpush1.msra.mxu0 0.0
        %1806 = vmatprep.subr.mxu0 0.0
        %1807 = vmatpush1.msra.mxu0 0.0
        %1808 = vmatprep.subr.mxu0 0.0
        %1809 = vmatpush1.msra.mxu0 0.0
        %1810 = vmatprep.subr.mxu0 0.0
        %1811 = vmatpush1.msra.mxu0 0.0
        %1812 = vmatprep.subr.mxu0 0.0
        %1813 = vmatpush1.msra.mxu0 0.0
        %1814 = vmatprep.subr.mxu0 0.0
        %1815 = vmatpush1.msra.mxu0 0.0
        %1816 = vmatprep.subr.mxu0 0.0
        %1817 = vmatpush1.msra.mxu0 0.0
        %1818 = vmatprep.subr.mxu0 0.0
        %1819 = vmatpush1.msra.mxu0 0.0
        %1820 = vmatprep.subr.mxu0 0.0
        %1821 = vmatpush1.msra.mxu0 0.0
        %1822 = vmatprep.subr.mxu0 0.0
        %1823 = vmatpush1.msra.mxu0 0.0
        %1824 = vmatprep.mubr.f32.mxu0 0.0
        %1825 = vmatmul.mubr.f32.gmra.mrb[0].mxu0 %v1758
        %v1826 = vpop.f32.mrb[0].mxu0
        %v1827 = vadd.f32 0.0, %v1826
        %v1828 = vpop.f32.mrb[0].mxu0
        %1829 = vdwg.mxu0
        %v1831 = vsel %vm1100, %v1547, 0
        %1833 = vmatprep.subr.mxu0 0.0
        %1834 = vmatpush1.msra.mxu0 %v1335
        %1835 = vmatprep.subr.mxu0 0.0
        %1836 = vmatpush1.msra.mxu0 0.0
        %1837 = vmatprep.subr.mxu0 0.0
        %1838 = vmatpush1.msra.mxu0 0.0
        %1839 = vmatprep.subr.mxu0 0.0
        %1840 = vmatpush1.msra.mxu0 0.0
        %1841 = vmatprep.subr.mxu0 0.0
        %1842 = vmatpush1.msra.mxu0 0.0
        %1843 = vmatprep.subr.mxu0 0.0
        %1844 = vmatpush1.msra.mxu0 0.0
        %1845 = vmatprep.subr.mxu0 0.0
        %1846 = vmatpush1.msra.mxu0 0.0
        %1847 = vmatprep.subr.mxu0 0.0
        %1848 = vmatpush1.msra.mxu0 0.0
        %1849 = vmatprep.subr.mxu0 0.0
        %1850 = vmatpush1.msra.mxu0 0.0
        %1851 = vmatprep.subr.mxu0 0.0
        %1852 = vmatpush1.msra.mxu0 0.0
        %1853 = vmatprep.subr.mxu0 0.0
        %1854 = vmatpush1.msra.mxu0 0.0
        %1855 = vmatprep.subr.mxu0 0.0
        %1856 = vmatpush1.msra.mxu0 0.0
        %1857 = vmatprep.subr.mxu0 0.0
        %1858 = vmatpush1.msra.mxu0 0.0
        %1859 = vmatprep.subr.mxu0 0.0
        %1860 = vmatpush1.msra.mxu0 0.0
        %1861 = vmatprep.subr.mxu0 0.0
        %1862 = vmatpush1.msra.mxu0 0.0
        %1863 = vmatprep.subr.mxu0 0.0
        %1864 = vmatpush1.msra.mxu0 0.0
        %1865 = vmatprep.subr.mxu0 0.0
        %1866 = vmatpush1.msra.mxu0 0.0
        %1867 = vmatprep.subr.mxu0 0.0
        %1868 = vmatpush1.msra.mxu0 0.0
        %1869 = vmatprep.subr.mxu0 0.0
        %1870 = vmatpush1.msra.mxu0 0.0
        %1871 = vmatprep.subr.mxu0 0.0
        %1872 = vmatpush1.msra.mxu0 0.0
        %1873 = vmatprep.subr.mxu0 0.0
        %1874 = vmatpush1.msra.mxu0 0.0
        %1875 = vmatprep.subr.mxu0 0.0
        %1876 = vmatpush1.msra.mxu0 0.0
        %1877 = vmatprep.subr.mxu0 0.0
        %1878 = vmatpush1.msra.mxu0 0.0
        %1879 = vmatprep.subr.mxu0 0.0
        %1880 = vmatpush1.msra.mxu0 0.0
        %1881 = vmatprep.subr.mxu0 0.0
        %1882 = vmatpush1.msra.mxu0 0.0
        %1883 = vmatprep.subr.mxu0 0.0
        %1884 = vmatpush1.msra.mxu0 0.0
        %1885 = vmatprep.subr.mxu0 0.0
        %1886 = vmatpush1.msra.mxu0 0.0
        %1887 = vmatprep.subr.mxu0 0.0
        %1888 = vmatpush1.msra.mxu0 0.0
        %1889 = vmatprep.subr.mxu0 0.0
        %1890 = vmatpush1.msra.mxu0 0.0
        %1891 = vmatprep.subr.mxu0 0.0
        %1892 = vmatpush1.msra.mxu0 0.0
        %1893 = vmatprep.subr.mxu0 0.0
        %1894 = vmatpush1.msra.mxu0 0.0
        %1895 = vmatprep.subr.mxu0 0.0
        %1896 = vmatpush1.msra.mxu0 0.0
        %1897 = vmatprep.mubr.f32.mxu0 0.0
        %1898 = vmatmul.mubr.f32.gmra.mrb[0].mxu0 %v1831
        %v1899 = vpop.f32.mrb[0].mxu0
        %v1900 = vadd.f32 %v1827, %v1899
        %v1901 = vpop.f32.mrb[0].mxu0
        %1902 = vdwg.mxu0
        %1903 = vrot.lane.b32.xlu0 %v1332, 112
        %v1904 = vpop.permute.xlu0 %1903
        %1905 = vrot.lane.b32.xlu0 %v1332, 80
        %v1906 = vpop.permute.xlu0 %1905
        %v1907 = vsel %vm1100, %v1904, 0
        %v1909 = vsel %vm1100, %v1906, 0
        %1911 = vmatprep.subr.mxu0 0.0
        %1912 = vmatpush1.xpose.msra.mxu0 %v1909
        %1913 = vmatprep.subr.mxu0 0.0
        %1914 = vmatpush1.xpose.msra.mxu0 0.0
        %1915 = vmatprep.subr.mxu0 0.0
        %1916 = vmatpush1.xpose.msra.mxu0 0.0
        %1917 = vmatprep.subr.mxu0 0.0
        %1918 = vmatpush1.xpose.msra.mxu0 0.0
        %1919 = vmatprep.subr.mxu0 0.0
        %1920 = vmatpush1.xpose.msra.mxu0 0.0
        %1921 = vmatprep.subr.mxu0 0.0
        %1922 = vmatpush1.xpose.msra.mxu0 0.0
        %1923 = vmatprep.subr.mxu0 0.0
        %1924 = vmatpush1.xpose.msra.mxu0 0.0
        %1925 = vmatprep.subr.mxu0 0.0
        %1926 = vmatpush1.xpose.msra.mxu0 0.0
        %1927 = vmatprep.subr.mxu0 0.0
        %1928 = vmatpush1.xpose.msra.mxu0 0.0
        %1929 = vmatprep.subr.mxu0 0.0
        %1930 = vmatpush1.xpose.msra.mxu0 0.0
        %1931 = vmatprep.subr.mxu0 0.0
        %1932 = vmatpush1.xpose.msra.mxu0 0.0
        %1933 = vmatprep.subr.mxu0 0.0
        %1934 = vmatpush1.xpose.msra.mxu0 0.0
        %1935 = vmatprep.subr.mxu0 0.0
        %1936 = vmatpush1.xpose.msra.mxu0 0.0
        %1937 = vmatprep.subr.mxu0 0.0
        %1938 = vmatpush1.xpose.msra.mxu0 0.0
        %1939 = vmatprep.subr.mxu0 0.0
        %1940 = vmatpush1.xpose.msra.mxu0 0.0
        %1941 = vmatprep.subr.mxu0 0.0
        %1942 = vmatpush1.xpose.msra.mxu0 0.0
        %1943 = vmatprep.subr.mxu0 0.0
        %1944 = vmatpush1.xpose.msra.mxu0 0.0
        %1945 = vmatprep.subr.mxu0 0.0
        %1946 = vmatpush1.xpose.msra.mxu0 0.0
        %1947 = vmatprep.subr.mxu0 0.0
        %1948 = vmatpush1.xpose.msra.mxu0 0.0
        %1949 = vmatprep.subr.mxu0 0.0
        %1950 = vmatpush1.xpose.msra.mxu0 0.0
        %1951 = vmatprep.subr.mxu0 0.0
        %1952 = vmatpush1.xpose.msra.mxu0 0.0
        %1953 = vmatprep.subr.mxu0 0.0
        %1954 = vmatpush1.xpose.msra.mxu0 0.0
        %1955 = vmatprep.subr.mxu0 0.0
        %1956 = vmatpush1.xpose.msra.mxu0 0.0
        %1957 = vmatprep.subr.mxu0 0.0
        %1958 = vmatpush1.xpose.msra.mxu0 0.0
        %1959 = vmatprep.subr.mxu0 0.0
        %1960 = vmatpush1.xpose.msra.mxu0 0.0
        %1961 = vmatprep.subr.mxu0 0.0
        %1962 = vmatpush1.xpose.msra.mxu0 0.0
        %1963 = vmatprep.subr.mxu0 0.0
        %1964 = vmatpush1.xpose.msra.mxu0 0.0
        %1965 = vmatprep.subr.mxu0 0.0
        %1966 = vmatpush1.xpose.msra.mxu0 0.0
        %1967 = vmatprep.subr.mxu0 0.0
        %1968 = vmatpush1.xpose.msra.mxu0 0.0
        %1969 = vmatprep.subr.mxu0 0.0
        %1970 = vmatpush1.xpose.msra.mxu0 0.0
        %1971 = vmatprep.subr.mxu0 0.0
        %1972 = vmatpush1.xpose.msra.mxu0 0.0
        %1973 = vmatprep.subr.mxu0 0.0
        %1974 = vmatpush1.xpose.msra.mxu0 0.0
        %1975 = vmatprep.mubr.f32.mxu0 0.0
        %1976 = vmatmul.mubr.f32.gmra.mrb[0].mxu0 %v1907
        %v1977 = vpop.f32.mrb[0].mxu0
        %v1978 = vadd.f32 0.0, %v1977
        %v1979 = vpop.f32.mrb[0].mxu0
        %1980 = vdwg.mxu0
        %v1981 = vadd.f32 %v1978, %v855
        %v1982 = vsel %vm1100, %v1981, -inf
        %1983 = vmax.xlane.f32.xlu0 %v1982
        %v1984 = vpop.xlane.xlu0 %1983
        %v1985 = vmul.f32 %v1978, %v853
        %v1986 = vsel %vm1100, %v1985, 0.0
        %1987 = vadd.xlane.f32.xlu0 %v1986
        %v1988 = vpop.xlane.xlu0 %1987
        %v1989 = vmul.f32 %v1988, 0.125
        %v1990 = vsub.f32 %v1984, %v1989
        %v1991 = vmul.f32 %v852, %v1990
        %v1992 = vsel %vm1100, %v1991, 0.0
        %v1993 = vrot.slane %v1992, 4
        %v1994 = vadd.f32 %v1992, %v1993
        %v1995 = vrot.slane %v1994, 2
        %v1996 = vadd.f32 %v1994, %v1995
        %v1997 = vrot.slane %v1996, 1
        %v1998 = vadd.f32 %v1996, %v1997
        %vm1999 = vcmp.gt.f32.partialorder %v1998, %v1990
        %vm2000 = vcmp.eq.f32.partialorder %v1998, %v1990
        %vm2001 = vmand %vm2000, %vm1436
        %vm2002 = vmor %vm1999, %vm2001
        %v2003 = vsel %vm2002, 1.0, 0.0
        %v2004 = vsel %vm1100, %v2003, 0.0
        %2005 = vadd.xlane.f32.xlu0 %v2004
        %v2006 = vpop.xlane.xlu0 %2005
        %vm2007 = vcmp.lt.f32.partialorder %v2006, 3.0
        %v2008 = vmul.f32 %v1978, 0.35355338
        %v2009 = vsel %vm1100, %v2008, -inf
        %2010 = vmax.xlane.f32.xlu0 %v2009
        %v2011 = vpop.xlane.xlu0 %2010
        %v2012 = vsub.f32 %v2008, %v2011
        %v2013 = vmul.f32 %v2012, 1.442695
        %v2014 = vpow.pop %v2013
        %v2015 = vsel %vm1100, %v2014, 0.0
        %2016 = vadd.xlane.f32.xlu0 %v2015
        %v2017 = vpop.xlane.xlu0 %2016
        %v2018 = vrcp.pop %v2017
        %v2019 = vmul.f32 %v2014, %v2018
        %2020 = vrot.lane.b32.xlu0 %v1332, 48
        %v2021 = vpop.permute.xlu0 %2020
        %v2024 = vsel %vm1100, %v2019, 0
        %2026 = vmatprep.subr.mxu0 0.0
        %2027 = vmatpush1.msra.mxu0 %v2021
        %2028 = vmatprep.subr.mxu0 0.0
        %2029 = vmatpush1.msra.mxu0 0.0
        %2030 = vmatprep.subr.mxu0 0.0
        %2031 = vmatpush1.msra.mxu0 0.0
        %2032 = vmatprep.subr.mxu0 0.0
        %2033 = vmatpush1.msra.mxu0 0.0
        %2034 = vmatprep.subr.mxu0 0.0
        %2035 = vmatpush1.msra.mxu0 0.0
        %2036 = vmatprep.subr.mxu0 0.0
        %2037 = vmatpush1.msra.mxu0 0.0
        %2038 = vmatprep.subr.mxu0 0.0
        %2039 = vmatpush1.msra.mxu0 0.0
        %2040 = vmatprep.subr.mxu0 0.0
        %2041 = vmatpush1.msra.mxu0 0.0
        %2042 = vmatprep.subr.mxu0 0.0
        %2043 = vmatpush1.msra.mxu0 0.0
        %2044 = vmatprep.subr.mxu0 0.0
        %2045 = vmatpush1.msra.mxu0 0.0
        %2046 = vmatprep.subr.mxu0 0.0
        %2047 = vmatpush1.msra.mxu0 0.0
        %2048 = vmatprep.subr.mxu0 0.0
        %2049 = vmatpush1.msra.mxu0 0.0
        %2050 = vmatprep.subr.mxu0 0.0
        %2051 = vmatpush1.msra.mxu0 0.0
        %2052 = vmatprep.subr.mxu0 0.0
        %2053 = vmatpush1.msra.mxu0 0.0
        %2054 = vmatprep.subr.mxu0 0.0
        %2055 = vmatpush1.msra.mxu0 0.0
        %2056 = vmatprep.subr.mxu0 0.0
        %2057 = vmatpush1.msra.mxu0 0.0
        %2058 = vmatprep.subr.mxu0 0.0
        %2059 = vmatpush1.msra.mxu0 0.0
        %2060 = vmatprep.subr.mxu0 0.0
        %2061 = vmatpush1.msra.mxu0 0.0
        %2062 = vmatprep.subr.mxu0 0.0
        %2063 = vmatpush1.msra.mxu0 0.0
        %2064 = vmatprep.subr.mxu0 0.0
        %2065 = vmatpush1.msra.mxu0 0.0
        %2066 = vmatprep.subr.mxu0 0.0
        %2067 = vmatpush1.msra.mxu0 0.0
        %2068 = vmatprep.subr.mxu0 0.0
        %2069 = vmatpush1.msra.mxu0 0.0
        %2070 = vmatprep.subr.mxu0 0.0
        %2071 = vmatpush1.msra.mxu0 0.0
        %2072 = vmatprep.subr.mxu0 0.0
        %2073 = vmatpush1.msra.mxu0 0.0
        %2074 = vmatprep.subr.mxu0 0.0
        %2075 = vmatpush1.msra.mxu0 0.0
        %2076 = vmatprep.subr.mxu0 0.0
        %2077 = vmatpush1.msra.mxu0 0.0
        %2078 = vmatprep.subr.mxu0 0.0
        %2079 = vmatpush1.msra.mxu0 0.0
        %2080 = vmatprep.subr.mxu0 0.0
        %2081 = vmatpush1.msra.mxu0 0.0
        %2082 = vmatprep.subr.mxu0 0.0
        %2083 = vmatpush1.msra.mxu0 0.0
        %2084 = vmatprep.subr.mxu0 0.0
        %2085 = vmatpush1.msra.mxu0 0.0
        %2086 = vmatprep.subr.mxu0 0.0
        %2087 = vmatpush1.msra.mxu0 0.0
        %2088 = vmatprep.subr.mxu0 0.0
        %2089 = vmatpush1.msra.mxu0 0.0
        %2090 = vmatprep.mubr.f32.mxu0 0.0
        %2091 = vmatmul.mubr.f32.gmra.mrb[0].mxu0 %v2024
        %v2092 = vpop.f32.mrb[0].mxu0
        %v2093 = vadd.f32 0.0, %v2092
        %v2094 = vpop.f32.mrb[0].mxu0
        %2095 = vdwg.mxu0
        %vm2096 = vcmask 720512
        %v2097 = vsel %vm2096, %v1332, 0.0
        %v2098 = vrot.slane %v2097, 4
        %v2099 = vadd.f32 %v2097, %v2098
        %v2100 = vrot.slane %v2099, 2
        %v2101 = vadd.f32 %v2099, %v2100
        %v2102 = vrot.slane %v2101, 1
        %v2103 = vadd.f32 %v2101, %v2102
        %v2104 = vmul.f32 %v2103, 0.125
        %v2105 = vsel %vm2007, 1, 0
        %vm2106 = vcmp.eq.s32.totalorder %v2105, 1
        %2108 = vrot.lane.b32.xlu0 %v2104, 48
        %v2109 = vpop.permute.xlu0 %2108
        %v2111 = vsel %vm2106, %v2093, %v2109
        %v2113 = vsel %vm1100, %v2111, 0
        %2115 = vmatprep.subr.mxu0 0.0
        %2116 = vmatpush1.msra.mxu0 %v1337
        %2117 = vmatprep.subr.mxu0 0.0
        %2118 = vmatpush1.msra.mxu0 0.0
        %2119 = vmatprep.subr.mxu0 0.0
        %2120 = vmatpush1.msra.mxu0 0.0
        %2121 = vmatprep.subr.mxu0 0.0
        %2122 = vmatpush1.msra.mxu0 0.0
        %2123 = vmatprep.subr.mxu0 0.0
        %2124 = vmatpush1.msra.mxu0 0.0
        %2125 = vmatprep.subr.mxu0 0.0
        %2126 = vmatpush1.msra.mxu0 0.0
        %2127 = vmatprep.subr.mxu0 0.0
        %2128 = vmatpush1.msra.mxu0 0.0
        %2129 = vmatprep.subr.mxu0 0.0
        %2130 = vmatpush1.msra.mxu0 0.0
        %2131 = vmatprep.subr.mxu0 0.0
        %2132 = vmatpush1.msra.mxu0 0.0
        %2133 = vmatprep.subr.mxu0 0.0
        %2134 = vmatpush1.msra.mxu0 0.0
        %2135 = vmatprep.subr.mxu0 0.0
        %2136 = vmatpush1.msra.mxu0 0.0
        %2137 = vmatprep.subr.mxu0 0.0
        %2138 = vmatpush1.msra.mxu0 0.0
        %2139 = vmatprep.subr.mxu0 0.0
        %2140 = vmatpush1.msra.mxu0 0.0
        %2141 = vmatprep.subr.mxu0 0.0
        %2142 = vmatpush1.msra.mxu0 0.0
        %2143 = vmatprep.subr.mxu0 0.0
        %2144 = vmatpush1.msra.mxu0 0.0
        %2145 = vmatprep.subr.mxu0 0.0
        %2146 = vmatpush1.msra.mxu0 0.0
        %2147 = vmatprep.subr.mxu0 0.0
        %2148 = vmatpush1.msra.mxu0 0.0
        %2149 = vmatprep.subr.mxu0 0.0
        %2150 = vmatpush1.msra.mxu0 0.0
        %2151 = vmatprep.subr.mxu0 0.0
        %2152 = vmatpush1.msra.mxu0 0.0
        %2153 = vmatprep.subr.mxu0 0.0
        %2154 = vmatpush1.msra.mxu0 0.0
        %2155 = vmatprep.subr.mxu0 0.0
        %2156 = vmatpush1.msra.mxu0 0.0
        %2157 = vmatprep.subr.mxu0 0.0
        %2158 = vmatpush1.msra.mxu0 0.0
        %2159 = vmatprep.subr.mxu0 0.0
        %2160 = vmatpush1.msra.mxu0 0.0
        %2161 = vmatprep.subr.mxu0 0.0
        %2162 = vmatpush1.msra.mxu0 0.0
        %2163 = vmatprep.subr.mxu0 0.0
        %2164 = vmatpush1.msra.mxu0 0.0
        %2165 = vmatprep.subr.mxu0 0.0
        %2166 = vmatpush1.msra.mxu0 0.0
        %2167 = vmatprep.subr.mxu0 0.0
        %2168 = vmatpush1.msra.mxu0 0.0
        %2169 = vmatprep.subr.mxu0 0.0
        %2170 = vmatpush1.msra.mxu0 0.0
        %2171 = vmatprep.subr.mxu0 0.0
        %2172 = vmatpush1.msra.mxu0 0.0
        %2173 = vmatprep.subr.mxu0 0.0
        %2174 = vmatpush1.msra.mxu0 0.0
        %2175 = vmatprep.subr.mxu0 0.0
        %2176 = vmatpush1.msra.mxu0 0.0
        %2177 = vmatprep.subr.mxu0 0.0
        %2178 = vmatpush1.msra.mxu0 0.0
        %2179 = vmatprep.mubr.f32.mxu0 0.0
        %2180 = vmatmul.mubr.f32.gmra.mrb[0].mxu0 %v2113
        %v2181 = vpop.f32.mrb[0].mxu0
        %v2182 = vadd.f32 0.0, %v2181
        %v2183 = vpop.f32.mrb[0].mxu0
        %2184 = vdwg.mxu0
        %v2185 = vadd.f32 %v1900, %v2182
        %2186 = vrot.lane.b32.xlu0 %v1332, 104
        %v2187 = vpop.permute.xlu0 %2186
        %2188 = vrot.lane.b32.xlu0 %v1332, 72
        %v2189 = vpop.permute.xlu0 %2188
        %v2190 = vsel %vm1100, %v2187, 0
        %v2192 = vsel %vm1100, %v2189, 0
        %2194 = vmatprep.subr.mxu0 0.0
        %2195 = vmatpush1.xpose.msra.mxu0 %v2192
        %2196 = vmatprep.subr.mxu0 0.0
        %2197 = vmatpush1.xpose.msra.mxu0 0.0
        %2198 = vmatprep.subr.mxu0 0.0
        %2199 = vmatpush1.xpose.msra.mxu0 0.0
        %2200 = vmatprep.subr.mxu0 0.0
        %2201 = vmatpush1.xpose.msra.mxu0 0.0
        %2202 = vmatprep.subr.mxu0 0.0
        %2203 = vmatpush1.xpose.msra.mxu0 0.0
        %2204 = vmatprep.subr.mxu0 0.0
        %2205 = vmatpush1.xpose.msra.mxu0 0.0
        %2206 = vmatprep.subr.mxu0 0.0
        %2207 = vmatpush1.xpose.msra.mxu0 0.0
        %2208 = vmatprep.subr.mxu0 0.0
        %2209 = vmatpush1.xpose.msra.mxu0 0.0
        %2210 = vmatprep.subr.mxu0 0.0
        %2211 = vmatpush1.xpose.msra.mxu0 0.0
        %2212 = vmatprep.subr.mxu0 0.0
        %2213 = vmatpush1.xpose.msra.mxu0 0.0
        %2214 = vmatprep.subr.mxu0 0.0
        %2215 = vmatpush1.xpose.msra.mxu0 0.0
        %2216 = vmatprep.subr.mxu0 0.0
        %2217 = vmatpush1.xpose.msra.mxu0 0.0
        %2218 = vmatprep.subr.mxu0 0.0
        %2219 = vmatpush1.xpose.msra.mxu0 0.0
        %2220 = vmatprep.subr.mxu0 0.0
        %2221 = vmatpush1.xpose.msra.mxu0 0.0
        %2222 = vmatprep.subr.mxu0 0.0
        %2223 = vmatpush1.xpose.msra.mxu0 0.0
        %2224 = vmatprep.subr.mxu0 0.0
        %2225 = vmatpush1.xpose.msra.mxu0 0.0
        %2226 = vmatprep.subr.mxu0 0.0
        %2227 = vmatpush1.xpose.msra.mxu0 0.0
        %2228 = vmatprep.subr.mxu0 0.0
        %2229 = vmatpush1.xpose.msra.mxu0 0.0
        %2230 = vmatprep.subr.mxu0 0.0
        %2231 = vmatpush1.xpose.msra.mxu0 0.0
        %2232 = vmatprep.subr.mxu0 0.0
        %2233 = vmatpush1.xpose.msra.mxu0 0.0
        %2234 = vmatprep.subr.mxu0 0.0
        %2235 = vmatpush1.xpose.msra.mxu0 0.0
        %2236 = vmatprep.subr.mxu0 0.0
        %2237 = vmatpush1.xpose.msra.mxu0 0.0
        %2238 = vmatprep.subr.mxu0 0.0
        %2239 = vmatpush1.xpose.msra.mxu0 0.0
        %2240 = vmatprep.subr.mxu0 0.0
        %2241 = vmatpush1.xpose.msra.mxu0 0.0
        %2242 = vmatprep.subr.mxu0 0.0
        %2243 = vmatpush1.xpose.msra.mxu0 0.0
        %2244 = vmatprep.subr.mxu0 0.0
        %2245 = vmatpush1.xpose.msra.mxu0 0.0
        %2246 = vmatprep.subr.mxu0 0.0
        %2247 = vmatpush1.xpose.msra.mxu0 0.0
        %2248 = vmatprep.subr.mxu0 0.0
        %2249 = vmatpush1.xpose.msra.mxu0 0.0
        %2250 = vmatprep.subr.mxu0 0.0
        %2251 = vmatpush1.xpose.msra.mxu0 0.0
        %2252 = vmatprep.subr.mxu0 0.0
        %2253 = vmatpush1.xpose.msra.mxu0 0.0
        %2254 = vmatprep.subr.mxu0 0.0
        %2255 = vmatpush1.xpose.msra.mxu0 0.0
        %2256 = vmatprep.subr.mxu0 0.0
        %2257 = vmatpush1.xpose.msra.mxu0 0.0
        %2258 = vmatprep.mubr.f32.mxu0 0.0
        %2259 = vmatmul.mubr.f32.gmra.mrb[0].mxu0 %v2190
        %v2260 = vpop.f32.mrb[0].mxu0
        %v2261 = vadd.f32 0.0, %v2260
        %v2262 = vpop.f32.mrb[0].mxu0
        %2263 = vdwg.mxu0
        %v2264 = vadd.f32 %v2261, %v855
        %v2265 = vsel %vm1100, %v2264, -inf
        %2266 = vmax.xlane.f32.xlu0 %v2265
        %v2267 = vpop.xlane.xlu0 %2266
        %v2268 = vmul.f32 %v2261, %v853
        %v2269 = vsel %vm1100, %v2268, 0.0
        %2270 = vadd.xlane.f32.xlu0 %v2269
        %v2271 = vpop.xlane.xlu0 %2270
        %v2272 = vmul.f32 %v2271, 0.125
        %v2273 = vsub.f32 %v2267, %v2272
        %v2274 = vmul.f32 %v852, %v2273
        %v2275 = vsel %vm1100, %v2274, 0.0
        %v2276 = vrot.slane %v2275, 4
        %v2277 = vadd.f32 %v2275, %v2276
        %v2278 = vrot.slane %v2277, 2
        %v2279 = vadd.f32 %v2277, %v2278
        %v2280 = vrot.slane %v2279, 1
        %v2281 = vadd.f32 %v2279, %v2280
        %vm2282 = vcmp.gt.f32.partialorder %v2281, %v2273
        %vm2283 = vcmp.eq.f32.partialorder %v2281, %v2273
        %vm2284 = vmand %vm2283, %vm1436
        %vm2285 = vmor %vm2282, %vm2284
        %v2286 = vsel %vm2285, 1.0, 0.0
        %v2287 = vsel %vm1100, %v2286, 0.0
        %2288 = vadd.xlane.f32.xlu0 %v2287
        %v2289 = vpop.xlane.xlu0 %2288
        %vm2290 = vcmp.lt.f32.partialorder %v2289, 3.0
        %v2291 = vmul.f32 %v2261, 0.35355338
        %v2292 = vsel %vm1100, %v2291, -inf
        %2293 = vmax.xlane.f32.xlu0 %v2292
        %v2294 = vpop.xlane.xlu0 %2293
        %v2295 = vsub.f32 %v2291, %v2294
        %v2296 = vmul.f32 %v2295, 1.442695
        %v2297 = vpow.pop %v2296
        %v2298 = vsel %vm1100, %v2297, 0.0
        %2299 = vadd.xlane.f32.xlu0 %v2298
        %v2300 = vpop.xlane.xlu0 %2299
        %v2301 = vrcp.pop %v2300
        %v2302 = vmul.f32 %v2297, %v2301
        %2303 = vrot.lane.b32.xlu0 %v1332, 40
        %v2304 = vpop.permute.xlu0 %2303
        %v2307 = vsel %vm1100, %v2302, 0
        %2309 = vmatprep.subr.mxu0 0.0
        %2310 = vmatpush1.msra.mxu0 %v2304
        %2311 = vmatprep.subr.mxu0 0.0
        %2312 = vmatpush1.msra.mxu0 0.0
        %2313 = vmatprep.subr.mxu0 0.0
        %2314 = vmatpush1.msra.mxu0 0.0
        %2315 = vmatprep.subr.mxu0 0.0
        %2316 = vmatpush1.msra.mxu0 0.0
        %2317 = vmatprep.subr.mxu0 0.0
        %2318 = vmatpush1.msra.mxu0 0.0
        %2319 = vmatprep.subr.mxu0 0.0
        %2320 = vmatpush1.msra.mxu0 0.0
        %2321 = vmatprep.subr.mxu0 0.0
        %2322 = vmatpush1.msra.mxu0 0.0
        %2323 = vmatprep.subr.mxu0 0.0
        %2324 = vmatpush1.msra.mxu0 0.0
        %2325 = vmatprep.subr.mxu0 0.0
        %2326 = vmatpush1.msra.mxu0 0.0
        %2327 = vmatprep.subr.mxu0 0.0
        %2328 = vmatpush1.msra.mxu0 0.0
        %2329 = vmatprep.subr.mxu0 0.0
        %2330 = vmatpush1.msra.mxu0 0.0
        %2331 = vmatprep.subr.mxu0 0.0
        %2332 = vmatpush1.msra.mxu0 0.0
        %2333 = vmatprep.subr.mxu0 0.0
        %2334 = vmatpush1.msra.mxu0 0.0
        %2335 = vmatprep.subr.mxu0 0.0
        %2336 = vmatpush1.msra.mxu0 0.0
        %2337 = vmatprep.subr.mxu0 0.0
        %2338 = vmatpush1.msra.mxu0 0.0
        %2339 = vmatprep.subr.mxu0 0.0
        %2340 = vmatpush1.msra.mxu0 0.0
        %2341 = vmatprep.subr.mxu0 0.0
        %2342 = vmatpush1.msra.mxu0 0.0
        %2343 = vmatprep.subr.mxu0 0.0
        %2344 = vmatpush1.msra.mxu0 0.0
        %2345 = vmatprep.subr.mxu0 0.0
        %2346 = vmatpush1.msra.mxu0 0.0
        %2347 = vmatprep.subr.mxu0 0.0
        %2348 = vmatpush1.msra.mxu0 0.0
        %2349 = vmatprep.subr.mxu0 0.0
        %2350 = vmatpush1.msra.mxu0 0.0
        %2351 = vmatprep.subr.mxu0 0.0
        %2352 = vmatpush1.msra.mxu0 0.0
        %2353 = vmatprep.subr.mxu0 0.0
        %2354 = vmatpush1.msra.mxu0 0.0
        %2355 = vmatprep.subr.mxu0 0.0
        %2356 = vmatpush1.msra.mxu0 0.0
        %2357 = vmatprep.subr.mxu0 0.0
        %2358 = vmatpush1.msra.mxu0 0.0
        %2359 = vmatprep.subr.mxu0 0.0
        %2360 = vmatpush1.msra.mxu0 0.0
        %2361 = vmatprep.subr.mxu0 0.0
        %2362 = vmatpush1.msra.mxu0 0.0
        %2363 = vmatprep.subr.mxu0 0.0
        %2364 = vmatpush1.msra.mxu0 0.0
        %2365 = vmatprep.subr.mxu0 0.0
        %2366 = vmatpush1.msra.mxu0 0.0
        %2367 = vmatprep.subr.mxu0 0.0
        %2368 = vmatpush1.msra.mxu0 0.0
        %2369 = vmatprep.subr.mxu0 0.0
        %2370 = vmatpush1.msra.mxu0 0.0
        %2371 = vmatprep.subr.mxu0 0.0
        %2372 = vmatpush1.msra.mxu0 0.0
        %2373 = vmatprep.mubr.f32.mxu0 0.0
        %2374 = vmatmul.mubr.f32.gmra.mrb[0].mxu0 %v2307
        %v2375 = vpop.f32.mrb[0].mxu0
        %v2376 = vadd.f32 0.0, %v2375
        %v2377 = vpop.f32.mrb[0].mxu0
        %2378 = vdwg.mxu0
        %vm2379 = vcmask 786112
        %v2380 = vsel %vm2379, %v1332, 0.0
        %v2381 = vrot.slane %v2380, 4
        %v2382 = vadd.f32 %v2380, %v2381
        %v2383 = vrot.slane %v2382, 2
        %v2384 = vadd.f32 %v2382, %v2383
        %v2385 = vrot.slane %v2384, 1
        %v2386 = vadd.f32 %v2384, %v2385
        %v2387 = vmul.f32 %v2386, 0.125
        %v2388 = vsel %vm2290, 1, 0
        %vm2389 = vcmp.eq.s32.totalorder %v2388, 1
        %2391 = vrot.lane.b32.xlu0 %v2387, 40
        %v2392 = vpop.permute.xlu0 %2391
        %v2394 = vsel %vm2389, %v2376, %v2392
        %v2396 = vsel %vm1100, %v2394, 0
        %2398 = vmatprep.subr.mxu0 0.0
        %2399 = vmatpush1.msra.mxu0 %v1338
        %2400 = vmatprep.subr.mxu0 0.0
        %2401 = vmatpush1.msra.mxu0 0.0
        %2402 = vmatprep.subr.mxu0 0.0
        %2403 = vmatpush1.msra.mxu0 0.0
        %2404 = vmatprep.subr.mxu0 0.0
        %2405 = vmatpush1.msra.mxu0 0.0
        %2406 = vmatprep.subr.mxu0 0.0
        %2407 = vmatpush1.msra.mxu0 0.0
        %2408 = vmatprep.subr.mxu0 0.0
        %2409 = vmatpush1.msra.mxu0 0.0
        %2410 = vmatprep.subr.mxu0 0.0
        %2411 = vmatpush1.msra.mxu0 0.0
        %2412 = vmatprep.subr.mxu0 0.0
        %2413 = vmatpush1.msra.mxu0 0.0
        %2414 = vmatprep.subr.mxu0 0.0
        %2415 = vmatpush1.msra.mxu0 0.0
        %2416 = vmatprep.subr.mxu0 0.0
        %2417 = vmatpush1.msra.mxu0 0.0
        %2418 = vmatprep.subr.mxu0 0.0
        %2419 = vmatpush1.msra.mxu0 0.0
        %2420 = vmatprep.subr.mxu0 0.0
        %2421 = vmatpush1.msra.mxu0 0.0
        %2422 = vmatprep.subr.mxu0 0.0
        %2423 = vmatpush1.msra.mxu0 0.0
        %2424 = vmatprep.subr.mxu0 0.0
        %2425 = vmatpush1.msra.mxu0 0.0
        %2426 = vmatprep.subr.mxu0 0.0
        %2427 = vmatpush1.msra.mxu0 0.0
        %2428 = vmatprep.subr.mxu0 0.0
        %2429 = vmatpush1.msra.mxu0 0.0
        %2430 = vmatprep.subr.mxu0 0.0
        %2431 = vmatpush1.msra.mxu0 0.0
        %2432 = vmatprep.subr.mxu0 0.0
        %2433 = vmatpush1.msra.mxu0 0.0
        %2434 = vmatprep.subr.mxu0 0.0
        %2435 = vmatpush1.msra.mxu0 0.0
        %2436 = vmatprep.subr.mxu0 0.0
        %2437 = vmatpush1.msra.mxu0 0.0
        %2438 = vmatprep.subr.mxu0 0.0
        %2439 = vmatpush1.msra.mxu0 0.0
        %2440 = vmatprep.subr.mxu0 0.0
        %2441 = vmatpush1.msra.mxu0 0.0
        %2442 = vmatprep.subr.mxu0 0.0
        %2443 = vmatpush1.msra.mxu0 0.0
        %2444 = vmatprep.subr.mxu0 0.0
        %2445 = vmatpush1.msra.mxu0 0.0
        %2446 = vmatprep.subr.mxu0 0.0
        %2447 = vmatpush1.msra.mxu0 0.0
        %2448 = vmatprep.subr.mxu0 0.0
        %2449 = vmatpush1.msra.mxu0 0.0
        %2450 = vmatprep.subr.mxu0 0.0
        %2451 = vmatpush1.msra.mxu0 0.0
        %2452 = vmatprep.subr.mxu0 0.0
        %2453 = vmatpush1.msra.mxu0 0.0
        %2454 = vmatprep.subr.mxu0 0.0
        %2455 = vmatpush1.msra.mxu0 0.0
        %2456 = vmatprep.subr.mxu0 0.0
        %2457 = vmatpush1.msra.mxu0 0.0
        %2458 = vmatprep.subr.mxu0 0.0
        %2459 = vmatpush1.msra.mxu0 0.0
        %2460 = vmatprep.subr.mxu0 0.0
        %2461 = vmatpush1.msra.mxu0 0.0
        %2462 = vmatprep.mubr.f32.mxu0 0.0
        %2463 = vmatmul.mubr.f32.gmra.mrb[0].mxu0 %v2396
        %v2464 = vpop.f32.mrb[0].mxu0
        %v2465 = vadd.f32 0.0, %v2464
        %v2466 = vpop.f32.mrb[0].mxu0
        %2467 = vdwg.mxu0
        %v2468 = vadd.f32 %v2185, %v2465
        %v2469 = vld [vmem:[#allocation11] sm:$0x1]
        %v2471 = vlaneseq
        %v2472 = vshrl.u32 %v2471, 7
        %v2473 = vsub.s32 0, %v2472
        %v2474 = vrot.slane %v2469, %v2473
        %v2476 = vadd.f32 %v2468, %v2474
        %v2477 = vadd.f32 %v1249, %v2476
        %v2478 = vld [vmem:[#allocation13] sm:$0x1]
        %v2479 = vld [vmem:[#allocation14] sm:$0x1]
        %v2480 = vsel %vm1261, %v2477, 0.0
        %2481 = vadd.xlane.f32.xlu0 %v2480
        %v2482 = vpop.xlane.xlu0 %2481
        %v2483 = vrcp.pop 32.0
        %v2484 = vmul.f32 %v2482, %v2483
        %v2485 = vsub.f32 %v2477, %v2484
        %v2486 = vmul.f32 %v2485, %v2485
        %v2487 = vsel %vm1261, %v2486, 0.0
        %2488 = vadd.xlane.f32.xlu0 %v2487
        %v2489 = vpop.xlane.xlu0 %2488
        %v2490 = vmul.f32 %v2489, %v2483
        %v2491 = vadd.f32 %v2490, 1e-05
        %v2492 = vrsqrt.pop %v2491
        %v2493 = vmul.f32 %v2485, %v2492
        %v2495 = vlaneseq
        %v2496 = vshrl.u32 %v2495, 7
        %v2497 = vsub.s32 0, %v2496
        %v2498 = vrot.slane %v2478, %v2497
        %v2500 = vmul.f32 %v2493, %v2498
        %v2502 = vlaneseq
        %v2503 = vshrl.u32 %v2502, 7
        %v2504 = vsub.s32 0, %v2503
        %v2505 = vrot.slane %v2479, %v2504
        %v2507 = vadd.f32 %v2500, %v2505
        %v2508 = vld [vmem:[#allocation16] sm:$0xff]
        %v2509 = vld [vmem:[#allocation16 + $0x8] sm:$0xff]
        %v2510 = vld [vmem:[#allocation16 + $0x10] sm:$0xff]
        %v2511 = vld [vmem:[#allocation16 + $0x18] sm:$0xff]
        %v2512 = vld [vmem:[#allocation17] sm:$0x1]
        %v2514 = vlaneseq
        %v2515 = vshrl.u32 %v2514, 7
        %v2516 = vsub.s32 0, %v2515
        %v2517 = vrot.slane %v2512, %v2516
        %v2520 = vsel %vm1261, %v2507, 0
        %2522 = vmatprep.subr.mxu0 0.0
        %2523 = vmatpush1.msra.mxu0 %v2508
        %2524 = vmatprep.subr.mxu0 0.0
        %2525 = vmatpush1.msra.mxu0 %v2509
        %2526 = vmatprep.subr.mxu0 0.0
        %2527 = vmatpush1.msra.mxu0 %v2510
        %2528 = vmatprep.subr.mxu0 0.0
        %2529 = vmatpush1.msra.mxu0 %v2511
        %2530 = vmatprep.subr.mxu0 0.0
        %2531 = vmatpush1.msra.mxu0 0.0
        %2532 = vmatprep.subr.mxu0 0.0
        %2533 = vmatpush1.msra.mxu0 0.0
        %2534 = vmatprep.subr.mxu0 0.0
        %2535 = vmatpush1.msra.mxu0 0.0
        %2536 = vmatprep.subr.mxu0 0.0
        %2537 = vmatpush1.msra.mxu0 0.0
        %2538 = vmatprep.subr.mxu0 0.0
        %2539 = vmatpush1.msra.mxu0 0.0
        %2540 = vmatprep.subr.mxu0 0.0
        %2541 = vmatpush1.msra.mxu0 0.0
        %2542 = vmatprep.subr.mxu0 0.0
        %2543 = vmatpush1.msra.mxu0 0.0
        %2544 = vmatprep.subr.mxu0 0.0
        %2545 = vmatpush1.msra.mxu0 0.0
        %2546 = vmatprep.subr.mxu0 0.0
        %2547 = vmatpush1.msra.mxu0 0.0
        %2548 = vmatprep.subr.mxu0 0.0
        %2549 = vmatpush1.msra.mxu0 0.0
        %2550 = vmatprep.subr.mxu0 0.0
        %2551 = vmatpush1.msra.mxu0 0.0
        %2552 = vmatprep.subr.mxu0 0.0
        %2553 = vmatpush1.msra.mxu0 0.0
        %2554 = vmatprep.subr.mxu0 0.0
        %2555 = vmatpush1.msra.mxu0 0.0
        %2556 = vmatprep.subr.mxu0 0.0
        %2557 = vmatpush1.msra.mxu0 0.0
        %2558 = vmatprep.subr.mxu0 0.0
        %2559 = vmatpush1.msra.mxu0 0.0
        %2560 = vmatprep.subr.mxu0 0.0
        %2561 = vmatpush1.msra.mxu0 0.0
        %2562 = vmatprep.subr.mxu0 0.0
        %2563 = vmatpush1.msra.mxu0 0.0
        %2564 = vmatprep.subr.mxu0 0.0
        %2565 = vmatpush1.msra.mxu0 0.0
        %2566 = vmatprep.subr.mxu0 0.0
        %2567 = vmatpush1.msra.mxu0 0.0
        %2568 = vmatprep.subr.mxu0 0.0
        %2569 = vmatpush1.msra.mxu0 0.0
        %2570 = vmatprep.subr.mxu0 0.0
        %2571 = vmatpush1.msra.mxu0 0.0
        %2572 = vmatprep.subr.mxu0 0.0
        %2573 = vmatpush1.msra.mxu0 0.0
        %2574 = vmatprep.subr.mxu0 0.0
        %2575 = vmatpush1.msra.mxu0 0.0
        %2576 = vmatprep.subr.mxu0 0.0
        %2577 = vmatpush1.msra.mxu0 0.0
        %2578 = vmatprep.subr.mxu0 0.0
        %2579 = vmatpush1.msra.mxu0 0.0
        %2580 = vmatprep.subr.mxu0 0.0
        %2581 = vmatpush1.msra.mxu0 0.0
        %2582 = vmatprep.subr.mxu0 0.0
        %2583 = vmatpush1.msra.mxu0 0.0
        %2584 = vmatprep.subr.mxu0 0.0
        %2585 = vmatpush1.msra.mxu0 0.0
        %2586 = vmatprep.mubr.f32.mxu0 0.0
        %2587 = vmatmul.mubr.f32.gmra.mrb[0].mxu0 %v2520
        %v2588 = vpop.f32.mrb[0].mxu0
        %v2589 = vadd.f32 %v2517, %v2588
        %v2590 = vpop.f32.mrb[0].mxu0
        %2591 = vdwg.mxu0
        %v2592 = vmul.f32 %v2589, 0.70710677
        %v2593 = vand.u32 2147483647, %v2592
        %v2594 = vmul.f32 %v2593, 0.3275911
        %v2595 = vadd.f32 %v2594, 1.0
        %v2596 = vrcp.pop %v2595
        %v2597 = vmul.f32 1.0, %v2596
        %v2598 = vmul.f32 %v2597, 1.0614054
        %v2599 = vadd.f32 %v2598, -1.4531521
        %v2600 = vmul.f32 %v2597, %v2599
        %v2601 = vadd.f32 %v2600, 1.4214138
        %v2602 = vmul.f32 %v2597, %v2601
        %v2603 = vadd.f32 %v2602, -0.28449672
        %v2604 = vmul.f32 %v2597, %v2603
        %v2605 = vadd.f32 %v2604, 0.2548296
        %v2606 = vmul.f32 %v2597, %v2605
        %v2607 = vsub.f32 0.0, %v2593
        %v2608 = vmul.f32 %v2607, %v2593
        %v2609 = vmul.f32 %v2608, 1.442695
        %v2610 = vpow.pop %v2609
        %v2611 = vmul.f32 %v2606, %v2610
        %v2612 = vsub.f32 1.0, %v2611
        %vm2613 = vcmp.lt.f32.partialorder %v2592, 0.0
        %v2614 = vsub.f32 0.0, %v2612
        %v2615 = vsel %vm2613, %v2614, %v2612
        %v2616 = vmul.f32 %v2589, 0.5
        %v2617 = vadd.f32 %v2615, 1.0
        %v2618 = vmul.f32 %v2616, %v2617
        %v2619 = vld [vmem:[%s12] sm:$0xff]
        %v2620 = vld [vmem:[%s12 + $0x8] sm:$0xff]
        %v2621 = vld [vmem:[%s12 + $0x10] sm:$0xff]
        %v2622 = vld [vmem:[%s12 + $0x18] sm:$0xff]
        %v2623 = vld [vmem:[%s12 + $0x20] sm:$0xff]
        %v2624 = vld [vmem:[%s12 + $0x28] sm:$0xff]
        %v2625 = vld [vmem:[%s12 + $0x30] sm:$0xff]
        %v2626 = vld [vmem:[%s12 + $0x38] sm:$0xff]
        %v2627 = vld [vmem:[#allocation19] sm:$0x1]
        %v2629 = vlaneseq
        %v2630 = vshrl.u32 %v2629, 7
        %v2631 = vsub.s32 0, %v2630
        %v2632 = vrot.slane %v2627, %v2631
        %vm2634 = vcmask 523264
        %v2636 = vsel %vm2634, %v2618, 0
        %2638 = vmatprep.subr.mxu0 0.0
        %2639 = vmatpush1.msra.mxu0 %v2619
        %2640 = vmatprep.subr.mxu0 0.0
        %2641 = vmatpush1.msra.mxu0 %v2620
        %2642 = vmatprep.subr.mxu0 0.0
        %2643 = vmatpush1.msra.mxu0 %v2621
        %2644 = vmatprep.subr.mxu0 0.0
        %2645 = vmatpush1.msra.mxu0 %v2622
        %2646 = vmatprep.subr.mxu0 0.0
        %2647 = vmatpush1.msra.mxu0 %v2623
        %2648 = vmatprep.subr.mxu0 0.0
        %2649 = vmatpush1.msra.mxu0 %v2624
        %2650 = vmatprep.subr.mxu0 0.0
        %2651 = vmatpush1.msra.mxu0 %v2625
        %2652 = vmatprep.subr.mxu0 0.0
        %2653 = vmatpush1.msra.mxu0 %v2626
        %2654 = vmatprep.subr.mxu0 0.0
        %2655 = vmatpush1.msra.mxu0 0.0
        %2656 = vmatprep.subr.mxu0 0.0
        %2657 = vmatpush1.msra.mxu0 0.0
        %2658 = vmatprep.subr.mxu0 0.0
        %2659 = vmatpush1.msra.mxu0 0.0
        %2660 = vmatprep.subr.mxu0 0.0
        %2661 = vmatpush1.msra.mxu0 0.0
        %2662 = vmatprep.subr.mxu0 0.0
        %2663 = vmatpush1.msra.mxu0 0.0
        %2664 = vmatprep.subr.mxu0 0.0
        %2665 = vmatpush1.msra.mxu0 0.0
        %2666 = vmatprep.subr.mxu0 0.0
        %2667 = vmatpush1.msra.mxu0 0.0
        %2668 = vmatprep.subr.mxu0 0.0
        %2669 = vmatpush1.msra.mxu0 0.0
        %2670 = vmatprep.subr.mxu0 0.0
        %2671 = vmatpush1.msra.mxu0 0.0
        %2672 = vmatprep.subr.mxu0 0.0
        %2673 = vmatpush1.msra.mxu0 0.0
        %2674 = vmatprep.subr.mxu0 0.0
        %2675 = vmatpush1.msra.mxu0 0.0
        %2676 = vmatprep.subr.mxu0 0.0
        %2677 = vmatpush1.msra.mxu0 0.0
        %2678 = vmatprep.subr.mxu0 0.0
        %2679 = vmatpush1.msra.mxu0 0.0
        %2680 = vmatprep.subr.mxu0 0.0
        %2681 = vmatpush1.msra.mxu0 0.0
        %2682 = vmatprep.subr.mxu0 0.0
        %2683 = vmatpush1.msra.mxu0 0.0
        %2684 = vmatprep.subr.mxu0 0.0
        %2685 = vmatpush1.msra.mxu0 0.0
        %2686 = vmatprep.subr.mxu0 0.0
        %2687 = vmatpush1.msra.mxu0 0.0
        %2688 = vmatprep.subr.mxu0 0.0
        %2689 = vmatpush1.msra.mxu0 0.0
        %2690 = vmatprep.subr.mxu0 0.0
        %2691 = vmatpush1.msra.mxu0 0.0
        %2692 = vmatprep.subr.mxu0 0.0
        %2693 = vmatpush1.msra.mxu0 0.0
        %2694 = vmatprep.subr.mxu0 0.0
        %2695 = vmatpush1.msra.mxu0 0.0
        %2696 = vmatprep.subr.mxu0 0.0
        %2697 = vmatpush1.msra.mxu0 0.0
        %2698 = vmatprep.subr.mxu0 0.0
        %2699 = vmatpush1.msra.mxu0 0.0
        %2700 = vmatprep.subr.mxu0 0.0
        %2701 = vmatpush1.msra.mxu0 0.0
        %2702 = vmatprep.mubr.f32.mxu0 0.0
        %2703 = vmatmul.mubr.f32.gmra.mrb[0].mxu0 %v2636
        %v2704 = vpop.f32.mrb[0].mxu0
        %v2705 = vadd.f32 %v2632, %v2704
        %v2706 = vpop.f32.mrb[0].mxu0
        %2707 = vdwg.mxu0
        %v2708 = vadd.f32 %v2507, %v2705
        %v2709 = vld [vmem:[#allocation20] sm:$0x1]
        %v2710 = vld [vmem:[#allocation22] sm:$0x1]
        %v2711 = vsel %vm1261, %v2708, 0.0
        %2712 = vadd.xlane.f32.xlu0 %v2711
        %v2713 = vpop.xlane.xlu0 %2712
        %v2714 = vmul.f32 %v2713, %v2483
        %v2715 = vsub.f32 %v2708, %v2714
        %v2716 = vmul.f32 %v2715, %v2715
        %v2717 = vsel %vm1261, %v2716, 0.0
        %2718 = vadd.xlane.f32.xlu0 %v2717
        %v2719 = vpop.xlane.xlu0 %2718
        %v2720 = vmul.f32 %v2719, %v2483
        %v2721 = vadd.f32 %v2720, 1e-05
        %v2722 = vrsqrt.pop %v2721
        %v2723 = vmul.f32 %v2715, %v2722
        %v2725 = vlaneseq
        %v2726 = vshrl.u32 %v2725, 7
        %v2727 = vsub.s32 0, %v2726
        %v2728 = vrot.slane %v2709, %v2727
        %v2730 = vmul.f32 %v2723, %v2728
        %v2732 = vlaneseq
        %v2733 = vshrl.u32 %v2732, 7
        %v2734 = vsub.s32 0, %v2733
        %v2735 = vrot.slane %v2710, %v2734
        %v2737 = vadd.f32 %v2730, %v2735
        %s2738 = scalar_lea.vmem [#allocation7], 32
        %v2739 = vld [vmem:[%s2738] sm:$0xff]
        %v2740 = vld [vmem:[%s2738 + $0x8] sm:$0xff]
        %v2741 = vld [vmem:[%s2738 + $0x10] sm:$0xff]
        %v2742 = vld [vmem:[%s2738 + $0x18] sm:$0xff]
        %s2743 = scalar_lea.vmem [#allocation8], 1
        %v2744 = vld [vmem:[%s2743] sm:$0x1]
        %v2746 = vlaneseq
        %v2747 = vshrl.u32 %v2746, 7
        %v2748 = vsub.s32 0, %v2747
        %v2749 = vrot.slane %v2744, %v2748
        %v2752 = vsel %vm1261, %v2737, 0
        %2754 = vmatprep.subr.mxu0 0.0
        %2755 = vmatpush1.msra.mxu0 %v2739
        %2756 = vmatprep.subr.mxu0 0.0
        %2757 = vmatpush1.msra.mxu0 %v2740
        %2758 = vmatprep.subr.mxu0 0.0
        %2759 = vmatpush1.msra.mxu0 %v2741
        %2760 = vmatprep.subr.mxu0 0.0
        %2761 = vmatpush1.msra.mxu0 %v2742
        %2762 = vmatprep.subr.mxu0 0.0
        %2763 = vmatpush1.msra.mxu0 0.0
        %2764 = vmatprep.subr.mxu0 0.0
        %2765 = vmatpush1.msra.mxu0 0.0
        %2766 = vmatprep.subr.mxu0 0.0
        %2767 = vmatpush1.msra.mxu0 0.0
        %2768 = vmatprep.subr.mxu0 0.0
        %2769 = vmatpush1.msra.mxu0 0.0
        %2770 = vmatprep.subr.mxu0 0.0
        %2771 = vmatpush1.msra.mxu0 0.0
        %2772 = vmatprep.subr.mxu0 0.0
        %2773 = vmatpush1.msra.mxu0 0.0
        %2774 = vmatprep.subr.mxu0 0.0
        %2775 = vmatpush1.msra.mxu0 0.0
        %2776 = vmatprep.subr.mxu0 0.0
        %2777 = vmatpush1.msra.mxu0 0.0
        %2778 = vmatprep.subr.mxu0 0.0
        %2779 = vmatpush1.msra.mxu0 0.0
        %2780 = vmatprep.subr.mxu0 0.0
        %2781 = vmatpush1.msra.mxu0 0.0
        %2782 = vmatprep.subr.mxu0 0.0
        %2783 = vmatpush1.msra.mxu0 0.0
        %2784 = vmatprep.subr.mxu0 0.0
        %2785 = vmatpush1.msra.mxu0 0.0
        %2786 = vmatprep.subr.mxu0 0.0
        %2787 = vmatpush1.msra.mxu0 0.0
        %2788 = vmatprep.subr.mxu0 0.0
        %2789 = vmatpush1.msra.mxu0 0.0
        %2790 = vmatprep.subr.mxu0 0.0
        %2791 = vmatpush1.msra.mxu0 0.0
        %2792 = vmatprep.subr.mxu0 0.0
        %2793 = vmatpush1.msra.mxu0 0.0
        %2794 = vmatprep.subr.mxu0 0.0
        %2795 = vmatpush1.msra.mxu0 0.0
        %2796 = vmatprep.subr.mxu0 0.0
        %2797 = vmatpush1.msra.mxu0 0.0
        %2798 = vmatprep.subr.mxu0 0.0
        %2799 = vmatpush1.msra.mxu0 0.0
        %2800 = vmatprep.subr.mxu0 0.0
        %2801 = vmatpush1.msra.mxu0 0.0
        %2802 = vmatprep.subr.mxu0 0.0
        %2803 = vmatpush1.msra.mxu0 0.0
        %2804 = vmatprep.subr.mxu0 0.0
        %2805 = vmatpush1.msra.mxu0 0.0
        %2806 = vmatprep.subr.mxu0 0.0
        %2807 = vmatpush1.msra.mxu0 0.0
        %2808 = vmatprep.subr.mxu0 0.0
        %2809 = vmatpush1.msra.mxu0 0.0
        %2810 = vmatprep.subr.mxu0 0.0
        %2811 = vmatpush1.msra.mxu0 0.0
        %2812 = vmatprep.subr.mxu0 0.0
        %2813 = vmatpush1.msra.mxu0 0.0
        %2814 = vmatprep.subr.mxu0 0.0
        %2815 = vmatpush1.msra.mxu0 0.0
        %2816 = vmatprep.subr.mxu0 0.0
        %2817 = vmatpush1.msra.mxu0 0.0
        %2818 = vmatprep.mubr.f32.mxu0 0.0
        %2819 = vmatmul.mubr.f32.gmra.mrb[0].mxu0 %v2752
        %v2820 = vpop.f32.mrb[0].mxu0
        %v2821 = vadd.f32 %v2749, %v2820
        %v2822 = vpop.f32.mrb[0].mxu0
        %2823 = vdwg.mxu0
        %s2824 = scalar_lea.vmem [#allocation10], 32
        %v2825 = vld [vmem:[%s2824] sm:$0xff]
        %v2826 = vld [vmem:[%s2824 + $0x8] sm:$0xff]
        %v2827 = vld [vmem:[%s2824 + $0x10] sm:$0xff]
        %v2828 = vld [vmem:[%s2824 + $0x18] sm:$0xff]
        %2830 = vrot.lane.b32.xlu0 %v2821, 96
        %v2831 = vpop.permute.xlu0 %2830
        %v2832 = vsel %vm1100, %v2821, 0
        %v2834 = vsel %vm1100, %v2831, 0
        %2836 = vmatprep.subr.mxu0 0.0
        %2837 = vmatpush1.xpose.msra.mxu0 %v2834
        %2838 = vmatprep.subr.mxu0 0.0
        %2839 = vmatpush1.xpose.msra.mxu0 0.0
        %2840 = vmatprep.subr.mxu0 0.0
        %2841 = vmatpush1.xpose.msra.mxu0 0.0
        %2842 = vmatprep.subr.mxu0 0.0
        %2843 = vmatpush1.xpose.msra.mxu0 0.0
        %2844 = vmatprep.subr.mxu0 0.0
        %2845 = vmatpush1.xpose.msra.mxu0 0.0
        %2846 = vmatprep.subr.mxu0 0.0
        %2847 = vmatpush1.xpose.msra.mxu0 0.0
        %2848 = vmatprep.subr.mxu0 0.0
        %2849 = vmatpush1.xpose.msra.mxu0 0.0
        %2850 = vmatprep.subr.mxu0 0.0
        %2851 = vmatpush1.xpose.msra.mxu0 0.0
        %2852 = vmatprep.subr.mxu0 0.0
        %2853 = vmatpush1.xpose.msra.mxu0 0.0
        %2854 = vmatprep.subr.mxu0 0.0
        %2855 = vmatpush1.xpose.msra.mxu0 0.0
        %2856 = vmatprep.subr.mxu0 0.0
        %2857 = vmatpush1.xpose.msra.mxu0 0.0
        %2858 = vmatprep.subr.mxu0 0.0
        %2859 = vmatpush1.xpose.msra.mxu0 0.0
        %2860 = vmatprep.subr.mxu0 0.0
        %2861 = vmatpush1.xpose.msra.mxu0 0.0
        %2862 = vmatprep.subr.mxu0 0.0
        %2863 = vmatpush1.xpose.msra.mxu0 0.0
        %2864 = vmatprep.subr.mxu0 0.0
        %2865 = vmatpush1.xpose.msra.mxu0 0.0
        %2866 = vmatprep.subr.mxu0 0.0
        %2867 = vmatpush1.xpose.msra.mxu0 0.0
        %2868 = vmatprep.subr.mxu0 0.0
        %2869 = vmatpush1.xpose.msra.mxu0 0.0
        %2870 = vmatprep.subr.mxu0 0.0
        %2871 = vmatpush1.xpose.msra.mxu0 0.0
        %2872 = vmatprep.subr.mxu0 0.0
        %2873 = vmatpush1.xpose.msra.mxu0 0.0
        %2874 = vmatprep.subr.mxu0 0.0
        %2875 = vmatpush1.xpose.msra.mxu0 0.0
        %2876 = vmatprep.subr.mxu0 0.0
        %2877 = vmatpush1.xpose.msra.mxu0 0.0
        %2878 = vmatprep.subr.mxu0 0.0
        %2879 = vmatpush1.xpose.msra.mxu0 0.0
        %2880 = vmatprep.subr.mxu0 0.0
        %2881 = vmatpush1.xpose.msra.mxu0 0.0
        %2882 = vmatprep.subr.mxu0 0.0
        %2883 = vmatpush1.xpose.msra.mxu0 0.0
        %2884 = vmatprep.subr.mxu0 0.0
        %2885 = vmatpush1.xpose.msra.mxu0 0.0
        %2886 = vmatprep.subr.mxu0 0.0
        %2887 = vmatpush1.xpose.msra.mxu0 0.0
        %2888 = vmatprep.subr.mxu0 0.0
        %2889 = vmatpush1.xpose.msra.mxu0 0.0
        %2890 = vmatprep.subr.mxu0 0.0
        %2891 = vmatpush1.xpose.msra.mxu0 0.0
        %2892 = vmatprep.subr.mxu0 0.0
        %2893 = vmatpush1.xpose.msra.mxu0 0.0
        %2894 = vmatprep.subr.mxu0 0.0
        %2895 = vmatpush1.xpose.msra.mxu0 0.0
        %2896 = vmatprep.subr.mxu0 0.0
        %2897 = vmatpush1.xpose.msra.mxu0 0.0
        %2898 = vmatprep.subr.mxu0 0.0
        %2899 = vmatpush1.xpose.msra.mxu0 0.0
        %2900 = vmatprep.mubr.f32.mxu0 0.0
        %2901 = vmatmul.mubr.f32.gmra.mrb[0].mxu0 %v2832
        %v2902 = vpop.f32.mrb[0].mxu0
        %v2903 = vadd.f32 0.0, %v2902
        %v2904 = vpop.f32.mrb[0].mxu0
        %2905 = vdwg.mxu0
        %v2906 = vadd.f32 %v2903, %v855
        %v2907 = vsel %vm1100, %v2906, -inf
        %2908 = vmax.xlane.f32.xlu0 %v2907
        %v2909 = vpop.xlane.xlu0 %2908
        %v2910 = vmul.f32 %v2903, %v853
        %v2911 = vsel %vm1100, %v2910, 0.0
        %2912 = vadd.xlane.f32.xlu0 %v2911
        %v2913 = vpop.xlane.xlu0 %2912
        %v2914 = vmul.f32 %v2913, 0.125
        %v2915 = vsub.f32 %v2909, %v2914
        %v2916 = vmul.f32 %v852, %v2915
        %v2917 = vsel %vm1100, %v2916, 0.0
        %v2918 = vrot.slane %v2917, 4
        %v2919 = vadd.f32 %v2917, %v2918
        %v2920 = vrot.slane %v2919, 2
        %v2921 = vadd.f32 %v2919, %v2920
        %v2922 = vrot.slane %v2921, 1
        %v2923 = vadd.f32 %v2921, %v2922
        %vm2924 = vcmp.gt.f32.partialorder %v2923, %v2915
        %vm2925 = vcmp.eq.f32.partialorder %v2923, %v2915
        %vm2926 = vmand %vm2925, %vm1436
        %vm2927 = vmor %vm2924, %vm2926
        %v2928 = vsel %vm2927, 1.0, 0.0
        %v2929 = vsel %vm1100, %v2928, 0.0
        %2930 = vadd.xlane.f32.xlu0 %v2929
        %v2931 = vpop.xlane.xlu0 %2930
        %vm2932 = vcmp.lt.f32.partialorder %v2931, 3.0
        %v2933 = vmul.f32 %v2903, 0.35355338
        %v2934 = vsel %vm1100, %v2933, -inf
        %2935 = vmax.xlane.f32.xlu0 %v2934
        %v2936 = vpop.xlane.xlu0 %2935
        %v2937 = vsub.f32 %v2933, %v2936
        %v2938 = vmul.f32 %v2937, 1.442695
        %v2939 = vpow.pop %v2938
        %v2940 = vsel %vm1100, %v2939, 0.0
        %2941 = vadd.xlane.f32.xlu0 %v2940
        %v2942 = vpop.xlane.xlu0 %2941
        %v2943 = vrcp.pop %v2942
        %v2944 = vmul.f32 %v2939, %v2943
        %2945 = vrot.lane.b32.xlu0 %v2821, 64
        %v2946 = vpop.permute.xlu0 %2945
        %v2949 = vsel %vm1100, %v2944, 0
        %2951 = vmatprep.subr.mxu0 0.0
        %2952 = vmatpush1.msra.mxu0 %v2946
        %2953 = vmatprep.subr.mxu0 0.0
        %2954 = vmatpush1.msra.mxu0 0.0
        %2955 = vmatprep.subr.mxu0 0.0
        %2956 = vmatpush1.msra.mxu0 0.0
        %2957 = vmatprep.subr.mxu0 0.0
        %2958 = vmatpush1.msra.mxu0 0.0
        %2959 = vmatprep.subr.mxu0 0.0
        %2960 = vmatpush1.msra.mxu0 0.0
        %2961 = vmatprep.subr.mxu0 0.0
        %2962 = vmatpush1.msra.mxu0 0.0
        %2963 = vmatprep.subr.mxu0 0.0
        %2964 = vmatpush1.msra.mxu0 0.0
        %2965 = vmatprep.subr.mxu0 0.0
        %2966 = vmatpush1.msra.mxu0 0.0
        %2967 = vmatprep.subr.mxu0 0.0
        %2968 = vmatpush1.msra.mxu0 0.0
        %2969 = vmatprep.subr.mxu0 0.0
        %2970 = vmatpush1.msra.mxu0 0.0
        %2971 = vmatprep.subr.mxu0 0.0
        %2972 = vmatpush1.msra.mxu0 0.0
        %2973 = vmatprep.subr.mxu0 0.0
        %2974 = vmatpush1.msra.mxu0 0.0
        %2975 = vmatprep.subr.mxu0 0.0
        %2976 = vmatpush1.msra.mxu0 0.0
        %2977 = vmatprep.subr.mxu0 0.0
        %2978 = vmatpush1.msra.mxu0 0.0
        %2979 = vmatprep.subr.mxu0 0.0
        %2980 = vmatpush1.msra.mxu0 0.0
        %2981 = vmatprep.subr.mxu0 0.0
        %2982 = vmatpush1.msra.mxu0 0.0
        %2983 = vmatprep.subr.mxu0 0.0
        %2984 = vmatpush1.msra.mxu0 0.0
        %2985 = vmatprep.subr.mxu0 0.0
        %2986 = vmatpush1.msra.mxu0 0.0
        %2987 = vmatprep.subr.mxu0 0.0
        %2988 = vmatpush1.msra.mxu0 0.0
        %2989 = vmatprep.subr.mxu0 0.0
        %2990 = vmatpush1.msra.mxu0 0.0
        %2991 = vmatprep.subr.mxu0 0.0
        %2992 = vmatpush1.msra.mxu0 0.0
        %2993 = vmatprep.subr.mxu0 0.0
        %2994 = vmatpush1.msra.mxu0 0.0
        %2995 = vmatprep.subr.mxu0 0.0
        %2996 = vmatpush1.msra.mxu0 0.0
        %2997 = vmatprep.subr.mxu0 0.0
        %2998 = vmatpush1.msra.mxu0 0.0
        %2999 = vmatprep.subr.mxu0 0.0
        %3000 = vmatpush1.msra.mxu0 0.0
        %3001 = vmatprep.subr.mxu0 0.0
        %3002 = vmatpush1.msra.mxu0 0.0
        %3003 = vmatprep.subr.mxu0 0.0
        %3004 = vmatpush1.msra.mxu0 0.0
        %3005 = vmatprep.subr.mxu0 0.0
        %3006 = vmatpush1.msra.mxu0 0.0
        %3007 = vmatprep.subr.mxu0 0.0
        %3008 = vmatpush1.msra.mxu0 0.0
        %3009 = vmatprep.subr.mxu0 0.0
        %3010 = vmatpush1.msra.mxu0 0.0
        %3011 = vmatprep.subr.mxu0 0.0
        %3012 = vmatpush1.msra.mxu0 0.0
        %3013 = vmatprep.subr.mxu0 0.0
        %3014 = vmatpush1.msra.mxu0 0.0
        %3015 = vmatprep.mubr.f32.mxu0 0.0
        %3016 = vmatmul.mubr.f32.gmra.mrb[0].mxu0 %v2949
        %v3017 = vpop.f32.mrb[0].mxu0
        %v3018 = vadd.f32 0.0, %v3017
        %v3019 = vpop.f32.mrb[0].mxu0
        %3020 = vdwg.mxu0
        %v3021 = vsel %vm1532, %v2821, 0.0
        %v3022 = vrot.slane %v3021, 4
        %v3023 = vadd.f32 %v3021, %v3022
        %v3024 = vrot.slane %v3023, 2
        %v3025 = vadd.f32 %v3023, %v3024
        %v3026 = vrot.slane %v3025, 1
        %v3027 = vadd.f32 %v3025, %v3026
        %v3028 = vmul.f32 %v3027, 0.125
        %v3029 = vsel %vm2932, 1, 0
        %vm3030 = vcmp.eq.s32.totalorder %v3029, 1
        %3032 = vrot.lane.b32.xlu0 %v3028, 64
        %v3033 = vpop.permute.xlu0 %3032
        %v3035 = vsel %vm3030, %v3018, %v3033
        %3036 = vrot.lane.b32.xlu0 %v2821, 120
        %v3037 = vpop.permute.xlu0 %3036
        %3038 = vrot.lane.b32.xlu0 %v2821, 88
        %v3039 = vpop.permute.xlu0 %3038
        %v3040 = vsel %vm1100, %v3037, 0
        %v3042 = vsel %vm1100, %v3039, 0
        %3044 = vmatprep.subr.mxu0 0.0
        %3045 = vmatpush1.xpose.msra.mxu0 %v3042
        %3046 = vmatprep.subr.mxu0 0.0
        %3047 = vmatpush1.xpose.msra.mxu0 0.0
        %3048 = vmatprep.subr.mxu0 0.0
        %3049 = vmatpush1.xpose.msra.mxu0 0.0
        %3050 = vmatprep.subr.mxu0 0.0
        %3051 = vmatpush1.xpose.msra.mxu0 0.0
        %3052 = vmatprep.subr.mxu0 0.0
        %3053 = vmatpush1.xpose.msra.mxu0 0.0
        %3054 = vmatprep.subr.mxu0 0.0
        %3055 = vmatpush1.xpose.msra.mxu0 0.0
        %3056 = vmatprep.subr.mxu0 0.0
        %3057 = vmatpush1.xpose.msra.mxu0 0.0
        %3058 = vmatprep.subr.mxu0 0.0
        %3059 = vmatpush1.xpose.msra.mxu0 0.0
        %3060 = vmatprep.subr.mxu0 0.0
        %3061 = vmatpush1.xpose.msra.mxu0 0.0
        %3062 = vmatprep.subr.mxu0 0.0
        %3063 = vmatpush1.xpose.msra.mxu0 0.0
        %3064 = vmatprep.subr.mxu0 0.0
        %3065 = vmatpush1.xpose.msra.mxu0 0.0
        %3066 = vmatprep.subr.mxu0 0.0
        %3067 = vmatpush1.xpose.msra.mxu0 0.0
        %3068 = vmatprep.subr.mxu0 0.0
        %3069 = vmatpush1.xpose.msra.mxu0 0.0
        %3070 = vmatprep.subr.mxu0 0.0
        %3071 = vmatpush1.xpose.msra.mxu0 0.0
        %3072 = vmatprep.subr.mxu0 0.0
        %3073 = vmatpush1.xpose.msra.mxu0 0.0
        %3074 = vmatprep.subr.mxu0 0.0
        %3075 = vmatpush1.xpose.msra.mxu0 0.0
        %3076 = vmatprep.subr.mxu0 0.0
        %3077 = vmatpush1.xpose.msra.mxu0 0.0
        %3078 = vmatprep.subr.mxu0 0.0
        %3079 = vmatpush1.xpose.msra.mxu0 0.0
        %3080 = vmatprep.subr.mxu0 0.0
        %3081 = vmatpush1.xpose.msra.mxu0 0.0
        %3082 = vmatprep.subr.mxu0 0.0
        %3083 = vmatpush1.xpose.msra.mxu0 0.0
        %3084 = vmatprep.subr.mxu0 0.0
        %3085 = vmatpush1.xpose.msra.mxu0 0.0
        %3086 = vmatprep.subr.mxu0 0.0
        %3087 = vmatpush1.xpose.msra.mxu0 0.0
        %3088 = vmatprep.subr.mxu0 0.0
        %3089 = vmatpush1.xpose.msra.mxu0 0.0
        %3090 = vmatprep.subr.mxu0 0.0
        %3091 = vmatpush1.xpose.msra.mxu0 0.0
        %3092 = vmatprep.subr.mxu0 0.0
        %3093 = vmatpush1.xpose.msra.mxu0 0.0
        %3094 = vmatprep.subr.mxu0 0.0
        %3095 = vmatpush1.xpose.msra.mxu0 0.0
        %3096 = vmatprep.subr.mxu0 0.0
        %3097 = vmatpush1.xpose.msra.mxu0 0.0
        %3098 = vmatprep.subr.mxu0 0.0
        %3099 = vmatpush1.xpose.msra.mxu0 0.0
        %3100 = vmatprep.subr.mxu0 0.0
        %3101 = vmatpush1.xpose.msra.mxu0 0.0
        %3102 = vmatprep.subr.mxu0 0.0
        %3103 = vmatpush1.xpose.msra.mxu0 0.0
        %3104 = vmatprep.subr.mxu0 0.0
        %3105 = vmatpush1.xpose.msra.mxu0 0.0
        %3106 = vmatprep.subr.mxu0 0.0
        %3107 = vmatpush1.xpose.msra.mxu0 0.0
        %3108 = vmatprep.mubr.f32.mxu0 0.0
        %3109 = vmatmul.mubr.f32.gmra.mrb[0].mxu0 %v3040
        %v3110 = vpop.f32.mrb[0].mxu0
        %v3111 = vadd.f32 0.0, %v3110
        %v3112 = vpop.f32.mrb[0].mxu0
        %3113 = vdwg.mxu0
        %v3114 = vadd.f32 %v3111, %v855
        %v3115 = vsel %vm1100, %v3114, -inf
        %3116 = vmax.xlane.f32.xlu0 %v3115
        %v3117 = vpop.xlane.xlu0 %3116
        %v3118 = vmul.f32 %v3111, %v853
        %v3119 = vsel %vm1100, %v3118, 0.0
        %3120 = vadd.xlane.f32.xlu0 %v3119
        %v3121 = vpop.xlane.xlu0 %3120
        %v3122 = vmul.f32 %v3121, 0.125
        %v3123 = vsub.f32 %v3117, %v3122
        %v3124 = vmul.f32 %v852, %v3123
        %v3125 = vsel %vm1100, %v3124, 0.0
        %v3126 = vrot.slane %v3125, 4
        %v3127 = vadd.f32 %v3125, %v3126
        %v3128 = vrot.slane %v3127, 2
        %v3129 = vadd.f32 %v3127, %v3128
        %v3130 = vrot.slane %v3129, 1
        %v3131 = vadd.f32 %v3129, %v3130
        %vm3132 = vcmp.gt.f32.partialorder %v3131, %v3123
        %vm3133 = vcmp.eq.f32.partialorder %v3131, %v3123
        %vm3134 = vmand %vm3133, %vm1436
        %vm3135 = vmor %vm3132, %vm3134
        %v3136 = vsel %vm3135, 1.0, 0.0
        %v3137 = vsel %vm1100, %v3136, 0.0
        %3138 = vadd.xlane.f32.xlu0 %v3137
        %v3139 = vpop.xlane.xlu0 %3138
        %vm3140 = vcmp.lt.f32.partialorder %v3139, 3.0
        %v3141 = vmul.f32 %v3111, 0.35355338
        %v3142 = vsel %vm1100, %v3141, -inf
        %3143 = vmax.xlane.f32.xlu0 %v3142
        %v3144 = vpop.xlane.xlu0 %3143
        %v3145 = vsub.f32 %v3141, %v3144
        %v3146 = vmul.f32 %v3145, 1.442695
        %v3147 = vpow.pop %v3146
        %v3148 = vsel %vm1100, %v3147, 0.0
        %3149 = vadd.xlane.f32.xlu0 %v3148
        %v3150 = vpop.xlane.xlu0 %3149
        %v3151 = vrcp.pop %v3150
        %v3152 = vmul.f32 %v3147, %v3151
        %3153 = vrot.lane.b32.xlu0 %v2821, 56
        %v3154 = vpop.permute.xlu0 %3153
        %v3157 = vsel %vm1100, %v3152, 0
        %3159 = vmatprep.subr.mxu0 0.0
        %3160 = vmatpush1.msra.mxu0 %v3154
        %3161 = vmatprep.subr.mxu0 0.0
        %3162 = vmatpush1.msra.mxu0 0.0
        %3163 = vmatprep.subr.mxu0 0.0
        %3164 = vmatpush1.msra.mxu0 0.0
        %3165 = vmatprep.subr.mxu0 0.0
        %3166 = vmatpush1.msra.mxu0 0.0
        %3167 = vmatprep.subr.mxu0 0.0
        %3168 = vmatpush1.msra.mxu0 0.0
        %3169 = vmatprep.subr.mxu0 0.0
        %3170 = vmatpush1.msra.mxu0 0.0
        %3171 = vmatprep.subr.mxu0 0.0
        %3172 = vmatpush1.msra.mxu0 0.0
        %3173 = vmatprep.subr.mxu0 0.0
        %3174 = vmatpush1.msra.mxu0 0.0
        %3175 = vmatprep.subr.mxu0 0.0
        %3176 = vmatpush1.msra.mxu0 0.0
        %3177 = vmatprep.subr.mxu0 0.0
        %3178 = vmatpush1.msra.mxu0 0.0
        %3179 = vmatprep.subr.mxu0 0.0
        %3180 = vmatpush1.msra.mxu0 0.0
        %3181 = vmatprep.subr.mxu0 0.0
        %3182 = vmatpush1.msra.mxu0 0.0
        %3183 = vmatprep.subr.mxu0 0.0
        %3184 = vmatpush1.msra.mxu0 0.0
        %3185 = vmatprep.subr.mxu0 0.0
        %3186 = vmatpush1.msra.mxu0 0.0
        %3187 = vmatprep.subr.mxu0 0.0
        %3188 = vmatpush1.msra.mxu0 0.0
        %3189 = vmatprep.subr.mxu0 0.0
        %3190 = vmatpush1.msra.mxu0 0.0
        %3191 = vmatprep.subr.mxu0 0.0
        %3192 = vmatpush1.msra.mxu0 0.0
        %3193 = vmatprep.subr.mxu0 0.0
        %3194 = vmatpush1.msra.mxu0 0.0
        %3195 = vmatprep.subr.mxu0 0.0
        %3196 = vmatpush1.msra.mxu0 0.0
        %3197 = vmatprep.subr.mxu0 0.0
        %3198 = vmatpush1.msra.mxu0 0.0
        %3199 = vmatprep.subr.mxu0 0.0
        %3200 = vmatpush1.msra.mxu0 0.0
        %3201 = vmatprep.subr.mxu0 0.0
        %3202 = vmatpush1.msra.mxu0 0.0
        %3203 = vmatprep.subr.mxu0 0.0
        %3204 = vmatpush1.msra.mxu0 0.0
        %3205 = vmatprep.subr.mxu0 0.0
        %3206 = vmatpush1.msra.mxu0 0.0
        %3207 = vmatprep.subr.mxu0 0.0
        %3208 = vmatpush1.msra.mxu0 0.0
        %3209 = vmatprep.subr.mxu0 0.0
        %3210 = vmatpush1.msra.mxu0 0.0
        %3211 = vmatprep.subr.mxu0 0.0
        %3212 = vmatpush1.msra.mxu0 0.0
        %3213 = vmatprep.subr.mxu0 0.0
        %3214 = vmatpush1.msra.mxu0 0.0
        %3215 = vmatprep.subr.mxu0 0.0
        %3216 = vmatpush1.msra.mxu0 0.0
        %3217 = vmatprep.subr.mxu0 0.0
        %3218 = vmatpush1.msra.mxu0 0.0
        %3219 = vmatprep.subr.mxu0 0.0
        %3220 = vmatpush1.msra.mxu0 0.0
        %3221 = vmatprep.subr.mxu0 0.0
        %3222 = vmatpush1.msra.mxu0 0.0
        %3223 = vmatprep.mubr.f32.mxu0 0.0
        %3224 = vmatmul.mubr.f32.gmra.mrb[0].mxu0 %v3157
        %v3225 = vpop.f32.mrb[0].mxu0
        %v3226 = vadd.f32 0.0, %v3225
        %v3227 = vpop.f32.mrb[0].mxu0
        %3228 = vdwg.mxu0
        %v3229 = vsel %vm1741, %v2821, 0.0
        %v3230 = vrot.slane %v3229, 4
        %v3231 = vadd.f32 %v3229, %v3230
        %v3232 = vrot.slane %v3231, 2
        %v3233 = vadd.f32 %v3231, %v3232
        %v3234 = vrot.slane %v3233, 1
        %v3235 = vadd.f32 %v3233, %v3234
        %v3236 = vmul.f32 %v3235, 0.125
        %v3237 = vsel %vm3140, 1, 0
        %vm3238 = vcmp.eq.s32.totalorder %v3237, 1
        %3240 = vrot.lane.b32.xlu0 %v3236, 56
        %v3241 = vpop.permute.xlu0 %3240
        %v3243 = vsel %vm3238, %v3226, %v3241
        %v3245 = vsel %vm1100, %v3243, 0
        %3247 = vmatprep.subr.mxu0 0.0
        %3248 = vmatpush1.msra.mxu0 %v2826
        %3249 = vmatprep.subr.mxu0 0.0
        %3250 = vmatpush1.msra.mxu0 0.0
        %3251 = vmatprep.subr.mxu0 0.0
        %3252 = vmatpush1.msra.mxu0 0.0
        %3253 = vmatprep.subr.mxu0 0.0
        %3254 = vmatpush1.msra.mxu0 0.0
        %3255 = vmatprep.subr.mxu0 0.0
        %3256 = vmatpush1.msra.mxu0 0.0
        %3257 = vmatprep.subr.mxu0 0.0
        %3258 = vmatpush1.msra.mxu0 0.0
        %3259 = vmatprep.subr.mxu0 0.0
        %3260 = vmatpush1.msra.mxu0 0.0
        %3261 = vmatprep.subr.mxu0 0.0
        %3262 = vmatpush1.msra.mxu0 0.0
        %3263 = vmatprep.subr.mxu0 0.0
        %3264 = vmatpush1.msra.mxu0 0.0
        %3265 = vmatprep.subr.mxu0 0.0
        %3266 = vmatpush1.msra.mxu0 0.0
        %3267 = vmatprep.subr.mxu0 0.0
        %3268 = vmatpush1.msra.mxu0 0.0
        %3269 = vmatprep.subr.mxu0 0.0
        %3270 = vmatpush1.msra.mxu0 0.0
        %3271 = vmatprep.subr.mxu0 0.0
        %3272 = vmatpush1.msra.mxu0 0.0
        %3273 = vmatprep.subr.mxu0 0.0
        %3274 = vmatpush1.msra.mxu0 0.0
        %3275 = vmatprep.subr.mxu0 0.0
        %3276 = vmatpush1.msra.mxu0 0.0
        %3277 = vmatprep.subr.mxu0 0.0
        %3278 = vmatpush1.msra.mxu0 0.0
        %3279 = vmatprep.subr.mxu0 0.0
        %3280 = vmatpush1.msra.mxu0 0.0
        %3281 = vmatprep.subr.mxu0 0.0
        %3282 = vmatpush1.msra.mxu0 0.0
        %3283 = vmatprep.subr.mxu0 0.0
        %3284 = vmatpush1.msra.mxu0 0.0
        %3285 = vmatprep.subr.mxu0 0.0
        %3286 = vmatpush1.msra.mxu0 0.0
        %3287 = vmatprep.subr.mxu0 0.0
        %3288 = vmatpush1.msra.mxu0 0.0
        %3289 = vmatprep.subr.mxu0 0.0
        %3290 = vmatpush1.msra.mxu0 0.0
        %3291 = vmatprep.subr.mxu0 0.0
        %3292 = vmatpush1.msra.mxu0 0.0
        %3293 = vmatprep.subr.mxu0 0.0
        %3294 = vmatpush1.msra.mxu0 0.0
        %3295 = vmatprep.subr.mxu0 0.0
        %3296 = vmatpush1.msra.mxu0 0.0
        %3297 = vmatprep.subr.mxu0 0.0
        %3298 = vmatpush1.msra.mxu0 0.0
        %3299 = vmatprep.subr.mxu0 0.0
        %3300 = vmatpush1.msra.mxu0 0.0
        %3301 = vmatprep.subr.mxu0 0.0
        %3302 = vmatpush1.msra.mxu0 0.0
        %3303 = vmatprep.subr.mxu0 0.0
        %3304 = vmatpush1.msra.mxu0 0.0
        %3305 = vmatprep.subr.mxu0 0.0
        %3306 = vmatpush1.msra.mxu0 0.0
        %3307 = vmatprep.subr.mxu0 0.0
        %3308 = vmatpush1.msra.mxu0 0.0
        %3309 = vmatprep.subr.mxu0 0.0
        %3310 = vmatpush1.msra.mxu0 0.0
        %3311 = vmatprep.mubr.f32.mxu0 0.0
        %3312 = vmatmul.mubr.f32.gmra.mrb[0].mxu0 %v3245
        %v3313 = vpop.f32.mrb[0].mxu0
        %v3314 = vadd.f32 0.0, %v3313
        %v3315 = vpop.f32.mrb[0].mxu0
        %3316 = vdwg.mxu0
        %v3318 = vsel %vm1100, %v3035, 0
        %3320 = vmatprep.subr.mxu0 0.0
        %3321 = vmatpush1.msra.mxu0 %v2825
        %3322 = vmatprep.subr.mxu0 0.0
        %3323 = vmatpush1.msra.mxu0 0.0
        %3324 = vmatprep.subr.mxu0 0.0
        %3325 = vmatpush1.msra.mxu0 0.0
        %3326 = vmatprep.subr.mxu0 0.0
        %3327 = vmatpush1.msra.mxu0 0.0
        %3328 = vmatprep.subr.mxu0 0.0
        %3329 = vmatpush1.msra.mxu0 0.0
        %3330 = vmatprep.subr.mxu0 0.0
        %3331 = vmatpush1.msra.mxu0 0.0
        %3332 = vmatprep.subr.mxu0 0.0
        %3333 = vmatpush1.msra.mxu0 0.0
        %3334 = vmatprep.subr.mxu0 0.0
        %3335 = vmatpush1.msra.mxu0 0.0
        %3336 = vmatprep.subr.mxu0 0.0
        %3337 = vmatpush1.msra.mxu0 0.0
        %3338 = vmatprep.subr.mxu0 0.0
        %3339 = vmatpush1.msra.mxu0 0.0
        %3340 = vmatprep.subr.mxu0 0.0
        %3341 = vmatpush1.msra.mxu0 0.0
        %3342 = vmatprep.subr.mxu0 0.0
        %3343 = vmatpush1.msra.mxu0 0.0
        %3344 = vmatprep.subr.mxu0 0.0
        %3345 = vmatpush1.msra.mxu0 0.0
        %3346 = vmatprep.subr.mxu0 0.0
        %3347 = vmatpush1.msra.mxu0 0.0
        %3348 = vmatprep.subr.mxu0 0.0
        %3349 = vmatpush1.msra.mxu0 0.0
        %3350 = vmatprep.subr.mxu0 0.0
        %3351 = vmatpush1.msra.mxu0 0.0
        %3352 = vmatprep.subr.mxu0 0.0
        %3353 = vmatpush1.msra.mxu0 0.0
        %3354 = vmatprep.subr.mxu0 0.0
        %3355 = vmatpush1.msra.mxu0 0.0
        %3356 = vmatprep.subr.mxu0 0.0
        %3357 = vmatpush1.msra.mxu0 0.0
        %3358 = vmatprep.subr.mxu0 0.0
        %3359 = vmatpush1.msra.mxu0 0.0
        %3360 = vmatprep.subr.mxu0 0.0
        %3361 = vmatpush1.msra.mxu0 0.0
        %3362 = vmatprep.subr.mxu0 0.0
        %3363 = vmatpush1.msra.mxu0 0.0
        %3364 = vmatprep.subr.mxu0 0.0
        %3365 = vmatpush1.msra.mxu0 0.0
        %3366 = vmatprep.subr.mxu0 0.0
        %3367 = vmatpush1.msra.mxu0 0.0
        %3368 = vmatprep.subr.mxu0 0.0
        %3369 = vmatpush1.msra.mxu0 0.0
        %3370 = vmatprep.subr.mxu0 0.0
        %3371 = vmatpush1.msra.mxu0 0.0
        %3372 = vmatprep.subr.mxu0 0.0
        %3373 = vmatpush1.msra.mxu0 0.0
        %3374 = vmatprep.subr.mxu0 0.0
        %3375 = vmatpush1.msra.mxu0 0.0
        %3376 = vmatprep.subr.mxu0 0.0
        %3377 = vmatpush1.msra.mxu0 0.0
        %3378 = vmatprep.subr.mxu0 0.0
        %3379 = vmatpush1.msra.mxu0 0.0
        %3380 = vmatprep.subr.mxu0 0.0
        %3381 = vmatpush1.msra.mxu0 0.0
        %3382 = vmatprep.subr.mxu0 0.0
        %3383 = vmatpush1.msra.mxu0 0.0
        %3384 = vmatprep.mubr.f32.mxu0 0.0
        %3385 = vmatmul.mubr.f32.gmra.mrb[0].mxu0 %v3318
        %v3386 = vpop.f32.mrb[0].mxu0
        %v3387 = vadd.f32 %v3314, %v3386
        %v3388 = vpop.f32.mrb[0].mxu0
        %3389 = vdwg.mxu0
        %3390 = vrot.lane.b32.xlu0 %v2821, 112
        %v3391 = vpop.permute.xlu0 %3390
        %3392 = vrot.lane.b32.xlu0 %v2821, 80
        %v3393 = vpop.permute.xlu0 %3392
        %v3394 = vsel %vm1100, %v3391, 0
        %v3396 = vsel %vm1100, %v3393, 0
        %3398 = vmatprep.subr.mxu0 0.0
        %3399 = vmatpush1.xpose.msra.mxu0 %v3396
        %3400 = vmatprep.subr.mxu0 0.0
        %3401 = vmatpush1.xpose.msra.mxu0 0.0
        %3402 = vmatprep.subr.mxu0 0.0
        %3403 = vmatpush1.xpose.msra.mxu0 0.0
        %3404 = vmatprep.subr.mxu0 0.0
        %3405 = vmatpush1.xpose.msra.mxu0 0.0
        %3406 = vmatprep.subr.mxu0 0.0
        %3407 = vmatpush1.xpose.msra.mxu0 0.0
        %3408 = vmatprep.subr.mxu0 0.0
        %3409 = vmatpush1.xpose.msra.mxu0 0.0
        %3410 = vmatprep.subr.mxu0 0.0
        %3411 = vmatpush1.xpose.msra.mxu0 0.0
        %3412 = vmatprep.subr.mxu0 0.0
        %3413 = vmatpush1.xpose.msra.mxu0 0.0
        %3414 = vmatprep.subr.mxu0 0.0
        %3415 = vmatpush1.xpose.msra.mxu0 0.0
        %3416 = vmatprep.subr.mxu0 0.0
        %3417 = vmatpush1.xpose.msra.mxu0 0.0
        %3418 = vmatprep.subr.mxu0 0.0
        %3419 = vmatpush1.xpose.msra.mxu0 0.0
        %3420 = vmatprep.subr.mxu0 0.0
        %3421 = vmatpush1.xpose.msra.mxu0 0.0
        %3422 = vmatprep.subr.mxu0 0.0
        %3423 = vmatpush1.xpose.msra.mxu0 0.0
        %3424 = vmatprep.subr.mxu0 0.0
        %3425 = vmatpush1.xpose.msra.mxu0 0.0
        %3426 = vmatprep.subr.mxu0 0.0
        %3427 = vmatpush1.xpose.msra.mxu0 0.0
        %3428 = vmatprep.subr.mxu0 0.0
        %3429 = vmatpush1.xpose.msra.mxu0 0.0
        %3430 = vmatprep.subr.mxu0 0.0
        %3431 = vmatpush1.xpose.msra.mxu0 0.0
        %3432 = vmatprep.subr.mxu0 0.0
        %3433 = vmatpush1.xpose.msra.mxu0 0.0
        %3434 = vmatprep.subr.mxu0 0.0
        %3435 = vmatpush1.xpose.msra.mxu0 0.0
        %3436 = vmatprep.subr.mxu0 0.0
        %3437 = vmatpush1.xpose.msra.mxu0 0.0
        %3438 = vmatprep.subr.mxu0 0.0
        %3439 = vmatpush1.xpose.msra.mxu0 0.0
        %3440 = vmatprep.subr.mxu0 0.0
        %3441 = vmatpush1.xpose.msra.mxu0 0.0
        %3442 = vmatprep.subr.mxu0 0.0
        %3443 = vmatpush1.xpose.msra.mxu0 0.0
        %3444 = vmatprep.subr.mxu0 0.0
        %3445 = vmatpush1.xpose.msra.mxu0 0.0
        %3446 = vmatprep.subr.mxu0 0.0
        %3447 = vmatpush1.xpose.msra.mxu0 0.0
        %3448 = vmatprep.subr.mxu0 0.0
        %3449 = vmatpush1.xpose.msra.mxu0 0.0
        %3450 = vmatprep.subr.mxu0 0.0
        %3451 = vmatpush1.xpose.msra.mxu0 0.0
        %3452 = vmatprep.subr.mxu0 0.0
        %3453 = vmatpush1.xpose.msra.mxu0 0.0
        %3454 = vmatprep.subr.mxu0 0.0
        %3455 = vmatpush1.xpose.msra.mxu0 0.0
        %3456 = vmatprep.subr.mxu0 0.0
        %3457 = vmatpush1.xpose.msra.mxu0 0.0
        %3458 = vmatprep.subr.mxu0 0.0
        %3459 = vmatpush1.xpose.msra.mxu0 0.0
        %3460 = vmatprep.subr.mxu0 0.0
        %3461 = vmatpush1.xpose.msra.mxu0 0.0
        %3462 = vmatprep.mubr.f32.mxu0 0.0
        %3463 = vmatmul.mubr.f32.gmra.mrb[0].mxu0 %v3394
        %v3464 = vpop.f32.mrb[0].mxu0
        %v3465 = vadd.f32 0.0, %v3464
        %v3466 = vpop.f32.mrb[0].mxu0
        %3467 = vdwg.mxu0
        %v3468 = vadd.f32 %v3465, %v855
        %v3469 = vsel %vm1100, %v3468, -inf
        %3470 = vmax.xlane.f32.xlu0 %v3469
        %v3471 = vpop.xlane.xlu0 %3470
        %v3472 = vmul.f32 %v3465, %v853
        %v3473 = vsel %vm1100, %v3472, 0.0
        %3474 = vadd.xlane.f32.xlu0 %v3473
        %v3475 = vpop.xlane.xlu0 %3474
        %v3476 = vmul.f32 %v3475, 0.125
        %v3477 = vsub.f32 %v3471, %v3476
        %v3478 = vmul.f32 %v852, %v3477
        %v3479 = vsel %vm1100, %v3478, 0.0
        %v3480 = vrot.slane %v3479, 4
        %v3481 = vadd.f32 %v3479, %v3480
        %v3482 = vrot.slane %v3481, 2
        %v3483 = vadd.f32 %v3481, %v3482
        %v3484 = vrot.slane %v3483, 1
        %v3485 = vadd.f32 %v3483, %v3484
        %vm3486 = vcmp.gt.f32.partialorder %v3485, %v3477
        %vm3487 = vcmp.eq.f32.partialorder %v3485, %v3477
        %vm3488 = vmand %vm3487, %vm1436
        %vm3489 = vmor %vm3486, %vm3488
        %v3490 = vsel %vm3489, 1.0, 0.0
        %v3491 = vsel %vm1100, %v3490, 0.0
        %3492 = vadd.xlane.f32.xlu0 %v3491
        %v3493 = vpop.xlane.xlu0 %3492
        %vm3494 = vcmp.lt.f32.partialorder %v3493, 3.0
        %v3495 = vmul.f32 %v3465, 0.35355338
        %v3496 = vsel %vm1100, %v3495, -inf
        %3497 = vmax.xlane.f32.xlu0 %v3496
        %v3498 = vpop.xlane.xlu0 %3497
        %v3499 = vsub.f32 %v3495, %v3498
        %v3500 = vmul.f32 %v3499, 1.442695
        %v3501 = vpow.pop %v3500
        %v3502 = vsel %vm1100, %v3501, 0.0
        %3503 = vadd.xlane.f32.xlu0 %v3502
        %v3504 = vpop.xlane.xlu0 %3503
        %v3505 = vrcp.pop %v3504
        %v3506 = vmul.f32 %v3501, %v3505
        %3507 = vrot.lane.b32.xlu0 %v2821, 48
        %v3508 = vpop.permute.xlu0 %3507
        %v3511 = vsel %vm1100, %v3506, 0
        %3513 = vmatprep.subr.mxu0 0.0
        %3514 = vmatpush1.msra.mxu0 %v3508
        %3515 = vmatprep.subr.mxu0 0.0
        %3516 = vmatpush1.msra.mxu0 0.0
        %3517 = vmatprep.subr.mxu0 0.0
        %3518 = vmatpush1.msra.mxu0 0.0
        %3519 = vmatprep.subr.mxu0 0.0
        %3520 = vmatpush1.msra.mxu0 0.0
        %3521 = vmatprep.subr.mxu0 0.0
        %3522 = vmatpush1.msra.mxu0 0.0
        %3523 = vmatprep.subr.mxu0 0.0
        %3524 = vmatpush1.msra.mxu0 0.0
        %3525 = vmatprep.subr.mxu0 0.0
        %3526 = vmatpush1.msra.mxu0 0.0
        %3527 = vmatprep.subr.mxu0 0.0
        %3528 = vmatpush1.msra.mxu0 0.0
        %3529 = vmatprep.subr.mxu0 0.0
        %3530 = vmatpush1.msra.mxu0 0.0
        %3531 = vmatprep.subr.mxu0 0.0
        %3532 = vmatpush1.msra.mxu0 0.0
        %3533 = vmatprep.subr.mxu0 0.0
        %3534 = vmatpush1.msra.mxu0 0.0
        %3535 = vmatprep.subr.mxu0 0.0
        %3536 = vmatpush1.msra.mxu0 0.0
        %3537 = vmatprep.subr.mxu0 0.0
        %3538 = vmatpush1.msra.mxu0 0.0
        %3539 = vmatprep.subr.mxu0 0.0
        %3540 = vmatpush1.msra.mxu0 0.0
        %3541 = vmatprep.subr.mxu0 0.0
        %3542 = vmatpush1.msra.mxu0 0.0
        %3543 = vmatprep.subr.mxu0 0.0
        %3544 = vmatpush1.msra.mxu0 0.0
        %3545 = vmatprep.subr.mxu0 0.0
        %3546 = vmatpush1.msra.mxu0 0.0
        %3547 = vmatprep.subr.mxu0 0.0
        %3548 = vmatpush1.msra.mxu0 0.0
        %3549 = vmatprep.subr.mxu0 0.0
        %3550 = vmatpush1.msra.mxu0 0.0
        %3551 = vmatprep.subr.mxu0 0.0
        %3552 = vmatpush1.msra.mxu0 0.0
        %3553 = vmatprep.subr.mxu0 0.0
        %3554 = vmatpush1.msra.mxu0 0.0
        %3555 = vmatprep.subr.mxu0 0.0
        %3556 = vmatpush1.msra.mxu0 0.0
        %3557 = vmatprep.subr.mxu0 0.0
        %3558 = vmatpush1.msra.mxu0 0.0
        %3559 = vmatprep.subr.mxu0 0.0
        %3560 = vmatpush1.msra.mxu0 0.0
        %3561 = vmatprep.subr.mxu0 0.0
        %3562 = vmatpush1.msra.mxu0 0.0
        %3563 = vmatprep.subr.mxu0 0.0
        %3564 = vmatpush1.msra.mxu0 0.0
        %3565 = vmatprep.subr.mxu0 0.0
        %3566 = vmatpush1.msra.mxu0 0.0
        %3567 = vmatprep.subr.mxu0 0.0
        %3568 = vmatpush1.msra.mxu0 0.0
        %3569 = vmatprep.subr.mxu0 0.0
        %3570 = vmatpush1.msra.mxu0 0.0
        %3571 = vmatprep.subr.mxu0 0.0
        %3572 = vmatpush1.msra.mxu0 0.0
        %3573 = vmatprep.subr.mxu0 0.0
        %3574 = vmatpush1.msra.mxu0 0.0
        %3575 = vmatprep.subr.mxu0 0.0
        %3576 = vmatpush1.msra.mxu0 0.0
        %3577 = vmatprep.mubr.f32.mxu0 0.0
        %3578 = vmatmul.mubr.f32.gmra.mrb[0].mxu0 %v3511
        %v3579 = vpop.f32.mrb[0].mxu0
        %v3580 = vadd.f32 0.0, %v3579
        %v3581 = vpop.f32.mrb[0].mxu0
        %3582 = vdwg.mxu0
        %v3583 = vsel %vm2096, %v2821, 0.0
        %v3584 = vrot.slane %v3583, 4
        %v3585 = vadd.f32 %v3583, %v3584
        %v3586 = vrot.slane %v3585, 2
        %v3587 = vadd.f32 %v3585, %v3586
        %v3588 = vrot.slane %v3587, 1
        %v3589 = vadd.f32 %v3587, %v3588
        %v3590 = vmul.f32 %v3589, 0.125
        %v3591 = vsel %vm3494, 1, 0
        %vm3592 = vcmp.eq.s32.totalorder %v3591, 1
        %3594 = vrot.lane.b32.xlu0 %v3590, 48
        %v3595 = vpop.permute.xlu0 %3594
        %v3597 = vsel %vm3592, %v3580, %v3595
        %v3599 = vsel %vm1100, %v3597, 0
        %3601 = vmatprep.subr.mxu0 0.0
        %3602 = vmatpush1.msra.mxu0 %v2827
        %3603 = vmatprep.subr.mxu0 0.0
        %3604 = vmatpush1.msra.mxu0 0.0
        %3605 = vmatprep.subr.mxu0 0.0
        %3606 = vmatpush1.msra.mxu0 0.0
        %3607 = vmatprep.subr.mxu0 0.0
        %3608 = vmatpush1.msra.mxu0 0.0
        %3609 = vmatprep.subr.mxu0 0.0
        %3610 = vmatpush1.msra.mxu0 0.0
        %3611 = vmatprep.subr.mxu0 0.0
        %3612 = vmatpush1.msra.mxu0 0.0
        %3613 = vmatprep.subr.mxu0 0.0
        %3614 = vmatpush1.msra.mxu0 0.0
        %3615 = vmatprep.subr.mxu0 0.0
        %3616 = vmatpush1.msra.mxu0 0.0
        %3617 = vmatprep.subr.mxu0 0.0
        %3618 = vmatpush1.msra.mxu0 0.0
        %3619 = vmatprep.subr.mxu0 0.0
        %3620 = vmatpush1.msra.mxu0 0.0
        %3621 = vmatprep.subr.mxu0 0.0
        %3622 = vmatpush1.msra.mxu0 0.0
        %3623 = vmatprep.subr.mxu0 0.0
        %3624 = vmatpush1.msra.mxu0 0.0
        %3625 = vmatprep.subr.mxu0 0.0
        %3626 = vmatpush1.msra.mxu0 0.0
        %3627 = vmatprep.subr.mxu0 0.0
        %3628 = vmatpush1.msra.mxu0 0.0
        %3629 = vmatprep.subr.mxu0 0.0
        %3630 = vmatpush1.msra.mxu0 0.0
        %3631 = vmatprep.subr.mxu0 0.0
        %3632 = vmatpush1.msra.mxu0 0.0
        %3633 = vmatprep.subr.mxu0 0.0
        %3634 = vmatpush1.msra.mxu0 0.0
        %3635 = vmatprep.subr.mxu0 0.0
        %3636 = vmatpush1.msra.mxu0 0.0
        %3637 = vmatprep.subr.mxu0 0.0
        %3638 = vmatpush1.msra.mxu0 0.0
        %3639 = vmatprep.subr.mxu0 0.0
        %3640 = vmatpush1.msra.mxu0 0.0
        %3641 = vmatprep.subr.mxu0 0.0
        %3642 = vmatpush1.msra.mxu0 0.0
        %3643 = vmatprep.subr.mxu0 0.0
        %3644 = vmatpush1.msra.mxu0 0.0
        %3645 = vmatprep.subr.mxu0 0.0
        %3646 = vmatpush1.msra.mxu0 0.0
        %3647 = vmatprep.subr.mxu0 0.0
        %3648 = vmatpush1.msra.mxu0 0.0
        %3649 = vmatprep.subr.mxu0 0.0
        %3650 = vmatpush1.msra.mxu0 0.0
        %3651 = vmatprep.subr.mxu0 0.0
        %3652 = vmatpush1.msra.mxu0 0.0
        %3653 = vmatprep.subr.mxu0 0.0
        %3654 = vmatpush1.msra.mxu0 0.0
        %3655 = vmatprep.subr.mxu0 0.0
        %3656 = vmatpush1.msra.mxu0 0.0
        %3657 = vmatprep.subr.mxu0 0.0
        %3658 = vmatpush1.msra.mxu0 0.0
        %3659 = vmatprep.subr.mxu0 0.0
        %3660 = vmatpush1.msra.mxu0 0.0
        %3661 = vmatprep.subr.mxu0 0.0
        %3662 = vmatpush1.msra.mxu0 0.0
        %3663 = vmatprep.subr.mxu0 0.0
        %3664 = vmatpush1.msra.mxu0 0.0
        %3665 = vmatprep.mubr.f32.mxu0 0.0
        %3666 = vmatmul.mubr.f32.gmra.mrb[0].mxu0 %v3599
        %v3667 = vpop.f32.mrb[0].mxu0
        %v3668 = vadd.f32 0.0, %v3667
        %v3669 = vpop.f32.mrb[0].mxu0
        %3670 = vdwg.mxu0
        %v3671 = vadd.f32 %v3387, %v3668
        %3672 = vrot.lane.b32.xlu0 %v2821, 104
        %v3673 = vpop.permute.xlu0 %3672
        %3674 = vrot.lane.b32.xlu0 %v2821, 72
        %v3675 = vpop.permute.xlu0 %3674
        %v3676 = vsel %vm1100, %v3673, 0
        %v3678 = vsel %vm1100, %v3675, 0
        %3680 = vmatprep.subr.mxu0 0.0
        %3681 = vmatpush1.xpose.msra.mxu0 %v3678
        %3682 = vmatprep.subr.mxu0 0.0
        %3683 = vmatpush1.xpose.msra.mxu0 0.0
        %3684 = vmatprep.subr.mxu0 0.0
        %3685 = vmatpush1.xpose.msra.mxu0 0.0
        %3686 = vmatprep.subr.mxu0 0.0
        %3687 = vmatpush1.xpose.msra.mxu0 0.0
        %3688 = vmatprep.subr.mxu0 0.0
        %3689 = vmatpush1.xpose.msra.mxu0 0.0
        %3690 = vmatprep.subr.mxu0 0.0
        %3691 = vmatpush1.xpose.msra.mxu0 0.0
        %3692 = vmatprep.subr.mxu0 0.0
        %3693 = vmatpush1.xpose.msra.mxu0 0.0
        %3694 = vmatprep.subr.mxu0 0.0
        %3695 = vmatpush1.xpose.msra.mxu0 0.0
        %3696 = vmatprep.subr.mxu0 0.0
        %3697 = vmatpush1.xpose.msra.mxu0 0.0
        %3698 = vmatprep.subr.mxu0 0.0
        %3699 = vmatpush1.xpose.msra.mxu0 0.0
        %3700 = vmatprep.subr.mxu0 0.0
        %3701 = vmatpush1.xpose.msra.mxu0 0.0
        %3702 = vmatprep.subr.mxu0 0.0
        %3703 = vmatpush1.xpose.msra.mxu0 0.0
        %3704 = vmatprep.subr.mxu0 0.0
        %3705 = vmatpush1.xpose.msra.mxu0 0.0
        %3706 = vmatprep.subr.mxu0 0.0
        %3707 = vmatpush1.xpose.msra.mxu0 0.0
        %3708 = vmatprep.subr.mxu0 0.0
        %3709 = vmatpush1.xpose.msra.mxu0 0.0
        %3710 = vmatprep.subr.mxu0 0.0
        %3711 = vmatpush1.xpose.msra.mxu0 0.0
        %3712 = vmatprep.subr.mxu0 0.0
        %3713 = vmatpush1.xpose.msra.mxu0 0.0
        %3714 = vmatprep.subr.mxu0 0.0
        %3715 = vmatpush1.xpose.msra.mxu0 0.0
        %3716 = vmatprep.subr.mxu0 0.0
        %3717 = vmatpush1.xpose.msra.mxu0 0.0
        %3718 = vmatprep.subr.mxu0 0.0
        %3719 = vmatpush1.xpose.msra.mxu0 0.0
        %3720 = vmatprep.subr.mxu0 0.0
        %3721 = vmatpush1.xpose.msra.mxu0 0.0
        %3722 = vmatprep.subr.mxu0 0.0
        %3723 = vmatpush1.xpose.msra.mxu0 0.0
        %3724 = vmatprep.subr.mxu0 0.0
        %3725 = vmatpush1.xpose.msra.mxu0 0.0
        %3726 = vmatprep.subr.mxu0 0.0
        %3727 = vmatpush1.xpose.msra.mxu0 0.0
        %3728 = vmatprep.subr.mxu0 0.0
        %3729 = vmatpush1.xpose.msra.mxu0 0.0
        %3730 = vmatprep.subr.mxu0 0.0
        %3731 = vmatpush1.xpose.msra.mxu0 0.0
        %3732 = vmatprep.subr.mxu0 0.0
        %3733 = vmatpush1.xpose.msra.mxu0 0.0
        %3734 = vmatprep.subr.mxu0 0.0
        %3735 = vmatpush1.xpose.msra.mxu0 0.0
        %3736 = vmatprep.subr.mxu0 0.0
        %3737 = vmatpush1.xpose.msra.mxu0 0.0
        %3738 = vmatprep.subr.mxu0 0.0
        %3739 = vmatpush1.xpose.msra.mxu0 0.0
        %3740 = vmatprep.subr.mxu0 0.0
        %3741 = vmatpush1.xpose.msra.mxu0 0.0
        %3742 = vmatprep.subr.mxu0 0.0
        %3743 = vmatpush1.xpose.msra.mxu0 0.0
        %3744 = vmatprep.mubr.f32.mxu0 0.0
        %3745 = vmatmul.mubr.f32.gmra.mrb[0].mxu0 %v3676
        %v3746 = vpop.f32.mrb[0].mxu0
        %v3747 = vadd.f32 0.0, %v3746
        %v3748 = vpop.f32.mrb[0].mxu0
        %3749 = vdwg.mxu0
        %v3750 = vadd.f32 %v3747, %v855
        %v3751 = vsel %vm1100, %v3750, -inf
        %3752 = vmax.xlane.f32.xlu0 %v3751
        %v3753 = vpop.xlane.xlu0 %3752
        %v3754 = vmul.f32 %v3747, %v853
        %v3755 = vsel %vm1100, %v3754, 0.0
        %3756 = vadd.xlane.f32.xlu0 %v3755
        %v3757 = vpop.xlane.xlu0 %3756
        %v3758 = vmul.f32 %v3757, 0.125
        %v3759 = vsub.f32 %v3753, %v3758
        %v3760 = vmul.f32 %v852, %v3759
        %v3761 = vsel %vm1100, %v3760, 0.0
        %v3762 = vrot.slane %v3761, 4
        %v3763 = vadd.f32 %v3761, %v3762
        %v3764 = vrot.slane %v3763, 2
        %v3765 = vadd.f32 %v3763, %v3764
        %v3766 = vrot.slane %v3765, 1
        %v3767 = vadd.f32 %v3765, %v3766
        %vm3768 = vcmp.gt.f32.partialorder %v3767, %v3759
        %vm3769 = vcmp.eq.f32.partialorder %v3767, %v3759
        %vm3770 = vmand %vm3769, %vm1436
        %vm3771 = vmor %vm3768, %vm3770
        %v3772 = vsel %vm3771, 1.0, 0.0
        %v3773 = vsel %vm1100, %v3772, 0.0
        %3774 = vadd.xlane.f32.xlu0 %v3773
        %v3775 = vpop.xlane.xlu0 %3774
        %vm3776 = vcmp.lt.f32.partialorder %v3775, 3.0
        %v3777 = vmul.f32 %v3747, 0.35355338
        %v3778 = vsel %vm1100, %v3777, -inf
        %3779 = vmax.xlane.f32.xlu0 %v3778
        %v3780 = vpop.xlane.xlu0 %3779
        %v3781 = vsub.f32 %v3777, %v3780
        %v3782 = vmul.f32 %v3781, 1.442695
        %v3783 = vpow.pop %v3782
        %v3784 = vsel %vm1100, %v3783, 0.0
        %3785 = vadd.xlane.f32.xlu0 %v3784
        %v3786 = vpop.xlane.xlu0 %3785
        %v3787 = vrcp.pop %v3786
        %v3788 = vmul.f32 %v3783, %v3787
        %3789 = vrot.lane.b32.xlu0 %v2821, 40
        %v3790 = vpop.permute.xlu0 %3789
        %v3793 = vsel %vm1100, %v3788, 0
        %3795 = vmatprep.subr.mxu0 0.0
        %3796 = vmatpush1.msra.mxu0 %v3790
        %3797 = vmatprep.subr.mxu0 0.0
        %3798 = vmatpush1.msra.mxu0 0.0
        %3799 = vmatprep.subr.mxu0 0.0
        %3800 = vmatpush1.msra.mxu0 0.0
        %3801 = vmatprep.subr.mxu0 0.0
        %3802 = vmatpush1.msra.mxu0 0.0
        %3803 = vmatprep.subr.mxu0 0.0
        %3804 = vmatpush1.msra.mxu0 0.0
        %3805 = vmatprep.subr.mxu0 0.0
        %3806 = vmatpush1.msra.mxu0 0.0
        %3807 = vmatprep.subr.mxu0 0.0
        %3808 = vmatpush1.msra.mxu0 0.0
        %3809 = vmatprep.subr.mxu0 0.0
        %3810 = vmatpush1.msra.mxu0 0.0
        %3811 = vmatprep.subr.mxu0 0.0
        %3812 = vmatpush1.msra.mxu0 0.0
        %3813 = vmatprep.subr.mxu0 0.0
        %3814 = vmatpush1.msra.mxu0 0.0
        %3815 = vmatprep.subr.mxu0 0.0
        %3816 = vmatpush1.msra.mxu0 0.0
        %3817 = vmatprep.subr.mxu0 0.0
        %3818 = vmatpush1.msra.mxu0 0.0
        %3819 = vmatprep.subr.mxu0 0.0
        %3820 = vmatpush1.msra.mxu0 0.0
        %3821 = vmatprep.subr.mxu0 0.0
        %3822 = vmatpush1.msra.mxu0 0.0
        %3823 = vmatprep.subr.mxu0 0.0
        %3824 = vmatpush1.msra.mxu0 0.0
        %3825 = vmatprep.subr.mxu0 0.0
        %3826 = vmatpush1.msra.mxu0 0.0
        %3827 = vmatprep.subr.mxu0 0.0
        %3828 = vmatpush1.msra.mxu0 0.0
        %3829 = vmatprep.subr.mxu0 0.0
        %3830 = vmatpush1.msra.mxu0 0.0
        %3831 = vmatprep.subr.mxu0 0.0
        %3832 = vmatpush1.msra.mxu0 0.0
        %3833 = vmatprep.subr.mxu0 0.0
        %3834 = vmatpush1.msra.mxu0 0.0
        %3835 = vmatprep.subr.mxu0 0.0
        %3836 = vmatpush1.msra.mxu0 0.0
        %3837 = vmatprep.subr.mxu0 0.0
        %3838 = vmatpush1.msra.mxu0 0.0
        %3839 = vmatprep.subr.mxu0 0.0
        %3840 = vmatpush1.msra.mxu0 0.0
        %3841 = vmatprep.subr.mxu0 0.0
        %3842 = vmatpush1.msra.mxu0 0.0
        %3843 = vmatprep.subr.mxu0 0.0
        %3844 = vmatpush1.msra.mxu0 0.0
        %3845 = vmatprep.subr.mxu0 0.0
        %3846 = vmatpush1.msra.mxu0 0.0
        %3847 = vmatprep.subr.mxu0 0.0
        %3848 = vmatpush1.msra.mxu0 0.0
        %3849 = vmatprep.subr.mxu0 0.0
        %3850 = vmatpush1.msra.mxu0 0.0
        %3851 = vmatprep.subr.mxu0 0.0
        %3852 = vmatpush1.msra.mxu0 0.0
        %3853 = vmatprep.subr.mxu0 0.0
        %3854 = vmatpush1.msra.mxu0 0.0
        %3855 = vmatprep.subr.mxu0 0.0
        %3856 = vmatpush1.msra.mxu0 0.0
        %3857 = vmatprep.subr.mxu0 0.0
        %3858 = vmatpush1.msra.mxu0 0.0
        %3859 = vmatprep.mubr.f32.mxu0 0.0
        %3860 = vmatmul.mubr.f32.gmra.mrb[0].mxu0 %v3793
        %v3861 = vpop.f32.mrb[0].mxu0
        %v3862 = vadd.f32 0.0, %v3861
        %v3863 = vpop.f32.mrb[0].mxu0
        %3864 = vdwg.mxu0
        %v3865 = vsel %vm2379, %v2821, 0.0
        %v3866 = vrot.slane %v3865, 4
        %v3867 = vadd.f32 %v3865, %v3866
        %v3868 = vrot.slane %v3867, 2
        %v3869 = vadd.f32 %v3867, %v3868
        %v3870 = vrot.slane %v3869, 1
        %v3871 = vadd.f32 %v3869, %v3870
        %v3872 = vmul.f32 %v3871, 0.125
        %v3873 = vsel %vm3776, 1, 0
        %vm3874 = vcmp.eq.s32.totalorder %v3873, 1
        %3876 = vrot.lane.b32.xlu0 %v3872, 40
        %v3877 = vpop.permute.xlu0 %3876
        %v3879 = vsel %vm3874, %v3862, %v3877
        %v3881 = vsel %vm1100, %v3879, 0
        %3883 = vmatprep.subr.mxu0 0.0
        %3884 = vmatpush1.msra.mxu0 %v2828
        %3885 = vmatprep.subr.mxu0 0.0
        %3886 = vmatpush1.msra.mxu0 0.0
        %3887 = vmatprep.subr.mxu0 0.0
        %3888 = vmatpush1.msra.mxu0 0.0
        %3889 = vmatprep.subr.mxu0 0.0
        %3890 = vmatpush1.msra.mxu0 0.0
        %3891 = vmatprep.subr.mxu0 0.0
        %3892 = vmatpush1.msra.mxu0 0.0
        %3893 = vmatprep.subr.mxu0 0.0
        %3894 = vmatpush1.msra.mxu0 0.0
        %3895 = vmatprep.subr.mxu0 0.0
        %3896 = vmatpush1.msra.mxu0 0.0
        %3897 = vmatprep.subr.mxu0 0.0
        %3898 = vmatpush1.msra.mxu0 0.0
        %3899 = vmatprep.subr.mxu0 0.0
        %3900 = vmatpush1.msra.mxu0 0.0
        %3901 = vmatprep.subr.mxu0 0.0
        %3902 = vmatpush1.msra.mxu0 0.0
        %3903 = vmatprep.subr.mxu0 0.0
        %3904 = vmatpush1.msra.mxu0 0.0
        %3905 = vmatprep.subr.mxu0 0.0
        %3906 = vmatpush1.msra.mxu0 0.0
        %3907 = vmatprep.subr.mxu0 0.0
        %3908 = vmatpush1.msra.mxu0 0.0
        %3909 = vmatprep.subr.mxu0 0.0
        %3910 = vmatpush1.msra.mxu0 0.0
        %3911 = vmatprep.subr.mxu0 0.0
        %3912 = vmatpush1.msra.mxu0 0.0
        %3913 = vmatprep.subr.mxu0 0.0
        %3914 = vmatpush1.msra.mxu0 0.0
        %3915 = vmatprep.subr.mxu0 0.0
        %3916 = vmatpush1.msra.mxu0 0.0
        %3917 = vmatprep.subr.mxu0 0.0
        %3918 = vmatpush1.msra.mxu0 0.0
        %3919 = vmatprep.subr.mxu0 0.0
        %3920 = vmatpush1.msra.mxu0 0.0
        %3921 = vmatprep.subr.mxu0 0.0
        %3922 = vmatpush1.msra.mxu0 0.0
        %3923 = vmatprep.subr.mxu0 0.0
        %3924 = vmatpush1.msra.mxu0 0.0
        %3925 = vmatprep.subr.mxu0 0.0
        %3926 = vmatpush1.msra.mxu0 0.0
        %3927 = vmatprep.subr.mxu0 0.0
        %3928 = vmatpush1.msra.mxu0 0.0
        %3929 = vmatprep.subr.mxu0 0.0
        %3930 = vmatpush1.msra.mxu0 0.0
        %3931 = vmatprep.subr.mxu0 0.0
        %3932 = vmatpush1.msra.mxu0 0.0
        %3933 = vmatprep.subr.mxu0 0.0
        %3934 = vmatpush1.msra.mxu0 0.0
        %3935 = vmatprep.subr.mxu0 0.0
        %3936 = vmatpush1.msra.mxu0 0.0
        %3937 = vmatprep.subr.mxu0 0.0
        %3938 = vmatpush1.msra.mxu0 0.0
        %3939 = vmatprep.subr.mxu0 0.0
        %3940 = vmatpush1.msra.mxu0 0.0
        %3941 = vmatprep.subr.mxu0 0.0
        %3942 = vmatpush1.msra.mxu0 0.0
        %3943 = vmatprep.subr.mxu0 0.0
        %3944 = vmatpush1.msra.mxu0 0.0
        %3945 = vmatprep.subr.mxu0 0.0
        %3946 = vmatpush1.msra.mxu0 0.0
        %3947 = vmatprep.mubr.f32.mxu0 0.0
        %3948 = vmatmul.mubr.f32.gmra.mrb[0].mxu0 %v3881
        %v3949 = vpop.f32.mrb[0].mxu0
        %v3950 = vadd.f32 0.0, %v3949
        %v3951 = vpop.f32.mrb[0].mxu0
        %3952 = vdwg.mxu0
        %v3953 = vadd.f32 %v3671, %v3950
        %s3954 = scalar_lea.vmem [#allocation11], 1
        %v3955 = vld [vmem:[%s3954] sm:$0x1]
        %v3957 = vlaneseq
        %v3958 = vshrl.u32 %v3957, 7
        %v3959 = vsub.s32 0, %v3958
        %v3960 = vrot.slane %v3955, %v3959
        %v3962 = vadd.f32 %v3953, %v3960
        %v3963 = vadd.f32 %v2737, %v3962
        %s3964 = scalar_lea.vmem [#allocation13], 1
        %v3965 = vld [vmem:[%s3964] sm:$0x1]
        %s3966 = scalar_lea.vmem [#allocation14], 1
        %v3967 = vld [vmem:[%s3966] sm:$0x1]
        %v3968 = vsel %vm1261, %v3963, 0.0
        %3969 = vadd.xlane.f32.xlu0 %v3968
        %v3970 = vpop.xlane.xlu0 %3969
        %v3971 = vmul.f32 %v3970, %v2483
        %v3972 = vsub.f32 %v3963, %v3971
        %v3973 = vmul.f32 %v3972, %v3972
        %v3974 = vsel %vm1261, %v3973, 0.0
        %3975 = vadd.xlane.f32.xlu0 %v3974
        %v3976 = vpop.xlane.xlu0 %3975
        %v3977 = vmul.f32 %v3976, %v2483
        %v3978 = vadd.f32 %v3977, 1e-05
        %v3979 = vrsqrt.pop %v3978
        %v3980 = vmul.f32 %v3972, %v3979
        %v3982 = vlaneseq
        %v3983 = vshrl.u32 %v3982, 7
        %v3984 = vsub.s32 0, %v3983
        %v3985 = vrot.slane %v3965, %v3984
        %v3987 = vmul.f32 %v3980, %v3985
        %v3989 = vlaneseq
        %v3990 = vshrl.u32 %v3989, 7
        %v3991 = vsub.s32 0, %v3990
        %v3992 = vrot.slane %v3967, %v3991
        %v3994 = vadd.f32 %v3987, %v3992
        %s3995 = scalar_lea.vmem [#allocation16], 32
        %v3996 = vld [vmem:[%s3995] sm:$0xff]
        %v3997 = vld [vmem:[%s3995 + $0x8] sm:$0xff]
        %v3998 = vld [vmem:[%s3995 + $0x10] sm:$0xff]
        %v3999 = vld [vmem:[%s3995 + $0x18] sm:$0xff]
        %s4000 = scalar_lea.vmem [#allocation17], 1
        %v4001 = vld [vmem:[%s4000] sm:$0x1]
        %v4003 = vlaneseq
        %v4004 = vshrl.u32 %v4003, 7
        %v4005 = vsub.s32 0, %v4004
        %v4006 = vrot.slane %v4001, %v4005
        %v4009 = vsel %vm1261, %v3994, 0
        %4011 = vmatprep.subr.mxu0 0.0
        %4012 = vmatpush1.msra.mxu0 %v3996
        %4013 = vmatprep.subr.mxu0 0.0
        %4014 = vmatpush1.msra.mxu0 %v3997
        %4015 = vmatprep.subr.mxu0 0.0
        %4016 = vmatpush1.msra.mxu0 %v3998
        %4017 = vmatprep.subr.mxu0 0.0
        %4018 = vmatpush1.msra.mxu0 %v3999
        %4019 = vmatprep.subr.mxu0 0.0
        %4020 = vmatpush1.msra.mxu0 0.0
        %4021 = vmatprep.subr.mxu0 0.0
        %4022 = vmatpush1.msra.mxu0 0.0
        %4023 = vmatprep.subr.mxu0 0.0
        %4024 = vmatpush1.msra.mxu0 0.0
        %4025 = vmatprep.subr.mxu0 0.0
        %4026 = vmatpush1.msra.mxu0 0.0
        %4027 = vmatprep.subr.mxu0 0.0
        %4028 = vmatpush1.msra.mxu0 0.0
        %4029 = vmatprep.subr.mxu0 0.0
        %4030 = vmatpush1.msra.mxu0 0.0
        %4031 = vmatprep.subr.mxu0 0.0
        %4032 = vmatpush1.msra.mxu0 0.0
        %4033 = vmatprep.subr.mxu0 0.0
        %4034 = vmatpush1.msra.mxu0 0.0
        %4035 = vmatprep.subr.mxu0 0.0
        %4036 = vmatpush1.msra.mxu0 0.0
        %4037 = vmatprep.subr.mxu0 0.0
        %4038 = vmatpush1.msra.mxu0 0.0
        %4039 = vmatprep.subr.mxu0 0.0
        %4040 = vmatpush1.msra.mxu0 0.0
        %4041 = vmatprep.subr.mxu0 0.0
        %4042 = vmatpush1.msra.mxu0 0.0
        %4043 = vmatprep.subr.mxu0 0.0
        %4044 = vmatpush1.msra.mxu0 0.0
        %4045 = vmatprep.subr.mxu0 0.0
        %4046 = vmatpush1.msra.mxu0 0.0
        %4047 = vmatprep.subr.mxu0 0.0
        %4048 = vmatpush1.msra.mxu0 0.0
        %4049 = vmatprep.subr.mxu0 0.0
        %4050 = vmatpush1.msra.mxu0 0.0
        %4051 = vmatprep.subr.mxu0 0.0
        %4052 = vmatpush1.msra.mxu0 0.0
        %4053 = vmatprep.subr.mxu0 0.0
        %4054 = vmatpush1.msra.mxu0 0.0
        %4055 = vmatprep.subr.mxu0 0.0
        %4056 = vmatpush1.msra.mxu0 0.0
        %4057 = vmatprep.subr.mxu0 0.0
        %4058 = vmatpush1.msra.mxu0 0.0
        %4059 = vmatprep.subr.mxu0 0.0
        %4060 = vmatpush1.msra.mxu0 0.0
        %4061 = vmatprep.subr.mxu0 0.0
        %4062 = vmatpush1.msra.mxu0 0.0
        %4063 = vmatprep.subr.mxu0 0.0
        %4064 = vmatpush1.msra.mxu0 0.0
        %4065 = vmatprep.subr.mxu0 0.0
        %4066 = vmatpush1.msra.mxu0 0.0
        %4067 = vmatprep.subr.mxu0 0.0
        %4068 = vmatpush1.msra.mxu0 0.0
        %4069 = vmatprep.subr.mxu0 0.0
        %4070 = vmatpush1.msra.mxu0 0.0
        %4071 = vmatprep.subr.mxu0 0.0
        %4072 = vmatpush1.msra.mxu0 0.0
        %4073 = vmatprep.subr.mxu0 0.0
        %4074 = vmatpush1.msra.mxu0 0.0
        %4075 = vmatprep.mubr.f32.mxu0 0.0
        %4076 = vmatmul.mubr.f32.gmra.mrb[0].mxu0 %v4009
        %v4077 = vpop.f32.mrb[0].mxu0
        %v4078 = vadd.f32 %v4006, %v4077
        %v4079 = vpop.f32.mrb[0].mxu0
        %4080 = vdwg.mxu0
        %v4081 = vmul.f32 %v4078, 0.70710677
        %v4082 = vand.u32 2147483647, %v4081
        %v4083 = vmul.f32 %v4082, 0.3275911
        %v4084 = vadd.f32 %v4083, 1.0
        %v4085 = vrcp.pop %v4084
        %v4086 = vmul.f32 1.0, %v4085
        %v4087 = vmul.f32 %v4086, 1.0614054
        %v4088 = vadd.f32 %v4087, -1.4531521
        %v4089 = vmul.f32 %v4086, %v4088
        %v4090 = vadd.f32 %v4089, 1.4214138
        %v4091 = vmul.f32 %v4086, %v4090
        %v4092 = vadd.f32 %v4091, -0.28449672
        %v4093 = vmul.f32 %v4086, %v4092
        %v4094 = vadd.f32 %v4093, 0.2548296
        %v4095 = vmul.f32 %v4086, %v4094
        %v4096 = vsub.f32 0.0, %v4082
        %v4097 = vmul.f32 %v4096, %v4082
        %v4098 = vmul.f32 %v4097, 1.442695
        %v4099 = vpow.pop %v4098
        %v4100 = vmul.f32 %v4095, %v4099
        %v4101 = vsub.f32 1.0, %v4100
        %vm4102 = vcmp.lt.f32.partialorder %v4081, 0.0
        %v4103 = vsub.f32 0.0, %v4101
        %v4104 = vsel %vm4102, %v4103, %v4101
        %v4105 = vmul.f32 %v4078, 0.5
        %v4106 = vadd.f32 %v4104, 1.0
        %v4107 = vmul.f32 %v4105, %v4106
        %s4108 = scalar_lea.vmem %s12, 64
        %v4109 = vld [vmem:[%s4108] sm:$0xff]
        %v4110 = vld [vmem:[%s4108 + $0x8] sm:$0xff]
        %v4111 = vld [vmem:[%s4108 + $0x10] sm:$0xff]
        %v4112 = vld [vmem:[%s4108 + $0x18] sm:$0xff]
        %v4113 = vld [vmem:[%s4108 + $0x20] sm:$0xff]
        %v4114 = vld [vmem:[%s4108 + $0x28] sm:$0xff]
        %v4115 = vld [vmem:[%s4108 + $0x30] sm:$0xff]
        %v4116 = vld [vmem:[%s4108 + $0x38] sm:$0xff]
        %s4117 = scalar_lea.vmem [#allocation19], 1
        %v4118 = vld [vmem:[%s4117] sm:$0x1]
        %v4120 = vlaneseq
        %v4121 = vshrl.u32 %v4120, 7
        %v4122 = vsub.s32 0, %v4121
        %v4123 = vrot.slane %v4118, %v4122
        %v4126 = vsel %vm2634, %v4107, 0
        %4128 = vmatprep.subr.mxu0 0.0
        %4129 = vmatpush1.msra.mxu0 %v4109
        %4130 = vmatprep.subr.mxu0 0.0
        %4131 = vmatpush1.msra.mxu0 %v4110
        %4132 = vmatprep.subr.mxu0 0.0
        %4133 = vmatpush1.msra.mxu0 %v4111
        %4134 = vmatprep.subr.mxu0 0.0
        %4135 = vmatpush1.msra.mxu0 %v4112
        %4136 = vmatprep.subr.mxu0 0.0
        %4137 = vmatpush1.msra.mxu0 %v4113
        %4138 = vmatprep.subr.mxu0 0.0
        %4139 = vmatpush1.msra.mxu0 %v4114
        %4140 = vmatprep.subr.mxu0 0.0
        %4141 = vmatpush1.msra.mxu0 %v4115
        %4142 = vmatprep.subr.mxu0 0.0
        %4143 = vmatpush1.msra.mxu0 %v4116
        %4144 = vmatprep.subr.mxu0 0.0
        %4145 = vmatpush1.msra.mxu0 0.0
        %4146 = vmatprep.subr.mxu0 0.0
        %4147 = vmatpush1.msra.mxu0 0.0
        %4148 = vmatprep.subr.mxu0 0.0
        %4149 = vmatpush1.msra.mxu0 0.0
        %4150 = vmatprep.subr.mxu0 0.0
        %4151 = vmatpush1.msra.mxu0 0.0
        %4152 = vmatprep.subr.mxu0 0.0
        %4153 = vmatpush1.msra.mxu0 0.0
        %4154 = vmatprep.subr.mxu0 0.0
        %4155 = vmatpush1.msra.mxu0 0.0
        %4156 = vmatprep.subr.mxu0 0.0
        %4157 = vmatpush1.msra.mxu0 0.0
        %4158 = vmatprep.subr.mxu0 0.0
        %4159 = vmatpush1.msra.mxu0 0.0
        %4160 = vmatprep.subr.mxu0 0.0
        %4161 = vmatpush1.msra.mxu0 0.0
        %4162 = vmatprep.subr.mxu0 0.0
        %4163 = vmatpush1.msra.mxu0 0.0
        %4164 = vmatprep.subr.mxu0 0.0
        %4165 = vmatpush1.msra.mxu0 0.0
        %4166 = vmatprep.subr.mxu0 0.0
        %4167 = vmatpush1.msra.mxu0 0.0
        %4168 = vmatprep.subr.mxu0 0.0
        %4169 = vmatpush1.msra.mxu0 0.0
        %4170 = vmatprep.subr.mxu0 0.0
        %4171 = vmatpush1.msra.mxu0 0.0
        %4172 = vmatprep.subr.mxu0 0.0
        %4173 = vmatpush1.msra.mxu0 0.0
        %4174 = vmatprep.subr.mxu0 0.0
        %4175 = vmatpush1.msra.mxu0 0.0
        %4176 = vmatprep.subr.mxu0 0.0
        %4177 = vmatpush1.msra.mxu0 0.0
        %4178 = vmatprep.subr.mxu0 0.0
        %4179 = vmatpush1.msra.mxu0 0.0
        %4180 = vmatprep.subr.mxu0 0.0
        %4181 = vmatpush1.msra.mxu0 0.0
        %4182 = vmatprep.subr.mxu0 0.0
        %4183 = vmatpush1.msra.mxu0 0.0
        %4184 = vmatprep.subr.mxu0 0.0
        %4185 = vmatpush1.msra.mxu0 0.0
        %4186 = vmatprep.subr.mxu0 0.0
        %4187 = vmatpush1.msra.mxu0 0.0
        %4188 = vmatprep.subr.mxu0 0.0
        %4189 = vmatpush1.msra.mxu0 0.0
        %4190 = vmatprep.subr.mxu0 0.0
        %4191 = vmatpush1.msra.mxu0 0.0
        %4192 = vmatprep.mubr.f32.mxu0 0.0
        %4193 = vmatmul.mubr.f32.gmra.mrb[0].mxu0 %v4126
        %v4194 = vpop.f32.mrb[0].mxu0
        %v4195 = vadd.f32 %v4123, %v4194
        %v4196 = vpop.f32.mrb[0].mxu0
        %4197 = vdwg.mxu0
        %v4198 = vadd.f32 %v3994, %v4195
        %s4199 = scalar_lea.vmem [#allocation20], 1
        %v4200 = vld [vmem:[%s4199] sm:$0x1]
        %s4201 = scalar_lea.vmem [#allocation22], 1
        %v4202 = vld [vmem:[%s4201] sm:$0x1]
        %v4203 = vsel %vm1261, %v4198, 0.0
        %4204 = vadd.xlane.f32.xlu0 %v4203
        %v4205 = vpop.xlane.xlu0 %4204
        %v4206 = vmul.f32 %v4205, %v2483
        %v4207 = vsub.f32 %v4198, %v4206
        %v4208 = vmul.f32 %v4207, %v4207
        %v4209 = vsel %vm1261, %v4208, 0.0
        %4210 = vadd.xlane.f32.xlu0 %v4209
        %v4211 = vpop.xlane.xlu0 %4210
        %v4212 = vmul.f32 %v4211, %v2483
        %v4213 = vadd.f32 %v4212, 1e-05
        %v4214 = vrsqrt.pop %v4213
        %v4215 = vmul.f32 %v4207, %v4214
        %v4217 = vlaneseq
        %v4218 = vshrl.u32 %v4217, 7
        %v4219 = vsub.s32 0, %v4218
        %v4220 = vrot.slane %v4200, %v4219
        %v4222 = vmul.f32 %v4215, %v4220
        %v4224 = vlaneseq
        %v4225 = vshrl.u32 %v4224, 7
        %v4226 = vsub.s32 0, %v4225
        %v4227 = vrot.slane %v4202, %v4226
        %v4229 = vadd.f32 %v4222, %v4227
        %v4230 = vld [vmem:[#allocation23] sm:$0x1]
        %v4231 = vld [vmem:[#allocation25] sm:$0x1]
        %v4232 = vsel %vm1261, %v4229, 0.0
        %4233 = vadd.xlane.f32.xlu0 %v4232
        %v4234 = vpop.xlane.xlu0 %4233
        %v4235 = vmul.f32 %v4234, %v2483
        %v4236 = vsub.f32 %v4229, %v4235
        %v4237 = vmul.f32 %v4236, %v4236
        %v4238 = vsel %vm1261, %v4237, 0.0
        %4239 = vadd.xlane.f32.xlu0 %v4238
        %v4240 = vpop.xlane.xlu0 %4239
        %v4241 = vmul.f32 %v4240, %v2483
        %v4242 = vadd.f32 %v4241, 1e-05
        %v4243 = vrsqrt.pop %v4242
        %v4244 = vmul.f32 %v4236, %v4243
        %v4246 = vlaneseq
        %v4247 = vshrl.u32 %v4246, 7
        %v4248 = vsub.s32 0, %v4247
        %v4249 = vrot.slane %v4230, %v4248
        %v4251 = vmul.f32 %v4244, %v4249
        %v4253 = vlaneseq
        %v4254 = vshrl.u32 %v4253, 7
        %v4255 = vsub.s32 0, %v4254
        %v4256 = vrot.slane %v4231, %v4255
        %v4258 = vadd.f32 %v4251, %v4256
        %v4259 = vmul.f32 %v4258, 0.70710677
        %v4260 = vand.u32 2147483647, %v4259
        %v4261 = vmul.f32 %v4260, 0.3275911
        %v4262 = vadd.f32 %v4261, 1.0
        %v4263 = vrcp.pop %v4262
        %v4264 = vmul.f32 1.0, %v4263
        %v4265 = vmul.f32 %v4264, 1.0614054
        %v4266 = vadd.f32 %v4265, -1.4531521
        %v4267 = vmul.f32 %v4264, %v4266
        %v4268 = vadd.f32 %v4267, 1.4214138
        %v4269 = vmul.f32 %v4264, %v4268
        %v4270 = vadd.f32 %v4269, -0.28449672
        %v4271 = vmul.f32 %v4264, %v4270
        %v4272 = vadd.f32 %v4271, 0.2548296
        %v4273 = vmul.f32 %v4264, %v4272
        %v4274 = vsub.f32 0.0, %v4260
        %v4275 = vmul.f32 %v4274, %v4260
        %v4276 = vmul.f32 %v4275, 1.442695
        %v4277 = vpow.pop %v4276
        %v4278 = vmul.f32 %v4273, %v4277
        %v4279 = vsub.f32 1.0, %v4278
        %vm4280 = vcmp.lt.f32.partialorder %v4259, 0.0
        %v4281 = vsub.f32 0.0, %v4279
        %v4282 = vsel %vm4280, %v4281, %v4279
        %v4283 = vmul.f32 %v4258, 0.5
        %v4284 = vadd.f32 %v4282, 1.0
        %v4285 = vmul.f32 %v4283, %v4284
        %v4286 = vld [vmem:[#allocation26] sm:$0x1]
        %v4287 = vld [vmem:[%s18] sm:$0xff]
        %v4288 = vld [vmem:[%s18 + $0x8] sm:$0xff]
        %v4289 = vld [vmem:[%s18 + $0x10] sm:$0xff]
        %v4290 = vld [vmem:[%s18 + $0x18] sm:$0xff]
        %v4292 = vsel %vm1261, %v4285, 0
        %4294 = vmatprep.subr.mxu0 0.0
        %4295 = vmatpush1.msra.mxu0 %v4287
        %4296 = vmatprep.subr.mxu0 0.0
        %4297 = vmatpush1.msra.mxu0 %v4288
        %4298 = vmatprep.subr.mxu0 0.0
        %4299 = vmatpush1.msra.mxu0 %v4289
        %4300 = vmatprep.subr.mxu0 0.0
        %4301 = vmatpush1.msra.mxu0 %v4290
        %4302 = vmatprep.subr.mxu0 0.0
        %4303 = vmatpush1.msra.mxu0 0.0
        %4304 = vmatprep.subr.mxu0 0.0
        %4305 = vmatpush1.msra.mxu0 0.0
        %4306 = vmatprep.subr.mxu0 0.0
        %4307 = vmatpush1.msra.mxu0 0.0
        %4308 = vmatprep.subr.mxu0 0.0
        %4309 = vmatpush1.msra.mxu0 0.0
        %4310 = vmatprep.subr.mxu0 0.0
        %4311 = vmatpush1.msra.mxu0 0.0
        %4312 = vmatprep.subr.mxu0 0.0
        %4313 = vmatpush1.msra.mxu0 0.0
        %4314 = vmatprep.subr.mxu0 0.0
        %4315 = vmatpush1.msra.mxu0 0.0
        %4316 = vmatprep.subr.mxu0 0.0
        %4317 = vmatpush1.msra.mxu0 0.0
        %4318 = vmatprep.subr.mxu0 0.0
        %4319 = vmatpush1.msra.mxu0 0.0
        %4320 = vmatprep.subr.mxu0 0.0
        %4321 = vmatpush1.msra.mxu0 0.0
        %4322 = vmatprep.subr.mxu0 0.0
        %4323 = vmatpush1.msra.mxu0 0.0
        %4324 = vmatprep.subr.mxu0 0.0
        %4325 = vmatpush1.msra.mxu0 0.0
        %4326 = vmatprep.subr.mxu0 0.0
        %4327 = vmatpush1.msra.mxu0 0.0
        %4328 = vmatprep.subr.mxu0 0.0
        %4329 = vmatpush1.msra.mxu0 0.0
        %4330 = vmatprep.subr.mxu0 0.0
        %4331 = vmatpush1.msra.mxu0 0.0
        %4332 = vmatprep.subr.mxu0 0.0
        %4333 = vmatpush1.msra.mxu0 0.0
        %4334 = vmatprep.subr.mxu0 0.0
        %4335 = vmatpush1.msra.mxu0 0.0
        %4336 = vmatprep.subr.mxu0 0.0
        %4337 = vmatpush1.msra.mxu0 0.0
        %4338 = vmatprep.subr.mxu0 0.0
        %4339 = vmatpush1.msra.mxu0 0.0
        %4340 = vmatprep.subr.mxu0 0.0
        %4341 = vmatpush1.msra.mxu0 0.0
        %4342 = vmatprep.subr.mxu0 0.0
        %4343 = vmatpush1.msra.mxu0 0.0
        %4344 = vmatprep.subr.mxu0 0.0
        %4345 = vmatpush1.msra.mxu0 0.0
        %4346 = vmatprep.subr.mxu0 0.0
        %4347 = vmatpush1.msra.mxu0 0.0
        %4348 = vmatprep.subr.mxu0 0.0
        %4349 = vmatpush1.msra.mxu0 0.0
        %4350 = vmatprep.subr.mxu0 0.0
        %4351 = vmatpush1.msra.mxu0 0.0
        %4352 = vmatprep.subr.mxu0 0.0
        %4353 = vmatpush1.msra.mxu0 0.0
        %4354 = vmatprep.subr.mxu0 0.0
        %4355 = vmatpush1.msra.mxu0 0.0
        %4356 = vmatprep.subr.mxu0 0.0
        %4357 = vmatpush1.msra.mxu0 0.0
        %4358 = vmatprep.mubr.f32.mxu0 0.0
        %4359 = vmatmul.mubr.f32.gmra.mrb[0].mxu0 %v4292
        %v4360 = vpop.f32.mrb[0].mxu0
        %v4361 = vadd.f32 0.0, %v4360
        %v4362 = vpop.f32.mrb[0].mxu0
        %4363 = vdwg.mxu0
        %v4364 = vadd.f32 %v4286, %v4361
        %s4365 = scalar_lea.vmem %s18, 32
        %v4366 = vld [vmem:[%s4365] sm:$0xff]
        %v4367 = vld [vmem:[%s4365 + $0x8] sm:$0xff]
        %v4368 = vld [vmem:[%s4365 + $0x10] sm:$0xff]
        %v4369 = vld [vmem:[%s4365 + $0x18] sm:$0xff]
        %v4370 = vrot.slane %v4285, 1
        %v4371 = vsel %vm1261, %v4370, 0
        %4373 = vmatprep.subr.mxu0 0.0
        %4374 = vmatpush1.msra.mxu0 %v4366
        %4375 = vmatprep.subr.mxu0 0.0
        %4376 = vmatpush1.msra.mxu0 %v4367
        %4377 = vmatprep.subr.mxu0 0.0
        %4378 = vmatpush1.msra.mxu0 %v4368
        %4379 = vmatprep.subr.mxu0 0.0
        %4380 = vmatpush1.msra.mxu0 %v4369
        %4381 = vmatprep.subr.mxu0 0.0
        %4382 = vmatpush1.msra.mxu0 0.0
        %4383 = vmatprep.subr.mxu0 0.0
        %4384 = vmatpush1.msra.mxu0 0.0
        %4385 = vmatprep.subr.mxu0 0.0
        %4386 = vmatpush1.msra.mxu0 0.0
        %4387 = vmatprep.subr.mxu0 0.0
        %4388 = vmatpush1.msra.mxu0 0.0
        %4389 = vmatprep.subr.mxu0 0.0
        %4390 = vmatpush1.msra.mxu0 0.0
        %4391 = vmatprep.subr.mxu0 0.0
        %4392 = vmatpush1.msra.mxu0 0.0
        %4393 = vmatprep.subr.mxu0 0.0
        %4394 = vmatpush1.msra.mxu0 0.0
        %4395 = vmatprep.subr.mxu0 0.0
        %4396 = vmatpush1.msra.mxu0 0.0
        %4397 = vmatprep.subr.mxu0 0.0
        %4398 = vmatpush1.msra.mxu0 0.0
        %4399 = vmatprep.subr.mxu0 0.0
        %4400 = vmatpush1.msra.mxu0 0.0
        %4401 = vmatprep.subr.mxu0 0.0
        %4402 = vmatpush1.msra.mxu0 0.0
        %4403 = vmatprep.subr.mxu0 0.0
        %4404 = vmatpush1.msra.mxu0 0.0
        %4405 = vmatprep.subr.mxu0 0.0
        %4406 = vmatpush1.msra.mxu0 0.0
        %4407 = vmatprep.subr.mxu0 0.0
        %4408 = vmatpush1.msra.mxu0 0.0
        %4409 = vmatprep.subr.mxu0 0.0
        %4410 = vmatpush1.msra.mxu0 0.0
        %4411 = vmatprep.subr.mxu0 0.0
        %4412 = vmatpush1.msra.mxu0 0.0
        %4413 = vmatprep.subr.mxu0 0.0
        %4414 = vmatpush1.msra.mxu0 0.0
        %4415 = vmatprep.subr.mxu0 0.0
        %4416 = vmatpush1.msra.mxu0 0.0
        %4417 = vmatprep.subr.mxu0 0.0
        %4418 = vmatpush1.msra.mxu0 0.0
        %4419 = vmatprep.subr.mxu0 0.0
        %4420 = vmatpush1.msra.mxu0 0.0
        %4421 = vmatprep.subr.mxu0 0.0
        %4422 = vmatpush1.msra.mxu0 0.0
        %4423 = vmatprep.subr.mxu0 0.0
        %4424 = vmatpush1.msra.mxu0 0.0
        %4425 = vmatprep.subr.mxu0 0.0
        %4426 = vmatpush1.msra.mxu0 0.0
        %4427 = vmatprep.subr.mxu0 0.0
        %4428 = vmatpush1.msra.mxu0 0.0
        %4429 = vmatprep.subr.mxu0 0.0
        %4430 = vmatpush1.msra.mxu0 0.0
        %4431 = vmatprep.subr.mxu0 0.0
        %4432 = vmatpush1.msra.mxu0 0.0
        %4433 = vmatprep.subr.mxu0 0.0
        %4434 = vmatpush1.msra.mxu0 0.0
        %4435 = vmatprep.subr.mxu0 0.0
        %4436 = vmatpush1.msra.mxu0 0.0
        %4437 = vmatprep.mubr.f32.mxu0 0.0
        %4438 = vmatmul.mubr.f32.gmra.mrb[0].mxu0 %v4371
        %v4439 = vpop.f32.mrb[0].mxu0
        %v4440 = vadd.f32 0.0, %v4439
        %v4441 = vpop.f32.mrb[0].mxu0
        %4442 = vdwg.mxu0
        %v4443 = vadd.f32 %v4364, %v4440
        %s4444 = scalar_lea.vmem %s18, 64
        %v4445 = vld [vmem:[%s4444] sm:$0xff]
        %v4446 = vld [vmem:[%s4444 + $0x8] sm:$0xff]
        %v4447 = vld [vmem:[%s4444 + $0x10] sm:$0xff]
        %v4448 = vld [vmem:[%s4444 + $0x18] sm:$0xff]
        %v4449 = vrot.slane %v4285, 2
        %v4450 = vsel %vm1261, %v4449, 0
        %4452 = vmatprep.subr.mxu0 0.0
        %4453 = vmatpush1.msra.mxu0 %v4445
        %4454 = vmatprep.subr.mxu0 0.0
        %4455 = vmatpush1.msra.mxu0 %v4446
        %4456 = vmatprep.subr.mxu0 0.0
        %4457 = vmatpush1.msra.mxu0 %v4447
        %4458 = vmatprep.subr.mxu0 0.0
        %4459 = vmatpush1.msra.mxu0 %v4448
        %4460 = vmatprep.subr.mxu0 0.0
        %4461 = vmatpush1.msra.mxu0 0.0
        %4462 = vmatprep.subr.mxu0 0.0
        %4463 = vmatpush1.msra.mxu0 0.0
        %4464 = vmatprep.subr.mxu0 0.0
        %4465 = vmatpush1.msra.mxu0 0.0
        %4466 = vmatprep.subr.mxu0 0.0
        %4467 = vmatpush1.msra.mxu0 0.0
        %4468 = vmatprep.subr.mxu0 0.0
        %4469 = vmatpush1.msra.mxu0 0.0
        %4470 = vmatprep.subr.mxu0 0.0
        %4471 = vmatpush1.msra.mxu0 0.0
        %4472 = vmatprep.subr.mxu0 0.0
        %4473 = vmatpush1.msra.mxu0 0.0
        %4474 = vmatprep.subr.mxu0 0.0
        %4475 = vmatpush1.msra.mxu0 0.0
        %4476 = vmatprep.subr.mxu0 0.0
        %4477 = vmatpush1.msra.mxu0 0.0
        %4478 = vmatprep.subr.mxu0 0.0
        %4479 = vmatpush1.msra.mxu0 0.0
        %4480 = vmatprep.subr.mxu0 0.0
        %4481 = vmatpush1.msra.mxu0 0.0
        %4482 = vmatprep.subr.mxu0 0.0
        %4483 = vmatpush1.msra.mxu0 0.0
        %4484 = vmatprep.subr.mxu0 0.0
        %4485 = vmatpush1.msra.mxu0 0.0
        %4486 = vmatprep.subr.mxu0 0.0
        %4487 = vmatpush1.msra.mxu0 0.0
        %4488 = vmatprep.subr.mxu0 0.0
        %4489 = vmatpush1.msra.mxu0 0.0
        %4490 = vmatprep.subr.mxu0 0.0
        %4491 = vmatpush1.msra.mxu0 0.0
        %4492 = vmatprep.subr.mxu0 0.0
        %4493 = vmatpush1.msra.mxu0 0.0
        %4494 = vmatprep.subr.mxu0 0.0
        %4495 = vmatpush1.msra.mxu0 0.0
        %4496 = vmatprep.subr.mxu0 0.0
        %4497 = vmatpush1.msra.mxu0 0.0
        %4498 = vmatprep.subr.mxu0 0.0
        %4499 = vmatpush1.msra.mxu0 0.0
        %4500 = vmatprep.subr.mxu0 0.0
        %4501 = vmatpush1.msra.mxu0 0.0
        %4502 = vmatprep.subr.mxu0 0.0
        %4503 = vmatpush1.msra.mxu0 0.0
        %4504 = vmatprep.subr.mxu0 0.0
        %4505 = vmatpush1.msra.mxu0 0.0
        %4506 = vmatprep.subr.mxu0 0.0
        %4507 = vmatpush1.msra.mxu0 0.0
        %4508 = vmatprep.subr.mxu0 0.0
        %4509 = vmatpush1.msra.mxu0 0.0
        %4510 = vmatprep.subr.mxu0 0.0
        %4511 = vmatpush1.msra.mxu0 0.0
        %4512 = vmatprep.subr.mxu0 0.0
        %4513 = vmatpush1.msra.mxu0 0.0
        %4514 = vmatprep.subr.mxu0 0.0
        %4515 = vmatpush1.msra.mxu0 0.0
        %4516 = vmatprep.mubr.f32.mxu0 0.0
        %4517 = vmatmul.mubr.f32.gmra.mrb[0].mxu0 %v4450
        %v4518 = vpop.f32.mrb[0].mxu0
        %v4519 = vadd.f32 0.0, %v4518
        %v4520 = vpop.f32.mrb[0].mxu0
        %4521 = vdwg.mxu0
        %v4522 = vadd.f32 %v4443, %v4519
        %s4523 = scalar_lea.vmem %s18, 96
        %v4524 = vld [vmem:[%s4523] sm:$0xff]
        %v4525 = vld [vmem:[%s4523 + $0x8] sm:$0xff]
        %v4526 = vld [vmem:[%s4523 + $0x10] sm:$0xff]
        %v4527 = vld [vmem:[%s4523 + $0x18] sm:$0xff]
        %v4528 = vrot.slane %v4285, 3
        %v4529 = vsel %vm1261, %v4528, 0
        %4531 = vmatprep.subr.mxu0 0.0
        %4532 = vmatpush1.msra.mxu0 %v4524
        %4533 = vmatprep.subr.mxu0 0.0
        %4534 = vmatpush1.msra.mxu0 %v4525
        %4535 = vmatprep.subr.mxu0 0.0
        %4536 = vmatpush1.msra.mxu0 %v4526
        %4537 = vmatprep.subr.mxu0 0.0
        %4538 = vmatpush1.msra.mxu0 %v4527
        %4539 = vmatprep.subr.mxu0 0.0
        %4540 = vmatpush1.msra.mxu0 0.0
        %4541 = vmatprep.subr.mxu0 0.0
        %4542 = vmatpush1.msra.mxu0 0.0
        %4543 = vmatprep.subr.mxu0 0.0
        %4544 = vmatpush1.msra.mxu0 0.0
        %4545 = vmatprep.subr.mxu0 0.0
        %4546 = vmatpush1.msra.mxu0 0.0
        %4547 = vmatprep.subr.mxu0 0.0
        %4548 = vmatpush1.msra.mxu0 0.0
        %4549 = vmatprep.subr.mxu0 0.0
        %4550 = vmatpush1.msra.mxu0 0.0
        %4551 = vmatprep.subr.mxu0 0.0
        %4552 = vmatpush1.msra.mxu0 0.0
        %4553 = vmatprep.subr.mxu0 0.0
        %4554 = vmatpush1.msra.mxu0 0.0
        %4555 = vmatprep.subr.mxu0 0.0
        %4556 = vmatpush1.msra.mxu0 0.0
        %4557 = vmatprep.subr.mxu0 0.0
        %4558 = vmatpush1.msra.mxu0 0.0
        %4559 = vmatprep.subr.mxu0 0.0
        %4560 = vmatpush1.msra.mxu0 0.0
        %4561 = vmatprep.subr.mxu0 0.0
        %4562 = vmatpush1.msra.mxu0 0.0
        %4563 = vmatprep.subr.mxu0 0.0
        %4564 = vmatpush1.msra.mxu0 0.0
        %4565 = vmatprep.subr.mxu0 0.0
        %4566 = vmatpush1.msra.mxu0 0.0
        %4567 = vmatprep.subr.mxu0 0.0
        %4568 = vmatpush1.msra.mxu0 0.0
        %4569 = vmatprep.subr.mxu0 0.0
        %4570 = vmatpush1.msra.mxu0 0.0
        %4571 = vmatprep.subr.mxu0 0.0
        %4572 = vmatpush1.msra.mxu0 0.0
        %4573 = vmatprep.subr.mxu0 0.0
        %4574 = vmatpush1.msra.mxu0 0.0
        %4575 = vmatprep.subr.mxu0 0.0
        %4576 = vmatpush1.msra.mxu0 0.0
        %4577 = vmatprep.subr.mxu0 0.0
        %4578 = vmatpush1.msra.mxu0 0.0
        %4579 = vmatprep.subr.mxu0 0.0
        %4580 = vmatpush1.msra.mxu0 0.0
        %4581 = vmatprep.subr.mxu0 0.0
        %4582 = vmatpush1.msra.mxu0 0.0
        %4583 = vmatprep.subr.mxu0 0.0
        %4584 = vmatpush1.msra.mxu0 0.0
        %4585 = vmatprep.subr.mxu0 0.0
        %4586 = vmatpush1.msra.mxu0 0.0
        %4587 = vmatprep.subr.mxu0 0.0
        %4588 = vmatpush1.msra.mxu0 0.0
        %4589 = vmatprep.subr.mxu0 0.0
        %4590 = vmatpush1.msra.mxu0 0.0
        %4591 = vmatprep.subr.mxu0 0.0
        %4592 = vmatpush1.msra.mxu0 0.0
        %4593 = vmatprep.subr.mxu0 0.0
        %4594 = vmatpush1.msra.mxu0 0.0
        %4595 = vmatprep.mubr.f32.mxu0 0.0
        %4596 = vmatmul.mubr.f32.gmra.mrb[0].mxu0 %v4529
        %v4597 = vpop.f32.mrb[0].mxu0
        %v4598 = vadd.f32 0.0, %v4597
        %v4599 = vpop.f32.mrb[0].mxu0
        %4600 = vdwg.mxu0
        %v4601 = vadd.f32 %v4522, %v4598
        %s4602 = scalar_lea.vmem %s18, 128
        %v4603 = vld [vmem:[%s4602] sm:$0xff]
        %v4604 = vld [vmem:[%s4602 + $0x8] sm:$0xff]
        %v4605 = vld [vmem:[%s4602 + $0x10] sm:$0xff]
        %v4606 = vld [vmem:[%s4602 + $0x18] sm:$0xff]
        %v4607 = vrot.slane %v4285, 4
        %v4608 = vsel %vm1261, %v4607, 0
        %4610 = vmatprep.subr.mxu0 0.0
        %4611 = vmatpush1.msra.mxu0 %v4603
        %4612 = vmatprep.subr.mxu0 0.0
        %4613 = vmatpush1.msra.mxu0 %v4604
        %4614 = vmatprep.subr.mxu0 0.0
        %4615 = vmatpush1.msra.mxu0 %v4605
        %4616 = vmatprep.subr.mxu0 0.0
        %4617 = vmatpush1.msra.mxu0 %v4606
        %4618 = vmatprep.subr.mxu0 0.0
        %4619 = vmatpush1.msra.mxu0 0.0
        %4620 = vmatprep.subr.mxu0 0.0
        %4621 = vmatpush1.msra.mxu0 0.0
        %4622 = vmatprep.subr.mxu0 0.0
        %4623 = vmatpush1.msra.mxu0 0.0
        %4624 = vmatprep.subr.mxu0 0.0
        %4625 = vmatpush1.msra.mxu0 0.0
        %4626 = vmatprep.subr.mxu0 0.0
        %4627 = vmatpush1.msra.mxu0 0.0
        %4628 = vmatprep.subr.mxu0 0.0
        %4629 = vmatpush1.msra.mxu0 0.0
        %4630 = vmatprep.subr.mxu0 0.0
        %4631 = vmatpush1.msra.mxu0 0.0
        %4632 = vmatprep.subr.mxu0 0.0
        %4633 = vmatpush1.msra.mxu0 0.0
        %4634 = vmatprep.subr.mxu0 0.0
        %4635 = vmatpush1.msra.mxu0 0.0
        %4636 = vmatprep.subr.mxu0 0.0
        %4637 = vmatpush1.msra.mxu0 0.0
        %4638 = vmatprep.subr.mxu0 0.0
        %4639 = vmatpush1.msra.mxu0 0.0
        %4640 = vmatprep.subr.mxu0 0.0
        %4641 = vmatpush1.msra.mxu0 0.0
        %4642 = vmatprep.subr.mxu0 0.0
        %4643 = vmatpush1.msra.mxu0 0.0
        %4644 = vmatprep.subr.mxu0 0.0
        %4645 = vmatpush1.msra.mxu0 0.0
        %4646 = vmatprep.subr.mxu0 0.0
        %4647 = vmatpush1.msra.mxu0 0.0
        %4648 = vmatprep.subr.mxu0 0.0
        %4649 = vmatpush1.msra.mxu0 0.0
        %4650 = vmatprep.subr.mxu0 0.0
        %4651 = vmatpush1.msra.mxu0 0.0
        %4652 = vmatprep.subr.mxu0 0.0
        %4653 = vmatpush1.msra.mxu0 0.0
        %4654 = vmatprep.subr.mxu0 0.0
        %4655 = vmatpush1.msra.mxu0 0.0
        %4656 = vmatprep.subr.mxu0 0.0
        %4657 = vmatpush1.msra.mxu0 0.0
        %4658 = vmatprep.subr.mxu0 0.0
        %4659 = vmatpush1.msra.mxu0 0.0
        %4660 = vmatprep.subr.mxu0 0.0
        %4661 = vmatpush1.msra.mxu0 0.0
        %4662 = vmatprep.subr.mxu0 0.0
        %4663 = vmatpush1.msra.mxu0 0.0
        %4664 = vmatprep.subr.mxu0 0.0
        %4665 = vmatpush1.msra.mxu0 0.0
        %4666 = vmatprep.subr.mxu0 0.0
        %4667 = vmatpush1.msra.mxu0 0.0
        %4668 = vmatprep.subr.mxu0 0.0
        %4669 = vmatpush1.msra.mxu0 0.0
        %4670 = vmatprep.subr.mxu0 0.0
        %4671 = vmatpush1.msra.mxu0 0.0
        %4672 = vmatprep.subr.mxu0 0.0
        %4673 = vmatpush1.msra.mxu0 0.0
        %4674 = vmatprep.mubr.f32.mxu0 0.0
        %4675 = vmatmul.mubr.f32.gmra.mrb[0].mxu0 %v4608
        %v4676 = vpop.f32.mrb[0].mxu0
        %v4677 = vadd.f32 0.0, %v4676
        %v4678 = vpop.f32.mrb[0].mxu0
        %4679 = vdwg.mxu0
        %v4680 = vadd.f32 %v4601, %v4677
        %s4681 = scalar_lea.vmem %s18, 160
        %v4682 = vld [vmem:[%s4681] sm:$0xff]
        %v4683 = vld [vmem:[%s4681 + $0x8] sm:$0xff]
        %v4684 = vld [vmem:[%s4681 + $0x10] sm:$0xff]
        %v4685 = vld [vmem:[%s4681 + $0x18] sm:$0xff]
        %v4686 = vrot.slane %v4285, 5
        %v4687 = vsel %vm1261, %v4686, 0
        %4689 = vmatprep.subr.mxu0 0.0
        %4690 = vmatpush1.msra.mxu0 %v4682
        %4691 = vmatprep.subr.mxu0 0.0
        %4692 = vmatpush1.msra.mxu0 %v4683
        %4693 = vmatprep.subr.mxu0 0.0
        %4694 = vmatpush1.msra.mxu0 %v4684
        %4695 = vmatprep.subr.mxu0 0.0
        %4696 = vmatpush1.msra.mxu0 %v4685
        %4697 = vmatprep.subr.mxu0 0.0
        %4698 = vmatpush1.msra.mxu0 0.0
        %4699 = vmatprep.subr.mxu0 0.0
        %4700 = vmatpush1.msra.mxu0 0.0
        %4701 = vmatprep.subr.mxu0 0.0
        %4702 = vmatpush1.msra.mxu0 0.0
        %4703 = vmatprep.subr.mxu0 0.0
        %4704 = vmatpush1.msra.mxu0 0.0
        %4705 = vmatprep.subr.mxu0 0.0
        %4706 = vmatpush1.msra.mxu0 0.0
        %4707 = vmatprep.subr.mxu0 0.0
        %4708 = vmatpush1.msra.mxu0 0.0
        %4709 = vmatprep.subr.mxu0 0.0
        %4710 = vmatpush1.msra.mxu0 0.0
        %4711 = vmatprep.subr.mxu0 0.0
        %4712 = vmatpush1.msra.mxu0 0.0
        %4713 = vmatprep.subr.mxu0 0.0
        %4714 = vmatpush1.msra.mxu0 0.0
        %4715 = vmatprep.subr.mxu0 0.0
        %4716 = vmatpush1.msra.mxu0 0.0
        %4717 = vmatprep.subr.mxu0 0.0
        %4718 = vmatpush1.msra.mxu0 0.0
        %4719 = vmatprep.subr.mxu0 0.0
        %4720 = vmatpush1.msra.mxu0 0.0
        %4721 = vmatprep.subr.mxu0 0.0
        %4722 = vmatpush1.msra.mxu0 0.0
        %4723 = vmatprep.subr.mxu0 0.0
        %4724 = vmatpush1.msra.mxu0 0.0
        %4725 = vmatprep.subr.mxu0 0.0
        %4726 = vmatpush1.msra.mxu0 0.0
        %4727 = vmatprep.subr.mxu0 0.0
        %4728 = vmatpush1.msra.mxu0 0.0
        %4729 = vmatprep.subr.mxu0 0.0
        %4730 = vmatpush1.msra.mxu0 0.0
        %4731 = vmatprep.subr.mxu0 0.0
        %4732 = vmatpush1.msra.mxu0 0.0
        %4733 = vmatprep.subr.mxu0 0.0
        %4734 = vmatpush1.msra.mxu0 0.0
        %4735 = vmatprep.subr.mxu0 0.0
        %4736 = vmatpush1.msra.mxu0 0.0
        %4737 = vmatprep.subr.mxu0 0.0
        %4738 = vmatpush1.msra.mxu0 0.0
        %4739 = vmatprep.subr.mxu0 0.0
        %4740 = vmatpush1.msra.mxu0 0.0
        %4741 = vmatprep.subr.mxu0 0.0
        %4742 = vmatpush1.msra.mxu0 0.0
        %4743 = vmatprep.subr.mxu0 0.0
        %4744 = vmatpush1.msra.mxu0 0.0
        %4745 = vmatprep.subr.mxu0 0.0
        %4746 = vmatpush1.msra.mxu0 0.0
        %4747 = vmatprep.subr.mxu0 0.0
        %4748 = vmatpush1.msra.mxu0 0.0
        %4749 = vmatprep.subr.mxu0 0.0
        %4750 = vmatpush1.msra.mxu0 0.0
        %4751 = vmatprep.subr.mxu0 0.0
        %4752 = vmatpush1.msra.mxu0 0.0
        %4753 = vmatprep.mubr.f32.mxu0 0.0
        %4754 = vmatmul.mubr.f32.gmra.mrb[0].mxu0 %v4687
        %v4755 = vpop.f32.mrb[0].mxu0
        %v4756 = vadd.f32 0.0, %v4755
        %v4757 = vpop.f32.mrb[0].mxu0
        %4758 = vdwg.mxu0
        %v4759 = vadd.f32 %v4680, %v4756
        %s4760 = scalar_lea.vmem %s18, 192
        %v4761 = vld [vmem:[%s4760] sm:$0xff]
        %v4762 = vld [vmem:[%s4760 + $0x8] sm:$0xff]
        %v4763 = vld [vmem:[%s4760 + $0x10] sm:$0xff]
        %v4764 = vld [vmem:[%s4760 + $0x18] sm:$0xff]
        %v4765 = vrot.slane %v4285, 6
        %v4766 = vsel %vm1261, %v4765, 0
        %4768 = vmatprep.subr.mxu0 0.0
        %4769 = vmatpush1.msra.mxu0 %v4761
        %4770 = vmatprep.subr.mxu0 0.0
        %4771 = vmatpush1.msra.mxu0 %v4762
        %4772 = vmatprep.subr.mxu0 0.0
        %4773 = vmatpush1.msra.mxu0 %v4763
        %4774 = vmatprep.subr.mxu0 0.0
        %4775 = vmatpush1.msra.mxu0 %v4764
        %4776 = vmatprep.subr.mxu0 0.0
        %4777 = vmatpush1.msra.mxu0 0.0
        %4778 = vmatprep.subr.mxu0 0.0
        %4779 = vmatpush1.msra.mxu0 0.0
        %4780 = vmatprep.subr.mxu0 0.0
        %4781 = vmatpush1.msra.mxu0 0.0
        %4782 = vmatprep.subr.mxu0 0.0
        %4783 = vmatpush1.msra.mxu0 0.0
        %4784 = vmatprep.subr.mxu0 0.0
        %4785 = vmatpush1.msra.mxu0 0.0
        %4786 = vmatprep.subr.mxu0 0.0
        %4787 = vmatpush1.msra.mxu0 0.0
        %4788 = vmatprep.subr.mxu0 0.0
        %4789 = vmatpush1.msra.mxu0 0.0
        %4790 = vmatprep.subr.mxu0 0.0
        %4791 = vmatpush1.msra.mxu0 0.0
        %4792 = vmatprep.subr.mxu0 0.0
        %4793 = vmatpush1.msra.mxu0 0.0
        %4794 = vmatprep.subr.mxu0 0.0
        %4795 = vmatpush1.msra.mxu0 0.0
        %4796 = vmatprep.subr.mxu0 0.0
        %4797 = vmatpush1.msra.mxu0 0.0
        %4798 = vmatprep.subr.mxu0 0.0
        %4799 = vmatpush1.msra.mxu0 0.0
        %4800 = vmatprep.subr.mxu0 0.0
        %4801 = vmatpush1.msra.mxu0 0.0
        %4802 = vmatprep.subr.mxu0 0.0
        %4803 = vmatpush1.msra.mxu0 0.0
        %4804 = vmatprep.subr.mxu0 0.0
        %4805 = vmatpush1.msra.mxu0 0.0
        %4806 = vmatprep.subr.mxu0 0.0
        %4807 = vmatpush1.msra.mxu0 0.0
        %4808 = vmatprep.subr.mxu0 0.0
        %4809 = vmatpush1.msra.mxu0 0.0
        %4810 = vmatprep.subr.mxu0 0.0
        %4811 = vmatpush1.msra.mxu0 0.0
        %4812 = vmatprep.subr.mxu0 0.0
        %4813 = vmatpush1.msra.mxu0 0.0
        %4814 = vmatprep.subr.mxu0 0.0
        %4815 = vmatpush1.msra.mxu0 0.0
        %4816 = vmatprep.subr.mxu0 0.0
        %4817 = vmatpush1.msra.mxu0 0.0
        %4818 = vmatprep.subr.mxu0 0.0
        %4819 = vmatpush1.msra.mxu0 0.0
        %4820 = vmatprep.subr.mxu0 0.0
        %4821 = vmatpush1.msra.mxu0 0.0
        %4822 = vmatprep.subr.mxu0 0.0
        %4823 = vmatpush1.msra.mxu0 0.0
        %4824 = vmatprep.subr.mxu0 0.0
        %4825 = vmatpush1.msra.mxu0 0.0
        %4826 = vmatprep.subr.mxu0 0.0
        %4827 = vmatpush1.msra.mxu0 0.0
        %4828 = vmatprep.subr.mxu0 0.0
        %4829 = vmatpush1.msra.mxu0 0.0
        %4830 = vmatprep.subr.mxu0 0.0
        %4831 = vmatpush1.msra.mxu0 0.0
        %4832 = vmatprep.mubr.f32.mxu0 0.0
        %4833 = vmatmul.mubr.f32.gmra.mrb[0].mxu0 %v4766
        %v4834 = vpop.f32.mrb[0].mxu0
        %v4835 = vadd.f32 0.0, %v4834
        %v4836 = vpop.f32.mrb[0].mxu0
        %4837 = vdwg.mxu0
        %v4838 = vadd.f32 %v4759, %v4835
        %s4839 = scalar_lea.vmem %s18, 224
        %v4840 = vld [vmem:[%s4839] sm:$0xff]
        %v4841 = vld [vmem:[%s4839 + $0x8] sm:$0xff]
        %v4842 = vld [vmem:[%s4839 + $0x10] sm:$0xff]
        %v4843 = vld [vmem:[%s4839 + $0x18] sm:$0xff]
        %v4844 = vrot.slane %v4285, 7
        %v4845 = vsel %vm1261, %v4844, 0
        %4847 = vmatprep.subr.mxu0 0.0
        %4848 = vmatpush1.msra.mxu0 %v4840
        %4849 = vmatprep.subr.mxu0 0.0
        %4850 = vmatpush1.msra.mxu0 %v4841
        %4851 = vmatprep.subr.mxu0 0.0
        %4852 = vmatpush1.msra.mxu0 %v4842
        %4853 = vmatprep.subr.mxu0 0.0
        %4854 = vmatpush1.msra.mxu0 %v4843
        %4855 = vmatprep.subr.mxu0 0.0
        %4856 = vmatpush1.msra.mxu0 0.0
        %4857 = vmatprep.subr.mxu0 0.0
        %4858 = vmatpush1.msra.mxu0 0.0
        %4859 = vmatprep.subr.mxu0 0.0
        %4860 = vmatpush1.msra.mxu0 0.0
        %4861 = vmatprep.subr.mxu0 0.0
        %4862 = vmatpush1.msra.mxu0 0.0
        %4863 = vmatprep.subr.mxu0 0.0
        %4864 = vmatpush1.msra.mxu0 0.0
        %4865 = vmatprep.subr.mxu0 0.0
        %4866 = vmatpush1.msra.mxu0 0.0
        %4867 = vmatprep.subr.mxu0 0.0
        %4868 = vmatpush1.msra.mxu0 0.0
        %4869 = vmatprep.subr.mxu0 0.0
        %4870 = vmatpush1.msra.mxu0 0.0
        %4871 = vmatprep.subr.mxu0 0.0
        %4872 = vmatpush1.msra.mxu0 0.0
        %4873 = vmatprep.subr.mxu0 0.0
        %4874 = vmatpush1.msra.mxu0 0.0
        %4875 = vmatprep.subr.mxu0 0.0
        %4876 = vmatpush1.msra.mxu0 0.0
        %4877 = vmatprep.subr.mxu0 0.0
        %4878 = vmatpush1.msra.mxu0 0.0
        %4879 = vmatprep.subr.mxu0 0.0
        %4880 = vmatpush1.msra.mxu0 0.0
        %4881 = vmatprep.subr.mxu0 0.0
        %4882 = vmatpush1.msra.mxu0 0.0
        %4883 = vmatprep.subr.mxu0 0.0
        %4884 = vmatpush1.msra.mxu0 0.0
        %4885 = vmatprep.subr.mxu0 0.0
        %4886 = vmatpush1.msra.mxu0 0.0
        %4887 = vmatprep.subr.mxu0 0.0
        %4888 = vmatpush1.msra.mxu0 0.0
        %4889 = vmatprep.subr.mxu0 0.0
        %4890 = vmatpush1.msra.mxu0 0.0
        %4891 = vmatprep.subr.mxu0 0.0
        %4892 = vmatpush1.msra.mxu0 0.0
        %4893 = vmatprep.subr.mxu0 0.0
        %4894 = vmatpush1.msra.mxu0 0.0
        %4895 = vmatprep.subr.mxu0 0.0
        %4896 = vmatpush1.msra.mxu0 0.0
        %4897 = vmatprep.subr.mxu0 0.0
        %4898 = vmatpush1.msra.mxu0 0.0
        %4899 = vmatprep.subr.mxu0 0.0
        %4900 = vmatpush1.msra.mxu0 0.0
        %4901 = vmatprep.subr.mxu0 0.0
        %4902 = vmatpush1.msra.mxu0 0.0
        %4903 = vmatprep.subr.mxu0 0.0
        %4904 = vmatpush1.msra.mxu0 0.0
        %4905 = vmatprep.subr.mxu0 0.0
        %4906 = vmatpush1.msra.mxu0 0.0
        %4907 = vmatprep.subr.mxu0 0.0
        %4908 = vmatpush1.msra.mxu0 0.0
        %4909 = vmatprep.subr.mxu0 0.0
        %4910 = vmatpush1.msra.mxu0 0.0
        %4911 = vmatprep.mubr.f32.mxu0 0.0
        %4912 = vmatmul.mubr.f32.gmra.mrb[0].mxu0 %v4845
        %v4913 = vpop.f32.mrb[0].mxu0
        %v4914 = vadd.f32 0.0, %v4913
        %v4915 = vpop.f32.mrb[0].mxu0
        %4916 = vdwg.mxu0
        %v4917 = vadd.f32 %v4838, %v4914
        %4918 = vst [vmem:[%s842] sm:$0x1] %v4917
        %s4919 = sand.u32 %s476, 1
        %s4920 = scalar_lea.sflag [#allocation4], %s4919
        %s4921 = sand.u32 %s476, 1
        %s4922 = scalar_lea.vmem [#allocation28], %s4921
        // Predicated region
        $region165: #{model_forward.1} parent=99 // pred_check
          %p4923 = pneg %p486
        $region166: #{model_forward.1} parent=99 // pred_check_branch
          %4925 = sbr.rel (%p4923) target = $region168
        $region167: #{model_forward.1} parent=99 // pred_region
          %s4927 = ssub.s32 16, 16
          %4928 = vsyncadd %s4920, %s4927
          %s4929 = smul.addr %s43, 16
          %s4930 = scalar_lea.hbm %s20, %s4929
          %s4932 = sshll.u32 %s4922, 4
          %s4933 = int_to_ptr.vmem [resolvable:$true] %s4932
          %4935 = dma.vmem_to_hbm [thread:$0]  %s4933, 16, %s4930, %s4920
        $region168: #{model_forward.1} parent=99 // pred_fallthru
          _
      $region100: #{model_forward.1} parent=5 // pred_fallthru
        _
      %p4936 = scmp.le.s32.totalorder 2, %s38
      // Predicated region
      $region169: #{model_forward.1} parent=5 // pred_check
        %p4937 = pneg %p4936
      $region170: #{model_forward.1} parent=5 // pred_check_branch
        %4939 = sbr.rel (%p4937) target = $region172
      $region171: #{model_forward.1} parent=5 // pred_region
        %s4940 = ssub.s32 %s38, 2
        // Predicated region
        $region173: #{model_forward.1} parent=171 // pred_check
          %p4941 = pneg %p492
        $region174: #{model_forward.1} parent=171 // pred_check_branch
          %4943 = sbr.rel (%p4941) target = $region176
        $region175: #{model_forward.1} parent=171 // pred_region
          %s4944 = sand.u32 %s477, 1
          %s4945 = scalar_lea.sflag [#allocation4], %s4944
          %s4946 = sand.u32 %s477, 1
          %s4947 = scalar_lea.vmem [#allocation28], %s4946
          %4948 = dma.done %s4945, 16
        $region176: #{model_forward.1} parent=171 // pred_fallthru
          _
      $region172: #{model_forward.1} parent=5 // pred_fallthru
        _
    $region6: #{model_forward.1} parent=1 // loop_footer
      %s42 = sadd.s32 1, %s38
    $region7: #{model_forward.1} parent=1 // loop_footer_branch
      %37 = sbr.rel target = $region3
    $region8: #{model_forward.1} parent=1 // loop_exit
      _
    %4949 = vsyncpa [#allocation3], 1
    %s4950 = scalar_lea.sflag [#allocation3], 1
    %4951 = vsyncpa %s4950, 1
    %4952 = vsyncpa [#allocation6], 1
    %4953 = vsyncpa [#allocation9], 1
    %4954 = vsyncpa [#allocation12], 1
    %4955 = vsyncpa [#allocation15], 1
    %4956 = vsyncpa [#allocation18], 1
    %4957 = vsyncpa [#allocation21], 1
    %4958 = vsyncpa [#allocation24], 1
    %4959 = vsyncpa [#allocation27], 1
    %4960 = vsyncpa [#allocation4], 1
    %s4961 = scalar_lea.sflag [#allocation4], 1
    %4962 = vsyncpa %s4961, 1

</llo_original>
